<compile_context>
chip_gen: v6e
topology: v6e:2x2x1
jax: 0.10.0
libtpu: 0.0.40
codegen_flags: <defaults>
</compile_context>

<pallas_src>
import functools

import numpy as np
import jax
import jax.numpy as jnp
from jax.experimental import pallas as pl
from jax.experimental.pallas import tpu as pltpu


# (kernel_size, cin, cout) for every conv in forward order (all bias=False)
_CONV_DEFS = [
    (3, 1, 8),    # convblock1
    (3, 8, 8),    # convblock2
    (1, 8, 12),   # convblock3
    (3, 12, 12),  # convblock4 conv a
    (3, 12, 12),  # convblock4 conv b
    (1, 12, 12),  # convblock5
    (3, 12, 12),  # convblock6 conv a
    (3, 12, 12),  # convblock6 conv b
    (3, 12, 10),  # convblock6 conv c
]
_MAX_C = 12


# ---------------------------------------------------------------------------
# In-kernel helpers (all sizes are static Python ints; traced once)
# ---------------------------------------------------------------------------
def _clear(buf):
    buf[...] = jnp.zeros(buf.shape, jnp.float32)


def _conv_relu(in_buf, out_buf, w_ref, k, cin, cout, H, W):
    """k x k 'same' conv (bias=False) + ReLU on a flat (C, H*W) lane layout.

    The input activation sits at lanes [W+1, W+1+H*W) of `in_buf` with zero
    margins, so every conv tap is a static shifted lane-slice; only the
    left/right column wrap needs an explicit mask.
    """
    N = H * W
    pad = W + 1
    taps = ([(dy, dx) for dy in (-1, 0, 1) for dx in (-1, 0, 1)]
            if k == 3 else [(0, 0)])
    col = (jax.lax.broadcasted_iota(jnp.int32, (1, N), 1) % W) if k == 3 else None

    acc = jnp.zeros((cout, N), jnp.float32)
    for t, (dy, dx) in enumerate(taps):
        xs = in_buf[pl.ds(0, cin), pl.ds(pad + dy * W + dx, N)]    # (cin, N)
        if dx == -1:            # source column w-1 is padding at w == 0
            xs = jnp.where(col >= 1, xs, 0.0)
        elif dx == 1:           # source column w+1 is padding at w == W-1
            xs = jnp.where(col <= W - 2, xs, 0.0)
        wt = w_ref[t]                                              # (cout, cin)
        if cin == 1:
            acc = acc + wt * xs                                    # VPU outer product
        else:
            acc = acc + jnp.dot(wt, xs, preferred_element_type=jnp.float32)

    _clear(out_buf)                                                # keep margins zero
    out_buf[pl.ds(0, cout), pl.ds(pad, N)] = jnp.maximum(acc, 0.0)


def _maxpool_2x2(in_buf, out_buf, sel_ref, C, H, W):
    """2x2 / stride-2 max pool (assumes even H, W, as in the 16x16 model)."""
    N, pad = H * W, W + 1
    Ho, Wo = H // 2, W // 2
    No, pad_o = Ho * Wo, Wo + 1
    a = in_buf[pl.ds(0, C), pl.ds(pad, N)]
    b = in_buf[pl.ds(0, C), pl.ds(pad + 1, N)]
    c = in_buf[pl.ds(0, C), pl.ds(pad + W, N)]
    d = in_buf[pl.ds(0, C), pl.ds(pad + W + 1, N)]
    m = jnp.maximum(jnp.maximum(a, b), jnp.maximum(c, d))          # (C, N)
    # Compaction of even-row/even-col positions via one-hot selection matmul.
    pooled = jnp.dot(m, sel_ref[...], preferred_element_type=jnp.float32)
    _clear(out_buf)
    out_buf[pl.ds(0, C), pl.ds(pad_o, No)] = pooled


def _gap_log_softmax(in_buf, o_ref, C, H, W):
    N, pad = H * W, W + 1
    x = in_buf[pl.ds(0, C), pl.ds(pad, N)]                         # (C, N)
    avg = jnp.full((1, N), 1.0 / N, dtype=jnp.float32)
    # (1, N) contracted with (C, N) on the spatial dim -> (1, C) on lanes.
    g = jax.lax.dot_general(avg, x, (((1,), (1,)), ((), ())),
                            preferred_element_type=jnp.float32)
    mx = jnp.max(g, axis=-1, keepdims=True)
    z = g - mx
    lse = jnp.log(jnp.sum(jnp.exp(z), axis=-1, keepdims=True))
    o_ref[0] = (z - lse).astype(o_ref.dtype)


def _fused_cnn_kernel(x_ref, w1, w2, w3, w4a, w4b, w5, w6a, w6b, w6c,
                      sel1_ref, sel2_ref, o_ref, buf_a, buf_b, *, H0, W0):
    H1, W1 = H0 // 2, W0 // 2
    H2, W2 = H1 // 2, W1 // 2

    # Stage the single-channel input into padded buffer A.
    _clear(buf_a)
    buf_a[pl.ds(0, 1), pl.ds(W0 + 1, H0 * W0)] = x_ref[0]

    _conv_relu(buf_a, buf_b, w1, 3, 1, 8, H0, W0)       # convblock1
    _conv_relu(buf_b, buf_a, w2, 3, 8, 8, H0, W0)       # convblock2
    _maxpool_2x2(buf_a, buf_b, sel1_ref, 8, H0, W0)     # pool1
    _conv_relu(buf_b, buf_a, w3, 1, 8, 12, H1, W1)      # convblock3
    _conv_relu(buf_a, buf_b, w4a, 3, 12, 12, H1, W1)    # convblock4 a
    _conv_relu(buf_b, buf_a, w4b, 3, 12, 12, H1, W1)    # convblock4 b
    _maxpool_2x2(buf_a, buf_b, sel2_ref, 12, H1, W1)    # pool2
    _conv_relu(buf_b, buf_a, w5, 1, 12, 12, H2, W2)     # convblock5
    _conv_relu(buf_a, buf_b, w6a, 3, 12, 12, H2, W2)    # convblock6 a
    _conv_relu(buf_b, buf_a, w6b, 3, 12, 12, H2, W2)    # convblock6 b
    _conv_relu(buf_a, buf_b, w6c, 3, 12, 10, H2, W2)    # convblock6 c
    _gap_log_softmax(buf_b, o_ref, 10, H2, W2)          # GAP + log_softmax


# ---------------------------------------------------------------------------
# Host-side parameter handling / wrappers
# ---------------------------------------------------------------------------
def init_params(seed=42):
    """Weights in PyTorch layout (cout, cin, k, k); bias=False everywhere."""
    key = jax.random.PRNGKey(seed)
    params = []
    for (k, cin, cout) in _CONV_DEFS:
        key, sub = jax.random.split(key)
        fan_in = k * k * cin
        w = jax.random.normal(sub, (cout, cin, k, k), jnp.float32) * np.sqrt(2.0 / fan_in)
        params.append(w)
    return params


def pack_params(params):
    """(cout, cin, k, k) -> (k*k, cout, cin); tap t = (kh)*k + kw (done once)."""
    packed = []
    for w in params:
        cout, cin, k, _ = w.shape
        packed.append(jnp.transpose(w, (2, 3, 0, 1)).reshape(k * k, cout, cin))
    return packed


def _pool_selector(H, W):
    """One-hot (H*W, H*W/4) matrix selecting the top-left element of every 2x2 window."""
    Ho, Wo = H // 2, W // 2
    s = np.zeros((H * W, Ho * Wo), np.float32)
    for ho in range(Ho):
        for wo in range(Wo):
            s[(2 * ho) * W + 2 * wo, ho * Wo + wo] = 1.0
    return s


@jax.jit
def forward(x_nchw, packed_weights):
    B, cin, H0, W0 = x_nchw.shape
    assert cin == 1 and H0 % 4 == 0 and W0 % 4 == 0
    N0 = H0 * W0
    buf_w = N0 + 2 * (W0 + 1)                    # flat feature map + zero margins

    x_flat = x_nchw.astype(jnp.float32).reshape(B, 1, N0)   # NCHW -> (B, C, H*W)
    sel1 = jnp.asarray(_pool_selector(H0, W0))
    sel2 = jnp.asarray(_pool_selector(H0 // 2, W0 // 2))

    def full(shape):
        return pl.BlockSpec(shape, lambda b, _s=len(shape): (0,) * _s)

    in_specs = [pl.BlockSpec((1, 1, N0), lambda b: (b, 0, 0))]
    in_specs += [full(tuple(w.shape)) for w in packed_weights]
    in_specs += [full(tuple(sel1.shape)), full(tuple(sel2.shape))]

    out = pl.pallas_call(
        functools.partial(_fused_cnn_kernel, H0=H0, W0=W0),
        out_shape=jax.ShapeDtypeStruct((B, 1, 10), jnp.float32),
        grid=(B,),
        in_specs=in_specs,
        out_specs=pl.BlockSpec((1, 1, 10), lambda b: (b, 0, 0)),
        scratch_shapes=[pltpu.VMEM((_MAX_C, buf_w), jnp.float32),
                        pltpu.VMEM((_MAX_C, buf_w), jnp.float32)],
        compiler_params=pltpu.CompilerParams(
            dimension_semantics=("parallel",)),
    )(x_flat, *packed_weights, sel1, sel2)
    return out.reshape(B, 10)


# ---------------------------------------------------------------------------
# Pure-JAX reference (mirrors the PyTorch module) for validation
# ---------------------------------------------------------------------------
def reference_forward(x, params):
    def conv(h, w, p):
        return jax.lax.conv_general_dilated(
            h, w, window_strides=(1, 1), padding=[(p, p), (p, p)],
            dimension_numbers=("NCHW", "OIHW", "NCHW"),
            precision=jax.lax.Precision.HIGHEST)

    def pool(h):
        return jax.lax.reduce_window(h, -jnp.inf, jax.lax.max,
                                     (1, 1, 2, 2), (1, 1, 2, 2), "VALID")

    h = x.astype(jnp.float32)
    h = jax.nn.relu(conv(h, params[0], 1))   # convblock1
    h = jax.nn.relu(conv(h, params[1], 1))   # convblock2
    h = pool(h)                              # pool1
    h = jax.nn.relu(conv(h, params[2], 0))   # convblock3
    h = jax.nn.relu(conv(h, params[3], 1))   # convblock4 a
    h = jax.nn.relu(conv(h, params[4], 1))   # convblock4 b
    h = pool(h)                              # pool2
    h = jax.nn.relu(conv(h, params[5], 0))   # convblock5
    h = jax.nn.relu(conv(h, params[6], 1))   # convblock6 a
    h = jax.nn.relu(conv(h, params[7], 1))   # convblock6 b
    h = jax.nn.relu(conv(h, params[8], 1))   # convblock6 c
    g = jnp.mean(h, axis=(2, 3))             # GAP
    return jax.nn.log_softmax(g, axis=-1)


# ---------------------------------------------------------------------------
if __name__ == "__main__":
    params = init_params(seed=42)
    packed = pack_params(params)

    key = jax.random.PRNGKey(0)
    x = jax.random.normal(key, (2, 1, 16, 16), jnp.float32)

    out = jax.block_until_ready(forward(x, packed))

    assert out.shape == (2, 10), out.shape
    assert bool(jnp.all(jnp.isfinite(out)))
    # log_softmax rows must exponentiate-sum to 1
    assert bool(jnp.allclose(jnp.sum(jnp.exp(out), axis=-1), 1.0, atol=1e-4))

    # numerical check against the XLA reference (loose tol for MXU precision)
    ref = reference_forward(x, params)
    assert bool(jnp.allclose(out, ref, atol=5e-2)), (out, ref)

    print("KERNEL_OK")
</pallas_src>

<mosaic_0001>
module attributes {stable_mosaic.version = 11 : i64} {
  func.func @_fused_cnn_kernel(%arg0: i32, %arg1: memref<1x1x256xf32, #tpu.memory_space<vmem>>, %arg2: memref<9x8x1xf32, #tpu.memory_space<vmem>>, %arg3: memref<9x8x8xf32, #tpu.memory_space<vmem>>, %arg4: memref<1x12x8xf32, #tpu.memory_space<vmem>>, %arg5: memref<9x12x12xf32, #tpu.memory_space<vmem>>, %arg6: memref<9x12x12xf32, #tpu.memory_space<vmem>>, %arg7: memref<1x12x12xf32, #tpu.memory_space<vmem>>, %arg8: memref<9x12x12xf32, #tpu.memory_space<vmem>>, %arg9: memref<9x12x12xf32, #tpu.memory_space<vmem>>, %arg10: memref<9x10x12xf32, #tpu.memory_space<vmem>>, %arg11: memref<256x64xf32, #tpu.memory_space<vmem>>, %arg12: memref<64x16xf32, #tpu.memory_space<vmem>>, %arg13: memref<1x1x10xf32, #tpu.memory_space<vmem>>, %arg14: memref<12x290xf32, #tpu.memory_space<vmem>>, %arg15: memref<12x290xf32, #tpu.memory_space<vmem>>) attributes {dimension_semantics = [#tpu.dimension_semantics<parallel>], iteration_bounds = array<i64: 2>, scalar_prefetch = 0 : i64, scratch_operands = 2 : i64, tpu.core_type = #tpu.core_type<tc>, window_params = [{transform_indices = @transform_0, window_bounds = array<i64: 1, 1, 256>}, {pipeline_mode = #tpu.pipeline_mode<synchronous>, transform_indices = @transform_1, window_bounds = array<i64: 9, 8, 1>}, {pipeline_mode = #tpu.pipeline_mode<synchronous>, transform_indices = @transform_2, window_bounds = array<i64: 9, 8, 8>}, {pipeline_mode = #tpu.pipeline_mode<synchronous>, transform_indices = @transform_3, window_bounds = array<i64: 1, 12, 8>}, {pipeline_mode = #tpu.pipeline_mode<synchronous>, transform_indices = @transform_4, window_bounds = array<i64: 9, 12, 12>}, {pipeline_mode = #tpu.pipeline_mode<synchronous>, transform_indices = @transform_5, window_bounds = array<i64: 9, 12, 12>}, {pipeline_mode = #tpu.pipeline_mode<synchronous>, transform_indices = @transform_6, window_bounds = array<i64: 1, 12, 12>}, {pipeline_mode = #tpu.pipeline_mode<synchronous>, transform_indices = @transform_7, window_bounds = array<i64: 9, 12, 12>}, {pipeline_mode = #tpu.pipeline_mode<synchronous>, transform_indices = @transform_8, window_bounds = array<i64: 9, 12, 12>}, {pipeline_mode = #tpu.pipeline_mode<synchronous>, transform_indices = @transform_9, window_bounds = array<i64: 9, 10, 12>}, {pipeline_mode = #tpu.pipeline_mode<synchronous>, transform_indices = @transform_10, window_bounds = array<i64: 256, 64>}, {pipeline_mode = #tpu.pipeline_mode<synchronous>, transform_indices = @transform_11, window_bounds = array<i64: 64, 16>}, {transform_indices = @transform_12, window_bounds = array<i64: 1, 1, 10>}]} {
    %cst = arith.constant 0.000000e+00 : f32
    %0 = vector.broadcast %cst : f32 to vector<12x290xf32>
    %c0 = arith.constant 0 : index
    %c0_0 = arith.constant 0 : index
    %1 = vector.load %arg14[%c0, %c0_0] : memref<12x290xf32, #tpu.memory_space<vmem>>, vector<12x290xf32>
    tpu.vector_store %arg14[%c0, %c0_0], %0 {strides = array<i32>} : memref<12x290xf32, #tpu.memory_space<vmem>>, vector<12x290xf32>,
    %c0_1 = arith.constant 0 : index
    %c0_2 = arith.constant 0 : index
    %c0_3 = arith.constant 0 : index
    %2 = vector.load %arg1[%c0_1, %c0_2, %c0_3] : memref<1x1x256xf32, #tpu.memory_space<vmem>>, vector<1x1x256xf32>
    %3 = vector.shape_cast %2 : vector<1x1x256xf32> to vector<1x256xf32>
    %c0_4 = arith.constant 0 : index
    %c17 = arith.constant 17 : index
    %4 = vector.load %arg14[%c0_4, %c17] : memref<12x290xf32, #tpu.memory_space<vmem>>, vector<1x256xf32>
    tpu.vector_store %arg14[%c0_4, %c17], %3 {strides = array<i32>} : memref<12x290xf32, #tpu.memory_space<vmem>>, vector<1x256xf32>,
    %5 = tpu.iota {dimensions = array<i32: 1>} : vector<1x256xi32>
    %c16_i32 = arith.constant 16 : i32
    %c0_i32 = arith.constant 0 : i32
    %6 = arith.cmpi eq, %c16_i32, %c0_i32 : i32
    %c1_i32 = arith.constant 1 : i32
    %7 = arith.select %6, %c1_i32, %c16_i32 : i32
    %8 = vector.broadcast %7 : i32 to vector<1x256xi32>
    %9 = arith.remsi %5, %8 : vector<1x256xi32>
    %c0_i32_5 = arith.constant 0 : i32
    %10 = vector.broadcast %c0_i32_5 : i32 to vector<1x256xi32>
    %11 = arith.cmpi ne, %9, %10 : vector<1x256xi32>
    %c0_i32_6 = arith.constant 0 : i32
    %12 = vector.broadcast %c0_i32_6 : i32 to vector<1x256xi32>
    %13 = arith.cmpi slt, %9, %12 : vector<1x256xi32>
    %c0_i32_7 = arith.constant 0 : i32
    %14 = arith.cmpi slt, %7, %c0_i32_7 : i32
    %15 = vector.broadcast %14 : i1 to vector<1x256xi1>
    %16 = vector.broadcast %15 : vector<1x256xi1> to vector<1x256xi1>
    %17 = arith.xori %13, %16 : vector<1x256xi1>
    %18 = arith.andi %17, %11 : vector<1x256xi1>
    %19 = vector.broadcast %7 : i32 to vector<1x256xi32>
    %20 = arith.addi %9, %19 : vector<1x256xi32>
    %21 = arith.select %18, %20, %9 : vector<1x256xi1>, vector<1x256xi32>
    %cst_8 = arith.constant 0.000000e+00 : f32
    %22 = vector.broadcast %cst_8 : f32 to vector<8x256xf32>
    %c0_9 = arith.constant 0 : index
    %c0_10 = arith.constant 0 : index
    %23 = vector.load %arg14[%c0_9, %c0_10] : memref<12x290xf32, #tpu.memory_space<vmem>>, vector<1x256xf32>
    %c1_i32_11 = arith.constant 1 : i32
    %24 = vector.broadcast %c1_i32_11 : i32 to vector<1x256xi32>
    %25 = arith.cmpi sge, %21, %24 : vector<1x256xi32>
    %cst_12 = arith.constant 0.000000e+00 : f32
    %26 = vector.broadcast %cst_12 : f32 to vector<1x256xf32>
    %27 = arith.select %25, %23, %26 : vector<1x256xi1>, vector<1x256xf32>
    %c0_13 = arith.constant 0 : index
    %c0_14 = arith.constant 0 : index
    %c0_15 = arith.constant 0 : index
    %28 = vector.load %arg2[%c0_13, %c0_14, %c0_15] : memref<9x8x1xf32, #tpu.memory_space<vmem>>, vector<1x8x1xf32>
    %29 = vector.shape_cast %28 : vector<1x8x1xf32> to vector<8x1xf32>
    %30 = vector.broadcast %29 : vector<8x1xf32> to vector<8x256xf32>
    %31 = vector.broadcast %27 : vector<1x256xf32> to vector<8x256xf32>
    %32 = arith.mulf %30, %31 : vector<8x256xf32>
    %33 = arith.addf %22, %32 : vector<8x256xf32>
    %c0_16 = arith.constant 0 : index
    %c1 = arith.constant 1 : index
    %34 = vector.load %arg14[%c0_16, %c1] : memref<12x290xf32, #tpu.memory_space<vmem>>, vector<1x256xf32>
    %c1_17 = arith.constant 1 : index
    %c0_18 = arith.constant 0 : index
    %c0_19 = arith.constant 0 : index
    %35 = vector.load %arg2[%c1_17, %c0_18, %c0_19] : memref<9x8x1xf32, #tpu.memory_space<vmem>>, vector<1x8x1xf32>
    %36 = vector.shape_cast %35 : vector<1x8x1xf32> to vector<8x1xf32>
    %37 = vector.broadcast %36 : vector<8x1xf32> to vector<8x256xf32>
    %38 = vector.broadcast %34 : vector<1x256xf32> to vector<8x256xf32>
    %39 = arith.mulf %37, %38 : vector<8x256xf32>
    %40 = arith.addf %33, %39 : vector<8x256xf32>
    %c0_20 = arith.constant 0 : index
    %c2 = arith.constant 2 : index
    %41 = vector.load %arg14[%c0_20, %c2] : memref<12x290xf32, #tpu.memory_space<vmem>>, vector<1x256xf32>
    %c14_i32 = arith.constant 14 : i32
    %42 = vector.broadcast %c14_i32 : i32 to vector<1x256xi32>
    %43 = arith.cmpi sle, %21, %42 : vector<1x256xi32>
    %cst_21 = arith.constant 0.000000e+00 : f32
    %44 = vector.broadcast %cst_21 : f32 to vector<1x256xf32>
    %45 = arith.select %43, %41, %44 : vector<1x256xi1>, vector<1x256xf32>
    %c2_22 = arith.constant 2 : index
    %c0_23 = arith.constant 0 : index
    %c0_24 = arith.constant 0 : index
    %46 = vector.load %arg2[%c2_22, %c0_23, %c0_24] : memref<9x8x1xf32, #tpu.memory_space<vmem>>, vector<1x8x1xf32>
    %47 = vector.shape_cast %46 : vector<1x8x1xf32> to vector<8x1xf32>
    %48 = vector.broadcast %47 : vector<8x1xf32> to vector<8x256xf32>
    %49 = vector.broadcast %45 : vector<1x256xf32> to vector<8x256xf32>
    %50 = arith.mulf %48, %49 : vector<8x256xf32>
    %51 = arith.addf %40, %50 : vector<8x256xf32>
    %c0_25 = arith.constant 0 : index
    %c16 = arith.constant 16 : index
    %52 = vector.load %arg14[%c0_25, %c16] : memref<12x290xf32, #tpu.memory_space<vmem>>, vector<1x256xf32>
    %c1_i32_26 = arith.constant 1 : i32
    %53 = vector.broadcast %c1_i32_26 : i32 to vector<1x256xi32>
    %54 = arith.cmpi sge, %21, %53 : vector<1x256xi32>
    %cst_27 = arith.constant 0.000000e+00 : f32
    %55 = vector.broadcast %cst_27 : f32 to vector<1x256xf32>
    %56 = arith.select %54, %52, %55 : vector<1x256xi1>, vector<1x256xf32>
    %c3 = arith.constant 3 : index
    %c0_28 = arith.constant 0 : index
    %c0_29 = arith.constant 0 : index
    %57 = vector.load %arg2[%c3, %c0_28, %c0_29] : memref<9x8x1xf32, #tpu.memory_space<vmem>>, vector<1x8x1xf32>
    %58 = vector.shape_cast %57 : vector<1x8x1xf32> to vector<8x1xf32>
    %59 = vector.broadcast %58 : vector<8x1xf32> to vector<8x256xf32>
    %60 = vector.broadcast %56 : vector<1x256xf32> to vector<8x256xf32>
    %61 = arith.mulf %59, %60 : vector<8x256xf32>
    %62 = arith.addf %51, %61 : vector<8x256xf32>
    %c0_30 = arith.constant 0 : index
    %c17_31 = arith.constant 17 : index
    %63 = vector.load %arg14[%c0_30, %c17_31] : memref<12x290xf32, #tpu.memory_space<vmem>>, vector<1x256xf32>
    %c4 = arith.constant 4 : index
    %c0_32 = arith.constant 0 : index
    %c0_33 = arith.constant 0 : index
    %64 = vector.load %arg2[%c4, %c0_32, %c0_33] : memref<9x8x1xf32, #tpu.memory_space<vmem>>, vector<1x8x1xf32>
    %65 = vector.shape_cast %64 : vector<1x8x1xf32> to vector<8x1xf32>
    %66 = vector.broadcast %65 : vector<8x1xf32> to vector<8x256xf32>
    %67 = vector.broadcast %63 : vector<1x256xf32> to vector<8x256xf32>
    %68 = arith.mulf %66, %67 : vector<8x256xf32>
    %69 = arith.addf %62, %68 : vector<8x256xf32>
    %c0_34 = arith.constant 0 : index
    %c18 = arith.constant 18 : index
    %70 = vector.load %arg14[%c0_34, %c18] : memref<12x290xf32, #tpu.memory_space<vmem>>, vector<1x256xf32>
    %c14_i32_35 = arith.constant 14 : i32
    %71 = vector.broadcast %c14_i32_35 : i32 to vector<1x256xi32>
    %72 = arith.cmpi sle, %21, %71 : vector<1x256xi32>
    %cst_36 = arith.constant 0.000000e+00 : f32
    %73 = vector.broadcast %cst_36 : f32 to vector<1x256xf32>
    %74 = arith.select %72, %70, %73 : vector<1x256xi1>, vector<1x256xf32>
    %c5 = arith.constant 5 : index
    %c0_37 = arith.constant 0 : index
    %c0_38 = arith.constant 0 : index
    %75 = vector.load %arg2[%c5, %c0_37, %c0_38] : memref<9x8x1xf32, #tpu.memory_space<vmem>>, vector<1x8x1xf32>
    %76 = vector.shape_cast %75 : vector<1x8x1xf32> to vector<8x1xf32>
    %77 = vector.broadcast %76 : vector<8x1xf32> to vector<8x256xf32>
    %78 = vector.broadcast %74 : vector<1x256xf32> to vector<8x256xf32>
    %79 = arith.mulf %77, %78 : vector<8x256xf32>
    %80 = arith.addf %69, %79 : vector<8x256xf32>
    %c0_39 = arith.constant 0 : index
    %c32 = arith.constant 32 : index
    %81 = vector.load %arg14[%c0_39, %c32] : memref<12x290xf32, #tpu.memory_space<vmem>>, vector<1x256xf32>
    %c1_i32_40 = arith.constant 1 : i32
    %82 = vector.broadcast %c1_i32_40 : i32 to vector<1x256xi32>
    %83 = arith.cmpi sge, %21, %82 : vector<1x256xi32>
    %cst_41 = arith.constant 0.000000e+00 : f32
    %84 = vector.broadcast %cst_41 : f32 to vector<1x256xf32>
    %85 = arith.select %83, %81, %84 : vector<1x256xi1>, vector<1x256xf32>
    %c6 = arith.constant 6 : index
    %c0_42 = arith.constant 0 : index
    %c0_43 = arith.constant 0 : index
    %86 = vector.load %arg2[%c6, %c0_42, %c0_43] : memref<9x8x1xf32, #tpu.memory_space<vmem>>, vector<1x8x1xf32>
    %87 = vector.shape_cast %86 : vector<1x8x1xf32> to vector<8x1xf32>
    %88 = vector.broadcast %87 : vector<8x1xf32> to vector<8x256xf32>
    %89 = vector.broadcast %85 : vector<1x256xf32> to vector<8x256xf32>
    %90 = arith.mulf %88, %89 : vector<8x256xf32>
    %91 = arith.addf %80, %90 : vector<8x256xf32>
    %c0_44 = arith.constant 0 : index
    %c33 = arith.constant 33 : index
    %92 = vector.load %arg14[%c0_44, %c33] : memref<12x290xf32, #tpu.memory_space<vmem>>, vector<1x256xf32>
    %c7 = arith.constant 7 : index
    %c0_45 = arith.constant 0 : index
    %c0_46 = arith.constant 0 : index
    %93 = vector.load %arg2[%c7, %c0_45, %c0_46] : memref<9x8x1xf32, #tpu.memory_space<vmem>>, vector<1x8x1xf32>
    %94 = vector.shape_cast %93 : vector<1x8x1xf32> to vector<8x1xf32>
    %95 = vector.broadcast %94 : vector<8x1xf32> to vector<8x256xf32>
    %96 = vector.broadcast %92 : vector<1x256xf32> to vector<8x256xf32>
    %97 = arith.mulf %95, %96 : vector<8x256xf32>
    %98 = arith.addf %91, %97 : vector<8x256xf32>
    %c0_47 = arith.constant 0 : index
    %c34 = arith.constant 34 : index
    %99 = vector.load %arg14[%c0_47, %c34] : memref<12x290xf32, #tpu.memory_space<vmem>>, vector<1x256xf32>
    %c14_i32_48 = arith.constant 14 : i32
    %100 = vector.broadcast %c14_i32_48 : i32 to vector<1x256xi32>
    %101 = arith.cmpi sle, %21, %100 : vector<1x256xi32>
    %cst_49 = arith.constant 0.000000e+00 : f32
    %102 = vector.broadcast %cst_49 : f32 to vector<1x256xf32>
    %103 = arith.select %101, %99, %102 : vector<1x256xi1>, vector<1x256xf32>
    %c8 = arith.constant 8 : index
    %c0_50 = arith.constant 0 : index
    %c0_51 = arith.constant 0 : index
    %104 = vector.load %arg2[%c8, %c0_50, %c0_51] : memref<9x8x1xf32, #tpu.memory_space<vmem>>, vector<1x8x1xf32>
    %105 = vector.shape_cast %104 : vector<1x8x1xf32> to vector<8x1xf32>
    %106 = vector.broadcast %105 : vector<8x1xf32> to vector<8x256xf32>
    %107 = vector.broadcast %103 : vector<1x256xf32> to vector<8x256xf32>
    %108 = arith.mulf %106, %107 : vector<8x256xf32>
    %109 = arith.addf %98, %108 : vector<8x256xf32>
    %cst_52 = arith.constant 0.000000e+00 : f32
    %110 = vector.broadcast %cst_52 : f32 to vector<12x290xf32>
    %c0_53 = arith.constant 0 : index
    %c0_54 = arith.constant 0 : index
    %111 = vector.load %arg15[%c0_53, %c0_54] : memref<12x290xf32, #tpu.memory_space<vmem>>, vector<12x290xf32>
    tpu.vector_store %arg15[%c0_53, %c0_54], %110 {strides = array<i32>} : memref<12x290xf32, #tpu.memory_space<vmem>>, vector<12x290xf32>,
    %cst_55 = arith.constant 0.000000e+00 : f32
    %112 = vector.broadcast %cst_55 : f32 to vector<8x256xf32>
    %113 = arith.maximumf %109, %112 : vector<8x256xf32>
    %c0_56 = arith.constant 0 : index
    %c17_57 = arith.constant 17 : index
    %114 = vector.load %arg15[%c0_56, %c17_57] : memref<12x290xf32, #tpu.memory_space<vmem>>, vector<8x256xf32>
    tpu.vector_store %arg15[%c0_56, %c17_57], %113 {strides = array<i32>} : memref<12x290xf32, #tpu.memory_space<vmem>>, vector<8x256xf32>,
    %115 = tpu.iota {dimensions = array<i32: 1>} : vector<1x256xi32>
    %c16_i32_58 = arith.constant 16 : i32
    %c0_i32_59 = arith.constant 0 : i32
    %116 = arith.cmpi eq, %c16_i32_58, %c0_i32_59 : i32
    %c1_i32_60 = arith.constant 1 : i32
    %117 = arith.select %116, %c1_i32_60, %c16_i32_58 : i32
    %118 = vector.broadcast %117 : i32 to vector<1x256xi32>
    %119 = arith.remsi %115, %118 : vector<1x256xi32>
    %c0_i32_61 = arith.constant 0 : i32
    %120 = vector.broadcast %c0_i32_61 : i32 to vector<1x256xi32>
    %121 = arith.cmpi ne, %119, %120 : vector<1x256xi32>
    %c0_i32_62 = arith.constant 0 : i32
    %122 = vector.broadcast %c0_i32_62 : i32 to vector<1x256xi32>
    %123 = arith.cmpi slt, %119, %122 : vector<1x256xi32>
    %c0_i32_63 = arith.constant 0 : i32
    %124 = arith.cmpi slt, %117, %c0_i32_63 : i32
    %125 = vector.broadcast %124 : i1 to vector<1x256xi1>
    %126 = vector.broadcast %125 : vector<1x256xi1> to vector<1x256xi1>
    %127 = arith.xori %123, %126 : vector<1x256xi1>
    %128 = arith.andi %127, %121 : vector<1x256xi1>
    %129 = vector.broadcast %117 : i32 to vector<1x256xi32>
    %130 = arith.addi %119, %129 : vector<1x256xi32>
    %131 = arith.select %128, %130, %119 : vector<1x256xi1>, vector<1x256xi32>
    %cst_64 = arith.constant 0.000000e+00 : f32
    %132 = vector.broadcast %cst_64 : f32 to vector<8x256xf32>
    %c0_65 = arith.constant 0 : index
    %c0_66 = arith.constant 0 : index
    %133 = vector.load %arg15[%c0_65, %c0_66] : memref<12x290xf32, #tpu.memory_space<vmem>>, vector<8x256xf32>
    %c1_i32_67 = arith.constant 1 : i32
    %134 = vector.broadcast %c1_i32_67 : i32 to vector<1x256xi32>
    %135 = arith.cmpi sge, %131, %134 : vector<1x256xi32>
    %cst_68 = arith.constant 0.000000e+00 : f32
    %136 = vector.shape_cast %135 : vector<1x256xi1> to vector<1x256xi1>
    %137 = vector.broadcast %136 : vector<1x256xi1> to vector<8x256xi1>
    %138 = vector.broadcast %cst_68 : f32 to vector<8x256xf32>
    %139 = arith.select %137, %133, %138 : vector<8x256xi1>, vector<8x256xf32>
    %c0_69 = arith.constant 0 : index
    %c0_70 = arith.constant 0 : index
    %c0_71 = arith.constant 0 : index
    %140 = vector.load %arg3[%c0_69, %c0_70, %c0_71] : memref<9x8x8xf32, #tpu.memory_space<vmem>>, vector<1x8x8xf32>
    %141 = vector.shape_cast %140 : vector<1x8x8xf32> to vector<8x8xf32>
    %cst_72 = arith.constant dense<0.000000e+00> : vector<8x256xf32>
    %142 = tpu.matmul %141, %139, %cst_72 {dimension_numbers = #tpu.dot_dimension_numbers<[1], [0], [0], [1], [0, 0, 1, 1], [], []>} : vector<8x8xf32>, vector<8x256xf32>, vector<8x256xf32> -> vector<8x256xf32>
    %143 = arith.addf %132, %142 : vector<8x256xf32>
    %c0_73 = arith.constant 0 : index
    %c1_74 = arith.constant 1 : index
    %144 = vector.load %arg15[%c0_73, %c1_74] : memref<12x290xf32, #tpu.memory_space<vmem>>, vector<8x256xf32>
    %c1_75 = arith.constant 1 : index
    %c0_76 = arith.constant 0 : index
    %c0_77 = arith.constant 0 : index
    %145 = vector.load %arg3[%c1_75, %c0_76, %c0_77] : memref<9x8x8xf32, #tpu.memory_space<vmem>>, vector<1x8x8xf32>
    %146 = vector.shape_cast %145 : vector<1x8x8xf32> to vector<8x8xf32>
    %cst_78 = arith.constant dense<0.000000e+00> : vector<8x256xf32>
    %147 = tpu.matmul %146, %144, %cst_78 {dimension_numbers = #tpu.dot_dimension_numbers<[1], [0], [0], [1], [0, 0, 1, 1], [], []>} : vector<8x8xf32>, vector<8x256xf32>, vector<8x256xf32> -> vector<8x256xf32>
    %148 = arith.addf %143, %147 : vector<8x256xf32>
    %c0_79 = arith.constant 0 : index
    %c2_80 = arith.constant 2 : index
    %149 = vector.load %arg15[%c0_79, %c2_80] : memref<12x290xf32, #tpu.memory_space<vmem>>, vector<8x256xf32>
    %c14_i32_81 = arith.constant 14 : i32
    %150 = vector.broadcast %c14_i32_81 : i32 to vector<1x256xi32>
    %151 = arith.cmpi sle, %131, %150 : vector<1x256xi32>
    %cst_82 = arith.constant 0.000000e+00 : f32
    %152 = vector.shape_cast %151 : vector<1x256xi1> to vector<1x256xi1>
    %153 = vector.broadcast %152 : vector<1x256xi1> to vector<8x256xi1>
    %154 = vector.broadcast %cst_82 : f32 to vector<8x256xf32>
    %155 = arith.select %153, %149, %154 : vector<8x256xi1>, vector<8x256xf32>
    %c2_83 = arith.constant 2 : index
    %c0_84 = arith.constant 0 : index
    %c0_85 = arith.constant 0 : index
    %156 = vector.load %arg3[%c2_83, %c0_84, %c0_85] : memref<9x8x8xf32, #tpu.memory_space<vmem>>, vector<1x8x8xf32>
    %157 = vector.shape_cast %156 : vector<1x8x8xf32> to vector<8x8xf32>
    %cst_86 = arith.constant dense<0.000000e+00> : vector<8x256xf32>
    %158 = tpu.matmul %157, %155, %cst_86 {dimension_numbers = #tpu.dot_dimension_numbers<[1], [0], [0], [1], [0, 0, 1, 1], [], []>} : vector<8x8xf32>, vector<8x256xf32>, vector<8x256xf32> -> vector<8x256xf32>
    %159 = arith.addf %148, %158 : vector<8x256xf32>
    %c0_87 = arith.constant 0 : index
    %c16_88 = arith.constant 16 : index
    %160 = vector.load %arg15[%c0_87, %c16_88] : memref<12x290xf32, #tpu.memory_space<vmem>>, vector<8x256xf32>
    %c1_i32_89 = arith.constant 1 : i32
    %161 = vector.broadcast %c1_i32_89 : i32 to vector<1x256xi32>
    %162 = arith.cmpi sge, %131, %161 : vector<1x256xi32>
    %cst_90 = arith.constant 0.000000e+00 : f32
    %163 = vector.shape_cast %162 : vector<1x256xi1> to vector<1x256xi1>
    %164 = vector.broadcast %163 : vector<1x256xi1> to vector<8x256xi1>
    %165 = vector.broadcast %cst_90 : f32 to vector<8x256xf32>
    %166 = arith.select %164, %160, %165 : vector<8x256xi1>, vector<8x256xf32>
    %c3_91 = arith.constant 3 : index
    %c0_92 = arith.constant 0 : index
    %c0_93 = arith.constant 0 : index
    %167 = vector.load %arg3[%c3_91, %c0_92, %c0_93] : memref<9x8x8xf32, #tpu.memory_space<vmem>>, vector<1x8x8xf32>
    %168 = vector.shape_cast %167 : vector<1x8x8xf32> to vector<8x8xf32>
    %cst_94 = arith.constant dense<0.000000e+00> : vector<8x256xf32>
    %169 = tpu.matmul %168, %166, %cst_94 {dimension_numbers = #tpu.dot_dimension_numbers<[1], [0], [0], [1], [0, 0, 1, 1], [], []>} : vector<8x8xf32>, vector<8x256xf32>, vector<8x256xf32> -> vector<8x256xf32>
    %170 = arith.addf %159, %169 : vector<8x256xf32>
    %c0_95 = arith.constant 0 : index
    %c17_96 = arith.constant 17 : index
    %171 = vector.load %arg15[%c0_95, %c17_96] : memref<12x290xf32, #tpu.memory_space<vmem>>, vector<8x256xf32>
    %c4_97 = arith.constant 4 : index
    %c0_98 = arith.constant 0 : index
    %c0_99 = arith.constant 0 : index
    %172 = vector.load %arg3[%c4_97, %c0_98, %c0_99] : memref<9x8x8xf32, #tpu.memory_space<vmem>>, vector<1x8x8xf32>
    %173 = vector.shape_cast %172 : vector<1x8x8xf32> to vector<8x8xf32>
    %cst_100 = arith.constant dense<0.000000e+00> : vector<8x256xf32>
    %174 = tpu.matmul %173, %171, %cst_100 {dimension_numbers = #tpu.dot_dimension_numbers<[1], [0], [0], [1], [0, 0, 1, 1], [], []>} : vector<8x8xf32>, vector<8x256xf32>, vector<8x256xf32> -> vector<8x256xf32>
    %175 = arith.addf %170, %174 : vector<8x256xf32>
    %c0_101 = arith.constant 0 : index
    %c18_102 = arith.constant 18 : index
    %176 = vector.load %arg15[%c0_101, %c18_102] : memref<12x290xf32, #tpu.memory_space<vmem>>, vector<8x256xf32>
    %c14_i32_103 = arith.constant 14 : i32
    %177 = vector.broadcast %c14_i32_103 : i32 to vector<1x256xi32>
    %178 = arith.cmpi sle, %131, %177 : vector<1x256xi32>
    %cst_104 = arith.constant 0.000000e+00 : f32
    %179 = vector.shape_cast %178 : vector<1x256xi1> to vector<1x256xi1>
    %180 = vector.broadcast %179 : vector<1x256xi1> to vector<8x256xi1>
    %181 = vector.broadcast %cst_104 : f32 to vector<8x256xf32>
    %182 = arith.select %180, %176, %181 : vector<8x256xi1>, vector<8x256xf32>
    %c5_105 = arith.constant 5 : index
    %c0_106 = arith.constant 0 : index
    %c0_107 = arith.constant 0 : index
    %183 = vector.load %arg3[%c5_105, %c0_106, %c0_107] : memref<9x8x8xf32, #tpu.memory_space<vmem>>, vector<1x8x8xf32>
    %184 = vector.shape_cast %183 : vector<1x8x8xf32> to vector<8x8xf32>
    %cst_108 = arith.constant dense<0.000000e+00> : vector<8x256xf32>
    %185 = tpu.matmul %184, %182, %cst_108 {dimension_numbers = #tpu.dot_dimension_numbers<[1], [0], [0], [1], [0, 0, 1, 1], [], []>} : vector<8x8xf32>, vector<8x256xf32>, vector<8x256xf32> -> vector<8x256xf32>
    %186 = arith.addf %175, %185 : vector<8x256xf32>
    %c0_109 = arith.constant 0 : index
    %c32_110 = arith.constant 32 : index
    %187 = vector.load %arg15[%c0_109, %c32_110] : memref<12x290xf32, #tpu.memory_space<vmem>>, vector<8x256xf32>
    %c1_i32_111 = arith.constant 1 : i32
    %188 = vector.broadcast %c1_i32_111 : i32 to vector<1x256xi32>
    %189 = arith.cmpi sge, %131, %188 : vector<1x256xi32>
    %cst_112 = arith.constant 0.000000e+00 : f32
    %190 = vector.shape_cast %189 : vector<1x256xi1> to vector<1x256xi1>
    %191 = vector.broadcast %190 : vector<1x256xi1> to vector<8x256xi1>
    %192 = vector.broadcast %cst_112 : f32 to vector<8x256xf32>
    %193 = arith.select %191, %187, %192 : vector<8x256xi1>, vector<8x256xf32>
    %c6_113 = arith.constant 6 : index
    %c0_114 = arith.constant 0 : index
    %c0_115 = arith.constant 0 : index
    %194 = vector.load %arg3[%c6_113, %c0_114, %c0_115] : memref<9x8x8xf32, #tpu.memory_space<vmem>>, vector<1x8x8xf32>
    %195 = vector.shape_cast %194 : vector<1x8x8xf32> to vector<8x8xf32>
    %cst_116 = arith.constant dense<0.000000e+00> : vector<8x256xf32>
    %196 = tpu.matmul %195, %193, %cst_116 {dimension_numbers = #tpu.dot_dimension_numbers<[1], [0], [0], [1], [0, 0, 1, 1], [], []>} : vector<8x8xf32>, vector<8x256xf32>, vector<8x256xf32> -> vector<8x256xf32>
    %197 = arith.addf %186, %196 : vector<8x256xf32>
    %c0_117 = arith.constant 0 : index
    %c33_118 = arith.constant 33 : index
    %198 = vector.load %arg15[%c0_117, %c33_118] : memref<12x290xf32, #tpu.memory_space<vmem>>, vector<8x256xf32>
    %c7_119 = arith.constant 7 : index
    %c0_120 = arith.constant 0 : index
    %c0_121 = arith.constant 0 : index
    %199 = vector.load %arg3[%c7_119, %c0_120, %c0_121] : memref<9x8x8xf32, #tpu.memory_space<vmem>>, vector<1x8x8xf32>
    %200 = vector.shape_cast %199 : vector<1x8x8xf32> to vector<8x8xf32>
    %cst_122 = arith.constant dense<0.000000e+00> : vector<8x256xf32>
    %201 = tpu.matmul %200, %198, %cst_122 {dimension_numbers = #tpu.dot_dimension_numbers<[1], [0], [0], [1], [0, 0, 1, 1], [], []>} : vector<8x8xf32>, vector<8x256xf32>, vector<8x256xf32> -> vector<8x256xf32>
    %202 = arith.addf %197, %201 : vector<8x256xf32>
    %c0_123 = arith.constant 0 : index
    %c34_124 = arith.constant 34 : index
    %203 = vector.load %arg15[%c0_123, %c34_124] : memref<12x290xf32, #tpu.memory_space<vmem>>, vector<8x256xf32>
    %c14_i32_125 = arith.constant 14 : i32
    %204 = vector.broadcast %c14_i32_125 : i32 to vector<1x256xi32>
    %205 = arith.cmpi sle, %131, %204 : vector<1x256xi32>
    %cst_126 = arith.constant 0.000000e+00 : f32
    %206 = vector.shape_cast %205 : vector<1x256xi1> to vector<1x256xi1>
    %207 = vector.broadcast %206 : vector<1x256xi1> to vector<8x256xi1>
    %208 = vector.broadcast %cst_126 : f32 to vector<8x256xf32>
    %209 = arith.select %207, %203, %208 : vector<8x256xi1>, vector<8x256xf32>
    %c8_127 = arith.constant 8 : index
    %c0_128 = arith.constant 0 : index
    %c0_129 = arith.constant 0 : index
    %210 = vector.load %arg3[%c8_127, %c0_128, %c0_129] : memref<9x8x8xf32, #tpu.memory_space<vmem>>, vector<1x8x8xf32>
    %211 = vector.shape_cast %210 : vector<1x8x8xf32> to vector<8x8xf32>
    %cst_130 = arith.constant dense<0.000000e+00> : vector<8x256xf32>
    %212 = tpu.matmul %211, %209, %cst_130 {dimension_numbers = #tpu.dot_dimension_numbers<[1], [0], [0], [1], [0, 0, 1, 1], [], []>} : vector<8x8xf32>, vector<8x256xf32>, vector<8x256xf32> -> vector<8x256xf32>
    %213 = arith.addf %202, %212 : vector<8x256xf32>
    %cst_131 = arith.constant 0.000000e+00 : f32
    %214 = vector.broadcast %cst_131 : f32 to vector<12x290xf32>
    %c0_132 = arith.constant 0 : index
    %c0_133 = arith.constant 0 : index
    %215 = vector.load %arg14[%c0_132, %c0_133] : memref<12x290xf32, #tpu.memory_space<vmem>>, vector<12x290xf32>
    tpu.vector_store %arg14[%c0_132, %c0_133], %214 {strides = array<i32>} : memref<12x290xf32, #tpu.memory_space<vmem>>, vector<12x290xf32>,
    %cst_134 = arith.constant 0.000000e+00 : f32
    %216 = vector.broadcast %cst_134 : f32 to vector<8x256xf32>
    %217 = arith.maximumf %213, %216 : vector<8x256xf32>
    %c0_135 = arith.constant 0 : index
    %c17_136 = arith.constant 17 : index
    %218 = vector.load %arg14[%c0_135, %c17_136] : memref<12x290xf32, #tpu.memory_space<vmem>>, vector<8x256xf32>
    tpu.vector_store %arg14[%c0_135, %c17_136], %217 {strides = array<i32>} : memref<12x290xf32, #tpu.memory_space<vmem>>, vector<8x256xf32>,
    %c0_137 = arith.constant 0 : index
    %c17_138 = arith.constant 17 : index
    %219 = vector.load %arg14[%c0_137, %c17_138] : memref<12x290xf32, #tpu.memory_space<vmem>>, vector<8x256xf32>
    %c0_139 = arith.constant 0 : index
    %c18_140 = arith.constant 18 : index
    %220 = vector.load %arg14[%c0_139, %c18_140] : memref<12x290xf32, #tpu.memory_space<vmem>>, vector<8x256xf32>
    %c0_141 = arith.constant 0 : index
    %c33_142 = arith.constant 33 : index
    %221 = vector.load %arg14[%c0_141, %c33_142] : memref<12x290xf32, #tpu.memory_space<vmem>>, vector<8x256xf32>
    %c0_143 = arith.constant 0 : index
    %c34_144 = arith.constant 34 : index
    %222 = vector.load %arg14[%c0_143, %c34_144] : memref<12x290xf32, #tpu.memory_space<vmem>>, vector<8x256xf32>
    %223 = arith.maximumf %219, %220 : vector<8x256xf32>
    %224 = arith.maximumf %221, %222 : vector<8x256xf32>
    %225 = arith.maximumf %223, %224 : vector<8x256xf32>
    %c0_145 = arith.constant 0 : index
    %c0_146 = arith.constant 0 : index
    %226 = vector.load %arg11[%c0_145, %c0_146] : memref<256x64xf32, #tpu.memory_space<vmem>>, vector<256x64xf32>
    %cst_147 = arith.constant dense<0.000000e+00> : vector<8x64xf32>
    %227 = tpu.matmul %225, %226, %cst_147 {dimension_numbers = #tpu.dot_dimension_numbers<[1], [0], [0], [1], [0, 0, 1, 1], [], []>} : vector<8x256xf32>, vector<256x64xf32>, vector<8x64xf32> -> vector<8x64xf32>
    %cst_148 = arith.constant 0.000000e+00 : f32
    %228 = vector.broadcast %cst_148 : f32 to vector<12x290xf32>
    %c0_149 = arith.constant 0 : index
    %c0_150 = arith.constant 0 : index
    %229 = vector.load %arg15[%c0_149, %c0_150] : memref<12x290xf32, #tpu.memory_space<vmem>>, vector<12x290xf32>
    tpu.vector_store %arg15[%c0_149, %c0_150], %228 {strides = array<i32>} : memref<12x290xf32, #tpu.memory_space<vmem>>, vector<12x290xf32>,
    %c0_151 = arith.constant 0 : index
    %c9 = arith.constant 9 : index
    %230 = vector.load %arg15[%c0_151, %c9] : memref<12x290xf32, #tpu.memory_space<vmem>>, vector<8x64xf32>
    tpu.vector_store %arg15[%c0_151, %c9], %227 {strides = array<i32>} : memref<12x290xf32, #tpu.memory_space<vmem>>, vector<8x64xf32>,
    %cst_152 = arith.constant 0.000000e+00 : f32
    %231 = vector.broadcast %cst_152 : f32 to vector<12x64xf32>
    %c0_153 = arith.constant 0 : index
    %c9_154 = arith.constant 9 : index
    %232 = vector.load %arg15[%c0_153, %c9_154] : memref<12x290xf32, #tpu.memory_space<vmem>>, vector<8x64xf32>
    %c0_155 = arith.constant 0 : index
    %c0_156 = arith.constant 0 : index
    %c0_157 = arith.constant 0 : index
    %233 = vector.load %arg4[%c0_155, %c0_156, %c0_157] : memref<1x12x8xf32, #tpu.memory_space<vmem>>, vector<1x12x8xf32>
    %234 = vector.shape_cast %233 : vector<1x12x8xf32> to vector<12x8xf32>
    %cst_158 = arith.constant dense<0.000000e+00> : vector<12x64xf32>
    %235 = tpu.matmul %234, %232, %cst_158 {dimension_numbers = #tpu.dot_dimension_numbers<[1], [0], [0], [1], [0, 0, 1, 1], [], []>} : vector<12x8xf32>, vector<8x64xf32>, vector<12x64xf32> -> vector<12x64xf32>
    %236 = arith.addf %231, %235 : vector<12x64xf32>
    %cst_159 = arith.constant 0.000000e+00 : f32
    %237 = vector.broadcast %cst_159 : f32 to vector<12x290xf32>
    %c0_160 = arith.constant 0 : index
    %c0_161 = arith.constant 0 : index
    %238 = vector.load %arg14[%c0_160, %c0_161] : memref<12x290xf32, #tpu.memory_space<vmem>>, vector<12x290xf32>
    tpu.vector_store %arg14[%c0_160, %c0_161], %237 {strides = array<i32>} : memref<12x290xf32, #tpu.memory_space<vmem>>, vector<12x290xf32>,
    %cst_162 = arith.constant 0.000000e+00 : f32
    %239 = vector.broadcast %cst_162 : f32 to vector<12x64xf32>
    %240 = arith.maximumf %236, %239 : vector<12x64xf32>
    %c0_163 = arith.constant 0 : index
    %c9_164 = arith.constant 9 : index
    %241 = vector.load %arg14[%c0_163, %c9_164] : memref<12x290xf32, #tpu.memory_space<vmem>>, vector<12x64xf32>
    tpu.vector_store %arg14[%c0_163, %c9_164], %240 {strides = array<i32>} : memref<12x290xf32, #tpu.memory_space<vmem>>, vector<12x64xf32>,
    %242 = tpu.iota {dimensions = array<i32: 1>} : vector<1x64xi32>
    %c8_i32 = arith.constant 8 : i32
    %c0_i32_165 = arith.constant 0 : i32
    %243 = arith.cmpi eq, %c8_i32, %c0_i32_165 : i32
    %c1_i32_166 = arith.constant 1 : i32
    %244 = arith.select %243, %c1_i32_166, %c8_i32 : i32
    %245 = vector.broadcast %244 : i32 to vector<1x64xi32>
    %246 = arith.remsi %242, %245 : vector<1x64xi32>
    %c0_i32_167 = arith.constant 0 : i32
    %247 = vector.broadcast %c0_i32_167 : i32 to vector<1x64xi32>
    %248 = arith.cmpi ne, %246, %247 : vector<1x64xi32>
    %c0_i32_168 = arith.constant 0 : i32
    %249 = vector.broadcast %c0_i32_168 : i32 to vector<1x64xi32>
    %250 = arith.cmpi slt, %246, %249 : vector<1x64xi32>
    %c0_i32_169 = arith.constant 0 : i32
    %251 = arith.cmpi slt, %244, %c0_i32_169 : i32
    %252 = vector.broadcast %251 : i1 to vector<1x64xi1>
    %253 = vector.broadcast %252 : vector<1x64xi1> to vector<1x64xi1>
    %254 = arith.xori %250, %253 : vector<1x64xi1>
    %255 = arith.andi %254, %248 : vector<1x64xi1>
    %256 = vector.broadcast %244 : i32 to vector<1x64xi32>
    %257 = arith.addi %246, %256 : vector<1x64xi32>
    %258 = arith.select %255, %257, %246 : vector<1x64xi1>, vector<1x64xi32>
    %cst_170 = arith.constant 0.000000e+00 : f32
    %259 = vector.broadcast %cst_170 : f32 to vector<12x64xf32>
    %c0_171 = arith.constant 0 : index
    %c0_172 = arith.constant 0 : index
    %260 = vector.load %arg14[%c0_171, %c0_172] : memref<12x290xf32, #tpu.memory_space<vmem>>, vector<12x64xf32>
    %c1_i32_173 = arith.constant 1 : i32
    %261 = vector.broadcast %c1_i32_173 : i32 to vector<1x64xi32>
    %262 = arith.cmpi sge, %258, %261 : vector<1x64xi32>
    %cst_174 = arith.constant 0.000000e+00 : f32
    %263 = vector.shape_cast %262 : vector<1x64xi1> to vector<1x64xi1>
    %264 = vector.broadcast %263 : vector<1x64xi1> to vector<12x64xi1>
    %265 = vector.broadcast %cst_174 : f32 to vector<12x64xf32>
    %266 = arith.select %264, %260, %265 : vector<12x64xi1>, vector<12x64xf32>
    %c0_175 = arith.constant 0 : index
    %c0_176 = arith.constant 0 : index
    %c0_177 = arith.constant 0 : index
    %267 = vector.load %arg5[%c0_175, %c0_176, %c0_177] : memref<9x12x12xf32, #tpu.memory_space<vmem>>, vector<1x12x12xf32>
    %268 = vector.shape_cast %267 : vector<1x12x12xf32> to vector<12x12xf32>
    %cst_178 = arith.constant dense<0.000000e+00> : vector<12x64xf32>
    %269 = tpu.matmul %268, %266, %cst_178 {dimension_numbers = #tpu.dot_dimension_numbers<[1], [0], [0], [1], [0, 0, 1, 1], [], []>} : vector<12x12xf32>, vector<12x64xf32>, vector<12x64xf32> -> vector<12x64xf32>
    %270 = arith.addf %259, %269 : vector<12x64xf32>
    %c0_179 = arith.constant 0 : index
    %c1_180 = arith.constant 1 : index
    %271 = vector.load %arg14[%c0_179, %c1_180] : memref<12x290xf32, #tpu.memory_space<vmem>>, vector<12x64xf32>
    %c1_181 = arith.constant 1 : index
    %c0_182 = arith.constant 0 : index
    %c0_183 = arith.constant 0 : index
    %272 = vector.load %arg5[%c1_181, %c0_182, %c0_183] : memref<9x12x12xf32, #tpu.memory_space<vmem>>, vector<1x12x12xf32>
    %273 = vector.shape_cast %272 : vector<1x12x12xf32> to vector<12x12xf32>
    %cst_184 = arith.constant dense<0.000000e+00> : vector<12x64xf32>
    %274 = tpu.matmul %273, %271, %cst_184 {dimension_numbers = #tpu.dot_dimension_numbers<[1], [0], [0], [1], [0, 0, 1, 1], [], []>} : vector<12x12xf32>, vector<12x64xf32>, vector<12x64xf32> -> vector<12x64xf32>
    %275 = arith.addf %270, %274 : vector<12x64xf32>
    %c0_185 = arith.constant 0 : index
    %c2_186 = arith.constant 2 : index
    %276 = vector.load %arg14[%c0_185, %c2_186] : memref<12x290xf32, #tpu.memory_space<vmem>>, vector<12x64xf32>
    %c6_i32 = arith.constant 6 : i32
    %277 = vector.broadcast %c6_i32 : i32 to vector<1x64xi32>
    %278 = arith.cmpi sle, %258, %277 : vector<1x64xi32>
    %cst_187 = arith.constant 0.000000e+00 : f32
    %279 = vector.shape_cast %278 : vector<1x64xi1> to vector<1x64xi1>
    %280 = vector.broadcast %279 : vector<1x64xi1> to vector<12x64xi1>
    %281 = vector.broadcast %cst_187 : f32 to vector<12x64xf32>
    %282 = arith.select %280, %276, %281 : vector<12x64xi1>, vector<12x64xf32>
    %c2_188 = arith.constant 2 : index
    %c0_189 = arith.constant 0 : index
    %c0_190 = arith.constant 0 : index
    %283 = vector.load %arg5[%c2_188, %c0_189, %c0_190] : memref<9x12x12xf32, #tpu.memory_space<vmem>>, vector<1x12x12xf32>
    %284 = vector.shape_cast %283 : vector<1x12x12xf32> to vector<12x12xf32>
    %cst_191 = arith.constant dense<0.000000e+00> : vector<12x64xf32>
    %285 = tpu.matmul %284, %282, %cst_191 {dimension_numbers = #tpu.dot_dimension_numbers<[1], [0], [0], [1], [0, 0, 1, 1], [], []>} : vector<12x12xf32>, vector<12x64xf32>, vector<12x64xf32> -> vector<12x64xf32>
    %286 = arith.addf %275, %285 : vector<12x64xf32>
    %c0_192 = arith.constant 0 : index
    %c8_193 = arith.constant 8 : index
    %287 = vector.load %arg14[%c0_192, %c8_193] : memref<12x290xf32, #tpu.memory_space<vmem>>, vector<12x64xf32>
    %c1_i32_194 = arith.constant 1 : i32
    %288 = vector.broadcast %c1_i32_194 : i32 to vector<1x64xi32>
    %289 = arith.cmpi sge, %258, %288 : vector<1x64xi32>
    %cst_195 = arith.constant 0.000000e+00 : f32
    %290 = vector.shape_cast %289 : vector<1x64xi1> to vector<1x64xi1>
    %291 = vector.broadcast %290 : vector<1x64xi1> to vector<12x64xi1>
    %292 = vector.broadcast %cst_195 : f32 to vector<12x64xf32>
    %293 = arith.select %291, %287, %292 : vector<12x64xi1>, vector<12x64xf32>
    %c3_196 = arith.constant 3 : index
    %c0_197 = arith.constant 0 : index
    %c0_198 = arith.constant 0 : index
    %294 = vector.load %arg5[%c3_196, %c0_197, %c0_198] : memref<9x12x12xf32, #tpu.memory_space<vmem>>, vector<1x12x12xf32>
    %295 = vector.shape_cast %294 : vector<1x12x12xf32> to vector<12x12xf32>
    %cst_199 = arith.constant dense<0.000000e+00> : vector<12x64xf32>
    %296 = tpu.matmul %295, %293, %cst_199 {dimension_numbers = #tpu.dot_dimension_numbers<[1], [0], [0], [1], [0, 0, 1, 1], [], []>} : vector<12x12xf32>, vector<12x64xf32>, vector<12x64xf32> -> vector<12x64xf32>
    %297 = arith.addf %286, %296 : vector<12x64xf32>
    %c0_200 = arith.constant 0 : index
    %c9_201 = arith.constant 9 : index
    %298 = vector.load %arg14[%c0_200, %c9_201] : memref<12x290xf32, #tpu.memory_space<vmem>>, vector<12x64xf32>
    %c4_202 = arith.constant 4 : index
    %c0_203 = arith.constant 0 : index
    %c0_204 = arith.constant 0 : index
    %299 = vector.load %arg5[%c4_202, %c0_203, %c0_204] : memref<9x12x12xf32, #tpu.memory_space<vmem>>, vector<1x12x12xf32>
    %300 = vector.shape_cast %299 : vector<1x12x12xf32> to vector<12x12xf32>
    %cst_205 = arith.constant dense<0.000000e+00> : vector<12x64xf32>
    %301 = tpu.matmul %300, %298, %cst_205 {dimension_numbers = #tpu.dot_dimension_numbers<[1], [0], [0], [1], [0, 0, 1, 1], [], []>} : vector<12x12xf32>, vector<12x64xf32>, vector<12x64xf32> -> vector<12x64xf32>
    %302 = arith.addf %297, %301 : vector<12x64xf32>
    %c0_206 = arith.constant 0 : index
    %c10 = arith.constant 10 : index
    %303 = vector.load %arg14[%c0_206, %c10] : memref<12x290xf32, #tpu.memory_space<vmem>>, vector<12x64xf32>
    %c6_i32_207 = arith.constant 6 : i32
    %304 = vector.broadcast %c6_i32_207 : i32 to vector<1x64xi32>
    %305 = arith.cmpi sle, %258, %304 : vector<1x64xi32>
    %cst_208 = arith.constant 0.000000e+00 : f32
    %306 = vector.shape_cast %305 : vector<1x64xi1> to vector<1x64xi1>
    %307 = vector.broadcast %306 : vector<1x64xi1> to vector<12x64xi1>
    %308 = vector.broadcast %cst_208 : f32 to vector<12x64xf32>
    %309 = arith.select %307, %303, %308 : vector<12x64xi1>, vector<12x64xf32>
    %c5_209 = arith.constant 5 : index
    %c0_210 = arith.constant 0 : index
    %c0_211 = arith.constant 0 : index
    %310 = vector.load %arg5[%c5_209, %c0_210, %c0_211] : memref<9x12x12xf32, #tpu.memory_space<vmem>>, vector<1x12x12xf32>
    %311 = vector.shape_cast %310 : vector<1x12x12xf32> to vector<12x12xf32>
    %cst_212 = arith.constant dense<0.000000e+00> : vector<12x64xf32>
    %312 = tpu.matmul %311, %309, %cst_212 {dimension_numbers = #tpu.dot_dimension_numbers<[1], [0], [0], [1], [0, 0, 1, 1], [], []>} : vector<12x12xf32>, vector<12x64xf32>, vector<12x64xf32> -> vector<12x64xf32>
    %313 = arith.addf %302, %312 : vector<12x64xf32>
    %c0_213 = arith.constant 0 : index
    %c16_214 = arith.constant 16 : index
    %314 = vector.load %arg14[%c0_213, %c16_214] : memref<12x290xf32, #tpu.memory_space<vmem>>, vector<12x64xf32>
    %c1_i32_215 = arith.constant 1 : i32
    %315 = vector.broadcast %c1_i32_215 : i32 to vector<1x64xi32>
    %316 = arith.cmpi sge, %258, %315 : vector<1x64xi32>
    %cst_216 = arith.constant 0.000000e+00 : f32
    %317 = vector.shape_cast %316 : vector<1x64xi1> to vector<1x64xi1>
    %318 = vector.broadcast %317 : vector<1x64xi1> to vector<12x64xi1>
    %319 = vector.broadcast %cst_216 : f32 to vector<12x64xf32>
    %320 = arith.select %318, %314, %319 : vector<12x64xi1>, vector<12x64xf32>
    %c6_217 = arith.constant 6 : index
    %c0_218 = arith.constant 0 : index
    %c0_219 = arith.constant 0 : index
    %321 = vector.load %arg5[%c6_217, %c0_218, %c0_219] : memref<9x12x12xf32, #tpu.memory_space<vmem>>, vector<1x12x12xf32>
    %322 = vector.shape_cast %321 : vector<1x12x12xf32> to vector<12x12xf32>
    %cst_220 = arith.constant dense<0.000000e+00> : vector<12x64xf32>
    %323 = tpu.matmul %322, %320, %cst_220 {dimension_numbers = #tpu.dot_dimension_numbers<[1], [0], [0], [1], [0, 0, 1, 1], [], []>} : vector<12x12xf32>, vector<12x64xf32>, vector<12x64xf32> -> vector<12x64xf32>
    %324 = arith.addf %313, %323 : vector<12x64xf32>
    %c0_221 = arith.constant 0 : index
    %c17_222 = arith.constant 17 : index
    %325 = vector.load %arg14[%c0_221, %c17_222] : memref<12x290xf32, #tpu.memory_space<vmem>>, vector<12x64xf32>
    %c7_223 = arith.constant 7 : index
    %c0_224 = arith.constant 0 : index
    %c0_225 = arith.constant 0 : index
    %326 = vector.load %arg5[%c7_223, %c0_224, %c0_225] : memref<9x12x12xf32, #tpu.memory_space<vmem>>, vector<1x12x12xf32>
    %327 = vector.shape_cast %326 : vector<1x12x12xf32> to vector<12x12xf32>
    %cst_226 = arith.constant dense<0.000000e+00> : vector<12x64xf32>
    %328 = tpu.matmul %327, %325, %cst_226 {dimension_numbers = #tpu.dot_dimension_numbers<[1], [0], [0], [1], [0, 0, 1, 1], [], []>} : vector<12x12xf32>, vector<12x64xf32>, vector<12x64xf32> -> vector<12x64xf32>
    %329 = arith.addf %324, %328 : vector<12x64xf32>
    %c0_227 = arith.constant 0 : index
    %c18_228 = arith.constant 18 : index
    %330 = vector.load %arg14[%c0_227, %c18_228] : memref<12x290xf32, #tpu.memory_space<vmem>>, vector<12x64xf32>
    %c6_i32_229 = arith.constant 6 : i32
    %331 = vector.broadcast %c6_i32_229 : i32 to vector<1x64xi32>
    %332 = arith.cmpi sle, %258, %331 : vector<1x64xi32>
    %cst_230 = arith.constant 0.000000e+00 : f32
    %333 = vector.shape_cast %332 : vector<1x64xi1> to vector<1x64xi1>
    %334 = vector.broadcast %333 : vector<1x64xi1> to vector<12x64xi1>
    %335 = vector.broadcast %cst_230 : f32 to vector<12x64xf32>
    %336 = arith.select %334, %330, %335 : vector<12x64xi1>, vector<12x64xf32>
    %c8_231 = arith.constant 8 : index
    %c0_232 = arith.constant 0 : index
    %c0_233 = arith.constant 0 : index
    %337 = vector.load %arg5[%c8_231, %c0_232, %c0_233] : memref<9x12x12xf32, #tpu.memory_space<vmem>>, vector<1x12x12xf32>
    %338 = vector.shape_cast %337 : vector<1x12x12xf32> to vector<12x12xf32>
    %cst_234 = arith.constant dense<0.000000e+00> : vector<12x64xf32>
    %339 = tpu.matmul %338, %336, %cst_234 {dimension_numbers = #tpu.dot_dimension_numbers<[1], [0], [0], [1], [0, 0, 1, 1], [], []>} : vector<12x12xf32>, vector<12x64xf32>, vector<12x64xf32> -> vector<12x64xf32>
    %340 = arith.addf %329, %339 : vector<12x64xf32>
    %cst_235 = arith.constant 0.000000e+00 : f32
    %341 = vector.broadcast %cst_235 : f32 to vector<12x290xf32>
    %c0_236 = arith.constant 0 : index
    %c0_237 = arith.constant 0 : index
    %342 = vector.load %arg15[%c0_236, %c0_237] : memref<12x290xf32, #tpu.memory_space<vmem>>, vector<12x290xf32>
    tpu.vector_store %arg15[%c0_236, %c0_237], %341 {strides = array<i32>} : memref<12x290xf32, #tpu.memory_space<vmem>>, vector<12x290xf32>,
    %cst_238 = arith.constant 0.000000e+00 : f32
    %343 = vector.broadcast %cst_238 : f32 to vector<12x64xf32>
    %344 = arith.maximumf %340, %343 : vector<12x64xf32>
    %c0_239 = arith.constant 0 : index
    %c9_240 = arith.constant 9 : index
    %345 = vector.load %arg15[%c0_239, %c9_240] : memref<12x290xf32, #tpu.memory_space<vmem>>, vector<12x64xf32>
    tpu.vector_store %arg15[%c0_239, %c9_240], %344 {strides = array<i32>} : memref<12x290xf32, #tpu.memory_space<vmem>>, vector<12x64xf32>,
    %346 = tpu.iota {dimensions = array<i32: 1>} : vector<1x64xi32>
    %c8_i32_241 = arith.constant 8 : i32
    %c0_i32_242 = arith.constant 0 : i32
    %347 = arith.cmpi eq, %c8_i32_241, %c0_i32_242 : i32
    %c1_i32_243 = arith.constant 1 : i32
    %348 = arith.select %347, %c1_i32_243, %c8_i32_241 : i32
    %349 = vector.broadcast %348 : i32 to vector<1x64xi32>
    %350 = arith.remsi %346, %349 : vector<1x64xi32>
    %c0_i32_244 = arith.constant 0 : i32
    %351 = vector.broadcast %c0_i32_244 : i32 to vector<1x64xi32>
    %352 = arith.cmpi ne, %350, %351 : vector<1x64xi32>
    %c0_i32_245 = arith.constant 0 : i32
    %353 = vector.broadcast %c0_i32_245 : i32 to vector<1x64xi32>
    %354 = arith.cmpi slt, %350, %353 : vector<1x64xi32>
    %c0_i32_246 = arith.constant 0 : i32
    %355 = arith.cmpi slt, %348, %c0_i32_246 : i32
    %356 = vector.broadcast %355 : i1 to vector<1x64xi1>
    %357 = vector.broadcast %356 : vector<1x64xi1> to vector<1x64xi1>
    %358 = arith.xori %354, %357 : vector<1x64xi1>
    %359 = arith.andi %358, %352 : vector<1x64xi1>
    %360 = vector.broadcast %348 : i32 to vector<1x64xi32>
    %361 = arith.addi %350, %360 : vector<1x64xi32>
    %362 = arith.select %359, %361, %350 : vector<1x64xi1>, vector<1x64xi32>
    %cst_247 = arith.constant 0.000000e+00 : f32
    %363 = vector.broadcast %cst_247 : f32 to vector<12x64xf32>
    %c0_248 = arith.constant 0 : index
    %c0_249 = arith.constant 0 : index
    %364 = vector.load %arg15[%c0_248, %c0_249] : memref<12x290xf32, #tpu.memory_space<vmem>>, vector<12x64xf32>
    %c1_i32_250 = arith.constant 1 : i32
    %365 = vector.broadcast %c1_i32_250 : i32 to vector<1x64xi32>
    %366 = arith.cmpi sge, %362, %365 : vector<1x64xi32>
    %cst_251 = arith.constant 0.000000e+00 : f32
    %367 = vector.shape_cast %366 : vector<1x64xi1> to vector<1x64xi1>
    %368 = vector.broadcast %367 : vector<1x64xi1> to vector<12x64xi1>
    %369 = vector.broadcast %cst_251 : f32 to vector<12x64xf32>
    %370 = arith.select %368, %364, %369 : vector<12x64xi1>, vector<12x64xf32>
    %c0_252 = arith.constant 0 : index
    %c0_253 = arith.constant 0 : index
    %c0_254 = arith.constant 0 : index
    %371 = vector.load %arg6[%c0_252, %c0_253, %c0_254] : memref<9x12x12xf32, #tpu.memory_space<vmem>>, vector<1x12x12xf32>
    %372 = vector.shape_cast %371 : vector<1x12x12xf32> to vector<12x12xf32>
    %cst_255 = arith.constant dense<0.000000e+00> : vector<12x64xf32>
    %373 = tpu.matmul %372, %370, %cst_255 {dimension_numbers = #tpu.dot_dimension_numbers<[1], [0], [0], [1], [0, 0, 1, 1], [], []>} : vector<12x12xf32>, vector<12x64xf32>, vector<12x64xf32> -> vector<12x64xf32>
    %374 = arith.addf %363, %373 : vector<12x64xf32>
    %c0_256 = arith.constant 0 : index
    %c1_257 = arith.constant 1 : index
    %375 = vector.load %arg15[%c0_256, %c1_257] : memref<12x290xf32, #tpu.memory_space<vmem>>, vector<12x64xf32>
    %c1_258 = arith.constant 1 : index
    %c0_259 = arith.constant 0 : index
    %c0_260 = arith.constant 0 : index
    %376 = vector.load %arg6[%c1_258, %c0_259, %c0_260] : memref<9x12x12xf32, #tpu.memory_space<vmem>>, vector<1x12x12xf32>
    %377 = vector.shape_cast %376 : vector<1x12x12xf32> to vector<12x12xf32>
    %cst_261 = arith.constant dense<0.000000e+00> : vector<12x64xf32>
    %378 = tpu.matmul %377, %375, %cst_261 {dimension_numbers = #tpu.dot_dimension_numbers<[1], [0], [0], [1], [0, 0, 1, 1], [], []>} : vector<12x12xf32>, vector<12x64xf32>, vector<12x64xf32> -> vector<12x64xf32>
    %379 = arith.addf %374, %378 : vector<12x64xf32>
    %c0_262 = arith.constant 0 : index
    %c2_263 = arith.constant 2 : index
    %380 = vector.load %arg15[%c0_262, %c2_263] : memref<12x290xf32, #tpu.memory_space<vmem>>, vector<12x64xf32>
    %c6_i32_264 = arith.constant 6 : i32
    %381 = vector.broadcast %c6_i32_264 : i32 to vector<1x64xi32>
    %382 = arith.cmpi sle, %362, %381 : vector<1x64xi32>
    %cst_265 = arith.constant 0.000000e+00 : f32
    %383 = vector.shape_cast %382 : vector<1x64xi1> to vector<1x64xi1>
    %384 = vector.broadcast %383 : vector<1x64xi1> to vector<12x64xi1>
    %385 = vector.broadcast %cst_265 : f32 to vector<12x64xf32>
    %386 = arith.select %384, %380, %385 : vector<12x64xi1>, vector<12x64xf32>
    %c2_266 = arith.constant 2 : index
    %c0_267 = arith.constant 0 : index
    %c0_268 = arith.constant 0 : index
    %387 = vector.load %arg6[%c2_266, %c0_267, %c0_268] : memref<9x12x12xf32, #tpu.memory_space<vmem>>, vector<1x12x12xf32>
    %388 = vector.shape_cast %387 : vector<1x12x12xf32> to vector<12x12xf32>
    %cst_269 = arith.constant dense<0.000000e+00> : vector<12x64xf32>
    %389 = tpu.matmul %388, %386, %cst_269 {dimension_numbers = #tpu.dot_dimension_numbers<[1], [0], [0], [1], [0, 0, 1, 1], [], []>} : vector<12x12xf32>, vector<12x64xf32>, vector<12x64xf32> -> vector<12x64xf32>
    %390 = arith.addf %379, %389 : vector<12x64xf32>
    %c0_270 = arith.constant 0 : index
    %c8_271 = arith.constant 8 : index
    %391 = vector.load %arg15[%c0_270, %c8_271] : memref<12x290xf32, #tpu.memory_space<vmem>>, vector<12x64xf32>
    %c1_i32_272 = arith.constant 1 : i32
    %392 = vector.broadcast %c1_i32_272 : i32 to vector<1x64xi32>
    %393 = arith.cmpi sge, %362, %392 : vector<1x64xi32>
    %cst_273 = arith.constant 0.000000e+00 : f32
    %394 = vector.shape_cast %393 : vector<1x64xi1> to vector<1x64xi1>
    %395 = vector.broadcast %394 : vector<1x64xi1> to vector<12x64xi1>
    %396 = vector.broadcast %cst_273 : f32 to vector<12x64xf32>
    %397 = arith.select %395, %391, %396 : vector<12x64xi1>, vector<12x64xf32>
    %c3_274 = arith.constant 3 : index
    %c0_275 = arith.constant 0 : index
    %c0_276 = arith.constant 0 : index
    %398 = vector.load %arg6[%c3_274, %c0_275, %c0_276] : memref<9x12x12xf32, #tpu.memory_space<vmem>>, vector<1x12x12xf32>
    %399 = vector.shape_cast %398 : vector<1x12x12xf32> to vector<12x12xf32>
    %cst_277 = arith.constant dense<0.000000e+00> : vector<12x64xf32>
    %400 = tpu.matmul %399, %397, %cst_277 {dimension_numbers = #tpu.dot_dimension_numbers<[1], [0], [0], [1], [0, 0, 1, 1], [], []>} : vector<12x12xf32>, vector<12x64xf32>, vector<12x64xf32> -> vector<12x64xf32>
    %401 = arith.addf %390, %400 : vector<12x64xf32>
    %c0_278 = arith.constant 0 : index
    %c9_279 = arith.constant 9 : index
    %402 = vector.load %arg15[%c0_278, %c9_279] : memref<12x290xf32, #tpu.memory_space<vmem>>, vector<12x64xf32>
    %c4_280 = arith.constant 4 : index
    %c0_281 = arith.constant 0 : index
    %c0_282 = arith.constant 0 : index
    %403 = vector.load %arg6[%c4_280, %c0_281, %c0_282] : memref<9x12x12xf32, #tpu.memory_space<vmem>>, vector<1x12x12xf32>
    %404 = vector.shape_cast %403 : vector<1x12x12xf32> to vector<12x12xf32>
    %cst_283 = arith.constant dense<0.000000e+00> : vector<12x64xf32>
    %405 = tpu.matmul %404, %402, %cst_283 {dimension_numbers = #tpu.dot_dimension_numbers<[1], [0], [0], [1], [0, 0, 1, 1], [], []>} : vector<12x12xf32>, vector<12x64xf32>, vector<12x64xf32> -> vector<12x64xf32>
    %406 = arith.addf %401, %405 : vector<12x64xf32>
    %c0_284 = arith.constant 0 : index
    %c10_285 = arith.constant 10 : index
    %407 = vector.load %arg15[%c0_284, %c10_285] : memref<12x290xf32, #tpu.memory_space<vmem>>, vector<12x64xf32>
    %c6_i32_286 = arith.constant 6 : i32
    %408 = vector.broadcast %c6_i32_286 : i32 to vector<1x64xi32>
    %409 = arith.cmpi sle, %362, %408 : vector<1x64xi32>
    %cst_287 = arith.constant 0.000000e+00 : f32
    %410 = vector.shape_cast %409 : vector<1x64xi1> to vector<1x64xi1>
    %411 = vector.broadcast %410 : vector<1x64xi1> to vector<12x64xi1>
    %412 = vector.broadcast %cst_287 : f32 to vector<12x64xf32>
    %413 = arith.select %411, %407, %412 : vector<12x64xi1>, vector<12x64xf32>
    %c5_288 = arith.constant 5 : index
    %c0_289 = arith.constant 0 : index
    %c0_290 = arith.constant 0 : index
    %414 = vector.load %arg6[%c5_288, %c0_289, %c0_290] : memref<9x12x12xf32, #tpu.memory_space<vmem>>, vector<1x12x12xf32>
    %415 = vector.shape_cast %414 : vector<1x12x12xf32> to vector<12x12xf32>
    %cst_291 = arith.constant dense<0.000000e+00> : vector<12x64xf32>
    %416 = tpu.matmul %415, %413, %cst_291 {dimension_numbers = #tpu.dot_dimension_numbers<[1], [0], [0], [1], [0, 0, 1, 1], [], []>} : vector<12x12xf32>, vector<12x64xf32>, vector<12x64xf32> -> vector<12x64xf32>
    %417 = arith.addf %406, %416 : vector<12x64xf32>
    %c0_292 = arith.constant 0 : index
    %c16_293 = arith.constant 16 : index
    %418 = vector.load %arg15[%c0_292, %c16_293] : memref<12x290xf32, #tpu.memory_space<vmem>>, vector<12x64xf32>
    %c1_i32_294 = arith.constant 1 : i32
    %419 = vector.broadcast %c1_i32_294 : i32 to vector<1x64xi32>
    %420 = arith.cmpi sge, %362, %419 : vector<1x64xi32>
    %cst_295 = arith.constant 0.000000e+00 : f32
    %421 = vector.shape_cast %420 : vector<1x64xi1> to vector<1x64xi1>
    %422 = vector.broadcast %421 : vector<1x64xi1> to vector<12x64xi1>
    %423 = vector.broadcast %cst_295 : f32 to vector<12x64xf32>
    %424 = arith.select %422, %418, %423 : vector<12x64xi1>, vector<12x64xf32>
    %c6_296 = arith.constant 6 : index
    %c0_297 = arith.constant 0 : index
    %c0_298 = arith.constant 0 : index
    %425 = vector.load %arg6[%c6_296, %c0_297, %c0_298] : memref<9x12x12xf32, #tpu.memory_space<vmem>>, vector<1x12x12xf32>
    %426 = vector.shape_cast %425 : vector<1x12x12xf32> to vector<12x12xf32>
    %cst_299 = arith.constant dense<0.000000e+00> : vector<12x64xf32>
    %427 = tpu.matmul %426, %424, %cst_299 {dimension_numbers = #tpu.dot_dimension_numbers<[1], [0], [0], [1], [0, 0, 1, 1], [], []>} : vector<12x12xf32>, vector<12x64xf32>, vector<12x64xf32> -> vector<12x64xf32>
    %428 = arith.addf %417, %427 : vector<12x64xf32>
    %c0_300 = arith.constant 0 : index
    %c17_301 = arith.constant 17 : index
    %429 = vector.load %arg15[%c0_300, %c17_301] : memref<12x290xf32, #tpu.memory_space<vmem>>, vector<12x64xf32>
    %c7_302 = arith.constant 7 : index
    %c0_303 = arith.constant 0 : index
    %c0_304 = arith.constant 0 : index
    %430 = vector.load %arg6[%c7_302, %c0_303, %c0_304] : memref<9x12x12xf32, #tpu.memory_space<vmem>>, vector<1x12x12xf32>
    %431 = vector.shape_cast %430 : vector<1x12x12xf32> to vector<12x12xf32>
    %cst_305 = arith.constant dense<0.000000e+00> : vector<12x64xf32>
    %432 = tpu.matmul %431, %429, %cst_305 {dimension_numbers = #tpu.dot_dimension_numbers<[1], [0], [0], [1], [0, 0, 1, 1], [], []>} : vector<12x12xf32>, vector<12x64xf32>, vector<12x64xf32> -> vector<12x64xf32>
    %433 = arith.addf %428, %432 : vector<12x64xf32>
    %c0_306 = arith.constant 0 : index
    %c18_307 = arith.constant 18 : index
    %434 = vector.load %arg15[%c0_306, %c18_307] : memref<12x290xf32, #tpu.memory_space<vmem>>, vector<12x64xf32>
    %c6_i32_308 = arith.constant 6 : i32
    %435 = vector.broadcast %c6_i32_308 : i32 to vector<1x64xi32>
    %436 = arith.cmpi sle, %362, %435 : vector<1x64xi32>
    %cst_309 = arith.constant 0.000000e+00 : f32
    %437 = vector.shape_cast %436 : vector<1x64xi1> to vector<1x64xi1>
    %438 = vector.broadcast %437 : vector<1x64xi1> to vector<12x64xi1>
    %439 = vector.broadcast %cst_309 : f32 to vector<12x64xf32>
    %440 = arith.select %438, %434, %439 : vector<12x64xi1>, vector<12x64xf32>
    %c8_310 = arith.constant 8 : index
    %c0_311 = arith.constant 0 : index
    %c0_312 = arith.constant 0 : index
    %441 = vector.load %arg6[%c8_310, %c0_311, %c0_312] : memref<9x12x12xf32, #tpu.memory_space<vmem>>, vector<1x12x12xf32>
    %442 = vector.shape_cast %441 : vector<1x12x12xf32> to vector<12x12xf32>
    %cst_313 = arith.constant dense<0.000000e+00> : vector<12x64xf32>
    %443 = tpu.matmul %442, %440, %cst_313 {dimension_numbers = #tpu.dot_dimension_numbers<[1], [0], [0], [1], [0, 0, 1, 1], [], []>} : vector<12x12xf32>, vector<12x64xf32>, vector<12x64xf32> -> vector<12x64xf32>
    %444 = arith.addf %433, %443 : vector<12x64xf32>
    %cst_314 = arith.constant 0.000000e+00 : f32
    %445 = vector.broadcast %cst_314 : f32 to vector<12x290xf32>
    %c0_315 = arith.constant 0 : index
    %c0_316 = arith.constant 0 : index
    %446 = vector.load %arg14[%c0_315, %c0_316] : memref<12x290xf32, #tpu.memory_space<vmem>>, vector<12x290xf32>
    tpu.vector_store %arg14[%c0_315, %c0_316], %445 {strides = array<i32>} : memref<12x290xf32, #tpu.memory_space<vmem>>, vector<12x290xf32>,
    %cst_317 = arith.constant 0.000000e+00 : f32
    %447 = vector.broadcast %cst_317 : f32 to vector<12x64xf32>
    %448 = arith.maximumf %444, %447 : vector<12x64xf32>
    %c0_318 = arith.constant 0 : index
    %c9_319 = arith.constant 9 : index
    %449 = vector.load %arg14[%c0_318, %c9_319] : memref<12x290xf32, #tpu.memory_space<vmem>>, vector<12x64xf32>
    tpu.vector_store %arg14[%c0_318, %c9_319], %448 {strides = array<i32>} : memref<12x290xf32, #tpu.memory_space<vmem>>, vector<12x64xf32>,
    %c0_320 = arith.constant 0 : index
    %c9_321 = arith.constant 9 : index
    %450 = vector.load %arg14[%c0_320, %c9_321] : memref<12x290xf32, #tpu.memory_space<vmem>>, vector<12x64xf32>
    %c0_322 = arith.constant 0 : index
    %c10_323 = arith.constant 10 : index
    %451 = vector.load %arg14[%c0_322, %c10_323] : memref<12x290xf32, #tpu.memory_space<vmem>>, vector<12x64xf32>
    %c0_324 = arith.constant 0 : index
    %c17_325 = arith.constant 17 : index
    %452 = vector.load %arg14[%c0_324, %c17_325] : memref<12x290xf32, #tpu.memory_space<vmem>>, vector<12x64xf32>
    %c0_326 = arith.constant 0 : index
    %c18_327 = arith.constant 18 : index
    %453 = vector.load %arg14[%c0_326, %c18_327] : memref<12x290xf32, #tpu.memory_space<vmem>>, vector<12x64xf32>
    %454 = arith.maximumf %450, %451 : vector<12x64xf32>
    %455 = arith.maximumf %452, %453 : vector<12x64xf32>
    %456 = arith.maximumf %454, %455 : vector<12x64xf32>
    %c0_328 = arith.constant 0 : index
    %c0_329 = arith.constant 0 : index
    %457 = vector.load %arg12[%c0_328, %c0_329] : memref<64x16xf32, #tpu.memory_space<vmem>>, vector<64x16xf32>
    %cst_330 = arith.constant dense<0.000000e+00> : vector<12x16xf32>
    %458 = tpu.matmul %456, %457, %cst_330 {dimension_numbers = #tpu.dot_dimension_numbers<[1], [0], [0], [1], [0, 0, 1, 1], [], []>} : vector<12x64xf32>, vector<64x16xf32>, vector<12x16xf32> -> vector<12x16xf32>
    %cst_331 = arith.constant 0.000000e+00 : f32
    %459 = vector.broadcast %cst_331 : f32 to vector<12x290xf32>
    %c0_332 = arith.constant 0 : index
    %c0_333 = arith.constant 0 : index
    %460 = vector.load %arg15[%c0_332, %c0_333] : memref<12x290xf32, #tpu.memory_space<vmem>>, vector<12x290xf32>
    tpu.vector_store %arg15[%c0_332, %c0_333], %459 {strides = array<i32>} : memref<12x290xf32, #tpu.memory_space<vmem>>, vector<12x290xf32>,
    %c0_334 = arith.constant 0 : index
    %c5_335 = arith.constant 5 : index
    %461 = vector.load %arg15[%c0_334, %c5_335] : memref<12x290xf32, #tpu.memory_space<vmem>>, vector<12x16xf32>
    tpu.vector_store %arg15[%c0_334, %c5_335], %458 {strides = array<i32>} : memref<12x290xf32, #tpu.memory_space<vmem>>, vector<12x16xf32>,
    %cst_336 = arith.constant 0.000000e+00 : f32
    %462 = vector.broadcast %cst_336 : f32 to vector<12x16xf32>
    %c0_337 = arith.constant 0 : index
    %c5_338 = arith.constant 5 : index
    %463 = vector.load %arg15[%c0_337, %c5_338] : memref<12x290xf32, #tpu.memory_space<vmem>>, vector<12x16xf32>
    %c0_339 = arith.constant 0 : index
    %c0_340 = arith.constant 0 : index
    %c0_341 = arith.constant 0 : index
    %464 = vector.load %arg7[%c0_339, %c0_340, %c0_341] : memref<1x12x12xf32, #tpu.memory_space<vmem>>, vector<1x12x12xf32>
    %465 = vector.shape_cast %464 : vector<1x12x12xf32> to vector<12x12xf32>
    %cst_342 = arith.constant dense<0.000000e+00> : vector<12x16xf32>
    %466 = tpu.matmul %465, %463, %cst_342 {dimension_numbers = #tpu.dot_dimension_numbers<[1], [0], [0], [1], [0, 0, 1, 1], [], []>} : vector<12x12xf32>, vector<12x16xf32>, vector<12x16xf32> -> vector<12x16xf32>
    %467 = arith.addf %462, %466 : vector<12x16xf32>
    %cst_343 = arith.constant 0.000000e+00 : f32
    %468 = vector.broadcast %cst_343 : f32 to vector<12x290xf32>
    %c0_344 = arith.constant 0 : index
    %c0_345 = arith.constant 0 : index
    %469 = vector.load %arg14[%c0_344, %c0_345] : memref<12x290xf32, #tpu.memory_space<vmem>>, vector<12x290xf32>
    tpu.vector_store %arg14[%c0_344, %c0_345], %468 {strides = array<i32>} : memref<12x290xf32, #tpu.memory_space<vmem>>, vector<12x290xf32>,
    %cst_346 = arith.constant 0.000000e+00 : f32
    %470 = vector.broadcast %cst_346 : f32 to vector<12x16xf32>
    %471 = arith.maximumf %467, %470 : vector<12x16xf32>
    %c0_347 = arith.constant 0 : index
    %c5_348 = arith.constant 5 : index
    %472 = vector.load %arg14[%c0_347, %c5_348] : memref<12x290xf32, #tpu.memory_space<vmem>>, vector<12x16xf32>
    tpu.vector_store %arg14[%c0_347, %c5_348], %471 {strides = array<i32>} : memref<12x290xf32, #tpu.memory_space<vmem>>, vector<12x16xf32>,
    %473 = tpu.iota {dimensions = array<i32: 1>} : vector<1x16xi32>
    %c4_i32 = arith.constant 4 : i32
    %c0_i32_349 = arith.constant 0 : i32
    %474 = arith.cmpi eq, %c4_i32, %c0_i32_349 : i32
    %c1_i32_350 = arith.constant 1 : i32
    %475 = arith.select %474, %c1_i32_350, %c4_i32 : i32
    %476 = vector.broadcast %475 : i32 to vector<1x16xi32>
    %477 = arith.remsi %473, %476 : vector<1x16xi32>
    %c0_i32_351 = arith.constant 0 : i32
    %478 = vector.broadcast %c0_i32_351 : i32 to vector<1x16xi32>
    %479 = arith.cmpi ne, %477, %478 : vector<1x16xi32>
    %c0_i32_352 = arith.constant 0 : i32
    %480 = vector.broadcast %c0_i32_352 : i32 to vector<1x16xi32>
    %481 = arith.cmpi slt, %477, %480 : vector<1x16xi32>
    %c0_i32_353 = arith.constant 0 : i32
    %482 = arith.cmpi slt, %475, %c0_i32_353 : i32
    %483 = vector.broadcast %482 : i1 to vector<1x16xi1>
    %484 = vector.broadcast %483 : vector<1x16xi1> to vector<1x16xi1>
    %485 = arith.xori %481, %484 : vector<1x16xi1>
    %486 = arith.andi %485, %479 : vector<1x16xi1>
    %487 = vector.broadcast %475 : i32 to vector<1x16xi32>
    %488 = arith.addi %477, %487 : vector<1x16xi32>
    %489 = arith.select %486, %488, %477 : vector<1x16xi1>, vector<1x16xi32>
    %cst_354 = arith.constant 0.000000e+00 : f32
    %490 = vector.broadcast %cst_354 : f32 to vector<12x16xf32>
    %c0_355 = arith.constant 0 : index
    %c0_356 = arith.constant 0 : index
    %491 = vector.load %arg14[%c0_355, %c0_356] : memref<12x290xf32, #tpu.memory_space<vmem>>, vector<12x16xf32>
    %c1_i32_357 = arith.constant 1 : i32
    %492 = vector.broadcast %c1_i32_357 : i32 to vector<1x16xi32>
    %493 = arith.cmpi sge, %489, %492 : vector<1x16xi32>
    %cst_358 = arith.constant 0.000000e+00 : f32
    %494 = vector.shape_cast %493 : vector<1x16xi1> to vector<1x16xi1>
    %495 = vector.broadcast %494 : vector<1x16xi1> to vector<12x16xi1>
    %496 = vector.broadcast %cst_358 : f32 to vector<12x16xf32>
    %497 = arith.select %495, %491, %496 : vector<12x16xi1>, vector<12x16xf32>
    %c0_359 = arith.constant 0 : index
    %c0_360 = arith.constant 0 : index
    %c0_361 = arith.constant 0 : index
    %498 = vector.load %arg8[%c0_359, %c0_360, %c0_361] : memref<9x12x12xf32, #tpu.memory_space<vmem>>, vector<1x12x12xf32>
    %499 = vector.shape_cast %498 : vector<1x12x12xf32> to vector<12x12xf32>
    %cst_362 = arith.constant dense<0.000000e+00> : vector<12x16xf32>
    %500 = tpu.matmul %499, %497, %cst_362 {dimension_numbers = #tpu.dot_dimension_numbers<[1], [0], [0], [1], [0, 0, 1, 1], [], []>} : vector<12x12xf32>, vector<12x16xf32>, vector<12x16xf32> -> vector<12x16xf32>
    %501 = arith.addf %490, %500 : vector<12x16xf32>
    %c0_363 = arith.constant 0 : index
    %c1_364 = arith.constant 1 : index
    %502 = vector.load %arg14[%c0_363, %c1_364] : memref<12x290xf32, #tpu.memory_space<vmem>>, vector<12x16xf32>
    %c1_365 = arith.constant 1 : index
    %c0_366 = arith.constant 0 : index
    %c0_367 = arith.constant 0 : index
    %503 = vector.load %arg8[%c1_365, %c0_366, %c0_367] : memref<9x12x12xf32, #tpu.memory_space<vmem>>, vector<1x12x12xf32>
    %504 = vector.shape_cast %503 : vector<1x12x12xf32> to vector<12x12xf32>
    %cst_368 = arith.constant dense<0.000000e+00> : vector<12x16xf32>
    %505 = tpu.matmul %504, %502, %cst_368 {dimension_numbers = #tpu.dot_dimension_numbers<[1], [0], [0], [1], [0, 0, 1, 1], [], []>} : vector<12x12xf32>, vector<12x16xf32>, vector<12x16xf32> -> vector<12x16xf32>
    %506 = arith.addf %501, %505 : vector<12x16xf32>
    %c0_369 = arith.constant 0 : index
    %c2_370 = arith.constant 2 : index
    %507 = vector.load %arg14[%c0_369, %c2_370] : memref<12x290xf32, #tpu.memory_space<vmem>>, vector<12x16xf32>
    %c2_i32 = arith.constant 2 : i32
    %508 = vector.broadcast %c2_i32 : i32 to vector<1x16xi32>
    %509 = arith.cmpi sle, %489, %508 : vector<1x16xi32>
    %cst_371 = arith.constant 0.000000e+00 : f32
    %510 = vector.shape_cast %509 : vector<1x16xi1> to vector<1x16xi1>
    %511 = vector.broadcast %510 : vector<1x16xi1> to vector<12x16xi1>
    %512 = vector.broadcast %cst_371 : f32 to vector<12x16xf32>
    %513 = arith.select %511, %507, %512 : vector<12x16xi1>, vector<12x16xf32>
    %c2_372 = arith.constant 2 : index
    %c0_373 = arith.constant 0 : index
    %c0_374 = arith.constant 0 : index
    %514 = vector.load %arg8[%c2_372, %c0_373, %c0_374] : memref<9x12x12xf32, #tpu.memory_space<vmem>>, vector<1x12x12xf32>
    %515 = vector.shape_cast %514 : vector<1x12x12xf32> to vector<12x12xf32>
    %cst_375 = arith.constant dense<0.000000e+00> : vector<12x16xf32>
    %516 = tpu.matmul %515, %513, %cst_375 {dimension_numbers = #tpu.dot_dimension_numbers<[1], [0], [0], [1], [0, 0, 1, 1], [], []>} : vector<12x12xf32>, vector<12x16xf32>, vector<12x16xf32> -> vector<12x16xf32>
    %517 = arith.addf %506, %516 : vector<12x16xf32>
    %c0_376 = arith.constant 0 : index
    %c4_377 = arith.constant 4 : index
    %518 = vector.load %arg14[%c0_376, %c4_377] : memref<12x290xf32, #tpu.memory_space<vmem>>, vector<12x16xf32>
    %c1_i32_378 = arith.constant 1 : i32
    %519 = vector.broadcast %c1_i32_378 : i32 to vector<1x16xi32>
    %520 = arith.cmpi sge, %489, %519 : vector<1x16xi32>
    %cst_379 = arith.constant 0.000000e+00 : f32
    %521 = vector.shape_cast %520 : vector<1x16xi1> to vector<1x16xi1>
    %522 = vector.broadcast %521 : vector<1x16xi1> to vector<12x16xi1>
    %523 = vector.broadcast %cst_379 : f32 to vector<12x16xf32>
    %524 = arith.select %522, %518, %523 : vector<12x16xi1>, vector<12x16xf32>
    %c3_380 = arith.constant 3 : index
    %c0_381 = arith.constant 0 : index
    %c0_382 = arith.constant 0 : index
    %525 = vector.load %arg8[%c3_380, %c0_381, %c0_382] : memref<9x12x12xf32, #tpu.memory_space<vmem>>, vector<1x12x12xf32>
    %526 = vector.shape_cast %525 : vector<1x12x12xf32> to vector<12x12xf32>
    %cst_383 = arith.constant dense<0.000000e+00> : vector<12x16xf32>
    %527 = tpu.matmul %526, %524, %cst_383 {dimension_numbers = #tpu.dot_dimension_numbers<[1], [0], [0], [1], [0, 0, 1, 1], [], []>} : vector<12x12xf32>, vector<12x16xf32>, vector<12x16xf32> -> vector<12x16xf32>
    %528 = arith.addf %517, %527 : vector<12x16xf32>
    %c0_384 = arith.constant 0 : index
    %c5_385 = arith.constant 5 : index
    %529 = vector.load %arg14[%c0_384, %c5_385] : memref<12x290xf32, #tpu.memory_space<vmem>>, vector<12x16xf32>
    %c4_386 = arith.constant 4 : index
    %c0_387 = arith.constant 0 : index
    %c0_388 = arith.constant 0 : index
    %530 = vector.load %arg8[%c4_386, %c0_387, %c0_388] : memref<9x12x12xf32, #tpu.memory_space<vmem>>, vector<1x12x12xf32>
    %531 = vector.shape_cast %530 : vector<1x12x12xf32> to vector<12x12xf32>
    %cst_389 = arith.constant dense<0.000000e+00> : vector<12x16xf32>
    %532 = tpu.matmul %531, %529, %cst_389 {dimension_numbers = #tpu.dot_dimension_numbers<[1], [0], [0], [1], [0, 0, 1, 1], [], []>} : vector<12x12xf32>, vector<12x16xf32>, vector<12x16xf32> -> vector<12x16xf32>
    %533 = arith.addf %528, %532 : vector<12x16xf32>
    %c0_390 = arith.constant 0 : index
    %c6_391 = arith.constant 6 : index
    %534 = vector.load %arg14[%c0_390, %c6_391] : memref<12x290xf32, #tpu.memory_space<vmem>>, vector<12x16xf32>
    %c2_i32_392 = arith.constant 2 : i32
    %535 = vector.broadcast %c2_i32_392 : i32 to vector<1x16xi32>
    %536 = arith.cmpi sle, %489, %535 : vector<1x16xi32>
    %cst_393 = arith.constant 0.000000e+00 : f32
    %537 = vector.shape_cast %536 : vector<1x16xi1> to vector<1x16xi1>
    %538 = vector.broadcast %537 : vector<1x16xi1> to vector<12x16xi1>
    %539 = vector.broadcast %cst_393 : f32 to vector<12x16xf32>
    %540 = arith.select %538, %534, %539 : vector<12x16xi1>, vector<12x16xf32>
    %c5_394 = arith.constant 5 : index
    %c0_395 = arith.constant 0 : index
    %c0_396 = arith.constant 0 : index
    %541 = vector.load %arg8[%c5_394, %c0_395, %c0_396] : memref<9x12x12xf32, #tpu.memory_space<vmem>>, vector<1x12x12xf32>
    %542 = vector.shape_cast %541 : vector<1x12x12xf32> to vector<12x12xf32>
    %cst_397 = arith.constant dense<0.000000e+00> : vector<12x16xf32>
    %543 = tpu.matmul %542, %540, %cst_397 {dimension_numbers = #tpu.dot_dimension_numbers<[1], [0], [0], [1], [0, 0, 1, 1], [], []>} : vector<12x12xf32>, vector<12x16xf32>, vector<12x16xf32> -> vector<12x16xf32>
    %544 = arith.addf %533, %543 : vector<12x16xf32>
    %c0_398 = arith.constant 0 : index
    %c8_399 = arith.constant 8 : index
    %545 = vector.load %arg14[%c0_398, %c8_399] : memref<12x290xf32, #tpu.memory_space<vmem>>, vector<12x16xf32>
    %c1_i32_400 = arith.constant 1 : i32
    %546 = vector.broadcast %c1_i32_400 : i32 to vector<1x16xi32>
    %547 = arith.cmpi sge, %489, %546 : vector<1x16xi32>
    %cst_401 = arith.constant 0.000000e+00 : f32
    %548 = vector.shape_cast %547 : vector<1x16xi1> to vector<1x16xi1>
    %549 = vector.broadcast %548 : vector<1x16xi1> to vector<12x16xi1>
    %550 = vector.broadcast %cst_401 : f32 to vector<12x16xf32>
    %551 = arith.select %549, %545, %550 : vector<12x16xi1>, vector<12x16xf32>
    %c6_402 = arith.constant 6 : index
    %c0_403 = arith.constant 0 : index
    %c0_404 = arith.constant 0 : index
    %552 = vector.load %arg8[%c6_402, %c0_403, %c0_404] : memref<9x12x12xf32, #tpu.memory_space<vmem>>, vector<1x12x12xf32>
    %553 = vector.shape_cast %552 : vector<1x12x12xf32> to vector<12x12xf32>
    %cst_405 = arith.constant dense<0.000000e+00> : vector<12x16xf32>
    %554 = tpu.matmul %553, %551, %cst_405 {dimension_numbers = #tpu.dot_dimension_numbers<[1], [0], [0], [1], [0, 0, 1, 1], [], []>} : vector<12x12xf32>, vector<12x16xf32>, vector<12x16xf32> -> vector<12x16xf32>
    %555 = arith.addf %544, %554 : vector<12x16xf32>
    %c0_406 = arith.constant 0 : index
    %c9_407 = arith.constant 9 : index
    %556 = vector.load %arg14[%c0_406, %c9_407] : memref<12x290xf32, #tpu.memory_space<vmem>>, vector<12x16xf32>
    %c7_408 = arith.constant 7 : index
    %c0_409 = arith.constant 0 : index
    %c0_410 = arith.constant 0 : index
    %557 = vector.load %arg8[%c7_408, %c0_409, %c0_410] : memref<9x12x12xf32, #tpu.memory_space<vmem>>, vector<1x12x12xf32>
    %558 = vector.shape_cast %557 : vector<1x12x12xf32> to vector<12x12xf32>
    %cst_411 = arith.constant dense<0.000000e+00> : vector<12x16xf32>
    %559 = tpu.matmul %558, %556, %cst_411 {dimension_numbers = #tpu.dot_dimension_numbers<[1], [0], [0], [1], [0, 0, 1, 1], [], []>} : vector<12x12xf32>, vector<12x16xf32>, vector<12x16xf32> -> vector<12x16xf32>
    %560 = arith.addf %555, %559 : vector<12x16xf32>
    %c0_412 = arith.constant 0 : index
    %c10_413 = arith.constant 10 : index
    %561 = vector.load %arg14[%c0_412, %c10_413] : memref<12x290xf32, #tpu.memory_space<vmem>>, vector<12x16xf32>
    %c2_i32_414 = arith.constant 2 : i32
    %562 = vector.broadcast %c2_i32_414 : i32 to vector<1x16xi32>
    %563 = arith.cmpi sle, %489, %562 : vector<1x16xi32>
    %cst_415 = arith.constant 0.000000e+00 : f32
    %564 = vector.shape_cast %563 : vector<1x16xi1> to vector<1x16xi1>
    %565 = vector.broadcast %564 : vector<1x16xi1> to vector<12x16xi1>
    %566 = vector.broadcast %cst_415 : f32 to vector<12x16xf32>
    %567 = arith.select %565, %561, %566 : vector<12x16xi1>, vector<12x16xf32>
    %c8_416 = arith.constant 8 : index
    %c0_417 = arith.constant 0 : index
    %c0_418 = arith.constant 0 : index
    %568 = vector.load %arg8[%c8_416, %c0_417, %c0_418] : memref<9x12x12xf32, #tpu.memory_space<vmem>>, vector<1x12x12xf32>
    %569 = vector.shape_cast %568 : vector<1x12x12xf32> to vector<12x12xf32>
    %cst_419 = arith.constant dense<0.000000e+00> : vector<12x16xf32>
    %570 = tpu.matmul %569, %567, %cst_419 {dimension_numbers = #tpu.dot_dimension_numbers<[1], [0], [0], [1], [0, 0, 1, 1], [], []>} : vector<12x12xf32>, vector<12x16xf32>, vector<12x16xf32> -> vector<12x16xf32>
    %571 = arith.addf %560, %570 : vector<12x16xf32>
    %cst_420 = arith.constant 0.000000e+00 : f32
    %572 = vector.broadcast %cst_420 : f32 to vector<12x290xf32>
    %c0_421 = arith.constant 0 : index
    %c0_422 = arith.constant 0 : index
    %573 = vector.load %arg15[%c0_421, %c0_422] : memref<12x290xf32, #tpu.memory_space<vmem>>, vector<12x290xf32>
    tpu.vector_store %arg15[%c0_421, %c0_422], %572 {strides = array<i32>} : memref<12x290xf32, #tpu.memory_space<vmem>>, vector<12x290xf32>,
    %cst_423 = arith.constant 0.000000e+00 : f32
    %574 = vector.broadcast %cst_423 : f32 to vector<12x16xf32>
    %575 = arith.maximumf %571, %574 : vector<12x16xf32>
    %c0_424 = arith.constant 0 : index
    %c5_425 = arith.constant 5 : index
    %576 = vector.load %arg15[%c0_424, %c5_425] : memref<12x290xf32, #tpu.memory_space<vmem>>, vector<12x16xf32>
    tpu.vector_store %arg15[%c0_424, %c5_425], %575 {strides = array<i32>} : memref<12x290xf32, #tpu.memory_space<vmem>>, vector<12x16xf32>,
    %577 = tpu.iota {dimensions = array<i32: 1>} : vector<1x16xi32>
    %c4_i32_426 = arith.constant 4 : i32
    %c0_i32_427 = arith.constant 0 : i32
    %578 = arith.cmpi eq, %c4_i32_426, %c0_i32_427 : i32
    %c1_i32_428 = arith.constant 1 : i32
    %579 = arith.select %578, %c1_i32_428, %c4_i32_426 : i32
    %580 = vector.broadcast %579 : i32 to vector<1x16xi32>
    %581 = arith.remsi %577, %580 : vector<1x16xi32>
    %c0_i32_429 = arith.constant 0 : i32
    %582 = vector.broadcast %c0_i32_429 : i32 to vector<1x16xi32>
    %583 = arith.cmpi ne, %581, %582 : vector<1x16xi32>
    %c0_i32_430 = arith.constant 0 : i32
    %584 = vector.broadcast %c0_i32_430 : i32 to vector<1x16xi32>
    %585 = arith.cmpi slt, %581, %584 : vector<1x16xi32>
    %c0_i32_431 = arith.constant 0 : i32
    %586 = arith.cmpi slt, %579, %c0_i32_431 : i32
    %587 = vector.broadcast %586 : i1 to vector<1x16xi1>
    %588 = vector.broadcast %587 : vector<1x16xi1> to vector<1x16xi1>
    %589 = arith.xori %585, %588 : vector<1x16xi1>
    %590 = arith.andi %589, %583 : vector<1x16xi1>
    %591 = vector.broadcast %579 : i32 to vector<1x16xi32>
    %592 = arith.addi %581, %591 : vector<1x16xi32>
    %593 = arith.select %590, %592, %581 : vector<1x16xi1>, vector<1x16xi32>
    %cst_432 = arith.constant 0.000000e+00 : f32
    %594 = vector.broadcast %cst_432 : f32 to vector<12x16xf32>
    %c0_433 = arith.constant 0 : index
    %c0_434 = arith.constant 0 : index
    %595 = vector.load %arg15[%c0_433, %c0_434] : memref<12x290xf32, #tpu.memory_space<vmem>>, vector<12x16xf32>
    %c1_i32_435 = arith.constant 1 : i32
    %596 = vector.broadcast %c1_i32_435 : i32 to vector<1x16xi32>
    %597 = arith.cmpi sge, %593, %596 : vector<1x16xi32>
    %cst_436 = arith.constant 0.000000e+00 : f32
    %598 = vector.shape_cast %597 : vector<1x16xi1> to vector<1x16xi1>
    %599 = vector.broadcast %598 : vector<1x16xi1> to vector<12x16xi1>
    %600 = vector.broadcast %cst_436 : f32 to vector<12x16xf32>
    %601 = arith.select %599, %595, %600 : vector<12x16xi1>, vector<12x16xf32>
    %c0_437 = arith.constant 0 : index
    %c0_438 = arith.constant 0 : index
    %c0_439 = arith.constant 0 : index
    %602 = vector.load %arg9[%c0_437, %c0_438, %c0_439] : memref<9x12x12xf32, #tpu.memory_space<vmem>>, vector<1x12x12xf32>
    %603 = vector.shape_cast %602 : vector<1x12x12xf32> to vector<12x12xf32>
    %cst_440 = arith.constant dense<0.000000e+00> : vector<12x16xf32>
    %604 = tpu.matmul %603, %601, %cst_440 {dimension_numbers = #tpu.dot_dimension_numbers<[1], [0], [0], [1], [0, 0, 1, 1], [], []>} : vector<12x12xf32>, vector<12x16xf32>, vector<12x16xf32> -> vector<12x16xf32>
    %605 = arith.addf %594, %604 : vector<12x16xf32>
    %c0_441 = arith.constant 0 : index
    %c1_442 = arith.constant 1 : index
    %606 = vector.load %arg15[%c0_441, %c1_442] : memref<12x290xf32, #tpu.memory_space<vmem>>, vector<12x16xf32>
    %c1_443 = arith.constant 1 : index
    %c0_444 = arith.constant 0 : index
    %c0_445 = arith.constant 0 : index
    %607 = vector.load %arg9[%c1_443, %c0_444, %c0_445] : memref<9x12x12xf32, #tpu.memory_space<vmem>>, vector<1x12x12xf32>
    %608 = vector.shape_cast %607 : vector<1x12x12xf32> to vector<12x12xf32>
    %cst_446 = arith.constant dense<0.000000e+00> : vector<12x16xf32>
    %609 = tpu.matmul %608, %606, %cst_446 {dimension_numbers = #tpu.dot_dimension_numbers<[1], [0], [0], [1], [0, 0, 1, 1], [], []>} : vector<12x12xf32>, vector<12x16xf32>, vector<12x16xf32> -> vector<12x16xf32>
    %610 = arith.addf %605, %609 : vector<12x16xf32>
    %c0_447 = arith.constant 0 : index
    %c2_448 = arith.constant 2 : index
    %611 = vector.load %arg15[%c0_447, %c2_448] : memref<12x290xf32, #tpu.memory_space<vmem>>, vector<12x16xf32>
    %c2_i32_449 = arith.constant 2 : i32
    %612 = vector.broadcast %c2_i32_449 : i32 to vector<1x16xi32>
    %613 = arith.cmpi sle, %593, %612 : vector<1x16xi32>
    %cst_450 = arith.constant 0.000000e+00 : f32
    %614 = vector.shape_cast %613 : vector<1x16xi1> to vector<1x16xi1>
    %615 = vector.broadcast %614 : vector<1x16xi1> to vector<12x16xi1>
    %616 = vector.broadcast %cst_450 : f32 to vector<12x16xf32>
    %617 = arith.select %615, %611, %616 : vector<12x16xi1>, vector<12x16xf32>
    %c2_451 = arith.constant 2 : index
    %c0_452 = arith.constant 0 : index
    %c0_453 = arith.constant 0 : index
    %618 = vector.load %arg9[%c2_451, %c0_452, %c0_453] : memref<9x12x12xf32, #tpu.memory_space<vmem>>, vector<1x12x12xf32>
    %619 = vector.shape_cast %618 : vector<1x12x12xf32> to vector<12x12xf32>
    %cst_454 = arith.constant dense<0.000000e+00> : vector<12x16xf32>
    %620 = tpu.matmul %619, %617, %cst_454 {dimension_numbers = #tpu.dot_dimension_numbers<[1], [0], [0], [1], [0, 0, 1, 1], [], []>} : vector<12x12xf32>, vector<12x16xf32>, vector<12x16xf32> -> vector<12x16xf32>
    %621 = arith.addf %610, %620 : vector<12x16xf32>
    %c0_455 = arith.constant 0 : index
    %c4_456 = arith.constant 4 : index
    %622 = vector.load %arg15[%c0_455, %c4_456] : memref<12x290xf32, #tpu.memory_space<vmem>>, vector<12x16xf32>
    %c1_i32_457 = arith.constant 1 : i32
    %623 = vector.broadcast %c1_i32_457 : i32 to vector<1x16xi32>
    %624 = arith.cmpi sge, %593, %623 : vector<1x16xi32>
    %cst_458 = arith.constant 0.000000e+00 : f32
    %625 = vector.shape_cast %624 : vector<1x16xi1> to vector<1x16xi1>
    %626 = vector.broadcast %625 : vector<1x16xi1> to vector<12x16xi1>
    %627 = vector.broadcast %cst_458 : f32 to vector<12x16xf32>
    %628 = arith.select %626, %622, %627 : vector<12x16xi1>, vector<12x16xf32>
    %c3_459 = arith.constant 3 : index
    %c0_460 = arith.constant 0 : index
    %c0_461 = arith.constant 0 : index
    %629 = vector.load %arg9[%c3_459, %c0_460, %c0_461] : memref<9x12x12xf32, #tpu.memory_space<vmem>>, vector<1x12x12xf32>
    %630 = vector.shape_cast %629 : vector<1x12x12xf32> to vector<12x12xf32>
    %cst_462 = arith.constant dense<0.000000e+00> : vector<12x16xf32>
    %631 = tpu.matmul %630, %628, %cst_462 {dimension_numbers = #tpu.dot_dimension_numbers<[1], [0], [0], [1], [0, 0, 1, 1], [], []>} : vector<12x12xf32>, vector<12x16xf32>, vector<12x16xf32> -> vector<12x16xf32>
    %632 = arith.addf %621, %631 : vector<12x16xf32>
    %c0_463 = arith.constant 0 : index
    %c5_464 = arith.constant 5 : index
    %633 = vector.load %arg15[%c0_463, %c5_464] : memref<12x290xf32, #tpu.memory_space<vmem>>, vector<12x16xf32>
    %c4_465 = arith.constant 4 : index
    %c0_466 = arith.constant 0 : index
    %c0_467 = arith.constant 0 : index
    %634 = vector.load %arg9[%c4_465, %c0_466, %c0_467] : memref<9x12x12xf32, #tpu.memory_space<vmem>>, vector<1x12x12xf32>
    %635 = vector.shape_cast %634 : vector<1x12x12xf32> to vector<12x12xf32>
    %cst_468 = arith.constant dense<0.000000e+00> : vector<12x16xf32>
    %636 = tpu.matmul %635, %633, %cst_468 {dimension_numbers = #tpu.dot_dimension_numbers<[1], [0], [0], [1], [0, 0, 1, 1], [], []>} : vector<12x12xf32>, vector<12x16xf32>, vector<12x16xf32> -> vector<12x16xf32>
    %637 = arith.addf %632, %636 : vector<12x16xf32>
    %c0_469 = arith.constant 0 : index
    %c6_470 = arith.constant 6 : index
    %638 = vector.load %arg15[%c0_469, %c6_470] : memref<12x290xf32, #tpu.memory_space<vmem>>, vector<12x16xf32>
    %c2_i32_471 = arith.constant 2 : i32
    %639 = vector.broadcast %c2_i32_471 : i32 to vector<1x16xi32>
    %640 = arith.cmpi sle, %593, %639 : vector<1x16xi32>
    %cst_472 = arith.constant 0.000000e+00 : f32
    %641 = vector.shape_cast %640 : vector<1x16xi1> to vector<1x16xi1>
    %642 = vector.broadcast %641 : vector<1x16xi1> to vector<12x16xi1>
    %643 = vector.broadcast %cst_472 : f32 to vector<12x16xf32>
    %644 = arith.select %642, %638, %643 : vector<12x16xi1>, vector<12x16xf32>
    %c5_473 = arith.constant 5 : index
    %c0_474 = arith.constant 0 : index
    %c0_475 = arith.constant 0 : index
    %645 = vector.load %arg9[%c5_473, %c0_474, %c0_475] : memref<9x12x12xf32, #tpu.memory_space<vmem>>, vector<1x12x12xf32>
    %646 = vector.shape_cast %645 : vector<1x12x12xf32> to vector<12x12xf32>
    %cst_476 = arith.constant dense<0.000000e+00> : vector<12x16xf32>
    %647 = tpu.matmul %646, %644, %cst_476 {dimension_numbers = #tpu.dot_dimension_numbers<[1], [0], [0], [1], [0, 0, 1, 1], [], []>} : vector<12x12xf32>, vector<12x16xf32>, vector<12x16xf32> -> vector<12x16xf32>
    %648 = arith.addf %637, %647 : vector<12x16xf32>
    %c0_477 = arith.constant 0 : index
    %c8_478 = arith.constant 8 : index
    %649 = vector.load %arg15[%c0_477, %c8_478] : memref<12x290xf32, #tpu.memory_space<vmem>>, vector<12x16xf32>
    %c1_i32_479 = arith.constant 1 : i32
    %650 = vector.broadcast %c1_i32_479 : i32 to vector<1x16xi32>
    %651 = arith.cmpi sge, %593, %650 : vector<1x16xi32>
    %cst_480 = arith.constant 0.000000e+00 : f32
    %652 = vector.shape_cast %651 : vector<1x16xi1> to vector<1x16xi1>
    %653 = vector.broadcast %652 : vector<1x16xi1> to vector<12x16xi1>
    %654 = vector.broadcast %cst_480 : f32 to vector<12x16xf32>
    %655 = arith.select %653, %649, %654 : vector<12x16xi1>, vector<12x16xf32>
    %c6_481 = arith.constant 6 : index
    %c0_482 = arith.constant 0 : index
    %c0_483 = arith.constant 0 : index
    %656 = vector.load %arg9[%c6_481, %c0_482, %c0_483] : memref<9x12x12xf32, #tpu.memory_space<vmem>>, vector<1x12x12xf32>
    %657 = vector.shape_cast %656 : vector<1x12x12xf32> to vector<12x12xf32>
    %cst_484 = arith.constant dense<0.000000e+00> : vector<12x16xf32>
    %658 = tpu.matmul %657, %655, %cst_484 {dimension_numbers = #tpu.dot_dimension_numbers<[1], [0], [0], [1], [0, 0, 1, 1], [], []>} : vector<12x12xf32>, vector<12x16xf32>, vector<12x16xf32> -> vector<12x16xf32>
    %659 = arith.addf %648, %658 : vector<12x16xf32>
    %c0_485 = arith.constant 0 : index
    %c9_486 = arith.constant 9 : index
    %660 = vector.load %arg15[%c0_485, %c9_486] : memref<12x290xf32, #tpu.memory_space<vmem>>, vector<12x16xf32>
    %c7_487 = arith.constant 7 : index
    %c0_488 = arith.constant 0 : index
    %c0_489 = arith.constant 0 : index
    %661 = vector.load %arg9[%c7_487, %c0_488, %c0_489] : memref<9x12x12xf32, #tpu.memory_space<vmem>>, vector<1x12x12xf32>
    %662 = vector.shape_cast %661 : vector<1x12x12xf32> to vector<12x12xf32>
    %cst_490 = arith.constant dense<0.000000e+00> : vector<12x16xf32>
    %663 = tpu.matmul %662, %660, %cst_490 {dimension_numbers = #tpu.dot_dimension_numbers<[1], [0], [0], [1], [0, 0, 1, 1], [], []>} : vector<12x12xf32>, vector<12x16xf32>, vector<12x16xf32> -> vector<12x16xf32>
    %664 = arith.addf %659, %663 : vector<12x16xf32>
    %c0_491 = arith.constant 0 : index
    %c10_492 = arith.constant 10 : index
    %665 = vector.load %arg15[%c0_491, %c10_492] : memref<12x290xf32, #tpu.memory_space<vmem>>, vector<12x16xf32>
    %c2_i32_493 = arith.constant 2 : i32
    %666 = vector.broadcast %c2_i32_493 : i32 to vector<1x16xi32>
    %667 = arith.cmpi sle, %593, %666 : vector<1x16xi32>
    %cst_494 = arith.constant 0.000000e+00 : f32
    %668 = vector.shape_cast %667 : vector<1x16xi1> to vector<1x16xi1>
    %669 = vector.broadcast %668 : vector<1x16xi1> to vector<12x16xi1>
    %670 = vector.broadcast %cst_494 : f32 to vector<12x16xf32>
    %671 = arith.select %669, %665, %670 : vector<12x16xi1>, vector<12x16xf32>
    %c8_495 = arith.constant 8 : index
    %c0_496 = arith.constant 0 : index
    %c0_497 = arith.constant 0 : index
    %672 = vector.load %arg9[%c8_495, %c0_496, %c0_497] : memref<9x12x12xf32, #tpu.memory_space<vmem>>, vector<1x12x12xf32>
    %673 = vector.shape_cast %672 : vector<1x12x12xf32> to vector<12x12xf32>
    %cst_498 = arith.constant dense<0.000000e+00> : vector<12x16xf32>
    %674 = tpu.matmul %673, %671, %cst_498 {dimension_numbers = #tpu.dot_dimension_numbers<[1], [0], [0], [1], [0, 0, 1, 1], [], []>} : vector<12x12xf32>, vector<12x16xf32>, vector<12x16xf32> -> vector<12x16xf32>
    %675 = arith.addf %664, %674 : vector<12x16xf32>
    %cst_499 = arith.constant 0.000000e+00 : f32
    %676 = vector.broadcast %cst_499 : f32 to vector<12x290xf32>
    %c0_500 = arith.constant 0 : index
    %c0_501 = arith.constant 0 : index
    %677 = vector.load %arg14[%c0_500, %c0_501] : memref<12x290xf32, #tpu.memory_space<vmem>>, vector<12x290xf32>
    tpu.vector_store %arg14[%c0_500, %c0_501], %676 {strides = array<i32>} : memref<12x290xf32, #tpu.memory_space<vmem>>, vector<12x290xf32>,
    %cst_502 = arith.constant 0.000000e+00 : f32
    %678 = vector.broadcast %cst_502 : f32 to vector<12x16xf32>
    %679 = arith.maximumf %675, %678 : vector<12x16xf32>
    %c0_503 = arith.constant 0 : index
    %c5_504 = arith.constant 5 : index
    %680 = vector.load %arg14[%c0_503, %c5_504] : memref<12x290xf32, #tpu.memory_space<vmem>>, vector<12x16xf32>
    tpu.vector_store %arg14[%c0_503, %c5_504], %679 {strides = array<i32>} : memref<12x290xf32, #tpu.memory_space<vmem>>, vector<12x16xf32>,
    %681 = tpu.iota {dimensions = array<i32: 1>} : vector<1x16xi32>
    %c4_i32_505 = arith.constant 4 : i32
    %c0_i32_506 = arith.constant 0 : i32
    %682 = arith.cmpi eq, %c4_i32_505, %c0_i32_506 : i32
    %c1_i32_507 = arith.constant 1 : i32
    %683 = arith.select %682, %c1_i32_507, %c4_i32_505 : i32
    %684 = vector.broadcast %683 : i32 to vector<1x16xi32>
    %685 = arith.remsi %681, %684 : vector<1x16xi32>
    %c0_i32_508 = arith.constant 0 : i32
    %686 = vector.broadcast %c0_i32_508 : i32 to vector<1x16xi32>
    %687 = arith.cmpi ne, %685, %686 : vector<1x16xi32>
    %c0_i32_509 = arith.constant 0 : i32
    %688 = vector.broadcast %c0_i32_509 : i32 to vector<1x16xi32>
    %689 = arith.cmpi slt, %685, %688 : vector<1x16xi32>
    %c0_i32_510 = arith.constant 0 : i32
    %690 = arith.cmpi slt, %683, %c0_i32_510 : i32
    %691 = vector.broadcast %690 : i1 to vector<1x16xi1>
    %692 = vector.broadcast %691 : vector<1x16xi1> to vector<1x16xi1>
    %693 = arith.xori %689, %692 : vector<1x16xi1>
    %694 = arith.andi %693, %687 : vector<1x16xi1>
    %695 = vector.broadcast %683 : i32 to vector<1x16xi32>
    %696 = arith.addi %685, %695 : vector<1x16xi32>
    %697 = arith.select %694, %696, %685 : vector<1x16xi1>, vector<1x16xi32>
    %cst_511 = arith.constant 0.000000e+00 : f32
    %698 = vector.broadcast %cst_511 : f32 to vector<10x16xf32>
    %c0_512 = arith.constant 0 : index
    %c0_513 = arith.constant 0 : index
    %699 = vector.load %arg14[%c0_512, %c0_513] : memref<12x290xf32, #tpu.memory_space<vmem>>, vector<12x16xf32>
    %c1_i32_514 = arith.constant 1 : i32
    %700 = vector.broadcast %c1_i32_514 : i32 to vector<1x16xi32>
    %701 = arith.cmpi sge, %697, %700 : vector<1x16xi32>
    %cst_515 = arith.constant 0.000000e+00 : f32
    %702 = vector.shape_cast %701 : vector<1x16xi1> to vector<1x16xi1>
    %703 = vector.broadcast %702 : vector<1x16xi1> to vector<12x16xi1>
    %704 = vector.broadcast %cst_515 : f32 to vector<12x16xf32>
    %705 = arith.select %703, %699, %704 : vector<12x16xi1>, vector<12x16xf32>
    %c0_516 = arith.constant 0 : index
    %c0_517 = arith.constant 0 : index
    %c0_518 = arith.constant 0 : index
    %706 = vector.load %arg10[%c0_516, %c0_517, %c0_518] : memref<9x10x12xf32, #tpu.memory_space<vmem>>, vector<1x10x12xf32>
    %707 = vector.shape_cast %706 : vector<1x10x12xf32> to vector<10x12xf32>
    %cst_519 = arith.constant dense<0.000000e+00> : vector<10x16xf32>
    %708 = tpu.matmul %707, %705, %cst_519 {dimension_numbers = #tpu.dot_dimension_numbers<[1], [0], [0], [1], [0, 0, 1, 1], [], []>} : vector<10x12xf32>, vector<12x16xf32>, vector<10x16xf32> -> vector<10x16xf32>
    %709 = arith.addf %698, %708 : vector<10x16xf32>
    %c0_520 = arith.constant 0 : index
    %c1_521 = arith.constant 1 : index
    %710 = vector.load %arg14[%c0_520, %c1_521] : memref<12x290xf32, #tpu.memory_space<vmem>>, vector<12x16xf32>
    %c1_522 = arith.constant 1 : index
    %c0_523 = arith.constant 0 : index
    %c0_524 = arith.constant 0 : index
    %711 = vector.load %arg10[%c1_522, %c0_523, %c0_524] : memref<9x10x12xf32, #tpu.memory_space<vmem>>, vector<1x10x12xf32>
    %712 = vector.shape_cast %711 : vector<1x10x12xf32> to vector<10x12xf32>
    %cst_525 = arith.constant dense<0.000000e+00> : vector<10x16xf32>
    %713 = tpu.matmul %712, %710, %cst_525 {dimension_numbers = #tpu.dot_dimension_numbers<[1], [0], [0], [1], [0, 0, 1, 1], [], []>} : vector<10x12xf32>, vector<12x16xf32>, vector<10x16xf32> -> vector<10x16xf32>
    %714 = arith.addf %709, %713 : vector<10x16xf32>
    %c0_526 = arith.constant 0 : index
    %c2_527 = arith.constant 2 : index
    %715 = vector.load %arg14[%c0_526, %c2_527] : memref<12x290xf32, #tpu.memory_space<vmem>>, vector<12x16xf32>
    %c2_i32_528 = arith.constant 2 : i32
    %716 = vector.broadcast %c2_i32_528 : i32 to vector<1x16xi32>
    %717 = arith.cmpi sle, %697, %716 : vector<1x16xi32>
    %cst_529 = arith.constant 0.000000e+00 : f32
    %718 = vector.shape_cast %717 : vector<1x16xi1> to vector<1x16xi1>
    %719 = vector.broadcast %718 : vector<1x16xi1> to vector<12x16xi1>
    %720 = vector.broadcast %cst_529 : f32 to vector<12x16xf32>
    %721 = arith.select %719, %715, %720 : vector<12x16xi1>, vector<12x16xf32>
    %c2_530 = arith.constant 2 : index
    %c0_531 = arith.constant 0 : index
    %c0_532 = arith.constant 0 : index
    %722 = vector.load %arg10[%c2_530, %c0_531, %c0_532] : memref<9x10x12xf32, #tpu.memory_space<vmem>>, vector<1x10x12xf32>
    %723 = vector.shape_cast %722 : vector<1x10x12xf32> to vector<10x12xf32>
    %cst_533 = arith.constant dense<0.000000e+00> : vector<10x16xf32>
    %724 = tpu.matmul %723, %721, %cst_533 {dimension_numbers = #tpu.dot_dimension_numbers<[1], [0], [0], [1], [0, 0, 1, 1], [], []>} : vector<10x12xf32>, vector<12x16xf32>, vector<10x16xf32> -> vector<10x16xf32>
    %725 = arith.addf %714, %724 : vector<10x16xf32>
    %c0_534 = arith.constant 0 : index
    %c4_535 = arith.constant 4 : index
    %726 = vector.load %arg14[%c0_534, %c4_535] : memref<12x290xf32, #tpu.memory_space<vmem>>, vector<12x16xf32>
    %c1_i32_536 = arith.constant 1 : i32
    %727 = vector.broadcast %c1_i32_536 : i32 to vector<1x16xi32>
    %728 = arith.cmpi sge, %697, %727 : vector<1x16xi32>
    %cst_537 = arith.constant 0.000000e+00 : f32
    %729 = vector.shape_cast %728 : vector<1x16xi1> to vector<1x16xi1>
    %730 = vector.broadcast %729 : vector<1x16xi1> to vector<12x16xi1>
    %731 = vector.broadcast %cst_537 : f32 to vector<12x16xf32>
    %732 = arith.select %730, %726, %731 : vector<12x16xi1>, vector<12x16xf32>
    %c3_538 = arith.constant 3 : index
    %c0_539 = arith.constant 0 : index
    %c0_540 = arith.constant 0 : index
    %733 = vector.load %arg10[%c3_538, %c0_539, %c0_540] : memref<9x10x12xf32, #tpu.memory_space<vmem>>, vector<1x10x12xf32>
    %734 = vector.shape_cast %733 : vector<1x10x12xf32> to vector<10x12xf32>
    %cst_541 = arith.constant dense<0.000000e+00> : vector<10x16xf32>
    %735 = tpu.matmul %734, %732, %cst_541 {dimension_numbers = #tpu.dot_dimension_numbers<[1], [0], [0], [1], [0, 0, 1, 1], [], []>} : vector<10x12xf32>, vector<12x16xf32>, vector<10x16xf32> -> vector<10x16xf32>
    %736 = arith.addf %725, %735 : vector<10x16xf32>
    %c0_542 = arith.constant 0 : index
    %c5_543 = arith.constant 5 : index
    %737 = vector.load %arg14[%c0_542, %c5_543] : memref<12x290xf32, #tpu.memory_space<vmem>>, vector<12x16xf32>
    %c4_544 = arith.constant 4 : index
    %c0_545 = arith.constant 0 : index
    %c0_546 = arith.constant 0 : index
    %738 = vector.load %arg10[%c4_544, %c0_545, %c0_546] : memref<9x10x12xf32, #tpu.memory_space<vmem>>, vector<1x10x12xf32>
    %739 = vector.shape_cast %738 : vector<1x10x12xf32> to vector<10x12xf32>
    %cst_547 = arith.constant dense<0.000000e+00> : vector<10x16xf32>
    %740 = tpu.matmul %739, %737, %cst_547 {dimension_numbers = #tpu.dot_dimension_numbers<[1], [0], [0], [1], [0, 0, 1, 1], [], []>} : vector<10x12xf32>, vector<12x16xf32>, vector<10x16xf32> -> vector<10x16xf32>
    %741 = arith.addf %736, %740 : vector<10x16xf32>
    %c0_548 = arith.constant 0 : index
    %c6_549 = arith.constant 6 : index
    %742 = vector.load %arg14[%c0_548, %c6_549] : memref<12x290xf32, #tpu.memory_space<vmem>>, vector<12x16xf32>
    %c2_i32_550 = arith.constant 2 : i32
    %743 = vector.broadcast %c2_i32_550 : i32 to vector<1x16xi32>
    %744 = arith.cmpi sle, %697, %743 : vector<1x16xi32>
    %cst_551 = arith.constant 0.000000e+00 : f32
    %745 = vector.shape_cast %744 : vector<1x16xi1> to vector<1x16xi1>
    %746 = vector.broadcast %745 : vector<1x16xi1> to vector<12x16xi1>
    %747 = vector.broadcast %cst_551 : f32 to vector<12x16xf32>
    %748 = arith.select %746, %742, %747 : vector<12x16xi1>, vector<12x16xf32>
    %c5_552 = arith.constant 5 : index
    %c0_553 = arith.constant 0 : index
    %c0_554 = arith.constant 0 : index
    %749 = vector.load %arg10[%c5_552, %c0_553, %c0_554] : memref<9x10x12xf32, #tpu.memory_space<vmem>>, vector<1x10x12xf32>
    %750 = vector.shape_cast %749 : vector<1x10x12xf32> to vector<10x12xf32>
    %cst_555 = arith.constant dense<0.000000e+00> : vector<10x16xf32>
    %751 = tpu.matmul %750, %748, %cst_555 {dimension_numbers = #tpu.dot_dimension_numbers<[1], [0], [0], [1], [0, 0, 1, 1], [], []>} : vector<10x12xf32>, vector<12x16xf32>, vector<10x16xf32> -> vector<10x16xf32>
    %752 = arith.addf %741, %751 : vector<10x16xf32>
    %c0_556 = arith.constant 0 : index
    %c8_557 = arith.constant 8 : index
    %753 = vector.load %arg14[%c0_556, %c8_557] : memref<12x290xf32, #tpu.memory_space<vmem>>, vector<12x16xf32>
    %c1_i32_558 = arith.constant 1 : i32
    %754 = vector.broadcast %c1_i32_558 : i32 to vector<1x16xi32>
    %755 = arith.cmpi sge, %697, %754 : vector<1x16xi32>
    %cst_559 = arith.constant 0.000000e+00 : f32
    %756 = vector.shape_cast %755 : vector<1x16xi1> to vector<1x16xi1>
    %757 = vector.broadcast %756 : vector<1x16xi1> to vector<12x16xi1>
    %758 = vector.broadcast %cst_559 : f32 to vector<12x16xf32>
    %759 = arith.select %757, %753, %758 : vector<12x16xi1>, vector<12x16xf32>
    %c6_560 = arith.constant 6 : index
    %c0_561 = arith.constant 0 : index
    %c0_562 = arith.constant 0 : index
    %760 = vector.load %arg10[%c6_560, %c0_561, %c0_562] : memref<9x10x12xf32, #tpu.memory_space<vmem>>, vector<1x10x12xf32>
    %761 = vector.shape_cast %760 : vector<1x10x12xf32> to vector<10x12xf32>
    %cst_563 = arith.constant dense<0.000000e+00> : vector<10x16xf32>
    %762 = tpu.matmul %761, %759, %cst_563 {dimension_numbers = #tpu.dot_dimension_numbers<[1], [0], [0], [1], [0, 0, 1, 1], [], []>} : vector<10x12xf32>, vector<12x16xf32>, vector<10x16xf32> -> vector<10x16xf32>
    %763 = arith.addf %752, %762 : vector<10x16xf32>
    %c0_564 = arith.constant 0 : index
    %c9_565 = arith.constant 9 : index
    %764 = vector.load %arg14[%c0_564, %c9_565] : memref<12x290xf32, #tpu.memory_space<vmem>>, vector<12x16xf32>
    %c7_566 = arith.constant 7 : index
    %c0_567 = arith.constant 0 : index
    %c0_568 = arith.constant 0 : index
    %765 = vector.load %arg10[%c7_566, %c0_567, %c0_568] : memref<9x10x12xf32, #tpu.memory_space<vmem>>, vector<1x10x12xf32>
    %766 = vector.shape_cast %765 : vector<1x10x12xf32> to vector<10x12xf32>
    %cst_569 = arith.constant dense<0.000000e+00> : vector<10x16xf32>
    %767 = tpu.matmul %766, %764, %cst_569 {dimension_numbers = #tpu.dot_dimension_numbers<[1], [0], [0], [1], [0, 0, 1, 1], [], []>} : vector<10x12xf32>, vector<12x16xf32>, vector<10x16xf32> -> vector<10x16xf32>
    %768 = arith.addf %763, %767 : vector<10x16xf32>
    %c0_570 = arith.constant 0 : index
    %c10_571 = arith.constant 10 : index
    %769 = vector.load %arg14[%c0_570, %c10_571] : memref<12x290xf32, #tpu.memory_space<vmem>>, vector<12x16xf32>
    %c2_i32_572 = arith.constant 2 : i32
    %770 = vector.broadcast %c2_i32_572 : i32 to vector<1x16xi32>
    %771 = arith.cmpi sle, %697, %770 : vector<1x16xi32>
    %cst_573 = arith.constant 0.000000e+00 : f32
    %772 = vector.shape_cast %771 : vector<1x16xi1> to vector<1x16xi1>
    %773 = vector.broadcast %772 : vector<1x16xi1> to vector<12x16xi1>
    %774 = vector.broadcast %cst_573 : f32 to vector<12x16xf32>
    %775 = arith.select %773, %769, %774 : vector<12x16xi1>, vector<12x16xf32>
    %c8_574 = arith.constant 8 : index
    %c0_575 = arith.constant 0 : index
    %c0_576 = arith.constant 0 : index
    %776 = vector.load %arg10[%c8_574, %c0_575, %c0_576] : memref<9x10x12xf32, #tpu.memory_space<vmem>>, vector<1x10x12xf32>
    %777 = vector.shape_cast %776 : vector<1x10x12xf32> to vector<10x12xf32>
    %cst_577 = arith.constant dense<0.000000e+00> : vector<10x16xf32>
    %778 = tpu.matmul %777, %775, %cst_577 {dimension_numbers = #tpu.dot_dimension_numbers<[1], [0], [0], [1], [0, 0, 1, 1], [], []>} : vector<10x12xf32>, vector<12x16xf32>, vector<10x16xf32> -> vector<10x16xf32>
    %779 = arith.addf %768, %778 : vector<10x16xf32>
    %cst_578 = arith.constant 0.000000e+00 : f32
    %780 = vector.broadcast %cst_578 : f32 to vector<12x290xf32>
    %c0_579 = arith.constant 0 : index
    %c0_580 = arith.constant 0 : index
    %781 = vector.load %arg15[%c0_579, %c0_580] : memref<12x290xf32, #tpu.memory_space<vmem>>, vector<12x290xf32>
    tpu.vector_store %arg15[%c0_579, %c0_580], %780 {strides = array<i32>} : memref<12x290xf32, #tpu.memory_space<vmem>>, vector<12x290xf32>,
    %cst_581 = arith.constant 0.000000e+00 : f32
    %782 = vector.broadcast %cst_581 : f32 to vector<10x16xf32>
    %783 = arith.maximumf %779, %782 : vector<10x16xf32>
    %c0_582 = arith.constant 0 : index
    %c5_583 = arith.constant 5 : index
    %784 = vector.load %arg15[%c0_582, %c5_583] : memref<12x290xf32, #tpu.memory_space<vmem>>, vector<10x16xf32>
    tpu.vector_store %arg15[%c0_582, %c5_583], %783 {strides = array<i32>} : memref<12x290xf32, #tpu.memory_space<vmem>>, vector<10x16xf32>,
    %c0_584 = arith.constant 0 : index
    %c5_585 = arith.constant 5 : index
    %785 = vector.load %arg15[%c0_584, %c5_585] : memref<12x290xf32, #tpu.memory_space<vmem>>, vector<10x16xf32>
    %cst_586 = arith.constant 6.250000e-02 : f32
    %786 = vector.broadcast %cst_586 : f32 to vector<1x16xf32>
    %cst_587 = arith.constant dense<0.000000e+00> : vector<1x10xf32>
    %787 = tpu.matmul %786, %785, %cst_587 {dimension_numbers = #tpu.dot_dimension_numbers<[1], [1], [0], [0], [0, 0, 1, 0], [], []>} : vector<1x16xf32>, vector<10x16xf32>, vector<1x10xf32> -> vector<1x10xf32>
    %cst_588 = arith.constant dense<0xFF800000> : vector<1xf32>
    %788 = vector.multi_reduction <maximumf>, %787, %cst_588 [1] : vector<1x10xf32> to vector<1xf32>
    %789 = vector.shape_cast %788 : vector<1xf32> to vector<1x1xf32>
    %790 = vector.broadcast %789 : vector<1x1xf32> to vector<1x10xf32>
    %791 = arith.subf %787, %790 : vector<1x10xf32>
    %792 = math.exp %791 : vector<1x10xf32>
    %cst_589 = arith.constant dense<0.000000e+00> : vector<1xf32>
    %793 = vector.multi_reduction <add>, %792, %cst_589 [1] : vector<1x10xf32> to vector<1xf32>
    %794 = vector.shape_cast %793 : vector<1xf32> to vector<1x1xf32>
    %795 = math.log %794 : vector<1x1xf32>
    %796 = vector.broadcast %795 : vector<1x1xf32> to vector<1x10xf32>
    %797 = arith.subf %791, %796 : vector<1x10xf32>
    %c0_590 = arith.constant 0 : index
    %c0_591 = arith.constant 0 : index
    %c0_592 = arith.constant 0 : index
    %798 = vector.load %arg13[%c0_590, %c0_591, %c0_592] : memref<1x1x10xf32, #tpu.memory_space<vmem>>, vector<1x1x10xf32>
    %799 = vector.shape_cast %798 : vector<1x1x10xf32> to vector<1x10xf32>
    %800 = vector.shape_cast %797 : vector<1x10xf32> to vector<1x1x10xf32>
    tpu.vector_store %arg13[%c0_590, %c0_591, %c0_592], %800 {strides = array<i32>} : memref<1x1x10xf32, #tpu.memory_space<vmem>>, vector<1x1x10xf32>,
    return
  }
  func.func @transform_0(%arg0: i32) -> (i32, i32, i32) {
    %c0_i32 = arith.constant 0 : i32
    %c0_i32_0 = arith.constant 0 : i32
    %c0_i32_1 = arith.constant 0 : i32
    return %arg0, %c0_i32, %c0_i32_0 : i32, i32, i32
  }
  func.func @transform_1(%arg0: i32) -> (i32, i32, i32) {
    %c0_i32 = arith.constant 0 : i32
    %c0_i32_0 = arith.constant 0 : i32
    %c0_i32_1 = arith.constant 0 : i32
    %c0_i32_2 = arith.constant 0 : i32
    return %c0_i32, %c0_i32_0, %c0_i32_1 : i32, i32, i32
  }
  func.func @transform_2(%arg0: i32) -> (i32, i32, i32) {
    %c0_i32 = arith.constant 0 : i32
    %c0_i32_0 = arith.constant 0 : i32
    %c0_i32_1 = arith.constant 0 : i32
    %c0_i32_2 = arith.constant 0 : i32
    return %c0_i32, %c0_i32_0, %c0_i32_1 : i32, i32, i32
  }
  func.func @transform_3(%arg0: i32) -> (i32, i32, i32) {
    %c0_i32 = arith.constant 0 : i32
    %c0_i32_0 = arith.constant 0 : i32
    %c0_i32_1 = arith.constant 0 : i32
    %c0_i32_2 = arith.constant 0 : i32
    return %c0_i32, %c0_i32_0, %c0_i32_1 : i32, i32, i32
  }
  func.func @transform_4(%arg0: i32) -> (i32, i32, i32) {
    %c0_i32 = arith.constant 0 : i32
    %c0_i32_0 = arith.constant 0 : i32
    %c0_i32_1 = arith.constant 0 : i32
    %c0_i32_2 = arith.constant 0 : i32
    return %c0_i32, %c0_i32_0, %c0_i32_1 : i32, i32, i32
  }
  func.func @transform_5(%arg0: i32) -> (i32, i32, i32) {
    %c0_i32 = arith.constant 0 : i32
    %c0_i32_0 = arith.constant 0 : i32
    %c0_i32_1 = arith.constant 0 : i32
    %c0_i32_2 = arith.constant 0 : i32
    return %c0_i32, %c0_i32_0, %c0_i32_1 : i32, i32, i32
  }
  func.func @transform_6(%arg0: i32) -> (i32, i32, i32) {
    %c0_i32 = arith.constant 0 : i32
    %c0_i32_0 = arith.constant 0 : i32
    %c0_i32_1 = arith.constant 0 : i32
    %c0_i32_2 = arith.constant 0 : i32
    return %c0_i32, %c0_i32_0, %c0_i32_1 : i32, i32, i32
  }
  func.func @transform_7(%arg0: i32) -> (i32, i32, i32) {
    %c0_i32 = arith.constant 0 : i32
    %c0_i32_0 = arith.constant 0 : i32
    %c0_i32_1 = arith.constant 0 : i32
    %c0_i32_2 = arith.constant 0 : i32
    return %c0_i32, %c0_i32_0, %c0_i32_1 : i32, i32, i32
  }
  func.func @transform_8(%arg0: i32) -> (i32, i32, i32) {
    %c0_i32 = arith.constant 0 : i32
    %c0_i32_0 = arith.constant 0 : i32
    %c0_i32_1 = arith.constant 0 : i32
    %c0_i32_2 = arith.constant 0 : i32
    return %c0_i32, %c0_i32_0, %c0_i32_1 : i32, i32, i32
  }
  func.func @transform_9(%arg0: i32) -> (i32, i32, i32) {
    %c0_i32 = arith.constant 0 : i32
    %c0_i32_0 = arith.constant 0 : i32
    %c0_i32_1 = arith.constant 0 : i32
    %c0_i32_2 = arith.constant 0 : i32
    return %c0_i32, %c0_i32_0, %c0_i32_1 : i32, i32, i32
  }
  func.func @transform_10(%arg0: i32) -> (i32, i32) {
    %c0_i32 = arith.constant 0 : i32
    %c0_i32_0 = arith.constant 0 : i32
    %c0_i32_1 = arith.constant 0 : i32
    return %c0_i32, %c0_i32_0 : i32, i32
  }
  func.func @transform_11(%arg0: i32) -> (i32, i32) {
    %c0_i32 = arith.constant 0 : i32
    %c0_i32_0 = arith.constant 0 : i32
    %c0_i32_1 = arith.constant 0 : i32
    return %c0_i32, %c0_i32_0 : i32, i32
  }
  func.func @transform_12(%arg0: i32) -> (i32, i32, i32) {
    %c0_i32 = arith.constant 0 : i32
    %c0_i32_0 = arith.constant 0 : i32
    %c0_i32_1 = arith.constant 0 : i32
    return %arg0, %c0_i32, %c0_i32_0 : i32, i32, i32
  }
}

</mosaic_0001>

<llo_original>
// kernel: forward.1
$region0: #{forward.1}
  #allocation0 [shape = 'u32[]', space=smem, size = 0x4, offset = 0x4, fixed_abs, tag = 'smem constant byte address 0x4 - core index']
  #allocation1 [shape = 'u32[144,128]{1,0:T(1,128)}', space=vmem, size = 0x12000, scoped, tag = 'internal scratch']
  #allocation2 [shape = 'f32[12,290]{1,0:T(8,128)}', space=vmem, size = 0x6000, scoped, tag = 'scratch operand']
  #allocation3 [shape = 'f32[12,290]{1,0:T(8,128)}', space=vmem, size = 0x6000, scoped, tag = 'scratch operand']
  %s0 = inlined_call_operand.vmem [shape: f32[2,1,256], index: 0, kind: input, shape index: {}]
  %s1 = inlined_call_operand.vmem [shape: f32[9,8,1], index: 1, kind: input, shape index: {}]
  %s2 = inlined_call_operand.vmem [shape: f32[9,8,8], index: 2, kind: input, shape index: {}]
  %s3 = inlined_call_operand.vmem [shape: f32[1,12,8], index: 3, kind: input, shape index: {}]
  %s4 = inlined_call_operand.hbm [shape: f32[9,12,12], index: 4, kind: input, shape index: {}]
  %s5 = inlined_call_operand.hbm [shape: f32[9,12,12], index: 5, kind: input, shape index: {}]
  %s6 = inlined_call_operand.vmem [shape: f32[1,12,12], index: 6, kind: input, shape index: {}]
  %s7 = inlined_call_operand.hbm [shape: f32[9,12,12], index: 7, kind: input, shape index: {}]
  %s8 = inlined_call_operand.hbm [shape: f32[9,12,12], index: 8, kind: input, shape index: {}]
  %s9 = inlined_call_operand.hbm [shape: f32[9,10,12], index: 9, kind: input, shape index: {}]
  %s10 = inlined_call_operand.vmem [shape: f32[256,64], index: 10, kind: input, shape index: {}]
  %s11 = inlined_call_operand.vmem [shape: f32[64,16], index: 11, kind: input, shape index: {}]
  %s12 = inlined_call_operand.hbm [shape: f32[2,1,10], index: 12, kind: output, shape index: {}]
  %s13 = sld [smem:[#allocation0]]
  $region101: #{forward.1} parent=0
    _
  %s15 = ssub.s32 1, %s13
  %s16 = scalar_select 0, %s15, %s13
  $region1: #{forward.1} parent=0
    #allocation4 [shape = 'u8[73728]{0}', space=vmem, size = 0x12000, scoped, tag = 'input window, operand 4, single buffered']
    #allocation5 [shape = 's32[2]{0}', space=sflag, size = 0x8, scoped, tag = 'scoped memory for forward.1']
    #allocation6 [shape = 's32[2]{0}', space=sflag, size = 0x8, scoped, tag = 'scoped memory for forward.1']
    #allocation7 [shape = 'u8[73728]{0}', space=vmem, size = 0x12000, scoped, tag = 'input window, operand 5, single buffered']
    #allocation8 [shape = 's32[1]{0}', space=sflag, size = 0x4, scoped, tag = 'scoped memory for forward.1']
    #allocation9 [shape = 'u8[73728]{0}', space=vmem, size = 0x12000, scoped, tag = 'input window, operand 7, single buffered']
    #allocation10 [shape = 'u8[73728]{0}', space=vmem, size = 0x12000, scoped, tag = 'input window, operand 8, single buffered']
    #allocation11 [shape = 's32[1]{0}', space=sflag, size = 0x4, scoped, tag = 'scoped memory for forward.1']
    #allocation12 [shape = 'u8[73728]{0}', space=vmem, size = 0x12000, scoped, tag = 'input window, operand 9, single buffered']
    #allocation13 [shape = 'u8[1024]{0}', space=vmem, size = 0x400, scoped, tag = 'output window, operand 0']
    %17 = vsyncpa [#allocation5], 0
    %18 = vsyncpa [#allocation8], 0
    %19 = vsyncpa [#allocation11], 0
    %20 = vsyncpa [#allocation6], 0
    %s21 = scalar_lea.sflag [#allocation6], 1
    %22 = vsyncpa %s21, 0
    loop: start=0, step=1, limit=4
    $region2: #{forward.1} parent=1 // loop_pre_header
      _
    $region3: #{forward.1} parent=1 // loop_header
      %s24 = sphi 0, %s28
      %p25 = scmp.ge.s32.totalorder %s24, 4
      %s34 = sphi 0, %s36
      %s37 = sphi 0, %s34
      %s38 = sphi 0, %s37
      %s54 = sphi 0, %s38
      %s58 = sphi 0, %s58
      %s60 = sphi 0, %s58
      %s61 = sphi 0, %s60
      %s75 = sphi 0, %s61
      %s79 = sphi 0, %s79
      %s81 = sphi 0, %s79
      %s82 = sphi 0, %s81
      %s96 = sphi 0, %s82
      %s100 = sphi 0, %s100
      %s102 = sphi 0, %s100
      %s103 = sphi 0, %s102
      %s117 = sphi 0, %s103
      %s121 = sphi 0, %s121
      %s123 = sphi 0, %s121
      %s124 = sphi 0, %s123
      %s138 = sphi 0, %s124
      %s142 = sphi 0, %s142
      %s144 = sphi 0, %s142
      %s145 = sphi 0, %s144
      %s159 = sphi 0, %s145
      %s163 = sphi 0, %s163
      %s165 = sphi 0, %s163
      %s166 = sphi 0, %s165
      %s180 = sphi 0, %s166
      %s184 = sphi 0, %s184
      %s186 = sphi 0, %s184
      %s187 = sphi 0, %s186
      %s201 = sphi 0, %s187
      %s205 = sphi 0, %s205
      %s207 = sphi 0, %s205
      %s208 = sphi 0, %s207
      %s222 = sphi 0, %s208
      %s226 = sphi 0, %s226
      %s228 = sphi 0, %s226
      %s229 = sphi 0, %s228
      %s243 = sphi 0, %s229
      %s247 = sphi 0, %s247
      %s249 = sphi 0, %s247
      %s250 = sphi 0, %s249
      %s264 = sphi 0, %s250
      %s268 = sphi 0, %s268
      %s270 = sphi 0, %s268
      %s271 = sphi 0, %s270
      %s285 = sphi 0, %s271
      %s291 = sphi 0, %s293
      %s294 = sphi 0, %s291
      %s295 = sphi 0, %s294
      %s311 = sphi 0, %s295
    $region4: #{forward.1} parent=1 // loop_header_branch
      %27 = sbr.rel (%p25) target = $region8
    $region5: #{forward.1} parent=1 // loop_body
      %s29 = ssub.s32 %s24, 1
      %s30 = ssub.s32 %s24, 2
      %s31 = sadd.s32 %s24, 1
      %s32 = ssub.s32 %s24, %s31
      %p33 = scmp.eq.s32.totalorder %s32, 0
      %s35 = sadd.s32 %s34, 1
      %s36 = scalar_select %p33, %s34, %s35
      %p39 = pneg %p33
      %p40 = scmp.eq.s32.totalorder %s24, 1
      %p41 = por %p39, %p40
      %p42 = scmp.ne.s32.totalorder %s34, %s37
      %p43 = scmp.eq.s32.totalorder %s24, 0
      %p44 = por %p42, %p43
      %p45 = scmp.ne.s32.totalorder %s34, %s37
      %p46 = scmp.eq.s32.totalorder %s29, 1
      %p47 = por %p45, %p46
      %p48 = scmp.ne.s32.totalorder %s37, %s38
      %p49 = scmp.eq.s32.totalorder %s29, 0
      %p50 = por %p48, %p49
      %p51 = scmp.ne.s32.totalorder %s37, %s38
      %p52 = scmp.eq.s32.totalorder %s30, 1
      %p53 = por %p51, %p52
      %p55 = scmp.ne.s32.totalorder %s38, %s54
      %p56 = scmp.eq.s32.totalorder %s30, 0
      %p57 = por %p55, %p56
      %s59 = sadd.s32 %s58, 1
      %p62 = scmp.eq.s32.totalorder %s24, 1
      %p63 = scmp.ne.s32.totalorder %s58, %s60
      %p64 = scmp.eq.s32.totalorder %s24, 0
      %p65 = por %p63, %p64
      %p66 = scmp.ne.s32.totalorder %s58, %s60
      %p67 = scmp.eq.s32.totalorder %s29, 1
      %p68 = por %p66, %p67
      %p69 = scmp.ne.s32.totalorder %s60, %s61
      %p70 = scmp.eq.s32.totalorder %s29, 0
      %p71 = por %p69, %p70
      %p72 = scmp.ne.s32.totalorder %s60, %s61
      %p73 = scmp.eq.s32.totalorder %s30, 1
      %p74 = por %p72, %p73
      %p76 = scmp.ne.s32.totalorder %s61, %s75
      %p77 = scmp.eq.s32.totalorder %s30, 0
      %p78 = por %p76, %p77
      %s80 = sadd.s32 %s79, 1
      %p83 = scmp.eq.s32.totalorder %s24, 1
      %p84 = scmp.ne.s32.totalorder %s79, %s81
      %p85 = scmp.eq.s32.totalorder %s24, 0
      %p86 = por %p84, %p85
      %p87 = scmp.ne.s32.totalorder %s79, %s81
      %p88 = scmp.eq.s32.totalorder %s29, 1
      %p89 = por %p87, %p88
      %p90 = scmp.ne.s32.totalorder %s81, %s82
      %p91 = scmp.eq.s32.totalorder %s29, 0
      %p92 = por %p90, %p91
      %p93 = scmp.ne.s32.totalorder %s81, %s82
      %p94 = scmp.eq.s32.totalorder %s30, 1
      %p95 = por %p93, %p94
      %p97 = scmp.ne.s32.totalorder %s82, %s96
      %p98 = scmp.eq.s32.totalorder %s30, 0
      %p99 = por %p97, %p98
      %s101 = sadd.s32 %s100, 1
      %p104 = scmp.eq.s32.totalorder %s24, 1
      %p105 = scmp.ne.s32.totalorder %s100, %s102
      %p106 = scmp.eq.s32.totalorder %s24, 0
      %p107 = por %p105, %p106
      %p108 = scmp.ne.s32.totalorder %s100, %s102
      %p109 = scmp.eq.s32.totalorder %s29, 1
      %p110 = por %p108, %p109
      %p111 = scmp.ne.s32.totalorder %s102, %s103
      %p112 = scmp.eq.s32.totalorder %s29, 0
      %p113 = por %p111, %p112
      %p114 = scmp.ne.s32.totalorder %s102, %s103
      %p115 = scmp.eq.s32.totalorder %s30, 1
      %p116 = por %p114, %p115
      %p118 = scmp.ne.s32.totalorder %s103, %s117
      %p119 = scmp.eq.s32.totalorder %s30, 0
      %p120 = por %p118, %p119
      %s122 = sadd.s32 %s121, 1
      %p125 = scmp.eq.s32.totalorder %s24, 1
      %p126 = scmp.ne.s32.totalorder %s121, %s123
      %p127 = scmp.eq.s32.totalorder %s24, 0
      %p128 = por %p126, %p127
      %p129 = scmp.ne.s32.totalorder %s121, %s123
      %p130 = scmp.eq.s32.totalorder %s29, 1
      %p131 = por %p129, %p130
      %p132 = scmp.ne.s32.totalorder %s123, %s124
      %p133 = scmp.eq.s32.totalorder %s29, 0
      %p134 = por %p132, %p133
      %p135 = scmp.ne.s32.totalorder %s123, %s124
      %p136 = scmp.eq.s32.totalorder %s30, 1
      %p137 = por %p135, %p136
      %p139 = scmp.ne.s32.totalorder %s124, %s138
      %p140 = scmp.eq.s32.totalorder %s30, 0
      %p141 = por %p139, %p140
      %s143 = sadd.s32 %s142, 1
      %p146 = scmp.eq.s32.totalorder %s24, 1
      %p147 = scmp.ne.s32.totalorder %s142, %s144
      %p148 = scmp.eq.s32.totalorder %s24, 0
      %p149 = por %p147, %p148
      %p150 = scmp.ne.s32.totalorder %s142, %s144
      %p151 = scmp.eq.s32.totalorder %s29, 1
      %p152 = por %p150, %p151
      %p153 = scmp.ne.s32.totalorder %s144, %s145
      %p154 = scmp.eq.s32.totalorder %s29, 0
      %p155 = por %p153, %p154
      %p156 = scmp.ne.s32.totalorder %s144, %s145
      %p157 = scmp.eq.s32.totalorder %s30, 1
      %p158 = por %p156, %p157
      %p160 = scmp.ne.s32.totalorder %s145, %s159
      %p161 = scmp.eq.s32.totalorder %s30, 0
      %p162 = por %p160, %p161
      %s164 = sadd.s32 %s163, 1
      %p167 = scmp.eq.s32.totalorder %s24, 1
      %p168 = scmp.ne.s32.totalorder %s163, %s165
      %p169 = scmp.eq.s32.totalorder %s24, 0
      %p170 = por %p168, %p169
      %p171 = scmp.ne.s32.totalorder %s163, %s165
      %p172 = scmp.eq.s32.totalorder %s29, 1
      %p173 = por %p171, %p172
      %p174 = scmp.ne.s32.totalorder %s165, %s166
      %p175 = scmp.eq.s32.totalorder %s29, 0
      %p176 = por %p174, %p175
      %p177 = scmp.ne.s32.totalorder %s165, %s166
      %p178 = scmp.eq.s32.totalorder %s30, 1
      %p179 = por %p177, %p178
      %p181 = scmp.ne.s32.totalorder %s166, %s180
      %p182 = scmp.eq.s32.totalorder %s30, 0
      %p183 = por %p181, %p182
      %s185 = sadd.s32 %s184, 1
      %p188 = scmp.eq.s32.totalorder %s24, 1
      %p189 = scmp.ne.s32.totalorder %s184, %s186
      %p190 = scmp.eq.s32.totalorder %s24, 0
      %p191 = por %p189, %p190
      %p192 = scmp.ne.s32.totalorder %s184, %s186
      %p193 = scmp.eq.s32.totalorder %s29, 1
      %p194 = por %p192, %p193
      %p195 = scmp.ne.s32.totalorder %s186, %s187
      %p196 = scmp.eq.s32.totalorder %s29, 0
      %p197 = por %p195, %p196
      %p198 = scmp.ne.s32.totalorder %s186, %s187
      %p199 = scmp.eq.s32.totalorder %s30, 1
      %p200 = por %p198, %p199
      %p202 = scmp.ne.s32.totalorder %s187, %s201
      %p203 = scmp.eq.s32.totalorder %s30, 0
      %p204 = por %p202, %p203
      %s206 = sadd.s32 %s205, 1
      %p209 = scmp.eq.s32.totalorder %s24, 1
      %p210 = scmp.ne.s32.totalorder %s205, %s207
      %p211 = scmp.eq.s32.totalorder %s24, 0
      %p212 = por %p210, %p211
      %p213 = scmp.ne.s32.totalorder %s205, %s207
      %p214 = scmp.eq.s32.totalorder %s29, 1
      %p215 = por %p213, %p214
      %p216 = scmp.ne.s32.totalorder %s207, %s208
      %p217 = scmp.eq.s32.totalorder %s29, 0
      %p218 = por %p216, %p217
      %p219 = scmp.ne.s32.totalorder %s207, %s208
      %p220 = scmp.eq.s32.totalorder %s30, 1
      %p221 = por %p219, %p220
      %p223 = scmp.ne.s32.totalorder %s208, %s222
      %p224 = scmp.eq.s32.totalorder %s30, 0
      %p225 = por %p223, %p224
      %s227 = sadd.s32 %s226, 1
      %p230 = scmp.eq.s32.totalorder %s24, 1
      %p231 = scmp.ne.s32.totalorder %s226, %s228
      %p232 = scmp.eq.s32.totalorder %s24, 0
      %p233 = por %p231, %p232
      %p234 = scmp.ne.s32.totalorder %s226, %s228
      %p235 = scmp.eq.s32.totalorder %s29, 1
      %p236 = por %p234, %p235
      %p237 = scmp.ne.s32.totalorder %s228, %s229
      %p238 = scmp.eq.s32.totalorder %s29, 0
      %p239 = por %p237, %p238
      %p240 = scmp.ne.s32.totalorder %s228, %s229
      %p241 = scmp.eq.s32.totalorder %s30, 1
      %p242 = por %p240, %p241
      %p244 = scmp.ne.s32.totalorder %s229, %s243
      %p245 = scmp.eq.s32.totalorder %s30, 0
      %p246 = por %p244, %p245
      %s248 = sadd.s32 %s247, 1
      %p251 = scmp.eq.s32.totalorder %s24, 1
      %p252 = scmp.ne.s32.totalorder %s247, %s249
      %p253 = scmp.eq.s32.totalorder %s24, 0
      %p254 = por %p252, %p253
      %p255 = scmp.ne.s32.totalorder %s247, %s249
      %p256 = scmp.eq.s32.totalorder %s29, 1
      %p257 = por %p255, %p256
      %p258 = scmp.ne.s32.totalorder %s249, %s250
      %p259 = scmp.eq.s32.totalorder %s29, 0
      %p260 = por %p258, %p259
      %p261 = scmp.ne.s32.totalorder %s249, %s250
      %p262 = scmp.eq.s32.totalorder %s30, 1
      %p263 = por %p261, %p262
      %p265 = scmp.ne.s32.totalorder %s250, %s264
      %p266 = scmp.eq.s32.totalorder %s30, 0
      %p267 = por %p265, %p266
      %s269 = sadd.s32 %s268, 1
      %p272 = scmp.eq.s32.totalorder %s24, 1
      %p273 = scmp.ne.s32.totalorder %s268, %s270
      %p274 = scmp.eq.s32.totalorder %s24, 0
      %p275 = por %p273, %p274
      %p276 = scmp.ne.s32.totalorder %s268, %s270
      %p277 = scmp.eq.s32.totalorder %s29, 1
      %p278 = por %p276, %p277
      %p279 = scmp.ne.s32.totalorder %s270, %s271
      %p280 = scmp.eq.s32.totalorder %s29, 0
      %p281 = por %p279, %p280
      %p282 = scmp.ne.s32.totalorder %s270, %s271
      %p283 = scmp.eq.s32.totalorder %s30, 1
      %p284 = por %p282, %p283
      %p286 = scmp.ne.s32.totalorder %s271, %s285
      %p287 = scmp.eq.s32.totalorder %s30, 0
      %p288 = por %p286, %p287
      %s289 = ssub.s32 %s24, %s31
      %p290 = scmp.eq.s32.totalorder %s289, 0
      %s292 = sadd.s32 %s291, 1
      %s293 = scalar_select %p290, %s291, %s292
      %p296 = pneg %p290
      %p297 = scmp.eq.s32.totalorder %s24, 1
      %p298 = por %p296, %p297
      %p299 = scmp.ne.s32.totalorder %s291, %s294
      %p300 = scmp.eq.s32.totalorder %s24, 0
      %p301 = por %p299, %p300
      %p302 = scmp.ne.s32.totalorder %s291, %s294
      %p303 = scmp.eq.s32.totalorder %s29, 1
      %p304 = por %p302, %p303
      %p305 = scmp.ne.s32.totalorder %s294, %s295
      %p306 = scmp.eq.s32.totalorder %s29, 0
      %p307 = por %p305, %p306
      %p308 = scmp.ne.s32.totalorder %s294, %s295
      %p309 = scmp.eq.s32.totalorder %s30, 1
      %p310 = por %p308, %p309
      %p312 = scmp.ne.s32.totalorder %s295, %s311
      %p313 = scmp.eq.s32.totalorder %s30, 0
      %p314 = por %p312, %p313
      %p315 = scmp.le.s32.totalorder 1, %s24
      %p316 = scmp.lt.s32.totalorder %s24, 3
      %p317 = pnand %p315, %p316
      %p318 = pneg %p317
      // Predicated region
      $region9: #{forward.1} parent=5 // pred_check
        _
      $region10: #{forward.1} parent=5 // pred_check_branch
        %320 = sbr.rel (%p317) target = $region12
      $region11: #{forward.1} parent=5 // pred_region
        %s321 = ssub.s32 %s24, 1
        // Predicated region
        $region13: #{forward.1} parent=11 // pred_check
          %p322 = pneg %p71
        $region14: #{forward.1} parent=11 // pred_check_branch
          %324 = sbr.rel (%p322) target = $region16
        $region15: #{forward.1} parent=11 // pred_region
          _
        $region16: #{forward.1} parent=11 // pred_fallthru
          _
        // Predicated region
        $region17: #{forward.1} parent=11 // pred_check
          %p325 = pneg %p92
        $region18: #{forward.1} parent=11 // pred_check_branch
          %327 = sbr.rel (%p325) target = $region20
        $region19: #{forward.1} parent=11 // pred_region
          _
        $region20: #{forward.1} parent=11 // pred_fallthru
          _
        // Predicated region
        $region21: #{forward.1} parent=11 // pred_check
          %p328 = pneg %p113
        $region22: #{forward.1} parent=11 // pred_check_branch
          %330 = sbr.rel (%p328) target = $region24
        $region23: #{forward.1} parent=11 // pred_region
          _
        $region24: #{forward.1} parent=11 // pred_fallthru
          _
        // Predicated region
        $region25: #{forward.1} parent=11 // pred_check
          %p331 = pneg %p134
        $region26: #{forward.1} parent=11 // pred_check_branch
          %333 = sbr.rel (%p331) target = $region28
        $region27: #{forward.1} parent=11 // pred_region
          %s335 = ssub.s32 2304, 2304
          %336 = vsyncadd [#allocation5], %s335
          %s337 = sshll.u32 [#allocation4], 4
          %s338 = int_to_ptr.vmem [resolvable:$true] %s337
          %343 = dma.hbm_to_vmem [thread:$0]  %s4, 2304, %s338, [#allocation5], 128, 128, 8
        $region28: #{forward.1} parent=11 // pred_fallthru
          _
        // Predicated region
        $region29: #{forward.1} parent=11 // pred_check
          %p344 = pneg %p155
        $region30: #{forward.1} parent=11 // pred_check_branch
          %346 = sbr.rel (%p344) target = $region32
        $region31: #{forward.1} parent=11 // pred_region
          %s348 = ssub.s32 2304, 2304
          %349 = vsyncadd [#allocation8], %s348
          %s350 = sshll.u32 [#allocation7], 4
          %s351 = int_to_ptr.vmem [resolvable:$true] %s350
          %356 = dma.hbm_to_vmem [thread:$0]  %s5, 2304, %s351, [#allocation8], 128, 128, 8
        $region32: #{forward.1} parent=11 // pred_fallthru
          _
        // Predicated region
        $region33: #{forward.1} parent=11 // pred_check
          %p357 = pneg %p176
        $region34: #{forward.1} parent=11 // pred_check_branch
          %359 = sbr.rel (%p357) target = $region36
        $region35: #{forward.1} parent=11 // pred_region
          _
        $region36: #{forward.1} parent=11 // pred_fallthru
          _
        // Predicated region
        $region37: #{forward.1} parent=11 // pred_check
          %p360 = pneg %p197
        $region38: #{forward.1} parent=11 // pred_check_branch
          %362 = sbr.rel (%p360) target = $region40
        $region39: #{forward.1} parent=11 // pred_region
          %s364 = ssub.s32 2304, 2304
          %365 = vsyncadd [#allocation8], %s364
          %s366 = sshll.u32 [#allocation9], 4
          %s367 = int_to_ptr.vmem [resolvable:$true] %s366
          %372 = dma.hbm_to_vmem [thread:$0]  %s7, 2304, %s367, [#allocation8], 128, 128, 8
        $region40: #{forward.1} parent=11 // pred_fallthru
          _
        // Predicated region
        $region41: #{forward.1} parent=11 // pred_check
          %p373 = pneg %p218
        $region42: #{forward.1} parent=11 // pred_check_branch
          %375 = sbr.rel (%p373) target = $region44
        $region43: #{forward.1} parent=11 // pred_region
          %s377 = ssub.s32 2304, 2304
          %378 = vsyncadd [#allocation11], %s377
          %s379 = sshll.u32 [#allocation10], 4
          %s380 = int_to_ptr.vmem [resolvable:$true] %s379
          %385 = dma.hbm_to_vmem [thread:$0]  %s8, 2304, %s380, [#allocation11], 128, 128, 8
        $region44: #{forward.1} parent=11 // pred_fallthru
          _
        // Predicated region
        $region45: #{forward.1} parent=11 // pred_check
          %p386 = pneg %p239
        $region46: #{forward.1} parent=11 // pred_check_branch
          %388 = sbr.rel (%p386) target = $region48
        $region47: #{forward.1} parent=11 // pred_region
          %s390 = ssub.s32 2304, 2304
          %391 = vsyncadd [#allocation11], %s390
          %s392 = sshll.u32 [#allocation12], 4
          %s393 = int_to_ptr.vmem [resolvable:$true] %s392
          %398 = dma.hbm_to_vmem [thread:$0]  %s9, 2304, %s393, [#allocation11], 128, 128, 8
        $region48: #{forward.1} parent=11 // pred_fallthru
          _
        // Predicated region
        $region49: #{forward.1} parent=11 // pred_check
          %p399 = pneg %p260
        $region50: #{forward.1} parent=11 // pred_check_branch
          %401 = sbr.rel (%p399) target = $region52
        $region51: #{forward.1} parent=11 // pred_region
          _
        $region52: #{forward.1} parent=11 // pred_fallthru
          _
        // Predicated region
        $region53: #{forward.1} parent=11 // pred_check
          %p402 = pneg %p281
        $region54: #{forward.1} parent=11 // pred_check_branch
          %404 = sbr.rel (%p402) target = $region56
        $region55: #{forward.1} parent=11 // pred_region
          _
        $region56: #{forward.1} parent=11 // pred_fallthru
          _
      $region12: #{forward.1} parent=5 // pred_fallthru
        _
      %p405 = scmp.lt.s32.totalorder %s24, 2
      // Predicated region
      $region57: #{forward.1} parent=5 // pred_check
        %p406 = pneg %p405
      $region58: #{forward.1} parent=5 // pred_check_branch
        %408 = sbr.rel (%p406) target = $region60
      $region59: #{forward.1} parent=5 // pred_region
        // Predicated region
        $region61: #{forward.1} parent=59 // pred_check
          %p409 = pneg %p44
        $region62: #{forward.1} parent=59 // pred_check_branch
          %411 = sbr.rel (%p409) target = $region64
        $region63: #{forward.1} parent=59 // pred_region
          %p412 = scmp.lt.s32.totalorder %s24, 1
          %s413 = scalar_select %p412, %s24, 1
          %s414 = smul.addr %s413, 2
          %s415 = scalar_lea.vmem %s0, %s414
        $region64: #{forward.1} parent=59 // pred_fallthru
          _
      $region60: #{forward.1} parent=5 // pred_fallthru
        _
      %p416 = scmp.le.s32.totalorder 1, %s24
      %p417 = scmp.lt.s32.totalorder %s24, 3
      %p418 = pnand %p416, %p417
      %p419 = pneg %p418
      // Predicated region
      $region65: #{forward.1} parent=5 // pred_check
        _
      $region66: #{forward.1} parent=5 // pred_check_branch
        %421 = sbr.rel (%p418) target = $region68
      $region67: #{forward.1} parent=5 // pred_region
        %s422 = ssub.s32 %s24, 1
        // Predicated region
        $region69: #{forward.1} parent=67 // pred_check
          %p423 = pneg %p134
        $region70: #{forward.1} parent=67 // pred_check_branch
          %425 = sbr.rel (%p423) target = $region72
        $region71: #{forward.1} parent=67 // pred_region
          %426 = dma.done [#allocation5], 2304
        $region72: #{forward.1} parent=67 // pred_fallthru
          _
        // Predicated region
        $region73: #{forward.1} parent=67 // pred_check
          %p427 = pneg %p155
        $region74: #{forward.1} parent=67 // pred_check_branch
          %429 = sbr.rel (%p427) target = $region76
        $region75: #{forward.1} parent=67 // pred_region
          %430 = dma.done [#allocation8], 2304
        $region76: #{forward.1} parent=67 // pred_fallthru
          _
        // Predicated region
        $region77: #{forward.1} parent=67 // pred_check
          %p431 = pneg %p197
        $region78: #{forward.1} parent=67 // pred_check_branch
          %433 = sbr.rel (%p431) target = $region80
        $region79: #{forward.1} parent=67 // pred_region
          %434 = dma.done [#allocation8], 2304
        $region80: #{forward.1} parent=67 // pred_fallthru
          _
        // Predicated region
        $region81: #{forward.1} parent=67 // pred_check
          %p435 = pneg %p218
        $region82: #{forward.1} parent=67 // pred_check_branch
          %437 = sbr.rel (%p435) target = $region84
        $region83: #{forward.1} parent=67 // pred_region
          %438 = dma.done [#allocation11], 2304
        $region84: #{forward.1} parent=67 // pred_fallthru
          _
        // Predicated region
        $region85: #{forward.1} parent=67 // pred_check
          %p439 = pneg %p239
        $region86: #{forward.1} parent=67 // pred_check_branch
          %441 = sbr.rel (%p439) target = $region88
        $region87: #{forward.1} parent=67 // pred_region
          %442 = dma.done [#allocation11], 2304
        $region88: #{forward.1} parent=67 // pred_fallthru
          _
        %p443 = scmp.lt.s32.totalorder %s29, 1
        %s444 = scalar_select %p443, %s29, 1
        %s445 = smul.addr %s444, 2
        %s446 = scalar_lea.vmem %s0, %s445
        %p447 = pneg %p50
        %p448 = pneg %p47
        %p449 = pneg %p71
        %p450 = pneg %p68
        %p451 = pneg %p92
        %p452 = pneg %p89
        %p453 = pneg %p113
        %p454 = pneg %p110
        %p455 = pneg %p134
        %p456 = pneg %p131
        %p457 = pneg %p155
        %p458 = pneg %p152
        %p459 = pneg %p176
        %p460 = pneg %p173
        %p461 = pneg %p197
        %p462 = pneg %p194
        %p463 = pneg %p218
        %p464 = pneg %p215
        %p465 = pneg %p239
        %p466 = pneg %p236
        %p467 = pneg %p260
        %p468 = pneg %p257
        %p469 = pneg %p281
        %p470 = pneg %p278
        %p471 = pneg %p307
        %p472 = pneg %p304
        %s473 = sand.u32 %s294, 1
        %s474 = scalar_lea.sflag [#allocation6], %s473
        %s475 = sand.u32 %s294, 1
        %s476 = scalar_lea.vmem [#allocation13], %s475
        %p477 = scmp.lt.s32.totalorder %s29, 1
        %s478 = scalar_select %p477, %s29, 1
        %s479 = smul.addr %s478, 2
        %s480 = scalar_lea.vmem %s0, %s479
        %481 = vst [vmem:[#allocation2] sm:$0xff] 0.0
        %482 = vst [vmem:[#allocation2 + $0x8] sm:$0xff] 0.0
        %vm483 = vcmask 277504
        %484 = vst.msk [vmem:[#allocation2 + $0x10] sm:$0xff] %vm483, 0.0
        %485 = vst [vmem:[#allocation2 + $0x18] sm:$0xf] 0.0
        %486 = vst [vmem:[#allocation2 + $0x20] sm:$0xf] 0.0
        %vm487 = vcmask 273408
        %488 = vst.msk [vmem:[#allocation2 + $0x28] sm:$0xf] %vm487, 0.0
        %v489 = vld [vmem:[%s480] sm:$0x3]
        %491 = vrot.lane.b32.xlu0 %v489, 17
        %v492 = vpop.permute.xlu0 %491
        %v493 = vrot.slane %v492, 7
        %vm494 = vcmask 138240
        %v495 = vsel %vm494, %v493, %v492
        %v497 = vlaneseq
        %vm498 = vcmp.ge.s32.totalorder %v497, 17
        %vm499 = vcmp.lt.s32.totalorder %v497, 273
        %vm500 = vmand %vm498, %vm499
        %501 = vst.msk [vmem:[#allocation2] ss:$8 sm:$0x7] %vm500, %v495
        %502 = vst.msk [vmem:[#allocation2] ss:$8 sm:$0x0] %vm500, %v495
        %v503 = vlaneseq
        %v504 = vand.u32 %v503, 127
        %v505 = vadd.s32 %v504, 128
        %vm506 = vcmp.lt.s32.totalorder %v504, 0
        %v507 = vsub.s32 0, %v504
        %v508 = vsel %vm506, %v507, %v504
        %v509 = vshrl.u32 %v508, 4
        %v510 = vand.u32 %v508, 15
        %v511 = vsub.s32 0, %v510
        %v512 = vsel %vm506, %v511, %v510
        %vm513 = vcmp.lt.s32.totalorder %v505, 0
        %v514 = vsub.s32 0, %v505
        %v515 = vsel %vm513, %v514, %v505
        %v516 = vshrl.u32 %v515, 4
        %v517 = vand.u32 %v515, 15
        %v518 = vsub.s32 0, %v517
        %v519 = vsel %vm513, %v518, %v517
        %vm520 = vcmp.ne.s32.totalorder %v512, 0
        %vm521 = vcmp.ne.s32.totalorder %v519, 0
        %vm522 = vcmp.lt.s32.totalorder %v512, 0
        %vm523 = vcmp.lt.s32.totalorder %v519, 0
        %vm524 = vmand %vm522, %vm520
        %vm525 = vmand %vm523, %vm521
        %v526 = vadd.s32 %v512, 16
        %v527 = vadd.s32 %v519, 16
        %v528 = vsel %vm524, %v526, %v512
        %v529 = vsel %vm525, %v527, %v519
        %v530 = vld [vmem:[#allocation2] ss:$8 sm:$0x3]
        %vm531 = vcmp.ge.s32.totalorder %v528, 1
        %vm532 = vcmp.ge.s32.totalorder %v529, 1
        %v534 = vlaneseq
        %v535 = vshrl.u32 %v534, 7
        %v536 = vsub.s32 0, %v535
        %v537 = vrot.slane %v530, %v536
        %v538 = vlaneseq
        %v539 = vshrl.u32 %v538, 7
        %v540 = vsub.s32 1, %v539
        %v541 = vrot.slane %v530, %v540
        %v544 = vsel %vm531, %v537, 0.0
        %v545 = vsel %vm532, %v541, 0.0
        %v546 = vld [vmem:[%s1] sm:$0xff]
        %548 = vset.pattern.permute.xlu0 0
        %549 = vperm.xlu0 %548, %v546
        %v550 = vpop.permute.xlu0 %549
        %v552 = vlaneseq
        %v553 = vshrl.u32 %v552, 7
        %v554 = vsub.s32 0, %v553
        %v555 = vrot.slane %v544, %v554
        %v556 = vlaneseq
        %v557 = vshrl.u32 %v556, 7
        %v558 = vsub.s32 0, %v557
        %v559 = vrot.slane %v545, %v558
        %v560 = vmul.f32 %v550, %v555
        %v561 = vmul.f32 %v550, %v559
        %v562 = vadd.f32 %v560, 0.0
        %v563 = vadd.f32 %v561, 0.0
        %v564 = vld [vmem:[#allocation2] ss:$8 sm:$0x7]
        %s565 = scalar_lea.vmem %s1, 8
        %v566 = vld [vmem:[%s565] sm:$0xff]
        %568 = vset.pattern.permute.xlu0 0
        %569 = vperm.xlu0 %568, %v566
        %v570 = vpop.permute.xlu0 %569
        %v573 = vlaneseq
        %v574 = vshrl.u32 %v573, 7
        %v575 = vsub.s32 0, %v574
        %v576 = vrot.slane %v564, %v575
        %v577 = vlaneseq
        %v578 = vshrl.u32 %v577, 7
        %v579 = vsub.s32 1, %v578
        %v580 = vrot.slane %v564, %v579
        %v581 = vlaneseq
        %v582 = vshrl.u32 %v581, 7
        %v583 = vsub.s32 2, %v582
        %v584 = vrot.slane %v564, %v583
        %v588 = vmul.f32 %v570, %v576
        %v589 = vmul.f32 %v570, %v580
        %v590 = vmul.f32 %v570, %v584
        %594 = vrot.lane.b32.xlu0 %v588, 127
        %v595 = vpop.permute.xlu0 %594
        %596 = vrot.lane.b32.xlu0 %v589, 127
        %v597 = vpop.permute.xlu0 %596
        %598 = vrot.lane.b32.xlu0 %v590, 127
        %v599 = vpop.permute.xlu0 %598
        %vm600 = vcmask 1039360
        %v601 = vsel %vm600, %v595, %v597
        %v602 = vsel %vm600, %v597, %v599
        %v605 = vadd.f32 %v562, %v601
        %v606 = vadd.f32 %v563, %v602
        %vm607 = vcmp.le.s32.totalorder %v528, 14
        %vm608 = vcmp.le.s32.totalorder %v529, 14
        %609 = vrot.lane.b32.xlu0 %v576, 126
        %v610 = vpop.permute.xlu0 %609
        %611 = vrot.lane.b32.xlu0 %v580, 126
        %v612 = vpop.permute.xlu0 %611
        %613 = vrot.lane.b32.xlu0 %v584, 126
        %v614 = vpop.permute.xlu0 %613
        %vm615 = vcmask 1031168
        %v616 = vsel %vm615, %v610, %v612
        %v617 = vsel %vm615, %v612, %v614
        %v620 = vsel %vm607, %v616, 0.0
        %v621 = vsel %vm608, %v617, 0.0
        %s622 = scalar_lea.vmem %s1, 16
        %v623 = vld [vmem:[%s622] sm:$0xff]
        %625 = vset.pattern.permute.xlu0 0
        %626 = vperm.xlu0 %625, %v623
        %v627 = vpop.permute.xlu0 %626
        %v629 = vlaneseq
        %v630 = vshrl.u32 %v629, 7
        %v631 = vsub.s32 0, %v630
        %v632 = vrot.slane %v620, %v631
        %v633 = vlaneseq
        %v634 = vshrl.u32 %v633, 7
        %v635 = vsub.s32 0, %v634
        %v636 = vrot.slane %v621, %v635
        %v637 = vmul.f32 %v627, %v632
        %v638 = vmul.f32 %v627, %v636
        %v639 = vadd.f32 %v605, %v637
        %v640 = vadd.f32 %v606, %v638
        %641 = vrot.lane.b32.xlu0 %v576, 112
        %v642 = vpop.permute.xlu0 %641
        %643 = vrot.lane.b32.xlu0 %v580, 112
        %v644 = vpop.permute.xlu0 %643
        %645 = vrot.lane.b32.xlu0 %v584, 112
        %v646 = vpop.permute.xlu0 %645
        %vm647 = vcmask 916480
        %v648 = vsel %vm647, %v642, %v644
        %v649 = vsel %vm647, %v644, %v646
        %v652 = vsel %vm531, %v648, 0.0
        %v653 = vsel %vm532, %v649, 0.0
        %s654 = scalar_lea.vmem %s1, 24
        %v655 = vld [vmem:[%s654] sm:$0xff]
        %657 = vset.pattern.permute.xlu0 0
        %658 = vperm.xlu0 %657, %v655
        %v659 = vpop.permute.xlu0 %658
        %v661 = vlaneseq
        %v662 = vshrl.u32 %v661, 7
        %v663 = vsub.s32 0, %v662
        %v664 = vrot.slane %v652, %v663
        %v665 = vlaneseq
        %v666 = vshrl.u32 %v665, 7
        %v667 = vsub.s32 0, %v666
        %v668 = vrot.slane %v653, %v667
        %v669 = vmul.f32 %v659, %v664
        %v670 = vmul.f32 %v659, %v668
        %v671 = vadd.f32 %v639, %v669
        %v672 = vadd.f32 %v640, %v670
        %s673 = scalar_lea.vmem %s1, 32
        %v674 = vld [vmem:[%s673] sm:$0xff]
        %676 = vset.pattern.permute.xlu0 0
        %677 = vperm.xlu0 %676, %v674
        %v678 = vpop.permute.xlu0 %677
        %v680 = vmul.f32 %v678, %v576
        %v681 = vmul.f32 %v678, %v580
        %v682 = vmul.f32 %v678, %v584
        %686 = vrot.lane.b32.xlu0 %v680, 111
        %v687 = vpop.permute.xlu0 %686
        %688 = vrot.lane.b32.xlu0 %v681, 111
        %v689 = vpop.permute.xlu0 %688
        %690 = vrot.lane.b32.xlu0 %v682, 111
        %v691 = vpop.permute.xlu0 %690
        %vm692 = vcmask 908288
        %v693 = vsel %vm692, %v687, %v689
        %v694 = vsel %vm692, %v689, %v691
        %v697 = vadd.f32 %v671, %v693
        %v698 = vadd.f32 %v672, %v694
        %699 = vrot.lane.b32.xlu0 %v576, 110
        %v700 = vpop.permute.xlu0 %699
        %701 = vrot.lane.b32.xlu0 %v580, 110
        %v702 = vpop.permute.xlu0 %701
        %703 = vrot.lane.b32.xlu0 %v584, 110
        %v704 = vpop.permute.xlu0 %703
        %vm705 = vcmask 900096
        %v706 = vsel %vm705, %v700, %v702
        %v707 = vsel %vm705, %v702, %v704
        %v710 = vsel %vm607, %v706, 0.0
        %v711 = vsel %vm608, %v707, 0.0
        %s712 = scalar_lea.vmem %s1, 40
        %v713 = vld [vmem:[%s712] sm:$0xff]
        %715 = vset.pattern.permute.xlu0 0
        %716 = vperm.xlu0 %715, %v713
        %v717 = vpop.permute.xlu0 %716
        %v719 = vlaneseq
        %v720 = vshrl.u32 %v719, 7
        %v721 = vsub.s32 0, %v720
        %v722 = vrot.slane %v710, %v721
        %v723 = vlaneseq
        %v724 = vshrl.u32 %v723, 7
        %v725 = vsub.s32 0, %v724
        %v726 = vrot.slane %v711, %v725
        %v727 = vmul.f32 %v717, %v722
        %v728 = vmul.f32 %v717, %v726
        %v729 = vadd.f32 %v697, %v727
        %v730 = vadd.f32 %v698, %v728
        %731 = vrot.lane.b32.xlu0 %v576, 96
        %v732 = vpop.permute.xlu0 %731
        %733 = vrot.lane.b32.xlu0 %v580, 96
        %v734 = vpop.permute.xlu0 %733
        %735 = vrot.lane.b32.xlu0 %v584, 96
        %v736 = vpop.permute.xlu0 %735
        %vm737 = vcmask 785408
        %v738 = vsel %vm737, %v732, %v734
        %v739 = vsel %vm737, %v734, %v736
        %v742 = vsel %vm531, %v738, 0.0
        %v743 = vsel %vm532, %v739, 0.0
        %s744 = scalar_lea.vmem %s1, 48
        %v745 = vld [vmem:[%s744] sm:$0xff]
        %747 = vset.pattern.permute.xlu0 0
        %748 = vperm.xlu0 %747, %v745
        %v749 = vpop.permute.xlu0 %748
        %v751 = vlaneseq
        %v752 = vshrl.u32 %v751, 7
        %v753 = vsub.s32 0, %v752
        %v754 = vrot.slane %v742, %v753
        %v755 = vlaneseq
        %v756 = vshrl.u32 %v755, 7
        %v757 = vsub.s32 0, %v756
        %v758 = vrot.slane %v743, %v757
        %v759 = vmul.f32 %v749, %v754
        %v760 = vmul.f32 %v749, %v758
        %v761 = vadd.f32 %v729, %v759
        %v762 = vadd.f32 %v730, %v760
        %s763 = scalar_lea.vmem %s1, 56
        %v764 = vld [vmem:[%s763] sm:$0xff]
        %766 = vset.pattern.permute.xlu0 0
        %767 = vperm.xlu0 %766, %v764
        %v768 = vpop.permute.xlu0 %767
        %v770 = vmul.f32 %v768, %v576
        %v771 = vmul.f32 %v768, %v580
        %v772 = vmul.f32 %v768, %v584
        %776 = vrot.lane.b32.xlu0 %v770, 95
        %v777 = vpop.permute.xlu0 %776
        %778 = vrot.lane.b32.xlu0 %v771, 95
        %v779 = vpop.permute.xlu0 %778
        %780 = vrot.lane.b32.xlu0 %v772, 95
        %v781 = vpop.permute.xlu0 %780
        %vm782 = vcmask 777216
        %v783 = vsel %vm782, %v777, %v779
        %v784 = vsel %vm782, %v779, %v781
        %v787 = vadd.f32 %v761, %v783
        %v788 = vadd.f32 %v762, %v784
        %789 = vrot.lane.b32.xlu0 %v576, 94
        %v790 = vpop.permute.xlu0 %789
        %791 = vrot.lane.b32.xlu0 %v580, 94
        %v792 = vpop.permute.xlu0 %791
        %793 = vrot.lane.b32.xlu0 %v584, 94
        %v794 = vpop.permute.xlu0 %793
        %vm795 = vcmask 769024
        %v796 = vsel %vm795, %v790, %v792
        %v797 = vsel %vm795, %v792, %v794
        %v800 = vsel %vm607, %v796, 0.0
        %v801 = vsel %vm608, %v797, 0.0
        %s802 = scalar_lea.vmem %s1, 64
        %v803 = vld [vmem:[%s802] sm:$0xff]
        %805 = vset.pattern.permute.xlu0 0
        %806 = vperm.xlu0 %805, %v803
        %v807 = vpop.permute.xlu0 %806
        %v809 = vlaneseq
        %v810 = vshrl.u32 %v809, 7
        %v811 = vsub.s32 0, %v810
        %v812 = vrot.slane %v800, %v811
        %v813 = vlaneseq
        %v814 = vshrl.u32 %v813, 7
        %v815 = vsub.s32 0, %v814
        %v816 = vrot.slane %v801, %v815
        %v817 = vmul.f32 %v807, %v812
        %v818 = vmul.f32 %v807, %v816
        %v819 = vadd.f32 %v787, %v817
        %v820 = vadd.f32 %v788, %v818
        %821 = vst [vmem:[#allocation3] sm:$0xff] 0.0
        %822 = vst [vmem:[#allocation3 + $0x8] sm:$0xff] 0.0
        %823 = vst.msk [vmem:[#allocation3 + $0x10] sm:$0xff] %vm483, 0.0
        %824 = vst [vmem:[#allocation3 + $0x18] sm:$0xf] 0.0
        %825 = vst [vmem:[#allocation3 + $0x20] sm:$0xf] 0.0
        %826 = vst.msk [vmem:[#allocation3 + $0x28] sm:$0xf] %vm487, 0.0
        %v827 = vmax.f32 %v819, 0.0
        %v828 = vmax.f32 %v820, 0.0
        %831 = vrot.lane.b32.xlu0 %v827, 17
        %v832 = vpop.permute.xlu0 %831
        %833 = vrot.lane.b32.xlu0 %v828, 17
        %v834 = vpop.permute.xlu0 %833
        %v835 = vsel %vm494, %v832, %v834
        %vm839 = vcmask 1047688
        %840 = vst.msk [vmem:[#allocation3] sm:$0xff] %vm839, %v832
        %841 = vst [vmem:[#allocation3 + $0x8] sm:$0xff] %v835
        %842 = vst.msk [vmem:[#allocation3 + $0x10] sm:$0xff] %vm494, %v834
        %v843 = vld [vmem:[#allocation3] sm:$0xff]
        %v844 = vld [vmem:[#allocation3 + $0x8] sm:$0xff]
        %v845 = vsel %vm531, 1, 0
        %v846 = vsel %vm532, 1, 0
        %vm847 = vcmp.eq.s32.totalorder %v845, 1
        %vm848 = vcmp.eq.s32.totalorder %v846, 1
        %v849 = vsel %vm847, %v843, 0.0
        %v850 = vsel %vm848, %v844, 0.0
        %v851 = vld [vmem:[%s2] sm:$0xff]
        %v852 = vld [vmem:[#allocation3 + $0x10] sm:$0xff]
        %s853 = scalar_lea.vmem %s2, 8
        %v854 = vld [vmem:[%s853] sm:$0xff]
        %858 = vrot.lane.b32.xlu0 %v843, 127
        %v859 = vpop.permute.xlu0 %858
        %860 = vrot.lane.b32.xlu0 %v844, 127
        %v861 = vpop.permute.xlu0 %860
        %862 = vrot.lane.b32.xlu0 %v852, 127
        %v863 = vpop.permute.xlu0 %862
        %v864 = vsel %vm600, %v859, %v861
        %v865 = vsel %vm600, %v861, %v863
        %vm868 = vcmask 64512
        %v870 = vsel %vm868, %v854, 0
        %872 = vmatprep.subr.mxu0 0.0
        %873 = vmatpush1.msra.mxu0 0.0
        %874 = vmatprep.subr.mxu0 0.0
        %875 = vmatpush1.msra.mxu0 0.0
        %876 = vmatprep.subr.mxu0 0.0
        %877 = vmatpush1.msra.mxu0 0.0
        %878 = vmatprep.subr.mxu0 0.0
        %879 = vmatpush1.msra.mxu0 0.0
        %880 = vmatprep.subr.mxu0 0.0
        %881 = vmatpush1.msra.mxu0 0.0
        %882 = vmatprep.subr.mxu0 0.0
        %883 = vmatpush1.msra.mxu0 0.0
        %884 = vmatprep.subr.mxu0 0.0
        %885 = vmatpush1.msra.mxu0 0.0
        %886 = vmatprep.subr.mxu0 0.0
        %887 = vmatpush1.msra.mxu0 0.0
        %888 = vmatprep.subr.mxu0 0.0
        %889 = vmatpush1.msra.mxu0 0.0
        %890 = vmatprep.subr.mxu0 0.0
        %891 = vmatpush1.msra.mxu0 0.0
        %892 = vmatprep.subr.mxu0 0.0
        %893 = vmatpush1.msra.mxu0 0.0
        %894 = vmatprep.subr.mxu0 0.0
        %895 = vmatpush1.msra.mxu0 0.0
        %896 = vmatprep.subr.mxu0 0.0
        %897 = vmatpush1.msra.mxu0 0.0
        %898 = vmatprep.subr.mxu0 0.0
        %899 = vmatpush1.msra.mxu0 0.0
        %900 = vmatprep.subr.mxu0 0.0
        %901 = vmatpush1.msra.mxu0 0.0
        %902 = vmatprep.subr.mxu0 %v865
        %903 = vmatpush1.msra.mxu0 %v864
        %904 = vmatprep.subr.mxu0 0.0
        %905 = vmatpush2.msra.mxu0 0.0
        %906 = vmatprep.subr.mxu0 0.0
        %907 = vmatpush2.msra.mxu0 0.0
        %908 = vmatprep.subr.mxu0 0.0
        %909 = vmatpush2.msra.mxu0 0.0
        %910 = vmatprep.subr.mxu0 0.0
        %911 = vmatpush2.msra.mxu0 0.0
        %912 = vmatprep.subr.mxu0 0.0
        %913 = vmatpush2.msra.mxu0 0.0
        %914 = vmatprep.subr.mxu0 0.0
        %915 = vmatpush2.msra.mxu0 0.0
        %916 = vmatprep.subr.mxu0 0.0
        %917 = vmatpush2.msra.mxu0 0.0
        %918 = vmatprep.subr.mxu0 0.0
        %919 = vmatpush2.msra.mxu0 0.0
        %920 = vmatprep.subr.mxu0 0.0
        %921 = vmatpush2.msra.mxu0 0.0
        %922 = vmatprep.subr.mxu0 0.0
        %923 = vmatpush2.msra.mxu0 0.0
        %924 = vmatprep.subr.mxu0 0.0
        %925 = vmatpush2.msra.mxu0 0.0
        %926 = vmatprep.subr.mxu0 0.0
        %927 = vmatpush2.msra.mxu0 0.0
        %928 = vmatprep.subr.mxu0 0.0
        %929 = vmatpush2.msra.mxu0 0.0
        %930 = vmatprep.subr.mxu0 0.0
        %931 = vmatpush2.msra.mxu0 0.0
        %932 = vmatprep.subr.mxu0 0.0
        %933 = vmatpush2.msra.mxu0 0.0
        %934 = vmatprep.subr.mxu0 0.0
        %935 = vmatpush2.msra.mxu0 0.0
        %936 = vmatprep.mubr.f32.mxu0 0.0
        %937 = vmatmul.mubr.f32.gmra.mxu0 %v870
        %v938 = vpop.f32.mrf.mxu0
        %v939 = vadd.f32 0.0, %v938
        %v940 = vpop.f32.mrf.mxu0
        %v941 = vadd.f32 0.0, %v940
        %942 = vdwg.mxu0
        %v944 = vsel %vm868, %v851, 0
        %946 = vmatprep.subr.mxu0 0.0
        %947 = vmatpush1.msra.mxu0 0.0
        %948 = vmatprep.subr.mxu0 0.0
        %949 = vmatpush1.msra.mxu0 0.0
        %950 = vmatprep.subr.mxu0 0.0
        %951 = vmatpush1.msra.mxu0 0.0
        %952 = vmatprep.subr.mxu0 0.0
        %953 = vmatpush1.msra.mxu0 0.0
        %954 = vmatprep.subr.mxu0 0.0
        %955 = vmatpush1.msra.mxu0 0.0
        %956 = vmatprep.subr.mxu0 0.0
        %957 = vmatpush1.msra.mxu0 0.0
        %958 = vmatprep.subr.mxu0 0.0
        %959 = vmatpush1.msra.mxu0 0.0
        %960 = vmatprep.subr.mxu0 0.0
        %961 = vmatpush1.msra.mxu0 0.0
        %962 = vmatprep.subr.mxu0 0.0
        %963 = vmatpush1.msra.mxu0 0.0
        %964 = vmatprep.subr.mxu0 0.0
        %965 = vmatpush1.msra.mxu0 0.0
        %966 = vmatprep.subr.mxu0 0.0
        %967 = vmatpush1.msra.mxu0 0.0
        %968 = vmatprep.subr.mxu0 0.0
        %969 = vmatpush1.msra.mxu0 0.0
        %970 = vmatprep.subr.mxu0 0.0
        %971 = vmatpush1.msra.mxu0 0.0
        %972 = vmatprep.subr.mxu0 0.0
        %973 = vmatpush1.msra.mxu0 0.0
        %974 = vmatprep.subr.mxu0 0.0
        %975 = vmatpush1.msra.mxu0 0.0
        %976 = vmatprep.subr.mxu0 %v850
        %977 = vmatpush1.msra.mxu0 %v849
        %978 = vmatprep.subr.mxu0 0.0
        %979 = vmatpush2.msra.mxu0 0.0
        %980 = vmatprep.subr.mxu0 0.0
        %981 = vmatpush2.msra.mxu0 0.0
        %982 = vmatprep.subr.mxu0 0.0
        %983 = vmatpush2.msra.mxu0 0.0
        %984 = vmatprep.subr.mxu0 0.0
        %985 = vmatpush2.msra.mxu0 0.0
        %986 = vmatprep.subr.mxu0 0.0
        %987 = vmatpush2.msra.mxu0 0.0
        %988 = vmatprep.subr.mxu0 0.0
        %989 = vmatpush2.msra.mxu0 0.0
        %990 = vmatprep.subr.mxu0 0.0
        %991 = vmatpush2.msra.mxu0 0.0
        %992 = vmatprep.subr.mxu0 0.0
        %993 = vmatpush2.msra.mxu0 0.0
        %994 = vmatprep.subr.mxu0 0.0
        %995 = vmatpush2.msra.mxu0 0.0
        %996 = vmatprep.subr.mxu0 0.0
        %997 = vmatpush2.msra.mxu0 0.0
        %998 = vmatprep.subr.mxu0 0.0
        %999 = vmatpush2.msra.mxu0 0.0
        %1000 = vmatprep.subr.mxu0 0.0
        %1001 = vmatpush2.msra.mxu0 0.0
        %1002 = vmatprep.subr.mxu0 0.0
        %1003 = vmatpush2.msra.mxu0 0.0
        %1004 = vmatprep.subr.mxu0 0.0
        %1005 = vmatpush2.msra.mxu0 0.0
        %1006 = vmatprep.subr.mxu0 0.0
        %1007 = vmatpush2.msra.mxu0 0.0
        %1008 = vmatprep.subr.mxu0 0.0
        %1009 = vmatpush2.msra.mxu0 0.0
        %1010 = vmatprep.mubr.f32.mxu0 0.0
        %1011 = vmatmul.mubr.f32.gmra.mxu0 %v944
        %v1012 = vpop.f32.mrf.mxu0
        %v1013 = vadd.f32 %v939, %v1012
        %v1014 = vpop.f32.mrf.mxu0
        %v1015 = vadd.f32 %v941, %v1014
        %1016 = vdwg.mxu0
        %v1017 = vsel %vm607, 1, 0
        %v1018 = vsel %vm608, 1, 0
        %vm1019 = vcmp.eq.s32.totalorder %v1017, 1
        %vm1020 = vcmp.eq.s32.totalorder %v1018, 1
        %1021 = vrot.lane.b32.xlu0 %v843, 126
        %v1022 = vpop.permute.xlu0 %1021
        %1023 = vrot.lane.b32.xlu0 %v844, 126
        %v1024 = vpop.permute.xlu0 %1023
        %1025 = vrot.lane.b32.xlu0 %v852, 126
        %v1026 = vpop.permute.xlu0 %1025
        %v1027 = vsel %vm615, %v1022, %v1024
        %v1028 = vsel %vm615, %v1024, %v1026
        %v1031 = vsel %vm1019, %v1027, 0.0
        %v1032 = vsel %vm1020, %v1028, 0.0
        %s1033 = scalar_lea.vmem %s2, 16
        %v1034 = vld [vmem:[%s1033] sm:$0xff]
        %v1036 = vsel %vm868, %v1034, 0
        %1038 = vmatprep.subr.mxu0 0.0
        %1039 = vmatpush1.msra.mxu0 0.0
        %1040 = vmatprep.subr.mxu0 0.0
        %1041 = vmatpush1.msra.mxu0 0.0
        %1042 = vmatprep.subr.mxu0 0.0
        %1043 = vmatpush1.msra.mxu0 0.0
        %1044 = vmatprep.subr.mxu0 0.0
        %1045 = vmatpush1.msra.mxu0 0.0
        %1046 = vmatprep.subr.mxu0 0.0
        %1047 = vmatpush1.msra.mxu0 0.0
        %1048 = vmatprep.subr.mxu0 0.0
        %1049 = vmatpush1.msra.mxu0 0.0
        %1050 = vmatprep.subr.mxu0 0.0
        %1051 = vmatpush1.msra.mxu0 0.0
        %1052 = vmatprep.subr.mxu0 0.0
        %1053 = vmatpush1.msra.mxu0 0.0
        %1054 = vmatprep.subr.mxu0 0.0
        %1055 = vmatpush1.msra.mxu0 0.0
        %1056 = vmatprep.subr.mxu0 0.0
        %1057 = vmatpush1.msra.mxu0 0.0
        %1058 = vmatprep.subr.mxu0 0.0
        %1059 = vmatpush1.msra.mxu0 0.0
        %1060 = vmatprep.subr.mxu0 0.0
        %1061 = vmatpush1.msra.mxu0 0.0
        %1062 = vmatprep.subr.mxu0 0.0
        %1063 = vmatpush1.msra.mxu0 0.0
        %1064 = vmatprep.subr.mxu0 0.0
        %1065 = vmatpush1.msra.mxu0 0.0
        %1066 = vmatprep.subr.mxu0 0.0
        %1067 = vmatpush1.msra.mxu0 0.0
        %1068 = vmatprep.subr.mxu0 %v1032
        %1069 = vmatpush1.msra.mxu0 %v1031
        %1070 = vmatprep.subr.mxu0 0.0
        %1071 = vmatpush2.msra.mxu0 0.0
        %1072 = vmatprep.subr.mxu0 0.0
        %1073 = vmatpush2.msra.mxu0 0.0
        %1074 = vmatprep.subr.mxu0 0.0
        %1075 = vmatpush2.msra.mxu0 0.0
        %1076 = vmatprep.subr.mxu0 0.0
        %1077 = vmatpush2.msra.mxu0 0.0
        %1078 = vmatprep.subr.mxu0 0.0
        %1079 = vmatpush2.msra.mxu0 0.0
        %1080 = vmatprep.subr.mxu0 0.0
        %1081 = vmatpush2.msra.mxu0 0.0
        %1082 = vmatprep.subr.mxu0 0.0
        %1083 = vmatpush2.msra.mxu0 0.0
        %1084 = vmatprep.subr.mxu0 0.0
        %1085 = vmatpush2.msra.mxu0 0.0
        %1086 = vmatprep.subr.mxu0 0.0
        %1087 = vmatpush2.msra.mxu0 0.0
        %1088 = vmatprep.subr.mxu0 0.0
        %1089 = vmatpush2.msra.mxu0 0.0
        %1090 = vmatprep.subr.mxu0 0.0
        %1091 = vmatpush2.msra.mxu0 0.0
        %1092 = vmatprep.subr.mxu0 0.0
        %1093 = vmatpush2.msra.mxu0 0.0
        %1094 = vmatprep.subr.mxu0 0.0
        %1095 = vmatpush2.msra.mxu0 0.0
        %1096 = vmatprep.subr.mxu0 0.0
        %1097 = vmatpush2.msra.mxu0 0.0
        %1098 = vmatprep.subr.mxu0 0.0
        %1099 = vmatpush2.msra.mxu0 0.0
        %1100 = vmatprep.subr.mxu0 0.0
        %1101 = vmatpush2.msra.mxu0 0.0
        %1102 = vmatprep.mubr.f32.mxu0 0.0
        %1103 = vmatmul.mubr.f32.gmra.mxu0 %v1036
        %v1104 = vpop.f32.mrf.mxu0
        %v1105 = vadd.f32 0.0, %v1104
        %v1106 = vpop.f32.mrf.mxu0
        %v1107 = vadd.f32 0.0, %v1106
        %1108 = vdwg.mxu0
        %v1109 = vadd.f32 %v1013, %v1105
        %v1110 = vadd.f32 %v1015, %v1107
        %1111 = vrot.lane.b32.xlu0 %v843, 112
        %v1112 = vpop.permute.xlu0 %1111
        %1113 = vrot.lane.b32.xlu0 %v844, 112
        %v1114 = vpop.permute.xlu0 %1113
        %1115 = vrot.lane.b32.xlu0 %v852, 112
        %v1116 = vpop.permute.xlu0 %1115
        %v1117 = vsel %vm647, %v1112, %v1114
        %v1118 = vsel %vm647, %v1114, %v1116
        %v1121 = vsel %vm847, %v1117, 0.0
        %v1122 = vsel %vm848, %v1118, 0.0
        %s1123 = scalar_lea.vmem %s2, 24
        %v1124 = vld [vmem:[%s1123] sm:$0xff]
        %v1126 = vsel %vm868, %v1124, 0
        %1128 = vmatprep.subr.mxu0 0.0
        %1129 = vmatpush1.msra.mxu0 0.0
        %1130 = vmatprep.subr.mxu0 0.0
        %1131 = vmatpush1.msra.mxu0 0.0
        %1132 = vmatprep.subr.mxu0 0.0
        %1133 = vmatpush1.msra.mxu0 0.0
        %1134 = vmatprep.subr.mxu0 0.0
        %1135 = vmatpush1.msra.mxu0 0.0
        %1136 = vmatprep.subr.mxu0 0.0
        %1137 = vmatpush1.msra.mxu0 0.0
        %1138 = vmatprep.subr.mxu0 0.0
        %1139 = vmatpush1.msra.mxu0 0.0
        %1140 = vmatprep.subr.mxu0 0.0
        %1141 = vmatpush1.msra.mxu0 0.0
        %1142 = vmatprep.subr.mxu0 0.0
        %1143 = vmatpush1.msra.mxu0 0.0
        %1144 = vmatprep.subr.mxu0 0.0
        %1145 = vmatpush1.msra.mxu0 0.0
        %1146 = vmatprep.subr.mxu0 0.0
        %1147 = vmatpush1.msra.mxu0 0.0
        %1148 = vmatprep.subr.mxu0 0.0
        %1149 = vmatpush1.msra.mxu0 0.0
        %1150 = vmatprep.subr.mxu0 0.0
        %1151 = vmatpush1.msra.mxu0 0.0
        %1152 = vmatprep.subr.mxu0 0.0
        %1153 = vmatpush1.msra.mxu0 0.0
        %1154 = vmatprep.subr.mxu0 0.0
        %1155 = vmatpush1.msra.mxu0 0.0
        %1156 = vmatprep.subr.mxu0 0.0
        %1157 = vmatpush1.msra.mxu0 0.0
        %1158 = vmatprep.subr.mxu0 %v1122
        %1159 = vmatpush1.msra.mxu0 %v1121
        %1160 = vmatprep.subr.mxu0 0.0
        %1161 = vmatpush2.msra.mxu0 0.0
        %1162 = vmatprep.subr.mxu0 0.0
        %1163 = vmatpush2.msra.mxu0 0.0
        %1164 = vmatprep.subr.mxu0 0.0
        %1165 = vmatpush2.msra.mxu0 0.0
        %1166 = vmatprep.subr.mxu0 0.0
        %1167 = vmatpush2.msra.mxu0 0.0
        %1168 = vmatprep.subr.mxu0 0.0
        %1169 = vmatpush2.msra.mxu0 0.0
        %1170 = vmatprep.subr.mxu0 0.0
        %1171 = vmatpush2.msra.mxu0 0.0
        %1172 = vmatprep.subr.mxu0 0.0
        %1173 = vmatpush2.msra.mxu0 0.0
        %1174 = vmatprep.subr.mxu0 0.0
        %1175 = vmatpush2.msra.mxu0 0.0
        %1176 = vmatprep.subr.mxu0 0.0
        %1177 = vmatpush2.msra.mxu0 0.0
        %1178 = vmatprep.subr.mxu0 0.0
        %1179 = vmatpush2.msra.mxu0 0.0
        %1180 = vmatprep.subr.mxu0 0.0
        %1181 = vmatpush2.msra.mxu0 0.0
        %1182 = vmatprep.subr.mxu0 0.0
        %1183 = vmatpush2.msra.mxu0 0.0
        %1184 = vmatprep.subr.mxu0 0.0
        %1185 = vmatpush2.msra.mxu0 0.0
        %1186 = vmatprep.subr.mxu0 0.0
        %1187 = vmatpush2.msra.mxu0 0.0
        %1188 = vmatprep.subr.mxu0 0.0
        %1189 = vmatpush2.msra.mxu0 0.0
        %1190 = vmatprep.subr.mxu0 0.0
        %1191 = vmatpush2.msra.mxu0 0.0
        %1192 = vmatprep.mubr.f32.mxu0 0.0
        %1193 = vmatmul.mubr.f32.gmra.mxu0 %v1126
        %v1194 = vpop.f32.mrf.mxu0
        %v1195 = vadd.f32 0.0, %v1194
        %v1196 = vpop.f32.mrf.mxu0
        %v1197 = vadd.f32 0.0, %v1196
        %1198 = vdwg.mxu0
        %v1199 = vadd.f32 %v1109, %v1195
        %v1200 = vadd.f32 %v1110, %v1197
        %s1201 = scalar_lea.vmem %s2, 32
        %v1202 = vld [vmem:[%s1201] sm:$0xff]
        %1203 = vrot.lane.b32.xlu0 %v843, 111
        %v1204 = vpop.permute.xlu0 %1203
        %1205 = vrot.lane.b32.xlu0 %v844, 111
        %v1206 = vpop.permute.xlu0 %1205
        %1207 = vrot.lane.b32.xlu0 %v852, 111
        %v1208 = vpop.permute.xlu0 %1207
        %v1209 = vsel %vm692, %v1204, %v1206
        %v1210 = vsel %vm692, %v1206, %v1208
        %v1214 = vsel %vm868, %v1202, 0
        %1216 = vmatprep.subr.mxu0 0.0
        %1217 = vmatpush1.msra.mxu0 0.0
        %1218 = vmatprep.subr.mxu0 0.0
        %1219 = vmatpush1.msra.mxu0 0.0
        %1220 = vmatprep.subr.mxu0 0.0
        %1221 = vmatpush1.msra.mxu0 0.0
        %1222 = vmatprep.subr.mxu0 0.0
        %1223 = vmatpush1.msra.mxu0 0.0
        %1224 = vmatprep.subr.mxu0 0.0
        %1225 = vmatpush1.msra.mxu0 0.0
        %1226 = vmatprep.subr.mxu0 0.0
        %1227 = vmatpush1.msra.mxu0 0.0
        %1228 = vmatprep.subr.mxu0 0.0
        %1229 = vmatpush1.msra.mxu0 0.0
        %1230 = vmatprep.subr.mxu0 0.0
        %1231 = vmatpush1.msra.mxu0 0.0
        %1232 = vmatprep.subr.mxu0 0.0
        %1233 = vmatpush1.msra.mxu0 0.0
        %1234 = vmatprep.subr.mxu0 0.0
        %1235 = vmatpush1.msra.mxu0 0.0
        %1236 = vmatprep.subr.mxu0 0.0
        %1237 = vmatpush1.msra.mxu0 0.0
        %1238 = vmatprep.subr.mxu0 0.0
        %1239 = vmatpush1.msra.mxu0 0.0
        %1240 = vmatprep.subr.mxu0 0.0
        %1241 = vmatpush1.msra.mxu0 0.0
        %1242 = vmatprep.subr.mxu0 0.0
        %1243 = vmatpush1.msra.mxu0 0.0
        %1244 = vmatprep.subr.mxu0 0.0
        %1245 = vmatpush1.msra.mxu0 0.0
        %1246 = vmatprep.subr.mxu0 %v1210
        %1247 = vmatpush1.msra.mxu0 %v1209
        %1248 = vmatprep.subr.mxu0 0.0
        %1249 = vmatpush2.msra.mxu0 0.0
        %1250 = vmatprep.subr.mxu0 0.0
        %1251 = vmatpush2.msra.mxu0 0.0
        %1252 = vmatprep.subr.mxu0 0.0
        %1253 = vmatpush2.msra.mxu0 0.0
        %1254 = vmatprep.subr.mxu0 0.0
        %1255 = vmatpush2.msra.mxu0 0.0
        %1256 = vmatprep.subr.mxu0 0.0
        %1257 = vmatpush2.msra.mxu0 0.0
        %1258 = vmatprep.subr.mxu0 0.0
        %1259 = vmatpush2.msra.mxu0 0.0
        %1260 = vmatprep.subr.mxu0 0.0
        %1261 = vmatpush2.msra.mxu0 0.0
        %1262 = vmatprep.subr.mxu0 0.0
        %1263 = vmatpush2.msra.mxu0 0.0
        %1264 = vmatprep.subr.mxu0 0.0
        %1265 = vmatpush2.msra.mxu0 0.0
        %1266 = vmatprep.subr.mxu0 0.0
        %1267 = vmatpush2.msra.mxu0 0.0
        %1268 = vmatprep.subr.mxu0 0.0
        %1269 = vmatpush2.msra.mxu0 0.0
        %1270 = vmatprep.subr.mxu0 0.0
        %1271 = vmatpush2.msra.mxu0 0.0
        %1272 = vmatprep.subr.mxu0 0.0
        %1273 = vmatpush2.msra.mxu0 0.0
        %1274 = vmatprep.subr.mxu0 0.0
        %1275 = vmatpush2.msra.mxu0 0.0
        %1276 = vmatprep.subr.mxu0 0.0
        %1277 = vmatpush2.msra.mxu0 0.0
        %1278 = vmatprep.subr.mxu0 0.0
        %1279 = vmatpush2.msra.mxu0 0.0
        %1280 = vmatprep.mubr.f32.mxu0 0.0
        %1281 = vmatmul.mubr.f32.gmra.mxu0 %v1214
        %v1282 = vpop.f32.mrf.mxu0
        %v1283 = vadd.f32 0.0, %v1282
        %v1284 = vpop.f32.mrf.mxu0
        %v1285 = vadd.f32 0.0, %v1284
        %1286 = vdwg.mxu0
        %v1287 = vadd.f32 %v1199, %v1283
        %v1288 = vadd.f32 %v1200, %v1285
        %1289 = vrot.lane.b32.xlu0 %v843, 110
        %v1290 = vpop.permute.xlu0 %1289
        %1291 = vrot.lane.b32.xlu0 %v844, 110
        %v1292 = vpop.permute.xlu0 %1291
        %1293 = vrot.lane.b32.xlu0 %v852, 110
        %v1294 = vpop.permute.xlu0 %1293
        %v1295 = vsel %vm705, %v1290, %v1292
        %v1296 = vsel %vm705, %v1292, %v1294
        %v1299 = vsel %vm1019, %v1295, 0.0
        %v1300 = vsel %vm1020, %v1296, 0.0
        %s1301 = scalar_lea.vmem %s2, 40
        %v1302 = vld [vmem:[%s1301] sm:$0xff]
        %v1304 = vsel %vm868, %v1302, 0
        %1306 = vmatprep.subr.mxu0 0.0
        %1307 = vmatpush1.msra.mxu0 0.0
        %1308 = vmatprep.subr.mxu0 0.0
        %1309 = vmatpush1.msra.mxu0 0.0
        %1310 = vmatprep.subr.mxu0 0.0
        %1311 = vmatpush1.msra.mxu0 0.0
        %1312 = vmatprep.subr.mxu0 0.0
        %1313 = vmatpush1.msra.mxu0 0.0
        %1314 = vmatprep.subr.mxu0 0.0
        %1315 = vmatpush1.msra.mxu0 0.0
        %1316 = vmatprep.subr.mxu0 0.0
        %1317 = vmatpush1.msra.mxu0 0.0
        %1318 = vmatprep.subr.mxu0 0.0
        %1319 = vmatpush1.msra.mxu0 0.0
        %1320 = vmatprep.subr.mxu0 0.0
        %1321 = vmatpush1.msra.mxu0 0.0
        %1322 = vmatprep.subr.mxu0 0.0
        %1323 = vmatpush1.msra.mxu0 0.0
        %1324 = vmatprep.subr.mxu0 0.0
        %1325 = vmatpush1.msra.mxu0 0.0
        %1326 = vmatprep.subr.mxu0 0.0
        %1327 = vmatpush1.msra.mxu0 0.0
        %1328 = vmatprep.subr.mxu0 0.0
        %1329 = vmatpush1.msra.mxu0 0.0
        %1330 = vmatprep.subr.mxu0 0.0
        %1331 = vmatpush1.msra.mxu0 0.0
        %1332 = vmatprep.subr.mxu0 0.0
        %1333 = vmatpush1.msra.mxu0 0.0
        %1334 = vmatprep.subr.mxu0 0.0
        %1335 = vmatpush1.msra.mxu0 0.0
        %1336 = vmatprep.subr.mxu0 %v1300
        %1337 = vmatpush1.msra.mxu0 %v1299
        %1338 = vmatprep.subr.mxu0 0.0
        %1339 = vmatpush2.msra.mxu0 0.0
        %1340 = vmatprep.subr.mxu0 0.0
        %1341 = vmatpush2.msra.mxu0 0.0
        %1342 = vmatprep.subr.mxu0 0.0
        %1343 = vmatpush2.msra.mxu0 0.0
        %1344 = vmatprep.subr.mxu0 0.0
        %1345 = vmatpush2.msra.mxu0 0.0
        %1346 = vmatprep.subr.mxu0 0.0
        %1347 = vmatpush2.msra.mxu0 0.0
        %1348 = vmatprep.subr.mxu0 0.0
        %1349 = vmatpush2.msra.mxu0 0.0
        %1350 = vmatprep.subr.mxu0 0.0
        %1351 = vmatpush2.msra.mxu0 0.0
        %1352 = vmatprep.subr.mxu0 0.0
        %1353 = vmatpush2.msra.mxu0 0.0
        %1354 = vmatprep.subr.mxu0 0.0
        %1355 = vmatpush2.msra.mxu0 0.0
        %1356 = vmatprep.subr.mxu0 0.0
        %1357 = vmatpush2.msra.mxu0 0.0
        %1358 = vmatprep.subr.mxu0 0.0
        %1359 = vmatpush2.msra.mxu0 0.0
        %1360 = vmatprep.subr.mxu0 0.0
        %1361 = vmatpush2.msra.mxu0 0.0
        %1362 = vmatprep.subr.mxu0 0.0
        %1363 = vmatpush2.msra.mxu0 0.0
        %1364 = vmatprep.subr.mxu0 0.0
        %1365 = vmatpush2.msra.mxu0 0.0
        %1366 = vmatprep.subr.mxu0 0.0
        %1367 = vmatpush2.msra.mxu0 0.0
        %1368 = vmatprep.subr.mxu0 0.0
        %1369 = vmatpush2.msra.mxu0 0.0
        %1370 = vmatprep.mubr.f32.mxu0 0.0
        %1371 = vmatmul.mubr.f32.gmra.mxu0 %v1304
        %v1372 = vpop.f32.mrf.mxu0
        %v1373 = vadd.f32 0.0, %v1372
        %v1374 = vpop.f32.mrf.mxu0
        %v1375 = vadd.f32 0.0, %v1374
        %1376 = vdwg.mxu0
        %v1377 = vadd.f32 %v1287, %v1373
        %v1378 = vadd.f32 %v1288, %v1375
        %1379 = vrot.lane.b32.xlu0 %v843, 96
        %v1380 = vpop.permute.xlu0 %1379
        %1381 = vrot.lane.b32.xlu0 %v844, 96
        %v1382 = vpop.permute.xlu0 %1381
        %1383 = vrot.lane.b32.xlu0 %v852, 96
        %v1384 = vpop.permute.xlu0 %1383
        %v1385 = vsel %vm737, %v1380, %v1382
        %v1386 = vsel %vm737, %v1382, %v1384
        %v1389 = vsel %vm847, %v1385, 0.0
        %v1390 = vsel %vm848, %v1386, 0.0
        %s1391 = scalar_lea.vmem %s2, 48
        %v1392 = vld [vmem:[%s1391] sm:$0xff]
        %v1394 = vsel %vm868, %v1392, 0
        %1396 = vmatprep.subr.mxu0 0.0
        %1397 = vmatpush1.msra.mxu0 0.0
        %1398 = vmatprep.subr.mxu0 0.0
        %1399 = vmatpush1.msra.mxu0 0.0
        %1400 = vmatprep.subr.mxu0 0.0
        %1401 = vmatpush1.msra.mxu0 0.0
        %1402 = vmatprep.subr.mxu0 0.0
        %1403 = vmatpush1.msra.mxu0 0.0
        %1404 = vmatprep.subr.mxu0 0.0
        %1405 = vmatpush1.msra.mxu0 0.0
        %1406 = vmatprep.subr.mxu0 0.0
        %1407 = vmatpush1.msra.mxu0 0.0
        %1408 = vmatprep.subr.mxu0 0.0
        %1409 = vmatpush1.msra.mxu0 0.0
        %1410 = vmatprep.subr.mxu0 0.0
        %1411 = vmatpush1.msra.mxu0 0.0
        %1412 = vmatprep.subr.mxu0 0.0
        %1413 = vmatpush1.msra.mxu0 0.0
        %1414 = vmatprep.subr.mxu0 0.0
        %1415 = vmatpush1.msra.mxu0 0.0
        %1416 = vmatprep.subr.mxu0 0.0
        %1417 = vmatpush1.msra.mxu0 0.0
        %1418 = vmatprep.subr.mxu0 0.0
        %1419 = vmatpush1.msra.mxu0 0.0
        %1420 = vmatprep.subr.mxu0 0.0
        %1421 = vmatpush1.msra.mxu0 0.0
        %1422 = vmatprep.subr.mxu0 0.0
        %1423 = vmatpush1.msra.mxu0 0.0
        %1424 = vmatprep.subr.mxu0 0.0
        %1425 = vmatpush1.msra.mxu0 0.0
        %1426 = vmatprep.subr.mxu0 %v1390
        %1427 = vmatpush1.msra.mxu0 %v1389
        %1428 = vmatprep.subr.mxu0 0.0
        %1429 = vmatpush2.msra.mxu0 0.0
        %1430 = vmatprep.subr.mxu0 0.0
        %1431 = vmatpush2.msra.mxu0 0.0
        %1432 = vmatprep.subr.mxu0 0.0
        %1433 = vmatpush2.msra.mxu0 0.0
        %1434 = vmatprep.subr.mxu0 0.0
        %1435 = vmatpush2.msra.mxu0 0.0
        %1436 = vmatprep.subr.mxu0 0.0
        %1437 = vmatpush2.msra.mxu0 0.0
        %1438 = vmatprep.subr.mxu0 0.0
        %1439 = vmatpush2.msra.mxu0 0.0
        %1440 = vmatprep.subr.mxu0 0.0
        %1441 = vmatpush2.msra.mxu0 0.0
        %1442 = vmatprep.subr.mxu0 0.0
        %1443 = vmatpush2.msra.mxu0 0.0
        %1444 = vmatprep.subr.mxu0 0.0
        %1445 = vmatpush2.msra.mxu0 0.0
        %1446 = vmatprep.subr.mxu0 0.0
        %1447 = vmatpush2.msra.mxu0 0.0
        %1448 = vmatprep.subr.mxu0 0.0
        %1449 = vmatpush2.msra.mxu0 0.0
        %1450 = vmatprep.subr.mxu0 0.0
        %1451 = vmatpush2.msra.mxu0 0.0
        %1452 = vmatprep.subr.mxu0 0.0
        %1453 = vmatpush2.msra.mxu0 0.0
        %1454 = vmatprep.subr.mxu0 0.0
        %1455 = vmatpush2.msra.mxu0 0.0
        %1456 = vmatprep.subr.mxu0 0.0
        %1457 = vmatpush2.msra.mxu0 0.0
        %1458 = vmatprep.subr.mxu0 0.0
        %1459 = vmatpush2.msra.mxu0 0.0
        %1460 = vmatprep.mubr.f32.mxu0 0.0
        %1461 = vmatmul.mubr.f32.gmra.mxu0 %v1394
        %v1462 = vpop.f32.mrf.mxu0
        %v1463 = vadd.f32 0.0, %v1462
        %v1464 = vpop.f32.mrf.mxu0
        %v1465 = vadd.f32 0.0, %v1464
        %1466 = vdwg.mxu0
        %v1467 = vadd.f32 %v1377, %v1463
        %v1468 = vadd.f32 %v1378, %v1465
        %s1469 = scalar_lea.vmem %s2, 56
        %v1470 = vld [vmem:[%s1469] sm:$0xff]
        %1471 = vrot.lane.b32.xlu0 %v843, 95
        %v1472 = vpop.permute.xlu0 %1471
        %1473 = vrot.lane.b32.xlu0 %v844, 95
        %v1474 = vpop.permute.xlu0 %1473
        %1475 = vrot.lane.b32.xlu0 %v852, 95
        %v1476 = vpop.permute.xlu0 %1475
        %v1477 = vsel %vm782, %v1472, %v1474
        %v1478 = vsel %vm782, %v1474, %v1476
        %v1482 = vsel %vm868, %v1470, 0
        %1484 = vmatprep.subr.mxu0 0.0
        %1485 = vmatpush1.msra.mxu0 0.0
        %1486 = vmatprep.subr.mxu0 0.0
        %1487 = vmatpush1.msra.mxu0 0.0
        %1488 = vmatprep.subr.mxu0 0.0
        %1489 = vmatpush1.msra.mxu0 0.0
        %1490 = vmatprep.subr.mxu0 0.0
        %1491 = vmatpush1.msra.mxu0 0.0
        %1492 = vmatprep.subr.mxu0 0.0
        %1493 = vmatpush1.msra.mxu0 0.0
        %1494 = vmatprep.subr.mxu0 0.0
        %1495 = vmatpush1.msra.mxu0 0.0
        %1496 = vmatprep.subr.mxu0 0.0
        %1497 = vmatpush1.msra.mxu0 0.0
        %1498 = vmatprep.subr.mxu0 0.0
        %1499 = vmatpush1.msra.mxu0 0.0
        %1500 = vmatprep.subr.mxu0 0.0
        %1501 = vmatpush1.msra.mxu0 0.0
        %1502 = vmatprep.subr.mxu0 0.0
        %1503 = vmatpush1.msra.mxu0 0.0
        %1504 = vmatprep.subr.mxu0 0.0
        %1505 = vmatpush1.msra.mxu0 0.0
        %1506 = vmatprep.subr.mxu0 0.0
        %1507 = vmatpush1.msra.mxu0 0.0
        %1508 = vmatprep.subr.mxu0 0.0
        %1509 = vmatpush1.msra.mxu0 0.0
        %1510 = vmatprep.subr.mxu0 0.0
        %1511 = vmatpush1.msra.mxu0 0.0
        %1512 = vmatprep.subr.mxu0 0.0
        %1513 = vmatpush1.msra.mxu0 0.0
        %1514 = vmatprep.subr.mxu0 %v1478
        %1515 = vmatpush1.msra.mxu0 %v1477
        %1516 = vmatprep.subr.mxu0 0.0
        %1517 = vmatpush2.msra.mxu0 0.0
        %1518 = vmatprep.subr.mxu0 0.0
        %1519 = vmatpush2.msra.mxu0 0.0
        %1520 = vmatprep.subr.mxu0 0.0
        %1521 = vmatpush2.msra.mxu0 0.0
        %1522 = vmatprep.subr.mxu0 0.0
        %1523 = vmatpush2.msra.mxu0 0.0
        %1524 = vmatprep.subr.mxu0 0.0
        %1525 = vmatpush2.msra.mxu0 0.0
        %1526 = vmatprep.subr.mxu0 0.0
        %1527 = vmatpush2.msra.mxu0 0.0
        %1528 = vmatprep.subr.mxu0 0.0
        %1529 = vmatpush2.msra.mxu0 0.0
        %1530 = vmatprep.subr.mxu0 0.0
        %1531 = vmatpush2.msra.mxu0 0.0
        %1532 = vmatprep.subr.mxu0 0.0
        %1533 = vmatpush2.msra.mxu0 0.0
        %1534 = vmatprep.subr.mxu0 0.0
        %1535 = vmatpush2.msra.mxu0 0.0
        %1536 = vmatprep.subr.mxu0 0.0
        %1537 = vmatpush2.msra.mxu0 0.0
        %1538 = vmatprep.subr.mxu0 0.0
        %1539 = vmatpush2.msra.mxu0 0.0
        %1540 = vmatprep.subr.mxu0 0.0
        %1541 = vmatpush2.msra.mxu0 0.0
        %1542 = vmatprep.subr.mxu0 0.0
        %1543 = vmatpush2.msra.mxu0 0.0
        %1544 = vmatprep.subr.mxu0 0.0
        %1545 = vmatpush2.msra.mxu0 0.0
        %1546 = vmatprep.subr.mxu0 0.0
        %1547 = vmatpush2.msra.mxu0 0.0
        %1548 = vmatprep.mubr.f32.mxu0 0.0
        %1549 = vmatmul.mubr.f32.gmra.mxu0 %v1482
        %v1550 = vpop.f32.mrf.mxu0
        %v1551 = vadd.f32 0.0, %v1550
        %v1552 = vpop.f32.mrf.mxu0
        %v1553 = vadd.f32 0.0, %v1552
        %1554 = vdwg.mxu0
        %v1555 = vadd.f32 %v1467, %v1551
        %v1556 = vadd.f32 %v1468, %v1553
        %1557 = vrot.lane.b32.xlu0 %v843, 94
        %v1558 = vpop.permute.xlu0 %1557
        %1559 = vrot.lane.b32.xlu0 %v844, 94
        %v1560 = vpop.permute.xlu0 %1559
        %1561 = vrot.lane.b32.xlu0 %v852, 94
        %v1562 = vpop.permute.xlu0 %1561
        %v1563 = vsel %vm795, %v1558, %v1560
        %v1564 = vsel %vm795, %v1560, %v1562
        %v1567 = vsel %vm1019, %v1563, 0.0
        %v1568 = vsel %vm1020, %v1564, 0.0
        %s1569 = scalar_lea.vmem %s2, 64
        %v1570 = vld [vmem:[%s1569] sm:$0xff]
        %v1572 = vsel %vm868, %v1570, 0
        %1574 = vmatprep.subr.mxu0 0.0
        %1575 = vmatpush1.msra.mxu0 0.0
        %1576 = vmatprep.subr.mxu0 0.0
        %1577 = vmatpush1.msra.mxu0 0.0
        %1578 = vmatprep.subr.mxu0 0.0
        %1579 = vmatpush1.msra.mxu0 0.0
        %1580 = vmatprep.subr.mxu0 0.0
        %1581 = vmatpush1.msra.mxu0 0.0
        %1582 = vmatprep.subr.mxu0 0.0
        %1583 = vmatpush1.msra.mxu0 0.0
        %1584 = vmatprep.subr.mxu0 0.0
        %1585 = vmatpush1.msra.mxu0 0.0
        %1586 = vmatprep.subr.mxu0 0.0
        %1587 = vmatpush1.msra.mxu0 0.0
        %1588 = vmatprep.subr.mxu0 0.0
        %1589 = vmatpush1.msra.mxu0 0.0
        %1590 = vmatprep.subr.mxu0 0.0
        %1591 = vmatpush1.msra.mxu0 0.0
        %1592 = vmatprep.subr.mxu0 0.0
        %1593 = vmatpush1.msra.mxu0 0.0
        %1594 = vmatprep.subr.mxu0 0.0
        %1595 = vmatpush1.msra.mxu0 0.0
        %1596 = vmatprep.subr.mxu0 0.0
        %1597 = vmatpush1.msra.mxu0 0.0
        %1598 = vmatprep.subr.mxu0 0.0
        %1599 = vmatpush1.msra.mxu0 0.0
        %1600 = vmatprep.subr.mxu0 0.0
        %1601 = vmatpush1.msra.mxu0 0.0
        %1602 = vmatprep.subr.mxu0 0.0
        %1603 = vmatpush1.msra.mxu0 0.0
        %1604 = vmatprep.subr.mxu0 %v1568
        %1605 = vmatpush1.msra.mxu0 %v1567
        %1606 = vmatprep.subr.mxu0 0.0
        %1607 = vmatpush2.msra.mxu0 0.0
        %1608 = vmatprep.subr.mxu0 0.0
        %1609 = vmatpush2.msra.mxu0 0.0
        %1610 = vmatprep.subr.mxu0 0.0
        %1611 = vmatpush2.msra.mxu0 0.0
        %1612 = vmatprep.subr.mxu0 0.0
        %1613 = vmatpush2.msra.mxu0 0.0
        %1614 = vmatprep.subr.mxu0 0.0
        %1615 = vmatpush2.msra.mxu0 0.0
        %1616 = vmatprep.subr.mxu0 0.0
        %1617 = vmatpush2.msra.mxu0 0.0
        %1618 = vmatprep.subr.mxu0 0.0
        %1619 = vmatpush2.msra.mxu0 0.0
        %1620 = vmatprep.subr.mxu0 0.0
        %1621 = vmatpush2.msra.mxu0 0.0
        %1622 = vmatprep.subr.mxu0 0.0
        %1623 = vmatpush2.msra.mxu0 0.0
        %1624 = vmatprep.subr.mxu0 0.0
        %1625 = vmatpush2.msra.mxu0 0.0
        %1626 = vmatprep.subr.mxu0 0.0
        %1627 = vmatpush2.msra.mxu0 0.0
        %1628 = vmatprep.subr.mxu0 0.0
        %1629 = vmatpush2.msra.mxu0 0.0
        %1630 = vmatprep.subr.mxu0 0.0
        %1631 = vmatpush2.msra.mxu0 0.0
        %1632 = vmatprep.subr.mxu0 0.0
        %1633 = vmatpush2.msra.mxu0 0.0
        %1634 = vmatprep.subr.mxu0 0.0
        %1635 = vmatpush2.msra.mxu0 0.0
        %1636 = vmatprep.subr.mxu0 0.0
        %1637 = vmatpush2.msra.mxu0 0.0
        %1638 = vmatprep.mubr.f32.mxu0 0.0
        %1639 = vmatmul.mubr.f32.gmra.mxu0 %v1572
        %v1640 = vpop.f32.mrf.mxu0
        %v1641 = vadd.f32 0.0, %v1640
        %v1642 = vpop.f32.mrf.mxu0
        %v1643 = vadd.f32 0.0, %v1642
        %1644 = vdwg.mxu0
        %v1645 = vadd.f32 %v1555, %v1641
        %v1646 = vadd.f32 %v1556, %v1643
        %1647 = vst [vmem:[#allocation2] sm:$0xff] 0.0
        %1648 = vst [vmem:[#allocation2 + $0x8] sm:$0xff] 0.0
        %1649 = vst.msk [vmem:[#allocation2 + $0x10] sm:$0xff] %vm483, 0.0
        %1650 = vst [vmem:[#allocation2 + $0x18] sm:$0xf] 0.0
        %1651 = vst [vmem:[#allocation2 + $0x20] sm:$0xf] 0.0
        %1652 = vst.msk [vmem:[#allocation2 + $0x28] sm:$0xf] %vm487, 0.0
        %v1653 = vmax.f32 %v1645, 0.0
        %v1654 = vmax.f32 %v1646, 0.0
        %1657 = vrot.lane.b32.xlu0 %v1653, 17
        %v1658 = vpop.permute.xlu0 %1657
        %1659 = vrot.lane.b32.xlu0 %v1654, 17
        %v1660 = vpop.permute.xlu0 %1659
        %v1661 = vsel %vm494, %v1658, %v1660
        %1665 = vst.msk [vmem:[#allocation2] sm:$0xff] %vm839, %v1658
        %1666 = vst [vmem:[#allocation2 + $0x8] sm:$0xff] %v1661
        %1667 = vst.msk [vmem:[#allocation2 + $0x10] sm:$0xff] %vm494, %v1660
        %v1668 = vld [vmem:[#allocation2] sm:$0xff]
        %v1669 = vld [vmem:[#allocation2 + $0x8] sm:$0xff]
        %v1670 = vld [vmem:[#allocation2 + $0x10] sm:$0xff]
        %1674 = vrot.lane.b32.xlu0 %v1668, 127
        %v1675 = vpop.permute.xlu0 %1674
        %1676 = vrot.lane.b32.xlu0 %v1669, 127
        %v1677 = vpop.permute.xlu0 %1676
        %1678 = vrot.lane.b32.xlu0 %v1670, 127
        %v1679 = vpop.permute.xlu0 %1678
        %v1680 = vsel %vm600, %v1675, %v1677
        %v1681 = vsel %vm600, %v1677, %v1679
        %v1685 = vmax.f32 %v1668, %v1680
        %v1686 = vmax.f32 %v1669, %v1681
        %v1687 = vmax.f32 %v1670, %v1679
        %1691 = vrot.lane.b32.xlu0 %v1685, 112
        %v1692 = vpop.permute.xlu0 %1691
        %1693 = vrot.lane.b32.xlu0 %v1686, 112
        %v1694 = vpop.permute.xlu0 %1693
        %1695 = vrot.lane.b32.xlu0 %v1687, 112
        %v1696 = vpop.permute.xlu0 %1695
        %v1697 = vsel %vm647, %v1692, %v1694
        %v1698 = vsel %vm647, %v1694, %v1696
        %v1702 = vmax.f32 %v1685, %v1697
        %v1703 = vmax.f32 %v1686, %v1698
        %v1704 = vmax.f32 %v1687, %v1696
        %v1705 = vld [vmem:[%s10] sm:$0xff]
        %v1706 = vld [vmem:[%s10 + $0x8] sm:$0xff]
        %v1707 = vld [vmem:[%s10 + $0x10] sm:$0xff]
        %v1708 = vld [vmem:[%s10 + $0x18] sm:$0xff]
        %v1709 = vld [vmem:[%s10 + $0x20] sm:$0xff]
        %v1710 = vld [vmem:[%s10 + $0x28] sm:$0xff]
        %v1711 = vld [vmem:[%s10 + $0x30] sm:$0xff]
        %v1712 = vld [vmem:[%s10 + $0x38] sm:$0xff]
        %v1713 = vld [vmem:[%s10 + $0x40] sm:$0xff]
        %v1714 = vld [vmem:[%s10 + $0x48] sm:$0xff]
        %v1715 = vld [vmem:[%s10 + $0x50] sm:$0xff]
        %v1716 = vld [vmem:[%s10 + $0x58] sm:$0xff]
        %v1717 = vld [vmem:[%s10 + $0x60] sm:$0xff]
        %v1718 = vld [vmem:[%s10 + $0x68] sm:$0xff]
        %v1719 = vld [vmem:[%s10 + $0x70] sm:$0xff]
        %v1720 = vld [vmem:[%s10 + $0x78] sm:$0xff]
        %v1721 = vld [vmem:[%s10 + $0x80] sm:$0xff]
        %v1722 = vld [vmem:[%s10 + $0x88] sm:$0xff]
        %v1723 = vld [vmem:[%s10 + $0x90] sm:$0xff]
        %v1724 = vld [vmem:[%s10 + $0x98] sm:$0xff]
        %v1725 = vld [vmem:[%s10 + $0xa0] sm:$0xff]
        %v1726 = vld [vmem:[%s10 + $0xa8] sm:$0xff]
        %v1727 = vld [vmem:[%s10 + $0xb0] sm:$0xff]
        %v1728 = vld [vmem:[%s10 + $0xb8] sm:$0xff]
        %v1729 = vld [vmem:[%s10 + $0xc0] sm:$0xff]
        %v1730 = vld [vmem:[%s10 + $0xc8] sm:$0xff]
        %v1731 = vld [vmem:[%s10 + $0xd0] sm:$0xff]
        %v1732 = vld [vmem:[%s10 + $0xd8] sm:$0xff]
        %v1733 = vld [vmem:[%s10 + $0xe0] sm:$0xff]
        %v1734 = vld [vmem:[%s10 + $0xe8] sm:$0xff]
        %v1735 = vld [vmem:[%s10 + $0xf0] sm:$0xff]
        %v1736 = vld [vmem:[%s10 + $0xf8] sm:$0xff]
        %1740 = vrot.lane.b32.xlu0 %v1702, 111
        %v1741 = vpop.permute.xlu0 %1740
        %1742 = vrot.lane.b32.xlu0 %v1703, 111
        %v1743 = vpop.permute.xlu0 %1742
        %1744 = vrot.lane.b32.xlu0 %v1704, 111
        %v1745 = vpop.permute.xlu0 %1744
        %v1746 = vsel %vm692, %v1741, %v1743
        %v1747 = vsel %vm692, %v1743, %v1745
        %1750 = vmatprep.subr.mxu0 0.0
        %1751 = vmatpush1.msra.mxu0 %v1720
        %1752 = vmatprep.subr.mxu0 0.0
        %1753 = vmatpush1.msra.mxu0 %v1719
        %1754 = vmatprep.subr.mxu0 0.0
        %1755 = vmatpush1.msra.mxu0 %v1718
        %1756 = vmatprep.subr.mxu0 0.0
        %1757 = vmatpush1.msra.mxu0 %v1717
        %1758 = vmatprep.subr.mxu0 0.0
        %1759 = vmatpush1.msra.mxu0 %v1716
        %1760 = vmatprep.subr.mxu0 0.0
        %1761 = vmatpush1.msra.mxu0 %v1715
        %1762 = vmatprep.subr.mxu0 0.0
        %1763 = vmatpush1.msra.mxu0 %v1714
        %1764 = vmatprep.subr.mxu0 0.0
        %1765 = vmatpush1.msra.mxu0 %v1713
        %1766 = vmatprep.subr.mxu0 0.0
        %1767 = vmatpush1.msra.mxu0 %v1712
        %1768 = vmatprep.subr.mxu0 0.0
        %1769 = vmatpush1.msra.mxu0 %v1711
        %1770 = vmatprep.subr.mxu0 0.0
        %1771 = vmatpush1.msra.mxu0 %v1710
        %1772 = vmatprep.subr.mxu0 0.0
        %1773 = vmatpush1.msra.mxu0 %v1709
        %1774 = vmatprep.subr.mxu0 0.0
        %1775 = vmatpush1.msra.mxu0 %v1708
        %1776 = vmatprep.subr.mxu0 0.0
        %1777 = vmatpush1.msra.mxu0 %v1707
        %1778 = vmatprep.subr.mxu0 0.0
        %1779 = vmatpush1.msra.mxu0 %v1706
        %1780 = vmatprep.subr.mxu0 0.0
        %1781 = vmatpush1.msra.mxu0 %v1705
        %1782 = vmatprep.subr.mxu0 0.0
        %1783 = vmatpush2.msra.mxu0 %v1736
        %1784 = vmatprep.subr.mxu0 0.0
        %1785 = vmatpush2.msra.mxu0 %v1735
        %1786 = vmatprep.subr.mxu0 0.0
        %1787 = vmatpush2.msra.mxu0 %v1734
        %1788 = vmatprep.subr.mxu0 0.0
        %1789 = vmatpush2.msra.mxu0 %v1733
        %1790 = vmatprep.subr.mxu0 0.0
        %1791 = vmatpush2.msra.mxu0 %v1732
        %1792 = vmatprep.subr.mxu0 0.0
        %1793 = vmatpush2.msra.mxu0 %v1731
        %1794 = vmatprep.subr.mxu0 0.0
        %1795 = vmatpush2.msra.mxu0 %v1730
        %1796 = vmatprep.subr.mxu0 0.0
        %1797 = vmatpush2.msra.mxu0 %v1729
        %1798 = vmatprep.subr.mxu0 0.0
        %1799 = vmatpush2.msra.mxu0 %v1728
        %1800 = vmatprep.subr.mxu0 0.0
        %1801 = vmatpush2.msra.mxu0 %v1727
        %1802 = vmatprep.subr.mxu0 0.0
        %1803 = vmatpush2.msra.mxu0 %v1726
        %1804 = vmatprep.subr.mxu0 0.0
        %1805 = vmatpush2.msra.mxu0 %v1725
        %1806 = vmatprep.subr.mxu0 0.0
        %1807 = vmatpush2.msra.mxu0 %v1724
        %1808 = vmatprep.subr.mxu0 0.0
        %1809 = vmatpush2.msra.mxu0 %v1723
        %1810 = vmatprep.subr.mxu0 0.0
        %1811 = vmatpush2.msra.mxu0 %v1722
        %1812 = vmatprep.subr.mxu0 0.0
        %1813 = vmatpush2.msra.mxu0 %v1721
        %1814 = vmatprep.mubr.f32.mxu0 %v1747
        %1815 = vmatmul.mubr.f32.gmra.mxu0 %v1746
        %v1816 = vpop.f32.mrf.mxu0
        %v1817 = vadd.f32 0.0, %v1816
        %v1818 = vpop.f32.mrf.mxu0
        %1819 = vdwg.mxu0
        %1820 = vst [vmem:[#allocation3] sm:$0xff] 0.0
        %1821 = vst [vmem:[#allocation3 + $0x8] sm:$0xff] 0.0
        %1822 = vst.msk [vmem:[#allocation3 + $0x10] sm:$0xff] %vm483, 0.0
        %1823 = vst [vmem:[#allocation3 + $0x18] sm:$0xf] 0.0
        %1824 = vst [vmem:[#allocation3 + $0x20] sm:$0xf] 0.0
        %1825 = vst.msk [vmem:[#allocation3 + $0x28] sm:$0xf] %vm487, 0.0
        %1827 = vrot.lane.b32.xlu0 %v1817, 9
        %v1828 = vpop.permute.xlu0 %1827
        %vm1830 = vcmask 597064
        %1831 = vst.msk [vmem:[#allocation3] sm:$0xff] %vm1830, %v1828
        %v1832 = vld [vmem:[#allocation3] sm:$0xff]
        %v1833 = vld [vmem:[%s3] sm:$0xff]
        %v1834 = vld [vmem:[%s3 + $0x8] sm:$0xf]
        %1836 = vrot.lane.b32.xlu0 %v1832, 119
        %v1837 = vpop.permute.xlu0 %1836
        %v1840 = vsel %vm868, %v1833, 0
        %v1843 = vsel %vm868, %v1834, 0
        %1845 = vmatprep.subr.mxu0 0.0
        %1846 = vmatpush1.msra.mxu0 0.0
        %1847 = vmatprep.subr.mxu0 0.0
        %1848 = vmatpush1.msra.mxu0 0.0
        %1849 = vmatprep.subr.mxu0 0.0
        %1850 = vmatpush1.msra.mxu0 0.0
        %1851 = vmatprep.subr.mxu0 0.0
        %1852 = vmatpush1.msra.mxu0 0.0
        %1853 = vmatprep.subr.mxu0 0.0
        %1854 = vmatpush1.msra.mxu0 0.0
        %1855 = vmatprep.subr.mxu0 0.0
        %1856 = vmatpush1.msra.mxu0 0.0
        %1857 = vmatprep.subr.mxu0 0.0
        %1858 = vmatpush1.msra.mxu0 0.0
        %1859 = vmatprep.subr.mxu0 0.0
        %1860 = vmatpush1.msra.mxu0 0.0
        %1861 = vmatprep.subr.mxu0 0.0
        %1862 = vmatpush1.msra.mxu0 0.0
        %1863 = vmatprep.subr.mxu0 0.0
        %1864 = vmatpush1.msra.mxu0 0.0
        %1865 = vmatprep.subr.mxu0 0.0
        %1866 = vmatpush1.msra.mxu0 0.0
        %1867 = vmatprep.subr.mxu0 0.0
        %1868 = vmatpush1.msra.mxu0 0.0
        %1869 = vmatprep.subr.mxu0 0.0
        %1870 = vmatpush1.msra.mxu0 0.0
        %1871 = vmatprep.subr.mxu0 0.0
        %1872 = vmatpush1.msra.mxu0 0.0
        %1873 = vmatprep.subr.mxu0 0.0
        %1874 = vmatpush1.msra.mxu0 0.0
        %1875 = vmatprep.subr.mxu0 0.0
        %1876 = vmatpush1.msra.mxu0 %v1837
        %1877 = vmatprep.subr.mxu0 0.0
        %1878 = vmatpush2.msra.mxu0 0.0
        %1879 = vmatprep.subr.mxu0 0.0
        %1880 = vmatpush2.msra.mxu0 0.0
        %1881 = vmatprep.subr.mxu0 0.0
        %1882 = vmatpush2.msra.mxu0 0.0
        %1883 = vmatprep.subr.mxu0 0.0
        %1884 = vmatpush2.msra.mxu0 0.0
        %1885 = vmatprep.subr.mxu0 0.0
        %1886 = vmatpush2.msra.mxu0 0.0
        %1887 = vmatprep.subr.mxu0 0.0
        %1888 = vmatpush2.msra.mxu0 0.0
        %1889 = vmatprep.subr.mxu0 0.0
        %1890 = vmatpush2.msra.mxu0 0.0
        %1891 = vmatprep.subr.mxu0 0.0
        %1892 = vmatpush2.msra.mxu0 0.0
        %1893 = vmatprep.subr.mxu0 0.0
        %1894 = vmatpush2.msra.mxu0 0.0
        %1895 = vmatprep.subr.mxu0 0.0
        %1896 = vmatpush2.msra.mxu0 0.0
        %1897 = vmatprep.subr.mxu0 0.0
        %1898 = vmatpush2.msra.mxu0 0.0
        %1899 = vmatprep.subr.mxu0 0.0
        %1900 = vmatpush2.msra.mxu0 0.0
        %1901 = vmatprep.subr.mxu0 0.0
        %1902 = vmatpush2.msra.mxu0 0.0
        %1903 = vmatprep.subr.mxu0 0.0
        %1904 = vmatpush2.msra.mxu0 0.0
        %1905 = vmatprep.subr.mxu0 0.0
        %1906 = vmatpush2.msra.mxu0 0.0
        %1907 = vmatprep.subr.mxu0 0.0
        %1908 = vmatpush2.msra.mxu0 0.0
        %1909 = vmatprep.mubr.f32.mxu0 0.0
        %1910 = vmatmul.mubr.f32.gmra.mxu0 %v1840
        %v1911 = vpop.f32.mrf.mxu0
        %v1912 = vadd.f32 0.0, %v1911
        %v1913 = vpop.f32.mrf.mxu0
        %1914 = vmatprep.mubr.f32.mxu0 0.0
        %1915 = vmatmul.mubr.f32.gmra.mxu0 %v1843
        %v1916 = vpop.f32.mrf.mxu0
        %v1917 = vadd.f32 0.0, %v1916
        %v1918 = vpop.f32.mrf.mxu0
        %1919 = vdwg.mxu0
        %1920 = vst [vmem:[#allocation2] sm:$0xff] 0.0
        %1921 = vst [vmem:[#allocation2 + $0x8] sm:$0xff] 0.0
        %1922 = vst.msk [vmem:[#allocation2 + $0x10] sm:$0xff] %vm483, 0.0
        %1923 = vst [vmem:[#allocation2 + $0x18] sm:$0xf] 0.0
        %1924 = vst [vmem:[#allocation2 + $0x20] sm:$0xf] 0.0
        %1925 = vst.msk [vmem:[#allocation2 + $0x28] sm:$0xf] %vm487, 0.0
        %v1926 = vmax.f32 %v1912, 0.0
        %v1927 = vmax.f32 %v1917, 0.0
        %1930 = vrot.lane.b32.xlu0 %v1926, 9
        %v1931 = vpop.permute.xlu0 %1930
        %1932 = vrot.lane.b32.xlu0 %v1927, 9
        %v1933 = vpop.permute.xlu0 %1932
        %1936 = vst.msk [vmem:[#allocation2] sm:$0xff] %vm1830, %v1931
        %vm1937 = vcmask 592968
        %1938 = vst.msk [vmem:[#allocation2 + $0x18] sm:$0xf] %vm1937, %v1933
        %vm1939 = vcmp.lt.s32.totalorder %v504, 0
        %v1940 = vsub.s32 0, %v504
        %v1941 = vsel %vm1939, %v1940, %v504
        %v1942 = vshrl.u32 %v1941, 3
        %v1943 = vand.u32 %v1941, 7
        %v1944 = vsub.s32 0, %v1943
        %v1945 = vsel %vm1939, %v1944, %v1943
        %vm1946 = vcmp.ne.s32.totalorder %v1945, 0
        %vm1947 = vcmp.lt.s32.totalorder %v1945, 0
        %vm1948 = vmand %vm1947, %vm1946
        %v1949 = vadd.s32 %v1945, 8
        %v1950 = vsel %vm1948, %v1949, %v1945
        %v1951 = vld [vmem:[#allocation2] sm:$0xff]
        %v1952 = vld [vmem:[#allocation2 + $0x18] sm:$0xf]
        %vm1953 = vcmp.ge.s32.totalorder %v1950, 1
        %v1954 = vsel %vm1953, 1, 0
        %vm1955 = vcmp.eq.s32.totalorder %v1954, 1
        %v1956 = vsel %vm1955, %v1951, 0.0
        %v1957 = vsel %vm1955, %v1952, 0.0
        %v1958 = vld [vmem:[#allocation4] sm:$0xff]
        %v1959 = vld [vmem:[#allocation4 + $0x8] sm:$0xf]
        %s1960 = scalar_lea.vmem [#allocation4], 16
        %v1961 = vld [vmem:[%s1960] sm:$0xff]
        %v1962 = vld [vmem:[%s1960 + $0x8] sm:$0xf]
        %1965 = vrot.lane.b32.xlu0 %v1951, 127
        %v1966 = vpop.permute.xlu0 %1965
        %1967 = vrot.lane.b32.xlu0 %v1952, 127
        %v1968 = vpop.permute.xlu0 %1967
        %vm1970 = vcmask 97280
        %v1972 = vsel %vm1970, %v1961, 0
        %v1975 = vsel %vm1970, %v1962, 0
        %vm1977 = vcmask 1043456
        %v1978 = vsel %vm1977, %v1968, 0
        %1980 = vmatprep.subr.mxu0 0.0
        %1981 = vmatpush1.msra.mxu0 0.0
        %1982 = vmatprep.subr.mxu0 0.0
        %1983 = vmatpush1.msra.mxu0 0.0
        %1984 = vmatprep.subr.mxu0 0.0
        %1985 = vmatpush1.msra.mxu0 0.0
        %1986 = vmatprep.subr.mxu0 0.0
        %1987 = vmatpush1.msra.mxu0 0.0
        %1988 = vmatprep.subr.mxu0 0.0
        %1989 = vmatpush1.msra.mxu0 0.0
        %1990 = vmatprep.subr.mxu0 0.0
        %1991 = vmatpush1.msra.mxu0 0.0
        %1992 = vmatprep.subr.mxu0 0.0
        %1993 = vmatpush1.msra.mxu0 0.0
        %1994 = vmatprep.subr.mxu0 0.0
        %1995 = vmatpush1.msra.mxu0 0.0
        %1996 = vmatprep.subr.mxu0 0.0
        %1997 = vmatpush1.msra.mxu0 0.0
        %1998 = vmatprep.subr.mxu0 0.0
        %1999 = vmatpush1.msra.mxu0 0.0
        %2000 = vmatprep.subr.mxu0 0.0
        %2001 = vmatpush1.msra.mxu0 0.0
        %2002 = vmatprep.subr.mxu0 0.0
        %2003 = vmatpush1.msra.mxu0 0.0
        %2004 = vmatprep.subr.mxu0 0.0
        %2005 = vmatpush1.msra.mxu0 0.0
        %2006 = vmatprep.subr.mxu0 0.0
        %2007 = vmatpush1.msra.mxu0 0.0
        %2008 = vmatprep.subr.mxu0 0.0
        %2009 = vmatpush1.msra.mxu0 %v1978
        %2010 = vmatprep.subr.mxu0 0.0
        %2011 = vmatpush1.msra.mxu0 %v1966
        %2012 = vmatprep.subr.mxu0 0.0
        %2013 = vmatpush2.msra.mxu0 0.0
        %2014 = vmatprep.subr.mxu0 0.0
        %2015 = vmatpush2.msra.mxu0 0.0
        %2016 = vmatprep.subr.mxu0 0.0
        %2017 = vmatpush2.msra.mxu0 0.0
        %2018 = vmatprep.subr.mxu0 0.0
        %2019 = vmatpush2.msra.mxu0 0.0
        %2020 = vmatprep.subr.mxu0 0.0
        %2021 = vmatpush2.msra.mxu0 0.0
        %2022 = vmatprep.subr.mxu0 0.0
        %2023 = vmatpush2.msra.mxu0 0.0
        %2024 = vmatprep.subr.mxu0 0.0
        %2025 = vmatpush2.msra.mxu0 0.0
        %2026 = vmatprep.subr.mxu0 0.0
        %2027 = vmatpush2.msra.mxu0 0.0
        %2028 = vmatprep.subr.mxu0 0.0
        %2029 = vmatpush2.msra.mxu0 0.0
        %2030 = vmatprep.subr.mxu0 0.0
        %2031 = vmatpush2.msra.mxu0 0.0
        %2032 = vmatprep.subr.mxu0 0.0
        %2033 = vmatpush2.msra.mxu0 0.0
        %2034 = vmatprep.subr.mxu0 0.0
        %2035 = vmatpush2.msra.mxu0 0.0
        %2036 = vmatprep.subr.mxu0 0.0
        %2037 = vmatpush2.msra.mxu0 0.0
        %2038 = vmatprep.subr.mxu0 0.0
        %2039 = vmatpush2.msra.mxu0 0.0
        %2040 = vmatprep.subr.mxu0 0.0
        %2041 = vmatpush2.msra.mxu0 0.0
        %2042 = vmatprep.subr.mxu0 0.0
        %2043 = vmatpush2.msra.mxu0 0.0
        %2044 = vmatprep.mubr.f32.mxu0 0.0
        %2045 = vmatmul.mubr.f32.gmra.mxu0 %v1972
        %v2046 = vpop.f32.mrf.mxu0
        %v2047 = vadd.f32 0.0, %v2046
        %v2048 = vpop.f32.mrf.mxu0
        %2049 = vmatprep.mubr.f32.mxu0 0.0
        %2050 = vmatmul.mubr.f32.gmra.mxu0 %v1975
        %v2051 = vpop.f32.mrf.mxu0
        %v2052 = vadd.f32 0.0, %v2051
        %v2053 = vpop.f32.mrf.mxu0
        %2054 = vdwg.mxu0
        %v2056 = vsel %vm1970, %v1958, 0
        %v2059 = vsel %vm1970, %v1959, 0
        %v2062 = vsel %vm1977, %v1957, 0
        %2064 = vmatprep.subr.mxu0 0.0
        %2065 = vmatpush1.msra.mxu0 0.0
        %2066 = vmatprep.subr.mxu0 0.0
        %2067 = vmatpush1.msra.mxu0 0.0
        %2068 = vmatprep.subr.mxu0 0.0
        %2069 = vmatpush1.msra.mxu0 0.0
        %2070 = vmatprep.subr.mxu0 0.0
        %2071 = vmatpush1.msra.mxu0 0.0
        %2072 = vmatprep.subr.mxu0 0.0
        %2073 = vmatpush1.msra.mxu0 0.0
        %2074 = vmatprep.subr.mxu0 0.0
        %2075 = vmatpush1.msra.mxu0 0.0
        %2076 = vmatprep.subr.mxu0 0.0
        %2077 = vmatpush1.msra.mxu0 0.0
        %2078 = vmatprep.subr.mxu0 0.0
        %2079 = vmatpush1.msra.mxu0 0.0
        %2080 = vmatprep.subr.mxu0 0.0
        %2081 = vmatpush1.msra.mxu0 0.0
        %2082 = vmatprep.subr.mxu0 0.0
        %2083 = vmatpush1.msra.mxu0 0.0
        %2084 = vmatprep.subr.mxu0 0.0
        %2085 = vmatpush1.msra.mxu0 0.0
        %2086 = vmatprep.subr.mxu0 0.0
        %2087 = vmatpush1.msra.mxu0 0.0
        %2088 = vmatprep.subr.mxu0 0.0
        %2089 = vmatpush1.msra.mxu0 0.0
        %2090 = vmatprep.subr.mxu0 0.0
        %2091 = vmatpush1.msra.mxu0 0.0
        %2092 = vmatprep.subr.mxu0 0.0
        %2093 = vmatpush1.msra.mxu0 %v2062
        %2094 = vmatprep.subr.mxu0 0.0
        %2095 = vmatpush1.msra.mxu0 %v1956
        %2096 = vmatprep.subr.mxu0 0.0
        %2097 = vmatpush2.msra.mxu0 0.0
        %2098 = vmatprep.subr.mxu0 0.0
        %2099 = vmatpush2.msra.mxu0 0.0
        %2100 = vmatprep.subr.mxu0 0.0
        %2101 = vmatpush2.msra.mxu0 0.0
        %2102 = vmatprep.subr.mxu0 0.0
        %2103 = vmatpush2.msra.mxu0 0.0
        %2104 = vmatprep.subr.mxu0 0.0
        %2105 = vmatpush2.msra.mxu0 0.0
        %2106 = vmatprep.subr.mxu0 0.0
        %2107 = vmatpush2.msra.mxu0 0.0
        %2108 = vmatprep.subr.mxu0 0.0
        %2109 = vmatpush2.msra.mxu0 0.0
        %2110 = vmatprep.subr.mxu0 0.0
        %2111 = vmatpush2.msra.mxu0 0.0
        %2112 = vmatprep.subr.mxu0 0.0
        %2113 = vmatpush2.msra.mxu0 0.0
        %2114 = vmatprep.subr.mxu0 0.0
        %2115 = vmatpush2.msra.mxu0 0.0
        %2116 = vmatprep.subr.mxu0 0.0
        %2117 = vmatpush2.msra.mxu0 0.0
        %2118 = vmatprep.subr.mxu0 0.0
        %2119 = vmatpush2.msra.mxu0 0.0
        %2120 = vmatprep.subr.mxu0 0.0
        %2121 = vmatpush2.msra.mxu0 0.0
        %2122 = vmatprep.subr.mxu0 0.0
        %2123 = vmatpush2.msra.mxu0 0.0
        %2124 = vmatprep.subr.mxu0 0.0
        %2125 = vmatpush2.msra.mxu0 0.0
        %2126 = vmatprep.subr.mxu0 0.0
        %2127 = vmatpush2.msra.mxu0 0.0
        %2128 = vmatprep.mubr.f32.mxu0 0.0
        %2129 = vmatmul.mubr.f32.gmra.mxu0 %v2056
        %v2130 = vpop.f32.mrf.mxu0
        %v2131 = vadd.f32 %v2047, %v2130
        %v2132 = vpop.f32.mrf.mxu0
        %2133 = vmatprep.mubr.f32.mxu0 0.0
        %2134 = vmatmul.mubr.f32.gmra.mxu0 %v2059
        %v2135 = vpop.f32.mrf.mxu0
        %v2136 = vadd.f32 %v2052, %v2135
        %v2137 = vpop.f32.mrf.mxu0
        %2138 = vdwg.mxu0
        %vm2139 = vcmp.le.s32.totalorder %v1950, 6
        %v2140 = vsel %vm2139, 1, 0
        %vm2141 = vcmp.eq.s32.totalorder %v2140, 1
        %2142 = vrot.lane.b32.xlu0 %v1951, 126
        %v2143 = vpop.permute.xlu0 %2142
        %2144 = vrot.lane.b32.xlu0 %v1952, 126
        %v2145 = vpop.permute.xlu0 %2144
        %v2148 = vsel %vm2141, %v2143, 0.0
        %v2149 = vsel %vm2141, %v2145, 0.0
        %s2150 = scalar_lea.vmem [#allocation4], 32
        %v2151 = vld [vmem:[%s2150] sm:$0xff]
        %v2152 = vld [vmem:[%s2150 + $0x8] sm:$0xf]
        %v2154 = vsel %vm1970, %v2151, 0
        %v2157 = vsel %vm1970, %v2152, 0
        %v2160 = vsel %vm1977, %v2149, 0
        %2162 = vmatprep.subr.mxu0 0.0
        %2163 = vmatpush1.msra.mxu0 0.0
        %2164 = vmatprep.subr.mxu0 0.0
        %2165 = vmatpush1.msra.mxu0 0.0
        %2166 = vmatprep.subr.mxu0 0.0
        %2167 = vmatpush1.msra.mxu0 0.0
        %2168 = vmatprep.subr.mxu0 0.0
        %2169 = vmatpush1.msra.mxu0 0.0
        %2170 = vmatprep.subr.mxu0 0.0
        %2171 = vmatpush1.msra.mxu0 0.0
        %2172 = vmatprep.subr.mxu0 0.0
        %2173 = vmatpush1.msra.mxu0 0.0
        %2174 = vmatprep.subr.mxu0 0.0
        %2175 = vmatpush1.msra.mxu0 0.0
        %2176 = vmatprep.subr.mxu0 0.0
        %2177 = vmatpush1.msra.mxu0 0.0
        %2178 = vmatprep.subr.mxu0 0.0
        %2179 = vmatpush1.msra.mxu0 0.0
        %2180 = vmatprep.subr.mxu0 0.0
        %2181 = vmatpush1.msra.mxu0 0.0
        %2182 = vmatprep.subr.mxu0 0.0
        %2183 = vmatpush1.msra.mxu0 0.0
        %2184 = vmatprep.subr.mxu0 0.0
        %2185 = vmatpush1.msra.mxu0 0.0
        %2186 = vmatprep.subr.mxu0 0.0
        %2187 = vmatpush1.msra.mxu0 0.0
        %2188 = vmatprep.subr.mxu0 0.0
        %2189 = vmatpush1.msra.mxu0 0.0
        %2190 = vmatprep.subr.mxu0 0.0
        %2191 = vmatpush1.msra.mxu0 %v2160
        %2192 = vmatprep.subr.mxu0 0.0
        %2193 = vmatpush1.msra.mxu0 %v2148
        %2194 = vmatprep.subr.mxu0 0.0
        %2195 = vmatpush2.msra.mxu0 0.0
        %2196 = vmatprep.subr.mxu0 0.0
        %2197 = vmatpush2.msra.mxu0 0.0
        %2198 = vmatprep.subr.mxu0 0.0
        %2199 = vmatpush2.msra.mxu0 0.0
        %2200 = vmatprep.subr.mxu0 0.0
        %2201 = vmatpush2.msra.mxu0 0.0
        %2202 = vmatprep.subr.mxu0 0.0
        %2203 = vmatpush2.msra.mxu0 0.0
        %2204 = vmatprep.subr.mxu0 0.0
        %2205 = vmatpush2.msra.mxu0 0.0
        %2206 = vmatprep.subr.mxu0 0.0
        %2207 = vmatpush2.msra.mxu0 0.0
        %2208 = vmatprep.subr.mxu0 0.0
        %2209 = vmatpush2.msra.mxu0 0.0
        %2210 = vmatprep.subr.mxu0 0.0
        %2211 = vmatpush2.msra.mxu0 0.0
        %2212 = vmatprep.subr.mxu0 0.0
        %2213 = vmatpush2.msra.mxu0 0.0
        %2214 = vmatprep.subr.mxu0 0.0
        %2215 = vmatpush2.msra.mxu0 0.0
        %2216 = vmatprep.subr.mxu0 0.0
        %2217 = vmatpush2.msra.mxu0 0.0
        %2218 = vmatprep.subr.mxu0 0.0
        %2219 = vmatpush2.msra.mxu0 0.0
        %2220 = vmatprep.subr.mxu0 0.0
        %2221 = vmatpush2.msra.mxu0 0.0
        %2222 = vmatprep.subr.mxu0 0.0
        %2223 = vmatpush2.msra.mxu0 0.0
        %2224 = vmatprep.subr.mxu0 0.0
        %2225 = vmatpush2.msra.mxu0 0.0
        %2226 = vmatprep.mubr.f32.mxu0 0.0
        %2227 = vmatmul.mubr.f32.gmra.mxu0 %v2154
        %v2228 = vpop.f32.mrf.mxu0
        %v2229 = vadd.f32 0.0, %v2228
        %v2230 = vpop.f32.mrf.mxu0
        %2231 = vmatprep.mubr.f32.mxu0 0.0
        %2232 = vmatmul.mubr.f32.gmra.mxu0 %v2157
        %v2233 = vpop.f32.mrf.mxu0
        %v2234 = vadd.f32 0.0, %v2233
        %v2235 = vpop.f32.mrf.mxu0
        %2236 = vdwg.mxu0
        %v2237 = vadd.f32 %v2131, %v2229
        %v2238 = vadd.f32 %v2136, %v2234
        %2239 = vrot.lane.b32.xlu0 %v1951, 120
        %v2240 = vpop.permute.xlu0 %2239
        %2241 = vrot.lane.b32.xlu0 %v1952, 120
        %v2242 = vpop.permute.xlu0 %2241
        %v2245 = vsel %vm1955, %v2240, 0.0
        %v2246 = vsel %vm1955, %v2242, 0.0
        %s2247 = scalar_lea.vmem [#allocation4], 48
        %v2248 = vld [vmem:[%s2247] sm:$0xff]
        %v2249 = vld [vmem:[%s2247 + $0x8] sm:$0xf]
        %v2251 = vsel %vm1970, %v2248, 0
        %v2254 = vsel %vm1970, %v2249, 0
        %v2257 = vsel %vm1977, %v2246, 0
        %2259 = vmatprep.subr.mxu0 0.0
        %2260 = vmatpush1.msra.mxu0 0.0
        %2261 = vmatprep.subr.mxu0 0.0
        %2262 = vmatpush1.msra.mxu0 0.0
        %2263 = vmatprep.subr.mxu0 0.0
        %2264 = vmatpush1.msra.mxu0 0.0
        %2265 = vmatprep.subr.mxu0 0.0
        %2266 = vmatpush1.msra.mxu0 0.0
        %2267 = vmatprep.subr.mxu0 0.0
        %2268 = vmatpush1.msra.mxu0 0.0
        %2269 = vmatprep.subr.mxu0 0.0
        %2270 = vmatpush1.msra.mxu0 0.0
        %2271 = vmatprep.subr.mxu0 0.0
        %2272 = vmatpush1.msra.mxu0 0.0
        %2273 = vmatprep.subr.mxu0 0.0
        %2274 = vmatpush1.msra.mxu0 0.0
        %2275 = vmatprep.subr.mxu0 0.0
        %2276 = vmatpush1.msra.mxu0 0.0
        %2277 = vmatprep.subr.mxu0 0.0
        %2278 = vmatpush1.msra.mxu0 0.0
        %2279 = vmatprep.subr.mxu0 0.0
        %2280 = vmatpush1.msra.mxu0 0.0
        %2281 = vmatprep.subr.mxu0 0.0
        %2282 = vmatpush1.msra.mxu0 0.0
        %2283 = vmatprep.subr.mxu0 0.0
        %2284 = vmatpush1.msra.mxu0 0.0
        %2285 = vmatprep.subr.mxu0 0.0
        %2286 = vmatpush1.msra.mxu0 0.0
        %2287 = vmatprep.subr.mxu0 0.0
        %2288 = vmatpush1.msra.mxu0 %v2257
        %2289 = vmatprep.subr.mxu0 0.0
        %2290 = vmatpush1.msra.mxu0 %v2245
        %2291 = vmatprep.subr.mxu0 0.0
        %2292 = vmatpush2.msra.mxu0 0.0
        %2293 = vmatprep.subr.mxu0 0.0
        %2294 = vmatpush2.msra.mxu0 0.0
        %2295 = vmatprep.subr.mxu0 0.0
        %2296 = vmatpush2.msra.mxu0 0.0
        %2297 = vmatprep.subr.mxu0 0.0
        %2298 = vmatpush2.msra.mxu0 0.0
        %2299 = vmatprep.subr.mxu0 0.0
        %2300 = vmatpush2.msra.mxu0 0.0
        %2301 = vmatprep.subr.mxu0 0.0
        %2302 = vmatpush2.msra.mxu0 0.0
        %2303 = vmatprep.subr.mxu0 0.0
        %2304 = vmatpush2.msra.mxu0 0.0
        %2305 = vmatprep.subr.mxu0 0.0
        %2306 = vmatpush2.msra.mxu0 0.0
        %2307 = vmatprep.subr.mxu0 0.0
        %2308 = vmatpush2.msra.mxu0 0.0
        %2309 = vmatprep.subr.mxu0 0.0
        %2310 = vmatpush2.msra.mxu0 0.0
        %2311 = vmatprep.subr.mxu0 0.0
        %2312 = vmatpush2.msra.mxu0 0.0
        %2313 = vmatprep.subr.mxu0 0.0
        %2314 = vmatpush2.msra.mxu0 0.0
        %2315 = vmatprep.subr.mxu0 0.0
        %2316 = vmatpush2.msra.mxu0 0.0
        %2317 = vmatprep.subr.mxu0 0.0
        %2318 = vmatpush2.msra.mxu0 0.0
        %2319 = vmatprep.subr.mxu0 0.0
        %2320 = vmatpush2.msra.mxu0 0.0
        %2321 = vmatprep.subr.mxu0 0.0
        %2322 = vmatpush2.msra.mxu0 0.0
        %2323 = vmatprep.mubr.f32.mxu0 0.0
        %2324 = vmatmul.mubr.f32.gmra.mxu0 %v2251
        %v2325 = vpop.f32.mrf.mxu0
        %v2326 = vadd.f32 0.0, %v2325
        %v2327 = vpop.f32.mrf.mxu0
        %2328 = vmatprep.mubr.f32.mxu0 0.0
        %2329 = vmatmul.mubr.f32.gmra.mxu0 %v2254
        %v2330 = vpop.f32.mrf.mxu0
        %v2331 = vadd.f32 0.0, %v2330
        %v2332 = vpop.f32.mrf.mxu0
        %2333 = vdwg.mxu0
        %v2334 = vadd.f32 %v2237, %v2326
        %v2335 = vadd.f32 %v2238, %v2331
        %s2336 = scalar_lea.vmem [#allocation4], 64
        %v2337 = vld [vmem:[%s2336] sm:$0xff]
        %v2338 = vld [vmem:[%s2336 + $0x8] sm:$0xf]
        %2339 = vrot.lane.b32.xlu0 %v1951, 119
        %v2340 = vpop.permute.xlu0 %2339
        %2341 = vrot.lane.b32.xlu0 %v1952, 119
        %v2342 = vpop.permute.xlu0 %2341
        %v2345 = vsel %vm1970, %v2337, 0
        %v2348 = vsel %vm1970, %v2338, 0
        %v2350 = vsel %vm1977, %v2342, 0
        %2352 = vmatprep.subr.mxu0 0.0
        %2353 = vmatpush1.msra.mxu0 0.0
        %2354 = vmatprep.subr.mxu0 0.0
        %2355 = vmatpush1.msra.mxu0 0.0
        %2356 = vmatprep.subr.mxu0 0.0
        %2357 = vmatpush1.msra.mxu0 0.0
        %2358 = vmatprep.subr.mxu0 0.0
        %2359 = vmatpush1.msra.mxu0 0.0
        %2360 = vmatprep.subr.mxu0 0.0
        %2361 = vmatpush1.msra.mxu0 0.0
        %2362 = vmatprep.subr.mxu0 0.0
        %2363 = vmatpush1.msra.mxu0 0.0
        %2364 = vmatprep.subr.mxu0 0.0
        %2365 = vmatpush1.msra.mxu0 0.0
        %2366 = vmatprep.subr.mxu0 0.0
        %2367 = vmatpush1.msra.mxu0 0.0
        %2368 = vmatprep.subr.mxu0 0.0
        %2369 = vmatpush1.msra.mxu0 0.0
        %2370 = vmatprep.subr.mxu0 0.0
        %2371 = vmatpush1.msra.mxu0 0.0
        %2372 = vmatprep.subr.mxu0 0.0
        %2373 = vmatpush1.msra.mxu0 0.0
        %2374 = vmatprep.subr.mxu0 0.0
        %2375 = vmatpush1.msra.mxu0 0.0
        %2376 = vmatprep.subr.mxu0 0.0
        %2377 = vmatpush1.msra.mxu0 0.0
        %2378 = vmatprep.subr.mxu0 0.0
        %2379 = vmatpush1.msra.mxu0 0.0
        %2380 = vmatprep.subr.mxu0 0.0
        %2381 = vmatpush1.msra.mxu0 %v2350
        %2382 = vmatprep.subr.mxu0 0.0
        %2383 = vmatpush1.msra.mxu0 %v2340
        %2384 = vmatprep.subr.mxu0 0.0
        %2385 = vmatpush2.msra.mxu0 0.0
        %2386 = vmatprep.subr.mxu0 0.0
        %2387 = vmatpush2.msra.mxu0 0.0
        %2388 = vmatprep.subr.mxu0 0.0
        %2389 = vmatpush2.msra.mxu0 0.0
        %2390 = vmatprep.subr.mxu0 0.0
        %2391 = vmatpush2.msra.mxu0 0.0
        %2392 = vmatprep.subr.mxu0 0.0
        %2393 = vmatpush2.msra.mxu0 0.0
        %2394 = vmatprep.subr.mxu0 0.0
        %2395 = vmatpush2.msra.mxu0 0.0
        %2396 = vmatprep.subr.mxu0 0.0
        %2397 = vmatpush2.msra.mxu0 0.0
        %2398 = vmatprep.subr.mxu0 0.0
        %2399 = vmatpush2.msra.mxu0 0.0
        %2400 = vmatprep.subr.mxu0 0.0
        %2401 = vmatpush2.msra.mxu0 0.0
        %2402 = vmatprep.subr.mxu0 0.0
        %2403 = vmatpush2.msra.mxu0 0.0
        %2404 = vmatprep.subr.mxu0 0.0
        %2405 = vmatpush2.msra.mxu0 0.0
        %2406 = vmatprep.subr.mxu0 0.0
        %2407 = vmatpush2.msra.mxu0 0.0
        %2408 = vmatprep.subr.mxu0 0.0
        %2409 = vmatpush2.msra.mxu0 0.0
        %2410 = vmatprep.subr.mxu0 0.0
        %2411 = vmatpush2.msra.mxu0 0.0
        %2412 = vmatprep.subr.mxu0 0.0
        %2413 = vmatpush2.msra.mxu0 0.0
        %2414 = vmatprep.subr.mxu0 0.0
        %2415 = vmatpush2.msra.mxu0 0.0
        %2416 = vmatprep.mubr.f32.mxu0 0.0
        %2417 = vmatmul.mubr.f32.gmra.mxu0 %v2345
        %v2418 = vpop.f32.mrf.mxu0
        %v2419 = vadd.f32 0.0, %v2418
        %v2420 = vpop.f32.mrf.mxu0
        %2421 = vmatprep.mubr.f32.mxu0 0.0
        %2422 = vmatmul.mubr.f32.gmra.mxu0 %v2348
        %v2423 = vpop.f32.mrf.mxu0
        %v2424 = vadd.f32 0.0, %v2423
        %v2425 = vpop.f32.mrf.mxu0
        %2426 = vdwg.mxu0
        %v2427 = vadd.f32 %v2334, %v2419
        %v2428 = vadd.f32 %v2335, %v2424
        %2429 = vrot.lane.b32.xlu0 %v1951, 118
        %v2430 = vpop.permute.xlu0 %2429
        %2431 = vrot.lane.b32.xlu0 %v1952, 118
        %v2432 = vpop.permute.xlu0 %2431
        %v2435 = vsel %vm2141, %v2430, 0.0
        %v2436 = vsel %vm2141, %v2432, 0.0
        %s2437 = scalar_lea.vmem [#allocation4], 80
        %v2438 = vld [vmem:[%s2437] sm:$0xff]
        %v2439 = vld [vmem:[%s2437 + $0x8] sm:$0xf]
        %v2441 = vsel %vm1970, %v2438, 0
        %v2444 = vsel %vm1970, %v2439, 0
        %v2447 = vsel %vm1977, %v2436, 0
        %2449 = vmatprep.subr.mxu0 0.0
        %2450 = vmatpush1.msra.mxu0 0.0
        %2451 = vmatprep.subr.mxu0 0.0
        %2452 = vmatpush1.msra.mxu0 0.0
        %2453 = vmatprep.subr.mxu0 0.0
        %2454 = vmatpush1.msra.mxu0 0.0
        %2455 = vmatprep.subr.mxu0 0.0
        %2456 = vmatpush1.msra.mxu0 0.0
        %2457 = vmatprep.subr.mxu0 0.0
        %2458 = vmatpush1.msra.mxu0 0.0
        %2459 = vmatprep.subr.mxu0 0.0
        %2460 = vmatpush1.msra.mxu0 0.0
        %2461 = vmatprep.subr.mxu0 0.0
        %2462 = vmatpush1.msra.mxu0 0.0
        %2463 = vmatprep.subr.mxu0 0.0
        %2464 = vmatpush1.msra.mxu0 0.0
        %2465 = vmatprep.subr.mxu0 0.0
        %2466 = vmatpush1.msra.mxu0 0.0
        %2467 = vmatprep.subr.mxu0 0.0
        %2468 = vmatpush1.msra.mxu0 0.0
        %2469 = vmatprep.subr.mxu0 0.0
        %2470 = vmatpush1.msra.mxu0 0.0
        %2471 = vmatprep.subr.mxu0 0.0
        %2472 = vmatpush1.msra.mxu0 0.0
        %2473 = vmatprep.subr.mxu0 0.0
        %2474 = vmatpush1.msra.mxu0 0.0
        %2475 = vmatprep.subr.mxu0 0.0
        %2476 = vmatpush1.msra.mxu0 0.0
        %2477 = vmatprep.subr.mxu0 0.0
        %2478 = vmatpush1.msra.mxu0 %v2447
        %2479 = vmatprep.subr.mxu0 0.0
        %2480 = vmatpush1.msra.mxu0 %v2435
        %2481 = vmatprep.subr.mxu0 0.0
        %2482 = vmatpush2.msra.mxu0 0.0
        %2483 = vmatprep.subr.mxu0 0.0
        %2484 = vmatpush2.msra.mxu0 0.0
        %2485 = vmatprep.subr.mxu0 0.0
        %2486 = vmatpush2.msra.mxu0 0.0
        %2487 = vmatprep.subr.mxu0 0.0
        %2488 = vmatpush2.msra.mxu0 0.0
        %2489 = vmatprep.subr.mxu0 0.0
        %2490 = vmatpush2.msra.mxu0 0.0
        %2491 = vmatprep.subr.mxu0 0.0
        %2492 = vmatpush2.msra.mxu0 0.0
        %2493 = vmatprep.subr.mxu0 0.0
        %2494 = vmatpush2.msra.mxu0 0.0
        %2495 = vmatprep.subr.mxu0 0.0
        %2496 = vmatpush2.msra.mxu0 0.0
        %2497 = vmatprep.subr.mxu0 0.0
        %2498 = vmatpush2.msra.mxu0 0.0
        %2499 = vmatprep.subr.mxu0 0.0
        %2500 = vmatpush2.msra.mxu0 0.0
        %2501 = vmatprep.subr.mxu0 0.0
        %2502 = vmatpush2.msra.mxu0 0.0
        %2503 = vmatprep.subr.mxu0 0.0
        %2504 = vmatpush2.msra.mxu0 0.0
        %2505 = vmatprep.subr.mxu0 0.0
        %2506 = vmatpush2.msra.mxu0 0.0
        %2507 = vmatprep.subr.mxu0 0.0
        %2508 = vmatpush2.msra.mxu0 0.0
        %2509 = vmatprep.subr.mxu0 0.0
        %2510 = vmatpush2.msra.mxu0 0.0
        %2511 = vmatprep.subr.mxu0 0.0
        %2512 = vmatpush2.msra.mxu0 0.0
        %2513 = vmatprep.mubr.f32.mxu0 0.0
        %2514 = vmatmul.mubr.f32.gmra.mxu0 %v2441
        %v2515 = vpop.f32.mrf.mxu0
        %v2516 = vadd.f32 0.0, %v2515
        %v2517 = vpop.f32.mrf.mxu0
        %2518 = vmatprep.mubr.f32.mxu0 0.0
        %2519 = vmatmul.mubr.f32.gmra.mxu0 %v2444
        %v2520 = vpop.f32.mrf.mxu0
        %v2521 = vadd.f32 0.0, %v2520
        %v2522 = vpop.f32.mrf.mxu0
        %2523 = vdwg.mxu0
        %v2524 = vadd.f32 %v2427, %v2516
        %v2525 = vadd.f32 %v2428, %v2521
        %2526 = vrot.lane.b32.xlu0 %v1951, 112
        %v2527 = vpop.permute.xlu0 %2526
        %2528 = vrot.lane.b32.xlu0 %v1952, 112
        %v2529 = vpop.permute.xlu0 %2528
        %v2532 = vsel %vm1955, %v2527, 0.0
        %v2533 = vsel %vm1955, %v2529, 0.0
        %s2534 = scalar_lea.vmem [#allocation4], 96
        %v2535 = vld [vmem:[%s2534] sm:$0xff]
        %v2536 = vld [vmem:[%s2534 + $0x8] sm:$0xf]
        %v2538 = vsel %vm1970, %v2535, 0
        %v2541 = vsel %vm1970, %v2536, 0
        %v2544 = vsel %vm1977, %v2533, 0
        %2546 = vmatprep.subr.mxu0 0.0
        %2547 = vmatpush1.msra.mxu0 0.0
        %2548 = vmatprep.subr.mxu0 0.0
        %2549 = vmatpush1.msra.mxu0 0.0
        %2550 = vmatprep.subr.mxu0 0.0
        %2551 = vmatpush1.msra.mxu0 0.0
        %2552 = vmatprep.subr.mxu0 0.0
        %2553 = vmatpush1.msra.mxu0 0.0
        %2554 = vmatprep.subr.mxu0 0.0
        %2555 = vmatpush1.msra.mxu0 0.0
        %2556 = vmatprep.subr.mxu0 0.0
        %2557 = vmatpush1.msra.mxu0 0.0
        %2558 = vmatprep.subr.mxu0 0.0
        %2559 = vmatpush1.msra.mxu0 0.0
        %2560 = vmatprep.subr.mxu0 0.0
        %2561 = vmatpush1.msra.mxu0 0.0
        %2562 = vmatprep.subr.mxu0 0.0
        %2563 = vmatpush1.msra.mxu0 0.0
        %2564 = vmatprep.subr.mxu0 0.0
        %2565 = vmatpush1.msra.mxu0 0.0
        %2566 = vmatprep.subr.mxu0 0.0
        %2567 = vmatpush1.msra.mxu0 0.0
        %2568 = vmatprep.subr.mxu0 0.0
        %2569 = vmatpush1.msra.mxu0 0.0
        %2570 = vmatprep.subr.mxu0 0.0
        %2571 = vmatpush1.msra.mxu0 0.0
        %2572 = vmatprep.subr.mxu0 0.0
        %2573 = vmatpush1.msra.mxu0 0.0
        %2574 = vmatprep.subr.mxu0 0.0
        %2575 = vmatpush1.msra.mxu0 %v2544
        %2576 = vmatprep.subr.mxu0 0.0
        %2577 = vmatpush1.msra.mxu0 %v2532
        %2578 = vmatprep.subr.mxu0 0.0
        %2579 = vmatpush2.msra.mxu0 0.0
        %2580 = vmatprep.subr.mxu0 0.0
        %2581 = vmatpush2.msra.mxu0 0.0
        %2582 = vmatprep.subr.mxu0 0.0
        %2583 = vmatpush2.msra.mxu0 0.0
        %2584 = vmatprep.subr.mxu0 0.0
        %2585 = vmatpush2.msra.mxu0 0.0
        %2586 = vmatprep.subr.mxu0 0.0
        %2587 = vmatpush2.msra.mxu0 0.0
        %2588 = vmatprep.subr.mxu0 0.0
        %2589 = vmatpush2.msra.mxu0 0.0
        %2590 = vmatprep.subr.mxu0 0.0
        %2591 = vmatpush2.msra.mxu0 0.0
        %2592 = vmatprep.subr.mxu0 0.0
        %2593 = vmatpush2.msra.mxu0 0.0
        %2594 = vmatprep.subr.mxu0 0.0
        %2595 = vmatpush2.msra.mxu0 0.0
        %2596 = vmatprep.subr.mxu0 0.0
        %2597 = vmatpush2.msra.mxu0 0.0
        %2598 = vmatprep.subr.mxu0 0.0
        %2599 = vmatpush2.msra.mxu0 0.0
        %2600 = vmatprep.subr.mxu0 0.0
        %2601 = vmatpush2.msra.mxu0 0.0
        %2602 = vmatprep.subr.mxu0 0.0
        %2603 = vmatpush2.msra.mxu0 0.0
        %2604 = vmatprep.subr.mxu0 0.0
        %2605 = vmatpush2.msra.mxu0 0.0
        %2606 = vmatprep.subr.mxu0 0.0
        %2607 = vmatpush2.msra.mxu0 0.0
        %2608 = vmatprep.subr.mxu0 0.0
        %2609 = vmatpush2.msra.mxu0 0.0
        %2610 = vmatprep.mubr.f32.mxu0 0.0
        %2611 = vmatmul.mubr.f32.gmra.mxu0 %v2538
        %v2612 = vpop.f32.mrf.mxu0
        %v2613 = vadd.f32 0.0, %v2612
        %v2614 = vpop.f32.mrf.mxu0
        %2615 = vmatprep.mubr.f32.mxu0 0.0
        %2616 = vmatmul.mubr.f32.gmra.mxu0 %v2541
        %v2617 = vpop.f32.mrf.mxu0
        %v2618 = vadd.f32 0.0, %v2617
        %v2619 = vpop.f32.mrf.mxu0
        %2620 = vdwg.mxu0
        %v2621 = vadd.f32 %v2524, %v2613
        %v2622 = vadd.f32 %v2525, %v2618
        %s2623 = scalar_lea.vmem [#allocation4], 112
        %v2624 = vld [vmem:[%s2623] sm:$0xff]
        %v2625 = vld [vmem:[%s2623 + $0x8] sm:$0xf]
        %2626 = vrot.lane.b32.xlu0 %v1951, 111
        %v2627 = vpop.permute.xlu0 %2626
        %2628 = vrot.lane.b32.xlu0 %v1952, 111
        %v2629 = vpop.permute.xlu0 %2628
        %v2632 = vsel %vm1970, %v2624, 0
        %v2635 = vsel %vm1970, %v2625, 0
        %v2637 = vsel %vm1977, %v2629, 0
        %2639 = vmatprep.subr.mxu0 0.0
        %2640 = vmatpush1.msra.mxu0 0.0
        %2641 = vmatprep.subr.mxu0 0.0
        %2642 = vmatpush1.msra.mxu0 0.0
        %2643 = vmatprep.subr.mxu0 0.0
        %2644 = vmatpush1.msra.mxu0 0.0
        %2645 = vmatprep.subr.mxu0 0.0
        %2646 = vmatpush1.msra.mxu0 0.0
        %2647 = vmatprep.subr.mxu0 0.0
        %2648 = vmatpush1.msra.mxu0 0.0
        %2649 = vmatprep.subr.mxu0 0.0
        %2650 = vmatpush1.msra.mxu0 0.0
        %2651 = vmatprep.subr.mxu0 0.0
        %2652 = vmatpush1.msra.mxu0 0.0
        %2653 = vmatprep.subr.mxu0 0.0
        %2654 = vmatpush1.msra.mxu0 0.0
        %2655 = vmatprep.subr.mxu0 0.0
        %2656 = vmatpush1.msra.mxu0 0.0
        %2657 = vmatprep.subr.mxu0 0.0
        %2658 = vmatpush1.msra.mxu0 0.0
        %2659 = vmatprep.subr.mxu0 0.0
        %2660 = vmatpush1.msra.mxu0 0.0
        %2661 = vmatprep.subr.mxu0 0.0
        %2662 = vmatpush1.msra.mxu0 0.0
        %2663 = vmatprep.subr.mxu0 0.0
        %2664 = vmatpush1.msra.mxu0 0.0
        %2665 = vmatprep.subr.mxu0 0.0
        %2666 = vmatpush1.msra.mxu0 0.0
        %2667 = vmatprep.subr.mxu0 0.0
        %2668 = vmatpush1.msra.mxu0 %v2637
        %2669 = vmatprep.subr.mxu0 0.0
        %2670 = vmatpush1.msra.mxu0 %v2627
        %2671 = vmatprep.subr.mxu0 0.0
        %2672 = vmatpush2.msra.mxu0 0.0
        %2673 = vmatprep.subr.mxu0 0.0
        %2674 = vmatpush2.msra.mxu0 0.0
        %2675 = vmatprep.subr.mxu0 0.0
        %2676 = vmatpush2.msra.mxu0 0.0
        %2677 = vmatprep.subr.mxu0 0.0
        %2678 = vmatpush2.msra.mxu0 0.0
        %2679 = vmatprep.subr.mxu0 0.0
        %2680 = vmatpush2.msra.mxu0 0.0
        %2681 = vmatprep.subr.mxu0 0.0
        %2682 = vmatpush2.msra.mxu0 0.0
        %2683 = vmatprep.subr.mxu0 0.0
        %2684 = vmatpush2.msra.mxu0 0.0
        %2685 = vmatprep.subr.mxu0 0.0
        %2686 = vmatpush2.msra.mxu0 0.0
        %2687 = vmatprep.subr.mxu0 0.0
        %2688 = vmatpush2.msra.mxu0 0.0
        %2689 = vmatprep.subr.mxu0 0.0
        %2690 = vmatpush2.msra.mxu0 0.0
        %2691 = vmatprep.subr.mxu0 0.0
        %2692 = vmatpush2.msra.mxu0 0.0
        %2693 = vmatprep.subr.mxu0 0.0
        %2694 = vmatpush2.msra.mxu0 0.0
        %2695 = vmatprep.subr.mxu0 0.0
        %2696 = vmatpush2.msra.mxu0 0.0
        %2697 = vmatprep.subr.mxu0 0.0
        %2698 = vmatpush2.msra.mxu0 0.0
        %2699 = vmatprep.subr.mxu0 0.0
        %2700 = vmatpush2.msra.mxu0 0.0
        %2701 = vmatprep.subr.mxu0 0.0
        %2702 = vmatpush2.msra.mxu0 0.0
        %2703 = vmatprep.mubr.f32.mxu0 0.0
        %2704 = vmatmul.mubr.f32.gmra.mxu0 %v2632
        %v2705 = vpop.f32.mrf.mxu0
        %v2706 = vadd.f32 0.0, %v2705
        %v2707 = vpop.f32.mrf.mxu0
        %2708 = vmatprep.mubr.f32.mxu0 0.0
        %2709 = vmatmul.mubr.f32.gmra.mxu0 %v2635
        %v2710 = vpop.f32.mrf.mxu0
        %v2711 = vadd.f32 0.0, %v2710
        %v2712 = vpop.f32.mrf.mxu0
        %2713 = vdwg.mxu0
        %v2714 = vadd.f32 %v2621, %v2706
        %v2715 = vadd.f32 %v2622, %v2711
        %2716 = vrot.lane.b32.xlu0 %v1951, 110
        %v2717 = vpop.permute.xlu0 %2716
        %2718 = vrot.lane.b32.xlu0 %v1952, 110
        %v2719 = vpop.permute.xlu0 %2718
        %v2722 = vsel %vm2141, %v2717, 0.0
        %v2723 = vsel %vm2141, %v2719, 0.0
        %s2724 = scalar_lea.vmem [#allocation4], 128
        %v2725 = vld [vmem:[%s2724] sm:$0xff]
        %v2726 = vld [vmem:[%s2724 + $0x8] sm:$0xf]
        %v2728 = vsel %vm1970, %v2725, 0
        %v2731 = vsel %vm1970, %v2726, 0
        %v2734 = vsel %vm1977, %v2723, 0
        %2736 = vmatprep.subr.mxu0 0.0
        %2737 = vmatpush1.msra.mxu0 0.0
        %2738 = vmatprep.subr.mxu0 0.0
        %2739 = vmatpush1.msra.mxu0 0.0
        %2740 = vmatprep.subr.mxu0 0.0
        %2741 = vmatpush1.msra.mxu0 0.0
        %2742 = vmatprep.subr.mxu0 0.0
        %2743 = vmatpush1.msra.mxu0 0.0
        %2744 = vmatprep.subr.mxu0 0.0
        %2745 = vmatpush1.msra.mxu0 0.0
        %2746 = vmatprep.subr.mxu0 0.0
        %2747 = vmatpush1.msra.mxu0 0.0
        %2748 = vmatprep.subr.mxu0 0.0
        %2749 = vmatpush1.msra.mxu0 0.0
        %2750 = vmatprep.subr.mxu0 0.0
        %2751 = vmatpush1.msra.mxu0 0.0
        %2752 = vmatprep.subr.mxu0 0.0
        %2753 = vmatpush1.msra.mxu0 0.0
        %2754 = vmatprep.subr.mxu0 0.0
        %2755 = vmatpush1.msra.mxu0 0.0
        %2756 = vmatprep.subr.mxu0 0.0
        %2757 = vmatpush1.msra.mxu0 0.0
        %2758 = vmatprep.subr.mxu0 0.0
        %2759 = vmatpush1.msra.mxu0 0.0
        %2760 = vmatprep.subr.mxu0 0.0
        %2761 = vmatpush1.msra.mxu0 0.0
        %2762 = vmatprep.subr.mxu0 0.0
        %2763 = vmatpush1.msra.mxu0 0.0
        %2764 = vmatprep.subr.mxu0 0.0
        %2765 = vmatpush1.msra.mxu0 %v2734
        %2766 = vmatprep.subr.mxu0 0.0
        %2767 = vmatpush1.msra.mxu0 %v2722
        %2768 = vmatprep.subr.mxu0 0.0
        %2769 = vmatpush2.msra.mxu0 0.0
        %2770 = vmatprep.subr.mxu0 0.0
        %2771 = vmatpush2.msra.mxu0 0.0
        %2772 = vmatprep.subr.mxu0 0.0
        %2773 = vmatpush2.msra.mxu0 0.0
        %2774 = vmatprep.subr.mxu0 0.0
        %2775 = vmatpush2.msra.mxu0 0.0
        %2776 = vmatprep.subr.mxu0 0.0
        %2777 = vmatpush2.msra.mxu0 0.0
        %2778 = vmatprep.subr.mxu0 0.0
        %2779 = vmatpush2.msra.mxu0 0.0
        %2780 = vmatprep.subr.mxu0 0.0
        %2781 = vmatpush2.msra.mxu0 0.0
        %2782 = vmatprep.subr.mxu0 0.0
        %2783 = vmatpush2.msra.mxu0 0.0
        %2784 = vmatprep.subr.mxu0 0.0
        %2785 = vmatpush2.msra.mxu0 0.0
        %2786 = vmatprep.subr.mxu0 0.0
        %2787 = vmatpush2.msra.mxu0 0.0
        %2788 = vmatprep.subr.mxu0 0.0
        %2789 = vmatpush2.msra.mxu0 0.0
        %2790 = vmatprep.subr.mxu0 0.0
        %2791 = vmatpush2.msra.mxu0 0.0
        %2792 = vmatprep.subr.mxu0 0.0
        %2793 = vmatpush2.msra.mxu0 0.0
        %2794 = vmatprep.subr.mxu0 0.0
        %2795 = vmatpush2.msra.mxu0 0.0
        %2796 = vmatprep.subr.mxu0 0.0
        %2797 = vmatpush2.msra.mxu0 0.0
        %2798 = vmatprep.subr.mxu0 0.0
        %2799 = vmatpush2.msra.mxu0 0.0
        %2800 = vmatprep.mubr.f32.mxu0 0.0
        %2801 = vmatmul.mubr.f32.gmra.mxu0 %v2728
        %v2802 = vpop.f32.mrf.mxu0
        %v2803 = vadd.f32 0.0, %v2802
        %v2804 = vpop.f32.mrf.mxu0
        %2805 = vmatprep.mubr.f32.mxu0 0.0
        %2806 = vmatmul.mubr.f32.gmra.mxu0 %v2731
        %v2807 = vpop.f32.mrf.mxu0
        %v2808 = vadd.f32 0.0, %v2807
        %v2809 = vpop.f32.mrf.mxu0
        %2810 = vdwg.mxu0
        %v2811 = vadd.f32 %v2714, %v2803
        %v2812 = vadd.f32 %v2715, %v2808
        %2813 = vst [vmem:[#allocation3] sm:$0xff] 0.0
        %2814 = vst [vmem:[#allocation3 + $0x8] sm:$0xff] 0.0
        %2815 = vst.msk [vmem:[#allocation3 + $0x10] sm:$0xff] %vm483, 0.0
        %2816 = vst [vmem:[#allocation3 + $0x18] sm:$0xf] 0.0
        %2817 = vst [vmem:[#allocation3 + $0x20] sm:$0xf] 0.0
        %2818 = vst.msk [vmem:[#allocation3 + $0x28] sm:$0xf] %vm487, 0.0
        %v2819 = vmax.f32 %v2811, 0.0
        %v2820 = vmax.f32 %v2812, 0.0
        %2823 = vrot.lane.b32.xlu0 %v2819, 9
        %v2824 = vpop.permute.xlu0 %2823
        %2825 = vrot.lane.b32.xlu0 %v2820, 9
        %v2826 = vpop.permute.xlu0 %2825
        %2829 = vst.msk [vmem:[#allocation3] sm:$0xff] %vm1830, %v2824
        %2830 = vst.msk [vmem:[#allocation3 + $0x18] sm:$0xf] %vm1937, %v2826
        %v2831 = vld [vmem:[#allocation3] sm:$0xff]
        %v2832 = vld [vmem:[#allocation3 + $0x18] sm:$0xf]
        %v2833 = vsel %vm1955, %v2831, 0.0
        %v2834 = vsel %vm1955, %v2832, 0.0
        %v2835 = vld [vmem:[#allocation7] sm:$0xff]
        %v2836 = vld [vmem:[#allocation7 + $0x8] sm:$0xf]
        %s2837 = scalar_lea.vmem [#allocation7], 16
        %v2838 = vld [vmem:[%s2837] sm:$0xff]
        %v2839 = vld [vmem:[%s2837 + $0x8] sm:$0xf]
        %2842 = vrot.lane.b32.xlu0 %v2831, 127
        %v2843 = vpop.permute.xlu0 %2842
        %2844 = vrot.lane.b32.xlu0 %v2832, 127
        %v2845 = vpop.permute.xlu0 %2844
        %v2848 = vsel %vm1970, %v2838, 0
        %v2851 = vsel %vm1970, %v2839, 0
        %v2853 = vsel %vm1977, %v2845, 0
        %2855 = vmatprep.subr.mxu0 0.0
        %2856 = vmatpush1.msra.mxu0 0.0
        %2857 = vmatprep.subr.mxu0 0.0
        %2858 = vmatpush1.msra.mxu0 0.0
        %2859 = vmatprep.subr.mxu0 0.0
        %2860 = vmatpush1.msra.mxu0 0.0
        %2861 = vmatprep.subr.mxu0 0.0
        %2862 = vmatpush1.msra.mxu0 0.0
        %2863 = vmatprep.subr.mxu0 0.0
        %2864 = vmatpush1.msra.mxu0 0.0
        %2865 = vmatprep.subr.mxu0 0.0
        %2866 = vmatpush1.msra.mxu0 0.0
        %2867 = vmatprep.subr.mxu0 0.0
        %2868 = vmatpush1.msra.mxu0 0.0
        %2869 = vmatprep.subr.mxu0 0.0
        %2870 = vmatpush1.msra.mxu0 0.0
        %2871 = vmatprep.subr.mxu0 0.0
        %2872 = vmatpush1.msra.mxu0 0.0
        %2873 = vmatprep.subr.mxu0 0.0
        %2874 = vmatpush1.msra.mxu0 0.0
        %2875 = vmatprep.subr.mxu0 0.0
        %2876 = vmatpush1.msra.mxu0 0.0
        %2877 = vmatprep.subr.mxu0 0.0
        %2878 = vmatpush1.msra.mxu0 0.0
        %2879 = vmatprep.subr.mxu0 0.0
        %2880 = vmatpush1.msra.mxu0 0.0
        %2881 = vmatprep.subr.mxu0 0.0
        %2882 = vmatpush1.msra.mxu0 0.0
        %2883 = vmatprep.subr.mxu0 0.0
        %2884 = vmatpush1.msra.mxu0 %v2853
        %2885 = vmatprep.subr.mxu0 0.0
        %2886 = vmatpush1.msra.mxu0 %v2843
        %2887 = vmatprep.subr.mxu0 0.0
        %2888 = vmatpush2.msra.mxu0 0.0
        %2889 = vmatprep.subr.mxu0 0.0
        %2890 = vmatpush2.msra.mxu0 0.0
        %2891 = vmatprep.subr.mxu0 0.0
        %2892 = vmatpush2.msra.mxu0 0.0
        %2893 = vmatprep.subr.mxu0 0.0
        %2894 = vmatpush2.msra.mxu0 0.0
        %2895 = vmatprep.subr.mxu0 0.0
        %2896 = vmatpush2.msra.mxu0 0.0
        %2897 = vmatprep.subr.mxu0 0.0
        %2898 = vmatpush2.msra.mxu0 0.0
        %2899 = vmatprep.subr.mxu0 0.0
        %2900 = vmatpush2.msra.mxu0 0.0
        %2901 = vmatprep.subr.mxu0 0.0
        %2902 = vmatpush2.msra.mxu0 0.0
        %2903 = vmatprep.subr.mxu0 0.0
        %2904 = vmatpush2.msra.mxu0 0.0
        %2905 = vmatprep.subr.mxu0 0.0
        %2906 = vmatpush2.msra.mxu0 0.0
        %2907 = vmatprep.subr.mxu0 0.0
        %2908 = vmatpush2.msra.mxu0 0.0
        %2909 = vmatprep.subr.mxu0 0.0
        %2910 = vmatpush2.msra.mxu0 0.0
        %2911 = vmatprep.subr.mxu0 0.0
        %2912 = vmatpush2.msra.mxu0 0.0
        %2913 = vmatprep.subr.mxu0 0.0
        %2914 = vmatpush2.msra.mxu0 0.0
        %2915 = vmatprep.subr.mxu0 0.0
        %2916 = vmatpush2.msra.mxu0 0.0
        %2917 = vmatprep.subr.mxu0 0.0
        %2918 = vmatpush2.msra.mxu0 0.0
        %2919 = vmatprep.mubr.f32.mxu0 0.0
        %2920 = vmatmul.mubr.f32.gmra.mxu0 %v2848
        %v2921 = vpop.f32.mrf.mxu0
        %v2922 = vadd.f32 0.0, %v2921
        %v2923 = vpop.f32.mrf.mxu0
        %2924 = vmatprep.mubr.f32.mxu0 0.0
        %2925 = vmatmul.mubr.f32.gmra.mxu0 %v2851
        %v2926 = vpop.f32.mrf.mxu0
        %v2927 = vadd.f32 0.0, %v2926
        %v2928 = vpop.f32.mrf.mxu0
        %2929 = vdwg.mxu0
        %v2931 = vsel %vm1970, %v2835, 0
        %v2934 = vsel %vm1970, %v2836, 0
        %v2937 = vsel %vm1977, %v2834, 0
        %2939 = vmatprep.subr.mxu0 0.0
        %2940 = vmatpush1.msra.mxu0 0.0
        %2941 = vmatprep.subr.mxu0 0.0
        %2942 = vmatpush1.msra.mxu0 0.0
        %2943 = vmatprep.subr.mxu0 0.0
        %2944 = vmatpush1.msra.mxu0 0.0
        %2945 = vmatprep.subr.mxu0 0.0
        %2946 = vmatpush1.msra.mxu0 0.0
        %2947 = vmatprep.subr.mxu0 0.0
        %2948 = vmatpush1.msra.mxu0 0.0
        %2949 = vmatprep.subr.mxu0 0.0
        %2950 = vmatpush1.msra.mxu0 0.0
        %2951 = vmatprep.subr.mxu0 0.0
        %2952 = vmatpush1.msra.mxu0 0.0
        %2953 = vmatprep.subr.mxu0 0.0
        %2954 = vmatpush1.msra.mxu0 0.0
        %2955 = vmatprep.subr.mxu0 0.0
        %2956 = vmatpush1.msra.mxu0 0.0
        %2957 = vmatprep.subr.mxu0 0.0
        %2958 = vmatpush1.msra.mxu0 0.0
        %2959 = vmatprep.subr.mxu0 0.0
        %2960 = vmatpush1.msra.mxu0 0.0
        %2961 = vmatprep.subr.mxu0 0.0
        %2962 = vmatpush1.msra.mxu0 0.0
        %2963 = vmatprep.subr.mxu0 0.0
        %2964 = vmatpush1.msra.mxu0 0.0
        %2965 = vmatprep.subr.mxu0 0.0
        %2966 = vmatpush1.msra.mxu0 0.0
        %2967 = vmatprep.subr.mxu0 0.0
        %2968 = vmatpush1.msra.mxu0 %v2937
        %2969 = vmatprep.subr.mxu0 0.0
        %2970 = vmatpush1.msra.mxu0 %v2833
        %2971 = vmatprep.subr.mxu0 0.0
        %2972 = vmatpush2.msra.mxu0 0.0
        %2973 = vmatprep.subr.mxu0 0.0
        %2974 = vmatpush2.msra.mxu0 0.0
        %2975 = vmatprep.subr.mxu0 0.0
        %2976 = vmatpush2.msra.mxu0 0.0
        %2977 = vmatprep.subr.mxu0 0.0
        %2978 = vmatpush2.msra.mxu0 0.0
        %2979 = vmatprep.subr.mxu0 0.0
        %2980 = vmatpush2.msra.mxu0 0.0
        %2981 = vmatprep.subr.mxu0 0.0
        %2982 = vmatpush2.msra.mxu0 0.0
        %2983 = vmatprep.subr.mxu0 0.0
        %2984 = vmatpush2.msra.mxu0 0.0
        %2985 = vmatprep.subr.mxu0 0.0
        %2986 = vmatpush2.msra.mxu0 0.0
        %2987 = vmatprep.subr.mxu0 0.0
        %2988 = vmatpush2.msra.mxu0 0.0
        %2989 = vmatprep.subr.mxu0 0.0
        %2990 = vmatpush2.msra.mxu0 0.0
        %2991 = vmatprep.subr.mxu0 0.0
        %2992 = vmatpush2.msra.mxu0 0.0
        %2993 = vmatprep.subr.mxu0 0.0
        %2994 = vmatpush2.msra.mxu0 0.0
        %2995 = vmatprep.subr.mxu0 0.0
        %2996 = vmatpush2.msra.mxu0 0.0
        %2997 = vmatprep.subr.mxu0 0.0
        %2998 = vmatpush2.msra.mxu0 0.0
        %2999 = vmatprep.subr.mxu0 0.0
        %3000 = vmatpush2.msra.mxu0 0.0
        %3001 = vmatprep.subr.mxu0 0.0
        %3002 = vmatpush2.msra.mxu0 0.0
        %3003 = vmatprep.mubr.f32.mxu0 0.0
        %3004 = vmatmul.mubr.f32.gmra.mxu0 %v2931
        %v3005 = vpop.f32.mrf.mxu0
        %v3006 = vadd.f32 %v2922, %v3005
        %v3007 = vpop.f32.mrf.mxu0
        %3008 = vmatprep.mubr.f32.mxu0 0.0
        %3009 = vmatmul.mubr.f32.gmra.mxu0 %v2934
        %v3010 = vpop.f32.mrf.mxu0
        %v3011 = vadd.f32 %v2927, %v3010
        %v3012 = vpop.f32.mrf.mxu0
        %3013 = vdwg.mxu0
        %3014 = vrot.lane.b32.xlu0 %v2831, 126
        %v3015 = vpop.permute.xlu0 %3014
        %3016 = vrot.lane.b32.xlu0 %v2832, 126
        %v3017 = vpop.permute.xlu0 %3016
        %v3020 = vsel %vm2141, %v3015, 0.0
        %v3021 = vsel %vm2141, %v3017, 0.0
        %s3022 = scalar_lea.vmem [#allocation7], 32
        %v3023 = vld [vmem:[%s3022] sm:$0xff]
        %v3024 = vld [vmem:[%s3022 + $0x8] sm:$0xf]
        %v3026 = vsel %vm1970, %v3023, 0
        %v3029 = vsel %vm1970, %v3024, 0
        %v3032 = vsel %vm1977, %v3021, 0
        %3034 = vmatprep.subr.mxu0 0.0
        %3035 = vmatpush1.msra.mxu0 0.0
        %3036 = vmatprep.subr.mxu0 0.0
        %3037 = vmatpush1.msra.mxu0 0.0
        %3038 = vmatprep.subr.mxu0 0.0
        %3039 = vmatpush1.msra.mxu0 0.0
        %3040 = vmatprep.subr.mxu0 0.0
        %3041 = vmatpush1.msra.mxu0 0.0
        %3042 = vmatprep.subr.mxu0 0.0
        %3043 = vmatpush1.msra.mxu0 0.0
        %3044 = vmatprep.subr.mxu0 0.0
        %3045 = vmatpush1.msra.mxu0 0.0
        %3046 = vmatprep.subr.mxu0 0.0
        %3047 = vmatpush1.msra.mxu0 0.0
        %3048 = vmatprep.subr.mxu0 0.0
        %3049 = vmatpush1.msra.mxu0 0.0
        %3050 = vmatprep.subr.mxu0 0.0
        %3051 = vmatpush1.msra.mxu0 0.0
        %3052 = vmatprep.subr.mxu0 0.0
        %3053 = vmatpush1.msra.mxu0 0.0
        %3054 = vmatprep.subr.mxu0 0.0
        %3055 = vmatpush1.msra.mxu0 0.0
        %3056 = vmatprep.subr.mxu0 0.0
        %3057 = vmatpush1.msra.mxu0 0.0
        %3058 = vmatprep.subr.mxu0 0.0
        %3059 = vmatpush1.msra.mxu0 0.0
        %3060 = vmatprep.subr.mxu0 0.0
        %3061 = vmatpush1.msra.mxu0 0.0
        %3062 = vmatprep.subr.mxu0 0.0
        %3063 = vmatpush1.msra.mxu0 %v3032
        %3064 = vmatprep.subr.mxu0 0.0
        %3065 = vmatpush1.msra.mxu0 %v3020
        %3066 = vmatprep.subr.mxu0 0.0
        %3067 = vmatpush2.msra.mxu0 0.0
        %3068 = vmatprep.subr.mxu0 0.0
        %3069 = vmatpush2.msra.mxu0 0.0
        %3070 = vmatprep.subr.mxu0 0.0
        %3071 = vmatpush2.msra.mxu0 0.0
        %3072 = vmatprep.subr.mxu0 0.0
        %3073 = vmatpush2.msra.mxu0 0.0
        %3074 = vmatprep.subr.mxu0 0.0
        %3075 = vmatpush2.msra.mxu0 0.0
        %3076 = vmatprep.subr.mxu0 0.0
        %3077 = vmatpush2.msra.mxu0 0.0
        %3078 = vmatprep.subr.mxu0 0.0
        %3079 = vmatpush2.msra.mxu0 0.0
        %3080 = vmatprep.subr.mxu0 0.0
        %3081 = vmatpush2.msra.mxu0 0.0
        %3082 = vmatprep.subr.mxu0 0.0
        %3083 = vmatpush2.msra.mxu0 0.0
        %3084 = vmatprep.subr.mxu0 0.0
        %3085 = vmatpush2.msra.mxu0 0.0
        %3086 = vmatprep.subr.mxu0 0.0
        %3087 = vmatpush2.msra.mxu0 0.0
        %3088 = vmatprep.subr.mxu0 0.0
        %3089 = vmatpush2.msra.mxu0 0.0
        %3090 = vmatprep.subr.mxu0 0.0
        %3091 = vmatpush2.msra.mxu0 0.0
        %3092 = vmatprep.subr.mxu0 0.0
        %3093 = vmatpush2.msra.mxu0 0.0
        %3094 = vmatprep.subr.mxu0 0.0
        %3095 = vmatpush2.msra.mxu0 0.0
        %3096 = vmatprep.subr.mxu0 0.0
        %3097 = vmatpush2.msra.mxu0 0.0
        %3098 = vmatprep.mubr.f32.mxu0 0.0
        %3099 = vmatmul.mubr.f32.gmra.mxu0 %v3026
        %v3100 = vpop.f32.mrf.mxu0
        %v3101 = vadd.f32 0.0, %v3100
        %v3102 = vpop.f32.mrf.mxu0
        %3103 = vmatprep.mubr.f32.mxu0 0.0
        %3104 = vmatmul.mubr.f32.gmra.mxu0 %v3029
        %v3105 = vpop.f32.mrf.mxu0
        %v3106 = vadd.f32 0.0, %v3105
        %v3107 = vpop.f32.mrf.mxu0
        %3108 = vdwg.mxu0
        %v3109 = vadd.f32 %v3006, %v3101
        %v3110 = vadd.f32 %v3011, %v3106
        %3111 = vrot.lane.b32.xlu0 %v2831, 120
        %v3112 = vpop.permute.xlu0 %3111
        %3113 = vrot.lane.b32.xlu0 %v2832, 120
        %v3114 = vpop.permute.xlu0 %3113
        %v3117 = vsel %vm1955, %v3112, 0.0
        %v3118 = vsel %vm1955, %v3114, 0.0
        %s3119 = scalar_lea.vmem [#allocation7], 48
        %v3120 = vld [vmem:[%s3119] sm:$0xff]
        %v3121 = vld [vmem:[%s3119 + $0x8] sm:$0xf]
        %v3123 = vsel %vm1970, %v3120, 0
        %v3126 = vsel %vm1970, %v3121, 0
        %v3129 = vsel %vm1977, %v3118, 0
        %3131 = vmatprep.subr.mxu0 0.0
        %3132 = vmatpush1.msra.mxu0 0.0
        %3133 = vmatprep.subr.mxu0 0.0
        %3134 = vmatpush1.msra.mxu0 0.0
        %3135 = vmatprep.subr.mxu0 0.0
        %3136 = vmatpush1.msra.mxu0 0.0
        %3137 = vmatprep.subr.mxu0 0.0
        %3138 = vmatpush1.msra.mxu0 0.0
        %3139 = vmatprep.subr.mxu0 0.0
        %3140 = vmatpush1.msra.mxu0 0.0
        %3141 = vmatprep.subr.mxu0 0.0
        %3142 = vmatpush1.msra.mxu0 0.0
        %3143 = vmatprep.subr.mxu0 0.0
        %3144 = vmatpush1.msra.mxu0 0.0
        %3145 = vmatprep.subr.mxu0 0.0
        %3146 = vmatpush1.msra.mxu0 0.0
        %3147 = vmatprep.subr.mxu0 0.0
        %3148 = vmatpush1.msra.mxu0 0.0
        %3149 = vmatprep.subr.mxu0 0.0
        %3150 = vmatpush1.msra.mxu0 0.0
        %3151 = vmatprep.subr.mxu0 0.0
        %3152 = vmatpush1.msra.mxu0 0.0
        %3153 = vmatprep.subr.mxu0 0.0
        %3154 = vmatpush1.msra.mxu0 0.0
        %3155 = vmatprep.subr.mxu0 0.0
        %3156 = vmatpush1.msra.mxu0 0.0
        %3157 = vmatprep.subr.mxu0 0.0
        %3158 = vmatpush1.msra.mxu0 0.0
        %3159 = vmatprep.subr.mxu0 0.0
        %3160 = vmatpush1.msra.mxu0 %v3129
        %3161 = vmatprep.subr.mxu0 0.0
        %3162 = vmatpush1.msra.mxu0 %v3117
        %3163 = vmatprep.subr.mxu0 0.0
        %3164 = vmatpush2.msra.mxu0 0.0
        %3165 = vmatprep.subr.mxu0 0.0
        %3166 = vmatpush2.msra.mxu0 0.0
        %3167 = vmatprep.subr.mxu0 0.0
        %3168 = vmatpush2.msra.mxu0 0.0
        %3169 = vmatprep.subr.mxu0 0.0
        %3170 = vmatpush2.msra.mxu0 0.0
        %3171 = vmatprep.subr.mxu0 0.0
        %3172 = vmatpush2.msra.mxu0 0.0
        %3173 = vmatprep.subr.mxu0 0.0
        %3174 = vmatpush2.msra.mxu0 0.0
        %3175 = vmatprep.subr.mxu0 0.0
        %3176 = vmatpush2.msra.mxu0 0.0
        %3177 = vmatprep.subr.mxu0 0.0
        %3178 = vmatpush2.msra.mxu0 0.0
        %3179 = vmatprep.subr.mxu0 0.0
        %3180 = vmatpush2.msra.mxu0 0.0
        %3181 = vmatprep.subr.mxu0 0.0
        %3182 = vmatpush2.msra.mxu0 0.0
        %3183 = vmatprep.subr.mxu0 0.0
        %3184 = vmatpush2.msra.mxu0 0.0
        %3185 = vmatprep.subr.mxu0 0.0
        %3186 = vmatpush2.msra.mxu0 0.0
        %3187 = vmatprep.subr.mxu0 0.0
        %3188 = vmatpush2.msra.mxu0 0.0
        %3189 = vmatprep.subr.mxu0 0.0
        %3190 = vmatpush2.msra.mxu0 0.0
        %3191 = vmatprep.subr.mxu0 0.0
        %3192 = vmatpush2.msra.mxu0 0.0
        %3193 = vmatprep.subr.mxu0 0.0
        %3194 = vmatpush2.msra.mxu0 0.0
        %3195 = vmatprep.mubr.f32.mxu0 0.0
        %3196 = vmatmul.mubr.f32.gmra.mxu0 %v3123
        %v3197 = vpop.f32.mrf.mxu0
        %v3198 = vadd.f32 0.0, %v3197
        %v3199 = vpop.f32.mrf.mxu0
        %3200 = vmatprep.mubr.f32.mxu0 0.0
        %3201 = vmatmul.mubr.f32.gmra.mxu0 %v3126
        %v3202 = vpop.f32.mrf.mxu0
        %v3203 = vadd.f32 0.0, %v3202
        %v3204 = vpop.f32.mrf.mxu0
        %3205 = vdwg.mxu0
        %v3206 = vadd.f32 %v3109, %v3198
        %v3207 = vadd.f32 %v3110, %v3203
        %s3208 = scalar_lea.vmem [#allocation7], 64
        %v3209 = vld [vmem:[%s3208] sm:$0xff]
        %v3210 = vld [vmem:[%s3208 + $0x8] sm:$0xf]
        %3211 = vrot.lane.b32.xlu0 %v2831, 119
        %v3212 = vpop.permute.xlu0 %3211
        %3213 = vrot.lane.b32.xlu0 %v2832, 119
        %v3214 = vpop.permute.xlu0 %3213
        %v3217 = vsel %vm1970, %v3209, 0
        %v3220 = vsel %vm1970, %v3210, 0
        %v3222 = vsel %vm1977, %v3214, 0
        %3224 = vmatprep.subr.mxu0 0.0
        %3225 = vmatpush1.msra.mxu0 0.0
        %3226 = vmatprep.subr.mxu0 0.0
        %3227 = vmatpush1.msra.mxu0 0.0
        %3228 = vmatprep.subr.mxu0 0.0
        %3229 = vmatpush1.msra.mxu0 0.0
        %3230 = vmatprep.subr.mxu0 0.0
        %3231 = vmatpush1.msra.mxu0 0.0
        %3232 = vmatprep.subr.mxu0 0.0
        %3233 = vmatpush1.msra.mxu0 0.0
        %3234 = vmatprep.subr.mxu0 0.0
        %3235 = vmatpush1.msra.mxu0 0.0
        %3236 = vmatprep.subr.mxu0 0.0
        %3237 = vmatpush1.msra.mxu0 0.0
        %3238 = vmatprep.subr.mxu0 0.0
        %3239 = vmatpush1.msra.mxu0 0.0
        %3240 = vmatprep.subr.mxu0 0.0
        %3241 = vmatpush1.msra.mxu0 0.0
        %3242 = vmatprep.subr.mxu0 0.0
        %3243 = vmatpush1.msra.mxu0 0.0
        %3244 = vmatprep.subr.mxu0 0.0
        %3245 = vmatpush1.msra.mxu0 0.0
        %3246 = vmatprep.subr.mxu0 0.0
        %3247 = vmatpush1.msra.mxu0 0.0
        %3248 = vmatprep.subr.mxu0 0.0
        %3249 = vmatpush1.msra.mxu0 0.0
        %3250 = vmatprep.subr.mxu0 0.0
        %3251 = vmatpush1.msra.mxu0 0.0
        %3252 = vmatprep.subr.mxu0 0.0
        %3253 = vmatpush1.msra.mxu0 %v3222
        %3254 = vmatprep.subr.mxu0 0.0
        %3255 = vmatpush1.msra.mxu0 %v3212
        %3256 = vmatprep.subr.mxu0 0.0
        %3257 = vmatpush2.msra.mxu0 0.0
        %3258 = vmatprep.subr.mxu0 0.0
        %3259 = vmatpush2.msra.mxu0 0.0
        %3260 = vmatprep.subr.mxu0 0.0
        %3261 = vmatpush2.msra.mxu0 0.0
        %3262 = vmatprep.subr.mxu0 0.0
        %3263 = vmatpush2.msra.mxu0 0.0
        %3264 = vmatprep.subr.mxu0 0.0
        %3265 = vmatpush2.msra.mxu0 0.0
        %3266 = vmatprep.subr.mxu0 0.0
        %3267 = vmatpush2.msra.mxu0 0.0
        %3268 = vmatprep.subr.mxu0 0.0
        %3269 = vmatpush2.msra.mxu0 0.0
        %3270 = vmatprep.subr.mxu0 0.0
        %3271 = vmatpush2.msra.mxu0 0.0
        %3272 = vmatprep.subr.mxu0 0.0
        %3273 = vmatpush2.msra.mxu0 0.0
        %3274 = vmatprep.subr.mxu0 0.0
        %3275 = vmatpush2.msra.mxu0 0.0
        %3276 = vmatprep.subr.mxu0 0.0
        %3277 = vmatpush2.msra.mxu0 0.0
        %3278 = vmatprep.subr.mxu0 0.0
        %3279 = vmatpush2.msra.mxu0 0.0
        %3280 = vmatprep.subr.mxu0 0.0
        %3281 = vmatpush2.msra.mxu0 0.0
        %3282 = vmatprep.subr.mxu0 0.0
        %3283 = vmatpush2.msra.mxu0 0.0
        %3284 = vmatprep.subr.mxu0 0.0
        %3285 = vmatpush2.msra.mxu0 0.0
        %3286 = vmatprep.subr.mxu0 0.0
        %3287 = vmatpush2.msra.mxu0 0.0
        %3288 = vmatprep.mubr.f32.mxu0 0.0
        %3289 = vmatmul.mubr.f32.gmra.mxu0 %v3217
        %v3290 = vpop.f32.mrf.mxu0
        %v3291 = vadd.f32 0.0, %v3290
        %v3292 = vpop.f32.mrf.mxu0
        %3293 = vmatprep.mubr.f32.mxu0 0.0
        %3294 = vmatmul.mubr.f32.gmra.mxu0 %v3220
        %v3295 = vpop.f32.mrf.mxu0
        %v3296 = vadd.f32 0.0, %v3295
        %v3297 = vpop.f32.mrf.mxu0
        %3298 = vdwg.mxu0
        %v3299 = vadd.f32 %v3206, %v3291
        %v3300 = vadd.f32 %v3207, %v3296
        %3301 = vrot.lane.b32.xlu0 %v2831, 118
        %v3302 = vpop.permute.xlu0 %3301
        %3303 = vrot.lane.b32.xlu0 %v2832, 118
        %v3304 = vpop.permute.xlu0 %3303
        %v3307 = vsel %vm2141, %v3302, 0.0
        %v3308 = vsel %vm2141, %v3304, 0.0
        %s3309 = scalar_lea.vmem [#allocation7], 80
        %v3310 = vld [vmem:[%s3309] sm:$0xff]
        %v3311 = vld [vmem:[%s3309 + $0x8] sm:$0xf]
        %v3313 = vsel %vm1970, %v3310, 0
        %v3316 = vsel %vm1970, %v3311, 0
        %v3319 = vsel %vm1977, %v3308, 0
        %3321 = vmatprep.subr.mxu0 0.0
        %3322 = vmatpush1.msra.mxu0 0.0
        %3323 = vmatprep.subr.mxu0 0.0
        %3324 = vmatpush1.msra.mxu0 0.0
        %3325 = vmatprep.subr.mxu0 0.0
        %3326 = vmatpush1.msra.mxu0 0.0
        %3327 = vmatprep.subr.mxu0 0.0
        %3328 = vmatpush1.msra.mxu0 0.0
        %3329 = vmatprep.subr.mxu0 0.0
        %3330 = vmatpush1.msra.mxu0 0.0
        %3331 = vmatprep.subr.mxu0 0.0
        %3332 = vmatpush1.msra.mxu0 0.0
        %3333 = vmatprep.subr.mxu0 0.0
        %3334 = vmatpush1.msra.mxu0 0.0
        %3335 = vmatprep.subr.mxu0 0.0
        %3336 = vmatpush1.msra.mxu0 0.0
        %3337 = vmatprep.subr.mxu0 0.0
        %3338 = vmatpush1.msra.mxu0 0.0
        %3339 = vmatprep.subr.mxu0 0.0
        %3340 = vmatpush1.msra.mxu0 0.0
        %3341 = vmatprep.subr.mxu0 0.0
        %3342 = vmatpush1.msra.mxu0 0.0
        %3343 = vmatprep.subr.mxu0 0.0
        %3344 = vmatpush1.msra.mxu0 0.0
        %3345 = vmatprep.subr.mxu0 0.0
        %3346 = vmatpush1.msra.mxu0 0.0
        %3347 = vmatprep.subr.mxu0 0.0
        %3348 = vmatpush1.msra.mxu0 0.0
        %3349 = vmatprep.subr.mxu0 0.0
        %3350 = vmatpush1.msra.mxu0 %v3319
        %3351 = vmatprep.subr.mxu0 0.0
        %3352 = vmatpush1.msra.mxu0 %v3307
        %3353 = vmatprep.subr.mxu0 0.0
        %3354 = vmatpush2.msra.mxu0 0.0
        %3355 = vmatprep.subr.mxu0 0.0
        %3356 = vmatpush2.msra.mxu0 0.0
        %3357 = vmatprep.subr.mxu0 0.0
        %3358 = vmatpush2.msra.mxu0 0.0
        %3359 = vmatprep.subr.mxu0 0.0
        %3360 = vmatpush2.msra.mxu0 0.0
        %3361 = vmatprep.subr.mxu0 0.0
        %3362 = vmatpush2.msra.mxu0 0.0
        %3363 = vmatprep.subr.mxu0 0.0
        %3364 = vmatpush2.msra.mxu0 0.0
        %3365 = vmatprep.subr.mxu0 0.0
        %3366 = vmatpush2.msra.mxu0 0.0
        %3367 = vmatprep.subr.mxu0 0.0
        %3368 = vmatpush2.msra.mxu0 0.0
        %3369 = vmatprep.subr.mxu0 0.0
        %3370 = vmatpush2.msra.mxu0 0.0
        %3371 = vmatprep.subr.mxu0 0.0
        %3372 = vmatpush2.msra.mxu0 0.0
        %3373 = vmatprep.subr.mxu0 0.0
        %3374 = vmatpush2.msra.mxu0 0.0
        %3375 = vmatprep.subr.mxu0 0.0
        %3376 = vmatpush2.msra.mxu0 0.0
        %3377 = vmatprep.subr.mxu0 0.0
        %3378 = vmatpush2.msra.mxu0 0.0
        %3379 = vmatprep.subr.mxu0 0.0
        %3380 = vmatpush2.msra.mxu0 0.0
        %3381 = vmatprep.subr.mxu0 0.0
        %3382 = vmatpush2.msra.mxu0 0.0
        %3383 = vmatprep.subr.mxu0 0.0
        %3384 = vmatpush2.msra.mxu0 0.0
        %3385 = vmatprep.mubr.f32.mxu0 0.0
        %3386 = vmatmul.mubr.f32.gmra.mxu0 %v3313
        %v3387 = vpop.f32.mrf.mxu0
        %v3388 = vadd.f32 0.0, %v3387
        %v3389 = vpop.f32.mrf.mxu0
        %3390 = vmatprep.mubr.f32.mxu0 0.0
        %3391 = vmatmul.mubr.f32.gmra.mxu0 %v3316
        %v3392 = vpop.f32.mrf.mxu0
        %v3393 = vadd.f32 0.0, %v3392
        %v3394 = vpop.f32.mrf.mxu0
        %3395 = vdwg.mxu0
        %v3396 = vadd.f32 %v3299, %v3388
        %v3397 = vadd.f32 %v3300, %v3393
        %3398 = vrot.lane.b32.xlu0 %v2831, 112
        %v3399 = vpop.permute.xlu0 %3398
        %3400 = vrot.lane.b32.xlu0 %v2832, 112
        %v3401 = vpop.permute.xlu0 %3400
        %v3404 = vsel %vm1955, %v3399, 0.0
        %v3405 = vsel %vm1955, %v3401, 0.0
        %s3406 = scalar_lea.vmem [#allocation7], 96
        %v3407 = vld [vmem:[%s3406] sm:$0xff]
        %v3408 = vld [vmem:[%s3406 + $0x8] sm:$0xf]
        %v3410 = vsel %vm1970, %v3407, 0
        %v3413 = vsel %vm1970, %v3408, 0
        %v3416 = vsel %vm1977, %v3405, 0
        %3418 = vmatprep.subr.mxu0 0.0
        %3419 = vmatpush1.msra.mxu0 0.0
        %3420 = vmatprep.subr.mxu0 0.0
        %3421 = vmatpush1.msra.mxu0 0.0
        %3422 = vmatprep.subr.mxu0 0.0
        %3423 = vmatpush1.msra.mxu0 0.0
        %3424 = vmatprep.subr.mxu0 0.0
        %3425 = vmatpush1.msra.mxu0 0.0
        %3426 = vmatprep.subr.mxu0 0.0
        %3427 = vmatpush1.msra.mxu0 0.0
        %3428 = vmatprep.subr.mxu0 0.0
        %3429 = vmatpush1.msra.mxu0 0.0
        %3430 = vmatprep.subr.mxu0 0.0
        %3431 = vmatpush1.msra.mxu0 0.0
        %3432 = vmatprep.subr.mxu0 0.0
        %3433 = vmatpush1.msra.mxu0 0.0
        %3434 = vmatprep.subr.mxu0 0.0
        %3435 = vmatpush1.msra.mxu0 0.0
        %3436 = vmatprep.subr.mxu0 0.0
        %3437 = vmatpush1.msra.mxu0 0.0
        %3438 = vmatprep.subr.mxu0 0.0
        %3439 = vmatpush1.msra.mxu0 0.0
        %3440 = vmatprep.subr.mxu0 0.0
        %3441 = vmatpush1.msra.mxu0 0.0
        %3442 = vmatprep.subr.mxu0 0.0
        %3443 = vmatpush1.msra.mxu0 0.0
        %3444 = vmatprep.subr.mxu0 0.0
        %3445 = vmatpush1.msra.mxu0 0.0
        %3446 = vmatprep.subr.mxu0 0.0
        %3447 = vmatpush1.msra.mxu0 %v3416
        %3448 = vmatprep.subr.mxu0 0.0
        %3449 = vmatpush1.msra.mxu0 %v3404
        %3450 = vmatprep.subr.mxu0 0.0
        %3451 = vmatpush2.msra.mxu0 0.0
        %3452 = vmatprep.subr.mxu0 0.0
        %3453 = vmatpush2.msra.mxu0 0.0
        %3454 = vmatprep.subr.mxu0 0.0
        %3455 = vmatpush2.msra.mxu0 0.0
        %3456 = vmatprep.subr.mxu0 0.0
        %3457 = vmatpush2.msra.mxu0 0.0
        %3458 = vmatprep.subr.mxu0 0.0
        %3459 = vmatpush2.msra.mxu0 0.0
        %3460 = vmatprep.subr.mxu0 0.0
        %3461 = vmatpush2.msra.mxu0 0.0
        %3462 = vmatprep.subr.mxu0 0.0
        %3463 = vmatpush2.msra.mxu0 0.0
        %3464 = vmatprep.subr.mxu0 0.0
        %3465 = vmatpush2.msra.mxu0 0.0
        %3466 = vmatprep.subr.mxu0 0.0
        %3467 = vmatpush2.msra.mxu0 0.0
        %3468 = vmatprep.subr.mxu0 0.0
        %3469 = vmatpush2.msra.mxu0 0.0
        %3470 = vmatprep.subr.mxu0 0.0
        %3471 = vmatpush2.msra.mxu0 0.0
        %3472 = vmatprep.subr.mxu0 0.0
        %3473 = vmatpush2.msra.mxu0 0.0
        %3474 = vmatprep.subr.mxu0 0.0
        %3475 = vmatpush2.msra.mxu0 0.0
        %3476 = vmatprep.subr.mxu0 0.0
        %3477 = vmatpush2.msra.mxu0 0.0
        %3478 = vmatprep.subr.mxu0 0.0
        %3479 = vmatpush2.msra.mxu0 0.0
        %3480 = vmatprep.subr.mxu0 0.0
        %3481 = vmatpush2.msra.mxu0 0.0
        %3482 = vmatprep.mubr.f32.mxu0 0.0
        %3483 = vmatmul.mubr.f32.gmra.mxu0 %v3410
        %v3484 = vpop.f32.mrf.mxu0
        %v3485 = vadd.f32 0.0, %v3484
        %v3486 = vpop.f32.mrf.mxu0
        %3487 = vmatprep.mubr.f32.mxu0 0.0
        %3488 = vmatmul.mubr.f32.gmra.mxu0 %v3413
        %v3489 = vpop.f32.mrf.mxu0
        %v3490 = vadd.f32 0.0, %v3489
        %v3491 = vpop.f32.mrf.mxu0
        %3492 = vdwg.mxu0
        %v3493 = vadd.f32 %v3396, %v3485
        %v3494 = vadd.f32 %v3397, %v3490
        %s3495 = scalar_lea.vmem [#allocation7], 112
        %v3496 = vld [vmem:[%s3495] sm:$0xff]
        %v3497 = vld [vmem:[%s3495 + $0x8] sm:$0xf]
        %3498 = vrot.lane.b32.xlu0 %v2831, 111
        %v3499 = vpop.permute.xlu0 %3498
        %3500 = vrot.lane.b32.xlu0 %v2832, 111
        %v3501 = vpop.permute.xlu0 %3500
        %v3504 = vsel %vm1970, %v3496, 0
        %v3507 = vsel %vm1970, %v3497, 0
        %v3509 = vsel %vm1977, %v3501, 0
        %3511 = vmatprep.subr.mxu0 0.0
        %3512 = vmatpush1.msra.mxu0 0.0
        %3513 = vmatprep.subr.mxu0 0.0
        %3514 = vmatpush1.msra.mxu0 0.0
        %3515 = vmatprep.subr.mxu0 0.0
        %3516 = vmatpush1.msra.mxu0 0.0
        %3517 = vmatprep.subr.mxu0 0.0
        %3518 = vmatpush1.msra.mxu0 0.0
        %3519 = vmatprep.subr.mxu0 0.0
        %3520 = vmatpush1.msra.mxu0 0.0
        %3521 = vmatprep.subr.mxu0 0.0
        %3522 = vmatpush1.msra.mxu0 0.0
        %3523 = vmatprep.subr.mxu0 0.0
        %3524 = vmatpush1.msra.mxu0 0.0
        %3525 = vmatprep.subr.mxu0 0.0
        %3526 = vmatpush1.msra.mxu0 0.0
        %3527 = vmatprep.subr.mxu0 0.0
        %3528 = vmatpush1.msra.mxu0 0.0
        %3529 = vmatprep.subr.mxu0 0.0
        %3530 = vmatpush1.msra.mxu0 0.0
        %3531 = vmatprep.subr.mxu0 0.0
        %3532 = vmatpush1.msra.mxu0 0.0
        %3533 = vmatprep.subr.mxu0 0.0
        %3534 = vmatpush1.msra.mxu0 0.0
        %3535 = vmatprep.subr.mxu0 0.0
        %3536 = vmatpush1.msra.mxu0 0.0
        %3537 = vmatprep.subr.mxu0 0.0
        %3538 = vmatpush1.msra.mxu0 0.0
        %3539 = vmatprep.subr.mxu0 0.0
        %3540 = vmatpush1.msra.mxu0 %v3509
        %3541 = vmatprep.subr.mxu0 0.0
        %3542 = vmatpush1.msra.mxu0 %v3499
        %3543 = vmatprep.subr.mxu0 0.0
        %3544 = vmatpush2.msra.mxu0 0.0
        %3545 = vmatprep.subr.mxu0 0.0
        %3546 = vmatpush2.msra.mxu0 0.0
        %3547 = vmatprep.subr.mxu0 0.0
        %3548 = vmatpush2.msra.mxu0 0.0
        %3549 = vmatprep.subr.mxu0 0.0
        %3550 = vmatpush2.msra.mxu0 0.0
        %3551 = vmatprep.subr.mxu0 0.0
        %3552 = vmatpush2.msra.mxu0 0.0
        %3553 = vmatprep.subr.mxu0 0.0
        %3554 = vmatpush2.msra.mxu0 0.0
        %3555 = vmatprep.subr.mxu0 0.0
        %3556 = vmatpush2.msra.mxu0 0.0
        %3557 = vmatprep.subr.mxu0 0.0
        %3558 = vmatpush2.msra.mxu0 0.0
        %3559 = vmatprep.subr.mxu0 0.0
        %3560 = vmatpush2.msra.mxu0 0.0
        %3561 = vmatprep.subr.mxu0 0.0
        %3562 = vmatpush2.msra.mxu0 0.0
        %3563 = vmatprep.subr.mxu0 0.0
        %3564 = vmatpush2.msra.mxu0 0.0
        %3565 = vmatprep.subr.mxu0 0.0
        %3566 = vmatpush2.msra.mxu0 0.0
        %3567 = vmatprep.subr.mxu0 0.0
        %3568 = vmatpush2.msra.mxu0 0.0
        %3569 = vmatprep.subr.mxu0 0.0
        %3570 = vmatpush2.msra.mxu0 0.0
        %3571 = vmatprep.subr.mxu0 0.0
        %3572 = vmatpush2.msra.mxu0 0.0
        %3573 = vmatprep.subr.mxu0 0.0
        %3574 = vmatpush2.msra.mxu0 0.0
        %3575 = vmatprep.mubr.f32.mxu0 0.0
        %3576 = vmatmul.mubr.f32.gmra.mxu0 %v3504
        %v3577 = vpop.f32.mrf.mxu0
        %v3578 = vadd.f32 0.0, %v3577
        %v3579 = vpop.f32.mrf.mxu0
        %3580 = vmatprep.mubr.f32.mxu0 0.0
        %3581 = vmatmul.mubr.f32.gmra.mxu0 %v3507
        %v3582 = vpop.f32.mrf.mxu0
        %v3583 = vadd.f32 0.0, %v3582
        %v3584 = vpop.f32.mrf.mxu0
        %3585 = vdwg.mxu0
        %v3586 = vadd.f32 %v3493, %v3578
        %v3587 = vadd.f32 %v3494, %v3583
        %3588 = vrot.lane.b32.xlu0 %v2831, 110
        %v3589 = vpop.permute.xlu0 %3588
        %3590 = vrot.lane.b32.xlu0 %v2832, 110
        %v3591 = vpop.permute.xlu0 %3590
        %v3594 = vsel %vm2141, %v3589, 0.0
        %v3595 = vsel %vm2141, %v3591, 0.0
        %s3596 = scalar_lea.vmem [#allocation7], 128
        %v3597 = vld [vmem:[%s3596] sm:$0xff]
        %v3598 = vld [vmem:[%s3596 + $0x8] sm:$0xf]
        %v3600 = vsel %vm1970, %v3597, 0
        %v3603 = vsel %vm1970, %v3598, 0
        %v3606 = vsel %vm1977, %v3595, 0
        %3608 = vmatprep.subr.mxu0 0.0
        %3609 = vmatpush1.msra.mxu0 0.0
        %3610 = vmatprep.subr.mxu0 0.0
        %3611 = vmatpush1.msra.mxu0 0.0
        %3612 = vmatprep.subr.mxu0 0.0
        %3613 = vmatpush1.msra.mxu0 0.0
        %3614 = vmatprep.subr.mxu0 0.0
        %3615 = vmatpush1.msra.mxu0 0.0
        %3616 = vmatprep.subr.mxu0 0.0
        %3617 = vmatpush1.msra.mxu0 0.0
        %3618 = vmatprep.subr.mxu0 0.0
        %3619 = vmatpush1.msra.mxu0 0.0
        %3620 = vmatprep.subr.mxu0 0.0
        %3621 = vmatpush1.msra.mxu0 0.0
        %3622 = vmatprep.subr.mxu0 0.0
        %3623 = vmatpush1.msra.mxu0 0.0
        %3624 = vmatprep.subr.mxu0 0.0
        %3625 = vmatpush1.msra.mxu0 0.0
        %3626 = vmatprep.subr.mxu0 0.0
        %3627 = vmatpush1.msra.mxu0 0.0
        %3628 = vmatprep.subr.mxu0 0.0
        %3629 = vmatpush1.msra.mxu0 0.0
        %3630 = vmatprep.subr.mxu0 0.0
        %3631 = vmatpush1.msra.mxu0 0.0
        %3632 = vmatprep.subr.mxu0 0.0
        %3633 = vmatpush1.msra.mxu0 0.0
        %3634 = vmatprep.subr.mxu0 0.0
        %3635 = vmatpush1.msra.mxu0 0.0
        %3636 = vmatprep.subr.mxu0 0.0
        %3637 = vmatpush1.msra.mxu0 %v3606
        %3638 = vmatprep.subr.mxu0 0.0
        %3639 = vmatpush1.msra.mxu0 %v3594
        %3640 = vmatprep.subr.mxu0 0.0
        %3641 = vmatpush2.msra.mxu0 0.0
        %3642 = vmatprep.subr.mxu0 0.0
        %3643 = vmatpush2.msra.mxu0 0.0
        %3644 = vmatprep.subr.mxu0 0.0
        %3645 = vmatpush2.msra.mxu0 0.0
        %3646 = vmatprep.subr.mxu0 0.0
        %3647 = vmatpush2.msra.mxu0 0.0
        %3648 = vmatprep.subr.mxu0 0.0
        %3649 = vmatpush2.msra.mxu0 0.0
        %3650 = vmatprep.subr.mxu0 0.0
        %3651 = vmatpush2.msra.mxu0 0.0
        %3652 = vmatprep.subr.mxu0 0.0
        %3653 = vmatpush2.msra.mxu0 0.0
        %3654 = vmatprep.subr.mxu0 0.0
        %3655 = vmatpush2.msra.mxu0 0.0
        %3656 = vmatprep.subr.mxu0 0.0
        %3657 = vmatpush2.msra.mxu0 0.0
        %3658 = vmatprep.subr.mxu0 0.0
        %3659 = vmatpush2.msra.mxu0 0.0
        %3660 = vmatprep.subr.mxu0 0.0
        %3661 = vmatpush2.msra.mxu0 0.0
        %3662 = vmatprep.subr.mxu0 0.0
        %3663 = vmatpush2.msra.mxu0 0.0
        %3664 = vmatprep.subr.mxu0 0.0
        %3665 = vmatpush2.msra.mxu0 0.0
        %3666 = vmatprep.subr.mxu0 0.0
        %3667 = vmatpush2.msra.mxu0 0.0
        %3668 = vmatprep.subr.mxu0 0.0
        %3669 = vmatpush2.msra.mxu0 0.0
        %3670 = vmatprep.subr.mxu0 0.0
        %3671 = vmatpush2.msra.mxu0 0.0
        %3672 = vmatprep.mubr.f32.mxu0 0.0
        %3673 = vmatmul.mubr.f32.gmra.mxu0 %v3600
        %v3674 = vpop.f32.mrf.mxu0
        %v3675 = vadd.f32 0.0, %v3674
        %v3676 = vpop.f32.mrf.mxu0
        %3677 = vmatprep.mubr.f32.mxu0 0.0
        %3678 = vmatmul.mubr.f32.gmra.mxu0 %v3603
        %v3679 = vpop.f32.mrf.mxu0
        %v3680 = vadd.f32 0.0, %v3679
        %v3681 = vpop.f32.mrf.mxu0
        %3682 = vdwg.mxu0
        %v3683 = vadd.f32 %v3586, %v3675
        %v3684 = vadd.f32 %v3587, %v3680
        %3685 = vst [vmem:[#allocation2] sm:$0xff] 0.0
        %3686 = vst [vmem:[#allocation2 + $0x8] sm:$0xff] 0.0
        %3687 = vst.msk [vmem:[#allocation2 + $0x10] sm:$0xff] %vm483, 0.0
        %3688 = vst [vmem:[#allocation2 + $0x18] sm:$0xf] 0.0
        %3689 = vst [vmem:[#allocation2 + $0x20] sm:$0xf] 0.0
        %3690 = vst.msk [vmem:[#allocation2 + $0x28] sm:$0xf] %vm487, 0.0
        %v3691 = vmax.f32 %v3683, 0.0
        %v3692 = vmax.f32 %v3684, 0.0
        %3695 = vrot.lane.b32.xlu0 %v3691, 9
        %v3696 = vpop.permute.xlu0 %3695
        %3697 = vrot.lane.b32.xlu0 %v3692, 9
        %v3698 = vpop.permute.xlu0 %3697
        %3701 = vst.msk [vmem:[#allocation2] sm:$0xff] %vm1830, %v3696
        %3702 = vst.msk [vmem:[#allocation2 + $0x18] sm:$0xf] %vm1937, %v3698
        %v3703 = vld [vmem:[#allocation2] sm:$0xff]
        %v3704 = vld [vmem:[#allocation2 + $0x18] sm:$0xf]
        %3707 = vrot.lane.b32.xlu0 %v3703, 127
        %v3708 = vpop.permute.xlu0 %3707
        %3709 = vrot.lane.b32.xlu0 %v3704, 127
        %v3710 = vpop.permute.xlu0 %3709
        %v3713 = vmax.f32 %v3703, %v3708
        %v3714 = vmax.f32 %v3704, %v3710
        %3717 = vrot.lane.b32.xlu0 %v3713, 120
        %v3718 = vpop.permute.xlu0 %3717
        %3719 = vrot.lane.b32.xlu0 %v3714, 120
        %v3720 = vpop.permute.xlu0 %3719
        %v3723 = vmax.f32 %v3713, %v3718
        %v3724 = vmax.f32 %v3714, %v3720
        %v3725 = vld [vmem:[%s11] sm:$0xff]
        %v3726 = vld [vmem:[%s11 + $0x8] sm:$0xff]
        %v3727 = vld [vmem:[%s11 + $0x10] sm:$0xff]
        %v3728 = vld [vmem:[%s11 + $0x18] sm:$0xff]
        %v3729 = vld [vmem:[%s11 + $0x20] sm:$0xff]
        %v3730 = vld [vmem:[%s11 + $0x28] sm:$0xff]
        %v3731 = vld [vmem:[%s11 + $0x30] sm:$0xff]
        %v3732 = vld [vmem:[%s11 + $0x38] sm:$0xff]
        %3735 = vrot.lane.b32.xlu0 %v3723, 119
        %v3736 = vpop.permute.xlu0 %3735
        %3737 = vrot.lane.b32.xlu0 %v3724, 119
        %v3738 = vpop.permute.xlu0 %3737
        %vm3739 = vcmask 523264
        %v3740 = vsel %vm3739, %v3736, 0
        %v3742 = vsel %vm3739, %v3738, 0
        %3744 = vmatprep.subr.mxu0 0.0
        %3745 = vmatpush1.msra.mxu0 0.0
        %3746 = vmatprep.subr.mxu0 0.0
        %3747 = vmatpush1.msra.mxu0 0.0
        %3748 = vmatprep.subr.mxu0 0.0
        %3749 = vmatpush1.msra.mxu0 0.0
        %3750 = vmatprep.subr.mxu0 0.0
        %3751 = vmatpush1.msra.mxu0 0.0
        %3752 = vmatprep.subr.mxu0 0.0
        %3753 = vmatpush1.msra.mxu0 0.0
        %3754 = vmatprep.subr.mxu0 0.0
        %3755 = vmatpush1.msra.mxu0 0.0
        %3756 = vmatprep.subr.mxu0 0.0
        %3757 = vmatpush1.msra.mxu0 0.0
        %3758 = vmatprep.subr.mxu0 0.0
        %3759 = vmatpush1.msra.mxu0 0.0
        %3760 = vmatprep.subr.mxu0 0.0
        %3761 = vmatpush1.msra.mxu0 %v3732
        %3762 = vmatprep.subr.mxu0 0.0
        %3763 = vmatpush1.msra.mxu0 %v3731
        %3764 = vmatprep.subr.mxu0 0.0
        %3765 = vmatpush1.msra.mxu0 %v3730
        %3766 = vmatprep.subr.mxu0 0.0
        %3767 = vmatpush1.msra.mxu0 %v3729
        %3768 = vmatprep.subr.mxu0 0.0
        %3769 = vmatpush1.msra.mxu0 %v3728
        %3770 = vmatprep.subr.mxu0 0.0
        %3771 = vmatpush1.msra.mxu0 %v3727
        %3772 = vmatprep.subr.mxu0 0.0
        %3773 = vmatpush1.msra.mxu0 %v3726
        %3774 = vmatprep.subr.mxu0 0.0
        %3775 = vmatpush1.msra.mxu0 %v3725
        %3776 = vmatprep.subr.mxu0 0.0
        %3777 = vmatpush2.msra.mxu0 0.0
        %3778 = vmatprep.subr.mxu0 0.0
        %3779 = vmatpush2.msra.mxu0 0.0
        %3780 = vmatprep.subr.mxu0 0.0
        %3781 = vmatpush2.msra.mxu0 0.0
        %3782 = vmatprep.subr.mxu0 0.0
        %3783 = vmatpush2.msra.mxu0 0.0
        %3784 = vmatprep.subr.mxu0 0.0
        %3785 = vmatpush2.msra.mxu0 0.0
        %3786 = vmatprep.subr.mxu0 0.0
        %3787 = vmatpush2.msra.mxu0 0.0
        %3788 = vmatprep.subr.mxu0 0.0
        %3789 = vmatpush2.msra.mxu0 0.0
        %3790 = vmatprep.subr.mxu0 0.0
        %3791 = vmatpush2.msra.mxu0 0.0
        %3792 = vmatprep.subr.mxu0 0.0
        %3793 = vmatpush2.msra.mxu0 0.0
        %3794 = vmatprep.subr.mxu0 0.0
        %3795 = vmatpush2.msra.mxu0 0.0
        %3796 = vmatprep.subr.mxu0 0.0
        %3797 = vmatpush2.msra.mxu0 0.0
        %3798 = vmatprep.subr.mxu0 0.0
        %3799 = vmatpush2.msra.mxu0 0.0
        %3800 = vmatprep.subr.mxu0 0.0
        %3801 = vmatpush2.msra.mxu0 0.0
        %3802 = vmatprep.subr.mxu0 0.0
        %3803 = vmatpush2.msra.mxu0 0.0
        %3804 = vmatprep.subr.mxu0 0.0
        %3805 = vmatpush2.msra.mxu0 0.0
        %3806 = vmatprep.subr.mxu0 0.0
        %3807 = vmatpush2.msra.mxu0 0.0
        %3808 = vmatprep.mubr.f32.mxu0 0.0
        %3809 = vmatmul.mubr.f32.gmra.mxu0 %v3740
        %v3810 = vpop.f32.mrf.mxu0
        %v3811 = vadd.f32 0.0, %v3810
        %v3812 = vpop.f32.mrf.mxu0
        %3813 = vmatprep.mubr.f32.mxu0 0.0
        %3814 = vmatmul.mubr.f32.gmra.mxu0 %v3742
        %v3815 = vpop.f32.mrf.mxu0
        %v3816 = vadd.f32 0.0, %v3815
        %v3817 = vpop.f32.mrf.mxu0
        %3818 = vdwg.mxu0
        %3819 = vst [vmem:[#allocation3] sm:$0xff] 0.0
        %3820 = vst [vmem:[#allocation3 + $0x8] sm:$0xff] 0.0
        %3821 = vst.msk [vmem:[#allocation3 + $0x10] sm:$0xff] %vm483, 0.0
        %3822 = vst [vmem:[#allocation3 + $0x18] sm:$0xf] 0.0
        %3823 = vst [vmem:[#allocation3 + $0x20] sm:$0xf] 0.0
        %3824 = vst.msk [vmem:[#allocation3 + $0x28] sm:$0xf] %vm487, 0.0
        %3827 = vrot.lane.b32.xlu0 %v3811, 5
        %v3828 = vpop.permute.xlu0 %3827
        %3829 = vrot.lane.b32.xlu0 %v3816, 5
        %v3830 = vpop.permute.xlu0 %3829
        %vm3833 = vcmask 171048
        %3834 = vst.msk [vmem:[#allocation3] sm:$0xff] %vm3833, %v3828
        %vm3835 = vcmask 166952
        %3836 = vst.msk [vmem:[#allocation3 + $0x18] sm:$0xf] %vm3835, %v3830
        %v3837 = vld [vmem:[#allocation3] sm:$0xff]
        %v3838 = vld [vmem:[#allocation3 + $0x18] sm:$0xf]
        %v3839 = vld [vmem:[%s6] sm:$0xff]
        %v3840 = vld [vmem:[%s6 + $0x8] sm:$0xf]
        %3843 = vrot.lane.b32.xlu0 %v3837, 123
        %v3844 = vpop.permute.xlu0 %3843
        %3845 = vrot.lane.b32.xlu0 %v3838, 123
        %v3846 = vpop.permute.xlu0 %3845
        %v3849 = vsel %vm1970, %v3839, 0
        %v3852 = vsel %vm1970, %v3840, 0
        %v3854 = vsel %vm1977, %v3846, 0
        %3856 = vmatprep.subr.mxu0 0.0
        %3857 = vmatpush1.msra.mxu0 0.0
        %3858 = vmatprep.subr.mxu0 0.0
        %3859 = vmatpush1.msra.mxu0 0.0
        %3860 = vmatprep.subr.mxu0 0.0
        %3861 = vmatpush1.msra.mxu0 0.0
        %3862 = vmatprep.subr.mxu0 0.0
        %3863 = vmatpush1.msra.mxu0 0.0
        %3864 = vmatprep.subr.mxu0 0.0
        %3865 = vmatpush1.msra.mxu0 0.0
        %3866 = vmatprep.subr.mxu0 0.0
        %3867 = vmatpush1.msra.mxu0 0.0
        %3868 = vmatprep.subr.mxu0 0.0
        %3869 = vmatpush1.msra.mxu0 0.0
        %3870 = vmatprep.subr.mxu0 0.0
        %3871 = vmatpush1.msra.mxu0 0.0
        %3872 = vmatprep.subr.mxu0 0.0
        %3873 = vmatpush1.msra.mxu0 0.0
        %3874 = vmatprep.subr.mxu0 0.0
        %3875 = vmatpush1.msra.mxu0 0.0
        %3876 = vmatprep.subr.mxu0 0.0
        %3877 = vmatpush1.msra.mxu0 0.0
        %3878 = vmatprep.subr.mxu0 0.0
        %3879 = vmatpush1.msra.mxu0 0.0
        %3880 = vmatprep.subr.mxu0 0.0
        %3881 = vmatpush1.msra.mxu0 0.0
        %3882 = vmatprep.subr.mxu0 0.0
        %3883 = vmatpush1.msra.mxu0 0.0
        %3884 = vmatprep.subr.mxu0 0.0
        %3885 = vmatpush1.msra.mxu0 %v3854
        %3886 = vmatprep.subr.mxu0 0.0
        %3887 = vmatpush1.msra.mxu0 %v3844
        %3888 = vmatprep.subr.mxu0 0.0
        %3889 = vmatpush2.msra.mxu0 0.0
        %3890 = vmatprep.subr.mxu0 0.0
        %3891 = vmatpush2.msra.mxu0 0.0
        %3892 = vmatprep.subr.mxu0 0.0
        %3893 = vmatpush2.msra.mxu0 0.0
        %3894 = vmatprep.subr.mxu0 0.0
        %3895 = vmatpush2.msra.mxu0 0.0
        %3896 = vmatprep.subr.mxu0 0.0
        %3897 = vmatpush2.msra.mxu0 0.0
        %3898 = vmatprep.subr.mxu0 0.0
        %3899 = vmatpush2.msra.mxu0 0.0
        %3900 = vmatprep.subr.mxu0 0.0
        %3901 = vmatpush2.msra.mxu0 0.0
        %3902 = vmatprep.subr.mxu0 0.0
        %3903 = vmatpush2.msra.mxu0 0.0
        %3904 = vmatprep.subr.mxu0 0.0
        %3905 = vmatpush2.msra.mxu0 0.0
        %3906 = vmatprep.subr.mxu0 0.0
        %3907 = vmatpush2.msra.mxu0 0.0
        %3908 = vmatprep.subr.mxu0 0.0
        %3909 = vmatpush2.msra.mxu0 0.0
        %3910 = vmatprep.subr.mxu0 0.0
        %3911 = vmatpush2.msra.mxu0 0.0
        %3912 = vmatprep.subr.mxu0 0.0
        %3913 = vmatpush2.msra.mxu0 0.0
        %3914 = vmatprep.subr.mxu0 0.0
        %3915 = vmatpush2.msra.mxu0 0.0
        %3916 = vmatprep.subr.mxu0 0.0
        %3917 = vmatpush2.msra.mxu0 0.0
        %3918 = vmatprep.subr.mxu0 0.0
        %3919 = vmatpush2.msra.mxu0 0.0
        %3920 = vmatprep.mubr.f32.mxu0 0.0
        %3921 = vmatmul.mubr.f32.gmra.mxu0 %v3849
        %v3922 = vpop.f32.mrf.mxu0
        %v3923 = vadd.f32 0.0, %v3922
        %v3924 = vpop.f32.mrf.mxu0
        %3925 = vmatprep.mubr.f32.mxu0 0.0
        %3926 = vmatmul.mubr.f32.gmra.mxu0 %v3852
        %v3927 = vpop.f32.mrf.mxu0
        %v3928 = vadd.f32 0.0, %v3927
        %v3929 = vpop.f32.mrf.mxu0
        %3930 = vdwg.mxu0
        %3931 = vst [vmem:[#allocation2] sm:$0xff] 0.0
        %3932 = vst [vmem:[#allocation2 + $0x8] sm:$0xff] 0.0
        %3933 = vst.msk [vmem:[#allocation2 + $0x10] sm:$0xff] %vm483, 0.0
        %3934 = vst [vmem:[#allocation2 + $0x18] sm:$0xf] 0.0
        %3935 = vst [vmem:[#allocation2 + $0x20] sm:$0xf] 0.0
        %3936 = vst.msk [vmem:[#allocation2 + $0x28] sm:$0xf] %vm487, 0.0
        %v3937 = vmax.f32 %v3923, 0.0
        %v3938 = vmax.f32 %v3928, 0.0
        %3941 = vrot.lane.b32.xlu0 %v3937, 5
        %v3942 = vpop.permute.xlu0 %3941
        %3943 = vrot.lane.b32.xlu0 %v3938, 5
        %v3944 = vpop.permute.xlu0 %3943
        %3947 = vst.msk [vmem:[#allocation2] sm:$0xff] %vm3833, %v3942
        %3948 = vst.msk [vmem:[#allocation2 + $0x18] sm:$0xf] %vm3835, %v3944
        %vm3949 = vcmp.lt.s32.totalorder %v504, 0
        %v3950 = vsub.s32 0, %v504
        %v3951 = vsel %vm3949, %v3950, %v504
        %v3952 = vshrl.u32 %v3951, 2
        %v3953 = vand.u32 %v3951, 3
        %v3954 = vsub.s32 0, %v3953
        %v3955 = vsel %vm3949, %v3954, %v3953
        %vm3956 = vcmp.ne.s32.totalorder %v3955, 0
        %vm3957 = vcmp.lt.s32.totalorder %v3955, 0
        %vm3958 = vmand %vm3957, %vm3956
        %v3959 = vadd.s32 %v3955, 4
        %v3960 = vsel %vm3958, %v3959, %v3955
        %v3961 = vld [vmem:[#allocation2] sm:$0xff]
        %v3962 = vld [vmem:[#allocation2 + $0x18] sm:$0xf]
        %vm3963 = vcmp.ge.s32.totalorder %v3960, 1
        %v3964 = vsel %vm3963, 1, 0
        %vm3965 = vcmp.eq.s32.totalorder %v3964, 1
        %v3966 = vsel %vm3965, %v3961, 0.0
        %v3967 = vsel %vm3965, %v3962, 0.0
        %v3968 = vld [vmem:[#allocation9] sm:$0xff]
        %v3969 = vld [vmem:[#allocation9 + $0x8] sm:$0xf]
        %s3970 = scalar_lea.vmem [#allocation9], 16
        %v3971 = vld [vmem:[%s3970] sm:$0xff]
        %v3972 = vld [vmem:[%s3970 + $0x8] sm:$0xf]
        %3975 = vrot.lane.b32.xlu0 %v3961, 127
        %v3976 = vpop.permute.xlu0 %3975
        %3977 = vrot.lane.b32.xlu0 %v3962, 127
        %v3978 = vpop.permute.xlu0 %3977
        %v3981 = vsel %vm1970, %v3971, 0
        %v3984 = vsel %vm1970, %v3972, 0
        %v3986 = vsel %vm1977, %v3978, 0
        %3988 = vmatprep.subr.mxu0 0.0
        %3989 = vmatpush1.msra.mxu0 0.0
        %3990 = vmatprep.subr.mxu0 0.0
        %3991 = vmatpush1.msra.mxu0 0.0
        %3992 = vmatprep.subr.mxu0 0.0
        %3993 = vmatpush1.msra.mxu0 0.0
        %3994 = vmatprep.subr.mxu0 0.0
        %3995 = vmatpush1.msra.mxu0 0.0
        %3996 = vmatprep.subr.mxu0 0.0
        %3997 = vmatpush1.msra.mxu0 0.0
        %3998 = vmatprep.subr.mxu0 0.0
        %3999 = vmatpush1.msra.mxu0 0.0
        %4000 = vmatprep.subr.mxu0 0.0
        %4001 = vmatpush1.msra.mxu0 0.0
        %4002 = vmatprep.subr.mxu0 0.0
        %4003 = vmatpush1.msra.mxu0 0.0
        %4004 = vmatprep.subr.mxu0 0.0
        %4005 = vmatpush1.msra.mxu0 0.0
        %4006 = vmatprep.subr.mxu0 0.0
        %4007 = vmatpush1.msra.mxu0 0.0
        %4008 = vmatprep.subr.mxu0 0.0
        %4009 = vmatpush1.msra.mxu0 0.0
        %4010 = vmatprep.subr.mxu0 0.0
        %4011 = vmatpush1.msra.mxu0 0.0
        %4012 = vmatprep.subr.mxu0 0.0
        %4013 = vmatpush1.msra.mxu0 0.0
        %4014 = vmatprep.subr.mxu0 0.0
        %4015 = vmatpush1.msra.mxu0 0.0
        %4016 = vmatprep.subr.mxu0 0.0
        %4017 = vmatpush1.msra.mxu0 %v3986
        %4018 = vmatprep.subr.mxu0 0.0
        %4019 = vmatpush1.msra.mxu0 %v3976
        %4020 = vmatprep.subr.mxu0 0.0
        %4021 = vmatpush2.msra.mxu0 0.0
        %4022 = vmatprep.subr.mxu0 0.0
        %4023 = vmatpush2.msra.mxu0 0.0
        %4024 = vmatprep.subr.mxu0 0.0
        %4025 = vmatpush2.msra.mxu0 0.0
        %4026 = vmatprep.subr.mxu0 0.0
        %4027 = vmatpush2.msra.mxu0 0.0
        %4028 = vmatprep.subr.mxu0 0.0
        %4029 = vmatpush2.msra.mxu0 0.0
        %4030 = vmatprep.subr.mxu0 0.0
        %4031 = vmatpush2.msra.mxu0 0.0
        %4032 = vmatprep.subr.mxu0 0.0
        %4033 = vmatpush2.msra.mxu0 0.0
        %4034 = vmatprep.subr.mxu0 0.0
        %4035 = vmatpush2.msra.mxu0 0.0
        %4036 = vmatprep.subr.mxu0 0.0
        %4037 = vmatpush2.msra.mxu0 0.0
        %4038 = vmatprep.subr.mxu0 0.0
        %4039 = vmatpush2.msra.mxu0 0.0
        %4040 = vmatprep.subr.mxu0 0.0
        %4041 = vmatpush2.msra.mxu0 0.0
        %4042 = vmatprep.subr.mxu0 0.0
        %4043 = vmatpush2.msra.mxu0 0.0
        %4044 = vmatprep.subr.mxu0 0.0
        %4045 = vmatpush2.msra.mxu0 0.0
        %4046 = vmatprep.subr.mxu0 0.0
        %4047 = vmatpush2.msra.mxu0 0.0
        %4048 = vmatprep.subr.mxu0 0.0
        %4049 = vmatpush2.msra.mxu0 0.0
        %4050 = vmatprep.subr.mxu0 0.0
        %4051 = vmatpush2.msra.mxu0 0.0
        %4052 = vmatprep.mubr.f32.mxu0 0.0
        %4053 = vmatmul.mubr.f32.gmra.mxu0 %v3981
        %v4054 = vpop.f32.mrf.mxu0
        %v4055 = vadd.f32 0.0, %v4054
        %v4056 = vpop.f32.mrf.mxu0
        %4057 = vmatprep.mubr.f32.mxu0 0.0
        %4058 = vmatmul.mubr.f32.gmra.mxu0 %v3984
        %v4059 = vpop.f32.mrf.mxu0
        %v4060 = vadd.f32 0.0, %v4059
        %v4061 = vpop.f32.mrf.mxu0
        %4062 = vdwg.mxu0
        %v4064 = vsel %vm1970, %v3968, 0
        %v4067 = vsel %vm1970, %v3969, 0
        %v4070 = vsel %vm1977, %v3967, 0
        %4072 = vmatprep.subr.mxu0 0.0
        %4073 = vmatpush1.msra.mxu0 0.0
        %4074 = vmatprep.subr.mxu0 0.0
        %4075 = vmatpush1.msra.mxu0 0.0
        %4076 = vmatprep.subr.mxu0 0.0
        %4077 = vmatpush1.msra.mxu0 0.0
        %4078 = vmatprep.subr.mxu0 0.0
        %4079 = vmatpush1.msra.mxu0 0.0
        %4080 = vmatprep.subr.mxu0 0.0
        %4081 = vmatpush1.msra.mxu0 0.0
        %4082 = vmatprep.subr.mxu0 0.0
        %4083 = vmatpush1.msra.mxu0 0.0
        %4084 = vmatprep.subr.mxu0 0.0
        %4085 = vmatpush1.msra.mxu0 0.0
        %4086 = vmatprep.subr.mxu0 0.0
        %4087 = vmatpush1.msra.mxu0 0.0
        %4088 = vmatprep.subr.mxu0 0.0
        %4089 = vmatpush1.msra.mxu0 0.0
        %4090 = vmatprep.subr.mxu0 0.0
        %4091 = vmatpush1.msra.mxu0 0.0
        %4092 = vmatprep.subr.mxu0 0.0
        %4093 = vmatpush1.msra.mxu0 0.0
        %4094 = vmatprep.subr.mxu0 0.0
        %4095 = vmatpush1.msra.mxu0 0.0
        %4096 = vmatprep.subr.mxu0 0.0
        %4097 = vmatpush1.msra.mxu0 0.0
        %4098 = vmatprep.subr.mxu0 0.0
        %4099 = vmatpush1.msra.mxu0 0.0
        %4100 = vmatprep.subr.mxu0 0.0
        %4101 = vmatpush1.msra.mxu0 %v4070
        %4102 = vmatprep.subr.mxu0 0.0
        %4103 = vmatpush1.msra.mxu0 %v3966
        %4104 = vmatprep.subr.mxu0 0.0
        %4105 = vmatpush2.msra.mxu0 0.0
        %4106 = vmatprep.subr.mxu0 0.0
        %4107 = vmatpush2.msra.mxu0 0.0
        %4108 = vmatprep.subr.mxu0 0.0
        %4109 = vmatpush2.msra.mxu0 0.0
        %4110 = vmatprep.subr.mxu0 0.0
        %4111 = vmatpush2.msra.mxu0 0.0
        %4112 = vmatprep.subr.mxu0 0.0
        %4113 = vmatpush2.msra.mxu0 0.0
        %4114 = vmatprep.subr.mxu0 0.0
        %4115 = vmatpush2.msra.mxu0 0.0
        %4116 = vmatprep.subr.mxu0 0.0
        %4117 = vmatpush2.msra.mxu0 0.0
        %4118 = vmatprep.subr.mxu0 0.0
        %4119 = vmatpush2.msra.mxu0 0.0
        %4120 = vmatprep.subr.mxu0 0.0
        %4121 = vmatpush2.msra.mxu0 0.0
        %4122 = vmatprep.subr.mxu0 0.0
        %4123 = vmatpush2.msra.mxu0 0.0
        %4124 = vmatprep.subr.mxu0 0.0
        %4125 = vmatpush2.msra.mxu0 0.0
        %4126 = vmatprep.subr.mxu0 0.0
        %4127 = vmatpush2.msra.mxu0 0.0
        %4128 = vmatprep.subr.mxu0 0.0
        %4129 = vmatpush2.msra.mxu0 0.0
        %4130 = vmatprep.subr.mxu0 0.0
        %4131 = vmatpush2.msra.mxu0 0.0
        %4132 = vmatprep.subr.mxu0 0.0
        %4133 = vmatpush2.msra.mxu0 0.0
        %4134 = vmatprep.subr.mxu0 0.0
        %4135 = vmatpush2.msra.mxu0 0.0
        %4136 = vmatprep.mubr.f32.mxu0 0.0
        %4137 = vmatmul.mubr.f32.gmra.mxu0 %v4064
        %v4138 = vpop.f32.mrf.mxu0
        %v4139 = vadd.f32 %v4055, %v4138
        %v4140 = vpop.f32.mrf.mxu0
        %4141 = vmatprep.mubr.f32.mxu0 0.0
        %4142 = vmatmul.mubr.f32.gmra.mxu0 %v4067
        %v4143 = vpop.f32.mrf.mxu0
        %v4144 = vadd.f32 %v4060, %v4143
        %v4145 = vpop.f32.mrf.mxu0
        %4146 = vdwg.mxu0
        %vm4147 = vcmp.le.s32.totalorder %v3960, 2
        %v4148 = vsel %vm4147, 1, 0
        %vm4149 = vcmp.eq.s32.totalorder %v4148, 1
        %4150 = vrot.lane.b32.xlu0 %v3961, 126
        %v4151 = vpop.permute.xlu0 %4150
        %4152 = vrot.lane.b32.xlu0 %v3962, 126
        %v4153 = vpop.permute.xlu0 %4152
        %v4156 = vsel %vm4149, %v4151, 0.0
        %v4157 = vsel %vm4149, %v4153, 0.0
        %s4158 = scalar_lea.vmem [#allocation9], 32
        %v4159 = vld [vmem:[%s4158] sm:$0xff]
        %v4160 = vld [vmem:[%s4158 + $0x8] sm:$0xf]
        %v4162 = vsel %vm1970, %v4159, 0
        %v4165 = vsel %vm1970, %v4160, 0
        %v4168 = vsel %vm1977, %v4157, 0
        %4170 = vmatprep.subr.mxu0 0.0
        %4171 = vmatpush1.msra.mxu0 0.0
        %4172 = vmatprep.subr.mxu0 0.0
        %4173 = vmatpush1.msra.mxu0 0.0
        %4174 = vmatprep.subr.mxu0 0.0
        %4175 = vmatpush1.msra.mxu0 0.0
        %4176 = vmatprep.subr.mxu0 0.0
        %4177 = vmatpush1.msra.mxu0 0.0
        %4178 = vmatprep.subr.mxu0 0.0
        %4179 = vmatpush1.msra.mxu0 0.0
        %4180 = vmatprep.subr.mxu0 0.0
        %4181 = vmatpush1.msra.mxu0 0.0
        %4182 = vmatprep.subr.mxu0 0.0
        %4183 = vmatpush1.msra.mxu0 0.0
        %4184 = vmatprep.subr.mxu0 0.0
        %4185 = vmatpush1.msra.mxu0 0.0
        %4186 = vmatprep.subr.mxu0 0.0
        %4187 = vmatpush1.msra.mxu0 0.0
        %4188 = vmatprep.subr.mxu0 0.0
        %4189 = vmatpush1.msra.mxu0 0.0
        %4190 = vmatprep.subr.mxu0 0.0
        %4191 = vmatpush1.msra.mxu0 0.0
        %4192 = vmatprep.subr.mxu0 0.0
        %4193 = vmatpush1.msra.mxu0 0.0
        %4194 = vmatprep.subr.mxu0 0.0
        %4195 = vmatpush1.msra.mxu0 0.0
        %4196 = vmatprep.subr.mxu0 0.0
        %4197 = vmatpush1.msra.mxu0 0.0
        %4198 = vmatprep.subr.mxu0 0.0
        %4199 = vmatpush1.msra.mxu0 %v4168
        %4200 = vmatprep.subr.mxu0 0.0
        %4201 = vmatpush1.msra.mxu0 %v4156
        %4202 = vmatprep.subr.mxu0 0.0
        %4203 = vmatpush2.msra.mxu0 0.0
        %4204 = vmatprep.subr.mxu0 0.0
        %4205 = vmatpush2.msra.mxu0 0.0
        %4206 = vmatprep.subr.mxu0 0.0
        %4207 = vmatpush2.msra.mxu0 0.0
        %4208 = vmatprep.subr.mxu0 0.0
        %4209 = vmatpush2.msra.mxu0 0.0
        %4210 = vmatprep.subr.mxu0 0.0
        %4211 = vmatpush2.msra.mxu0 0.0
        %4212 = vmatprep.subr.mxu0 0.0
        %4213 = vmatpush2.msra.mxu0 0.0
        %4214 = vmatprep.subr.mxu0 0.0
        %4215 = vmatpush2.msra.mxu0 0.0
        %4216 = vmatprep.subr.mxu0 0.0
        %4217 = vmatpush2.msra.mxu0 0.0
        %4218 = vmatprep.subr.mxu0 0.0
        %4219 = vmatpush2.msra.mxu0 0.0
        %4220 = vmatprep.subr.mxu0 0.0
        %4221 = vmatpush2.msra.mxu0 0.0
        %4222 = vmatprep.subr.mxu0 0.0
        %4223 = vmatpush2.msra.mxu0 0.0
        %4224 = vmatprep.subr.mxu0 0.0
        %4225 = vmatpush2.msra.mxu0 0.0
        %4226 = vmatprep.subr.mxu0 0.0
        %4227 = vmatpush2.msra.mxu0 0.0
        %4228 = vmatprep.subr.mxu0 0.0
        %4229 = vmatpush2.msra.mxu0 0.0
        %4230 = vmatprep.subr.mxu0 0.0
        %4231 = vmatpush2.msra.mxu0 0.0
        %4232 = vmatprep.subr.mxu0 0.0
        %4233 = vmatpush2.msra.mxu0 0.0
        %4234 = vmatprep.mubr.f32.mxu0 0.0
        %4235 = vmatmul.mubr.f32.gmra.mxu0 %v4162
        %v4236 = vpop.f32.mrf.mxu0
        %v4237 = vadd.f32 0.0, %v4236
        %v4238 = vpop.f32.mrf.mxu0
        %4239 = vmatprep.mubr.f32.mxu0 0.0
        %4240 = vmatmul.mubr.f32.gmra.mxu0 %v4165
        %v4241 = vpop.f32.mrf.mxu0
        %v4242 = vadd.f32 0.0, %v4241
        %v4243 = vpop.f32.mrf.mxu0
        %4244 = vdwg.mxu0
        %v4245 = vadd.f32 %v4139, %v4237
        %v4246 = vadd.f32 %v4144, %v4242
        %4247 = vrot.lane.b32.xlu0 %v3961, 124
        %v4248 = vpop.permute.xlu0 %4247
        %4249 = vrot.lane.b32.xlu0 %v3962, 124
        %v4250 = vpop.permute.xlu0 %4249
        %v4253 = vsel %vm3965, %v4248, 0.0
        %v4254 = vsel %vm3965, %v4250, 0.0
        %s4255 = scalar_lea.vmem [#allocation9], 48
        %v4256 = vld [vmem:[%s4255] sm:$0xff]
        %v4257 = vld [vmem:[%s4255 + $0x8] sm:$0xf]
        %v4259 = vsel %vm1970, %v4256, 0
        %v4262 = vsel %vm1970, %v4257, 0
        %v4265 = vsel %vm1977, %v4254, 0
        %4267 = vmatprep.subr.mxu0 0.0
        %4268 = vmatpush1.msra.mxu0 0.0
        %4269 = vmatprep.subr.mxu0 0.0
        %4270 = vmatpush1.msra.mxu0 0.0
        %4271 = vmatprep.subr.mxu0 0.0
        %4272 = vmatpush1.msra.mxu0 0.0
        %4273 = vmatprep.subr.mxu0 0.0
        %4274 = vmatpush1.msra.mxu0 0.0
        %4275 = vmatprep.subr.mxu0 0.0
        %4276 = vmatpush1.msra.mxu0 0.0
        %4277 = vmatprep.subr.mxu0 0.0
        %4278 = vmatpush1.msra.mxu0 0.0
        %4279 = vmatprep.subr.mxu0 0.0
        %4280 = vmatpush1.msra.mxu0 0.0
        %4281 = vmatprep.subr.mxu0 0.0
        %4282 = vmatpush1.msra.mxu0 0.0
        %4283 = vmatprep.subr.mxu0 0.0
        %4284 = vmatpush1.msra.mxu0 0.0
        %4285 = vmatprep.subr.mxu0 0.0
        %4286 = vmatpush1.msra.mxu0 0.0
        %4287 = vmatprep.subr.mxu0 0.0
        %4288 = vmatpush1.msra.mxu0 0.0
        %4289 = vmatprep.subr.mxu0 0.0
        %4290 = vmatpush1.msra.mxu0 0.0
        %4291 = vmatprep.subr.mxu0 0.0
        %4292 = vmatpush1.msra.mxu0 0.0
        %4293 = vmatprep.subr.mxu0 0.0
        %4294 = vmatpush1.msra.mxu0 0.0
        %4295 = vmatprep.subr.mxu0 0.0
        %4296 = vmatpush1.msra.mxu0 %v4265
        %4297 = vmatprep.subr.mxu0 0.0
        %4298 = vmatpush1.msra.mxu0 %v4253
        %4299 = vmatprep.subr.mxu0 0.0
        %4300 = vmatpush2.msra.mxu0 0.0
        %4301 = vmatprep.subr.mxu0 0.0
        %4302 = vmatpush2.msra.mxu0 0.0
        %4303 = vmatprep.subr.mxu0 0.0
        %4304 = vmatpush2.msra.mxu0 0.0
        %4305 = vmatprep.subr.mxu0 0.0
        %4306 = vmatpush2.msra.mxu0 0.0
        %4307 = vmatprep.subr.mxu0 0.0
        %4308 = vmatpush2.msra.mxu0 0.0
        %4309 = vmatprep.subr.mxu0 0.0
        %4310 = vmatpush2.msra.mxu0 0.0
        %4311 = vmatprep.subr.mxu0 0.0
        %4312 = vmatpush2.msra.mxu0 0.0
        %4313 = vmatprep.subr.mxu0 0.0
        %4314 = vmatpush2.msra.mxu0 0.0
        %4315 = vmatprep.subr.mxu0 0.0
        %4316 = vmatpush2.msra.mxu0 0.0
        %4317 = vmatprep.subr.mxu0 0.0
        %4318 = vmatpush2.msra.mxu0 0.0
        %4319 = vmatprep.subr.mxu0 0.0
        %4320 = vmatpush2.msra.mxu0 0.0
        %4321 = vmatprep.subr.mxu0 0.0
        %4322 = vmatpush2.msra.mxu0 0.0
        %4323 = vmatprep.subr.mxu0 0.0
        %4324 = vmatpush2.msra.mxu0 0.0
        %4325 = vmatprep.subr.mxu0 0.0
        %4326 = vmatpush2.msra.mxu0 0.0
        %4327 = vmatprep.subr.mxu0 0.0
        %4328 = vmatpush2.msra.mxu0 0.0
        %4329 = vmatprep.subr.mxu0 0.0
        %4330 = vmatpush2.msra.mxu0 0.0
        %4331 = vmatprep.mubr.f32.mxu0 0.0
        %4332 = vmatmul.mubr.f32.gmra.mxu0 %v4259
        %v4333 = vpop.f32.mrf.mxu0
        %v4334 = vadd.f32 0.0, %v4333
        %v4335 = vpop.f32.mrf.mxu0
        %4336 = vmatprep.mubr.f32.mxu0 0.0
        %4337 = vmatmul.mubr.f32.gmra.mxu0 %v4262
        %v4338 = vpop.f32.mrf.mxu0
        %v4339 = vadd.f32 0.0, %v4338
        %v4340 = vpop.f32.mrf.mxu0
        %4341 = vdwg.mxu0
        %v4342 = vadd.f32 %v4245, %v4334
        %v4343 = vadd.f32 %v4246, %v4339
        %s4344 = scalar_lea.vmem [#allocation9], 64
        %v4345 = vld [vmem:[%s4344] sm:$0xff]
        %v4346 = vld [vmem:[%s4344 + $0x8] sm:$0xf]
        %4347 = vrot.lane.b32.xlu0 %v3961, 123
        %v4348 = vpop.permute.xlu0 %4347
        %4349 = vrot.lane.b32.xlu0 %v3962, 123
        %v4350 = vpop.permute.xlu0 %4349
        %v4353 = vsel %vm1970, %v4345, 0
        %v4356 = vsel %vm1970, %v4346, 0
        %v4358 = vsel %vm1977, %v4350, 0
        %4360 = vmatprep.subr.mxu0 0.0
        %4361 = vmatpush1.msra.mxu0 0.0
        %4362 = vmatprep.subr.mxu0 0.0
        %4363 = vmatpush1.msra.mxu0 0.0
        %4364 = vmatprep.subr.mxu0 0.0
        %4365 = vmatpush1.msra.mxu0 0.0
        %4366 = vmatprep.subr.mxu0 0.0
        %4367 = vmatpush1.msra.mxu0 0.0
        %4368 = vmatprep.subr.mxu0 0.0
        %4369 = vmatpush1.msra.mxu0 0.0
        %4370 = vmatprep.subr.mxu0 0.0
        %4371 = vmatpush1.msra.mxu0 0.0
        %4372 = vmatprep.subr.mxu0 0.0
        %4373 = vmatpush1.msra.mxu0 0.0
        %4374 = vmatprep.subr.mxu0 0.0
        %4375 = vmatpush1.msra.mxu0 0.0
        %4376 = vmatprep.subr.mxu0 0.0
        %4377 = vmatpush1.msra.mxu0 0.0
        %4378 = vmatprep.subr.mxu0 0.0
        %4379 = vmatpush1.msra.mxu0 0.0
        %4380 = vmatprep.subr.mxu0 0.0
        %4381 = vmatpush1.msra.mxu0 0.0
        %4382 = vmatprep.subr.mxu0 0.0
        %4383 = vmatpush1.msra.mxu0 0.0
        %4384 = vmatprep.subr.mxu0 0.0
        %4385 = vmatpush1.msra.mxu0 0.0
        %4386 = vmatprep.subr.mxu0 0.0
        %4387 = vmatpush1.msra.mxu0 0.0
        %4388 = vmatprep.subr.mxu0 0.0
        %4389 = vmatpush1.msra.mxu0 %v4358
        %4390 = vmatprep.subr.mxu0 0.0
        %4391 = vmatpush1.msra.mxu0 %v4348
        %4392 = vmatprep.subr.mxu0 0.0
        %4393 = vmatpush2.msra.mxu0 0.0
        %4394 = vmatprep.subr.mxu0 0.0
        %4395 = vmatpush2.msra.mxu0 0.0
        %4396 = vmatprep.subr.mxu0 0.0
        %4397 = vmatpush2.msra.mxu0 0.0
        %4398 = vmatprep.subr.mxu0 0.0
        %4399 = vmatpush2.msra.mxu0 0.0
        %4400 = vmatprep.subr.mxu0 0.0
        %4401 = vmatpush2.msra.mxu0 0.0
        %4402 = vmatprep.subr.mxu0 0.0
        %4403 = vmatpush2.msra.mxu0 0.0
        %4404 = vmatprep.subr.mxu0 0.0
        %4405 = vmatpush2.msra.mxu0 0.0
        %4406 = vmatprep.subr.mxu0 0.0
        %4407 = vmatpush2.msra.mxu0 0.0
        %4408 = vmatprep.subr.mxu0 0.0
        %4409 = vmatpush2.msra.mxu0 0.0
        %4410 = vmatprep.subr.mxu0 0.0
        %4411 = vmatpush2.msra.mxu0 0.0
        %4412 = vmatprep.subr.mxu0 0.0
        %4413 = vmatpush2.msra.mxu0 0.0
        %4414 = vmatprep.subr.mxu0 0.0
        %4415 = vmatpush2.msra.mxu0 0.0
        %4416 = vmatprep.subr.mxu0 0.0
        %4417 = vmatpush2.msra.mxu0 0.0
        %4418 = vmatprep.subr.mxu0 0.0
        %4419 = vmatpush2.msra.mxu0 0.0
        %4420 = vmatprep.subr.mxu0 0.0
        %4421 = vmatpush2.msra.mxu0 0.0
        %4422 = vmatprep.subr.mxu0 0.0
        %4423 = vmatpush2.msra.mxu0 0.0
        %4424 = vmatprep.mubr.f32.mxu0 0.0
        %4425 = vmatmul.mubr.f32.gmra.mxu0 %v4353
        %v4426 = vpop.f32.mrf.mxu0
        %v4427 = vadd.f32 0.0, %v4426
        %v4428 = vpop.f32.mrf.mxu0
        %4429 = vmatprep.mubr.f32.mxu0 0.0
        %4430 = vmatmul.mubr.f32.gmra.mxu0 %v4356
        %v4431 = vpop.f32.mrf.mxu0
        %v4432 = vadd.f32 0.0, %v4431
        %v4433 = vpop.f32.mrf.mxu0
        %4434 = vdwg.mxu0
        %v4435 = vadd.f32 %v4342, %v4427
        %v4436 = vadd.f32 %v4343, %v4432
        %4437 = vrot.lane.b32.xlu0 %v3961, 122
        %v4438 = vpop.permute.xlu0 %4437
        %4439 = vrot.lane.b32.xlu0 %v3962, 122
        %v4440 = vpop.permute.xlu0 %4439
        %v4443 = vsel %vm4149, %v4438, 0.0
        %v4444 = vsel %vm4149, %v4440, 0.0
        %s4445 = scalar_lea.vmem [#allocation9], 80
        %v4446 = vld [vmem:[%s4445] sm:$0xff]
        %v4447 = vld [vmem:[%s4445 + $0x8] sm:$0xf]
        %v4449 = vsel %vm1970, %v4446, 0
        %v4452 = vsel %vm1970, %v4447, 0
        %v4455 = vsel %vm1977, %v4444, 0
        %4457 = vmatprep.subr.mxu0 0.0
        %4458 = vmatpush1.msra.mxu0 0.0
        %4459 = vmatprep.subr.mxu0 0.0
        %4460 = vmatpush1.msra.mxu0 0.0
        %4461 = vmatprep.subr.mxu0 0.0
        %4462 = vmatpush1.msra.mxu0 0.0
        %4463 = vmatprep.subr.mxu0 0.0
        %4464 = vmatpush1.msra.mxu0 0.0
        %4465 = vmatprep.subr.mxu0 0.0
        %4466 = vmatpush1.msra.mxu0 0.0
        %4467 = vmatprep.subr.mxu0 0.0
        %4468 = vmatpush1.msra.mxu0 0.0
        %4469 = vmatprep.subr.mxu0 0.0
        %4470 = vmatpush1.msra.mxu0 0.0
        %4471 = vmatprep.subr.mxu0 0.0
        %4472 = vmatpush1.msra.mxu0 0.0
        %4473 = vmatprep.subr.mxu0 0.0
        %4474 = vmatpush1.msra.mxu0 0.0
        %4475 = vmatprep.subr.mxu0 0.0
        %4476 = vmatpush1.msra.mxu0 0.0
        %4477 = vmatprep.subr.mxu0 0.0
        %4478 = vmatpush1.msra.mxu0 0.0
        %4479 = vmatprep.subr.mxu0 0.0
        %4480 = vmatpush1.msra.mxu0 0.0
        %4481 = vmatprep.subr.mxu0 0.0
        %4482 = vmatpush1.msra.mxu0 0.0
        %4483 = vmatprep.subr.mxu0 0.0
        %4484 = vmatpush1.msra.mxu0 0.0
        %4485 = vmatprep.subr.mxu0 0.0
        %4486 = vmatpush1.msra.mxu0 %v4455
        %4487 = vmatprep.subr.mxu0 0.0
        %4488 = vmatpush1.msra.mxu0 %v4443
        %4489 = vmatprep.subr.mxu0 0.0
        %4490 = vmatpush2.msra.mxu0 0.0
        %4491 = vmatprep.subr.mxu0 0.0
        %4492 = vmatpush2.msra.mxu0 0.0
        %4493 = vmatprep.subr.mxu0 0.0
        %4494 = vmatpush2.msra.mxu0 0.0
        %4495 = vmatprep.subr.mxu0 0.0
        %4496 = vmatpush2.msra.mxu0 0.0
        %4497 = vmatprep.subr.mxu0 0.0
        %4498 = vmatpush2.msra.mxu0 0.0
        %4499 = vmatprep.subr.mxu0 0.0
        %4500 = vmatpush2.msra.mxu0 0.0
        %4501 = vmatprep.subr.mxu0 0.0
        %4502 = vmatpush2.msra.mxu0 0.0
        %4503 = vmatprep.subr.mxu0 0.0
        %4504 = vmatpush2.msra.mxu0 0.0
        %4505 = vmatprep.subr.mxu0 0.0
        %4506 = vmatpush2.msra.mxu0 0.0
        %4507 = vmatprep.subr.mxu0 0.0
        %4508 = vmatpush2.msra.mxu0 0.0
        %4509 = vmatprep.subr.mxu0 0.0
        %4510 = vmatpush2.msra.mxu0 0.0
        %4511 = vmatprep.subr.mxu0 0.0
        %4512 = vmatpush2.msra.mxu0 0.0
        %4513 = vmatprep.subr.mxu0 0.0
        %4514 = vmatpush2.msra.mxu0 0.0
        %4515 = vmatprep.subr.mxu0 0.0
        %4516 = vmatpush2.msra.mxu0 0.0
        %4517 = vmatprep.subr.mxu0 0.0
        %4518 = vmatpush2.msra.mxu0 0.0
        %4519 = vmatprep.subr.mxu0 0.0
        %4520 = vmatpush2.msra.mxu0 0.0
        %4521 = vmatprep.mubr.f32.mxu0 0.0
        %4522 = vmatmul.mubr.f32.gmra.mxu0 %v4449
        %v4523 = vpop.f32.mrf.mxu0
        %v4524 = vadd.f32 0.0, %v4523
        %v4525 = vpop.f32.mrf.mxu0
        %4526 = vmatprep.mubr.f32.mxu0 0.0
        %4527 = vmatmul.mubr.f32.gmra.mxu0 %v4452
        %v4528 = vpop.f32.mrf.mxu0
        %v4529 = vadd.f32 0.0, %v4528
        %v4530 = vpop.f32.mrf.mxu0
        %4531 = vdwg.mxu0
        %v4532 = vadd.f32 %v4435, %v4524
        %v4533 = vadd.f32 %v4436, %v4529
        %4534 = vrot.lane.b32.xlu0 %v3961, 120
        %v4535 = vpop.permute.xlu0 %4534
        %4536 = vrot.lane.b32.xlu0 %v3962, 120
        %v4537 = vpop.permute.xlu0 %4536
        %v4540 = vsel %vm3965, %v4535, 0.0
        %v4541 = vsel %vm3965, %v4537, 0.0
        %s4542 = scalar_lea.vmem [#allocation9], 96
        %v4543 = vld [vmem:[%s4542] sm:$0xff]
        %v4544 = vld [vmem:[%s4542 + $0x8] sm:$0xf]
        %v4546 = vsel %vm1970, %v4543, 0
        %v4549 = vsel %vm1970, %v4544, 0
        %v4552 = vsel %vm1977, %v4541, 0
        %4554 = vmatprep.subr.mxu0 0.0
        %4555 = vmatpush1.msra.mxu0 0.0
        %4556 = vmatprep.subr.mxu0 0.0
        %4557 = vmatpush1.msra.mxu0 0.0
        %4558 = vmatprep.subr.mxu0 0.0
        %4559 = vmatpush1.msra.mxu0 0.0
        %4560 = vmatprep.subr.mxu0 0.0
        %4561 = vmatpush1.msra.mxu0 0.0
        %4562 = vmatprep.subr.mxu0 0.0
        %4563 = vmatpush1.msra.mxu0 0.0
        %4564 = vmatprep.subr.mxu0 0.0
        %4565 = vmatpush1.msra.mxu0 0.0
        %4566 = vmatprep.subr.mxu0 0.0
        %4567 = vmatpush1.msra.mxu0 0.0
        %4568 = vmatprep.subr.mxu0 0.0
        %4569 = vmatpush1.msra.mxu0 0.0
        %4570 = vmatprep.subr.mxu0 0.0
        %4571 = vmatpush1.msra.mxu0 0.0
        %4572 = vmatprep.subr.mxu0 0.0
        %4573 = vmatpush1.msra.mxu0 0.0
        %4574 = vmatprep.subr.mxu0 0.0
        %4575 = vmatpush1.msra.mxu0 0.0
        %4576 = vmatprep.subr.mxu0 0.0
        %4577 = vmatpush1.msra.mxu0 0.0
        %4578 = vmatprep.subr.mxu0 0.0
        %4579 = vmatpush1.msra.mxu0 0.0
        %4580 = vmatprep.subr.mxu0 0.0
        %4581 = vmatpush1.msra.mxu0 0.0
        %4582 = vmatprep.subr.mxu0 0.0
        %4583 = vmatpush1.msra.mxu0 %v4552
        %4584 = vmatprep.subr.mxu0 0.0
        %4585 = vmatpush1.msra.mxu0 %v4540
        %4586 = vmatprep.subr.mxu0 0.0
        %4587 = vmatpush2.msra.mxu0 0.0
        %4588 = vmatprep.subr.mxu0 0.0
        %4589 = vmatpush2.msra.mxu0 0.0
        %4590 = vmatprep.subr.mxu0 0.0
        %4591 = vmatpush2.msra.mxu0 0.0
        %4592 = vmatprep.subr.mxu0 0.0
        %4593 = vmatpush2.msra.mxu0 0.0
        %4594 = vmatprep.subr.mxu0 0.0
        %4595 = vmatpush2.msra.mxu0 0.0
        %4596 = vmatprep.subr.mxu0 0.0
        %4597 = vmatpush2.msra.mxu0 0.0
        %4598 = vmatprep.subr.mxu0 0.0
        %4599 = vmatpush2.msra.mxu0 0.0
        %4600 = vmatprep.subr.mxu0 0.0
        %4601 = vmatpush2.msra.mxu0 0.0
        %4602 = vmatprep.subr.mxu0 0.0
        %4603 = vmatpush2.msra.mxu0 0.0
        %4604 = vmatprep.subr.mxu0 0.0
        %4605 = vmatpush2.msra.mxu0 0.0
        %4606 = vmatprep.subr.mxu0 0.0
        %4607 = vmatpush2.msra.mxu0 0.0
        %4608 = vmatprep.subr.mxu0 0.0
        %4609 = vmatpush2.msra.mxu0 0.0
        %4610 = vmatprep.subr.mxu0 0.0
        %4611 = vmatpush2.msra.mxu0 0.0
        %4612 = vmatprep.subr.mxu0 0.0
        %4613 = vmatpush2.msra.mxu0 0.0
        %4614 = vmatprep.subr.mxu0 0.0
        %4615 = vmatpush2.msra.mxu0 0.0
        %4616 = vmatprep.subr.mxu0 0.0
        %4617 = vmatpush2.msra.mxu0 0.0
        %4618 = vmatprep.mubr.f32.mxu0 0.0
        %4619 = vmatmul.mubr.f32.gmra.mxu0 %v4546
        %v4620 = vpop.f32.mrf.mxu0
        %v4621 = vadd.f32 0.0, %v4620
        %v4622 = vpop.f32.mrf.mxu0
        %4623 = vmatprep.mubr.f32.mxu0 0.0
        %4624 = vmatmul.mubr.f32.gmra.mxu0 %v4549
        %v4625 = vpop.f32.mrf.mxu0
        %v4626 = vadd.f32 0.0, %v4625
        %v4627 = vpop.f32.mrf.mxu0
        %4628 = vdwg.mxu0
        %v4629 = vadd.f32 %v4532, %v4621
        %v4630 = vadd.f32 %v4533, %v4626
        %s4631 = scalar_lea.vmem [#allocation9], 112
        %v4632 = vld [vmem:[%s4631] sm:$0xff]
        %v4633 = vld [vmem:[%s4631 + $0x8] sm:$0xf]
        %4634 = vrot.lane.b32.xlu0 %v3961, 119
        %v4635 = vpop.permute.xlu0 %4634
        %4636 = vrot.lane.b32.xlu0 %v3962, 119
        %v4637 = vpop.permute.xlu0 %4636
        %v4640 = vsel %vm1970, %v4632, 0
        %v4643 = vsel %vm1970, %v4633, 0
        %v4645 = vsel %vm1977, %v4637, 0
        %4647 = vmatprep.subr.mxu0 0.0
        %4648 = vmatpush1.msra.mxu0 0.0
        %4649 = vmatprep.subr.mxu0 0.0
        %4650 = vmatpush1.msra.mxu0 0.0
        %4651 = vmatprep.subr.mxu0 0.0
        %4652 = vmatpush1.msra.mxu0 0.0
        %4653 = vmatprep.subr.mxu0 0.0
        %4654 = vmatpush1.msra.mxu0 0.0
        %4655 = vmatprep.subr.mxu0 0.0
        %4656 = vmatpush1.msra.mxu0 0.0
        %4657 = vmatprep.subr.mxu0 0.0
        %4658 = vmatpush1.msra.mxu0 0.0
        %4659 = vmatprep.subr.mxu0 0.0
        %4660 = vmatpush1.msra.mxu0 0.0
        %4661 = vmatprep.subr.mxu0 0.0
        %4662 = vmatpush1.msra.mxu0 0.0
        %4663 = vmatprep.subr.mxu0 0.0
        %4664 = vmatpush1.msra.mxu0 0.0
        %4665 = vmatprep.subr.mxu0 0.0
        %4666 = vmatpush1.msra.mxu0 0.0
        %4667 = vmatprep.subr.mxu0 0.0
        %4668 = vmatpush1.msra.mxu0 0.0
        %4669 = vmatprep.subr.mxu0 0.0
        %4670 = vmatpush1.msra.mxu0 0.0
        %4671 = vmatprep.subr.mxu0 0.0
        %4672 = vmatpush1.msra.mxu0 0.0
        %4673 = vmatprep.subr.mxu0 0.0
        %4674 = vmatpush1.msra.mxu0 0.0
        %4675 = vmatprep.subr.mxu0 0.0
        %4676 = vmatpush1.msra.mxu0 %v4645
        %4677 = vmatprep.subr.mxu0 0.0
        %4678 = vmatpush1.msra.mxu0 %v4635
        %4679 = vmatprep.subr.mxu0 0.0
        %4680 = vmatpush2.msra.mxu0 0.0
        %4681 = vmatprep.subr.mxu0 0.0
        %4682 = vmatpush2.msra.mxu0 0.0
        %4683 = vmatprep.subr.mxu0 0.0
        %4684 = vmatpush2.msra.mxu0 0.0
        %4685 = vmatprep.subr.mxu0 0.0
        %4686 = vmatpush2.msra.mxu0 0.0
        %4687 = vmatprep.subr.mxu0 0.0
        %4688 = vmatpush2.msra.mxu0 0.0
        %4689 = vmatprep.subr.mxu0 0.0
        %4690 = vmatpush2.msra.mxu0 0.0
        %4691 = vmatprep.subr.mxu0 0.0
        %4692 = vmatpush2.msra.mxu0 0.0
        %4693 = vmatprep.subr.mxu0 0.0
        %4694 = vmatpush2.msra.mxu0 0.0
        %4695 = vmatprep.subr.mxu0 0.0
        %4696 = vmatpush2.msra.mxu0 0.0
        %4697 = vmatprep.subr.mxu0 0.0
        %4698 = vmatpush2.msra.mxu0 0.0
        %4699 = vmatprep.subr.mxu0 0.0
        %4700 = vmatpush2.msra.mxu0 0.0
        %4701 = vmatprep.subr.mxu0 0.0
        %4702 = vmatpush2.msra.mxu0 0.0
        %4703 = vmatprep.subr.mxu0 0.0
        %4704 = vmatpush2.msra.mxu0 0.0
        %4705 = vmatprep.subr.mxu0 0.0
        %4706 = vmatpush2.msra.mxu0 0.0
        %4707 = vmatprep.subr.mxu0 0.0
        %4708 = vmatpush2.msra.mxu0 0.0
        %4709 = vmatprep.subr.mxu0 0.0
        %4710 = vmatpush2.msra.mxu0 0.0
        %4711 = vmatprep.mubr.f32.mxu0 0.0
        %4712 = vmatmul.mubr.f32.gmra.mxu0 %v4640
        %v4713 = vpop.f32.mrf.mxu0
        %v4714 = vadd.f32 0.0, %v4713
        %v4715 = vpop.f32.mrf.mxu0
        %4716 = vmatprep.mubr.f32.mxu0 0.0
        %4717 = vmatmul.mubr.f32.gmra.mxu0 %v4643
        %v4718 = vpop.f32.mrf.mxu0
        %v4719 = vadd.f32 0.0, %v4718
        %v4720 = vpop.f32.mrf.mxu0
        %4721 = vdwg.mxu0
        %v4722 = vadd.f32 %v4629, %v4714
        %v4723 = vadd.f32 %v4630, %v4719
        %4724 = vrot.lane.b32.xlu0 %v3961, 118
        %v4725 = vpop.permute.xlu0 %4724
        %4726 = vrot.lane.b32.xlu0 %v3962, 118
        %v4727 = vpop.permute.xlu0 %4726
        %v4730 = vsel %vm4149, %v4725, 0.0
        %v4731 = vsel %vm4149, %v4727, 0.0
        %s4732 = scalar_lea.vmem [#allocation9], 128
        %v4733 = vld [vmem:[%s4732] sm:$0xff]
        %v4734 = vld [vmem:[%s4732 + $0x8] sm:$0xf]
        %v4736 = vsel %vm1970, %v4733, 0
        %v4739 = vsel %vm1970, %v4734, 0
        %v4742 = vsel %vm1977, %v4731, 0
        %4744 = vmatprep.subr.mxu0 0.0
        %4745 = vmatpush1.msra.mxu0 0.0
        %4746 = vmatprep.subr.mxu0 0.0
        %4747 = vmatpush1.msra.mxu0 0.0
        %4748 = vmatprep.subr.mxu0 0.0
        %4749 = vmatpush1.msra.mxu0 0.0
        %4750 = vmatprep.subr.mxu0 0.0
        %4751 = vmatpush1.msra.mxu0 0.0
        %4752 = vmatprep.subr.mxu0 0.0
        %4753 = vmatpush1.msra.mxu0 0.0
        %4754 = vmatprep.subr.mxu0 0.0
        %4755 = vmatpush1.msra.mxu0 0.0
        %4756 = vmatprep.subr.mxu0 0.0
        %4757 = vmatpush1.msra.mxu0 0.0
        %4758 = vmatprep.subr.mxu0 0.0
        %4759 = vmatpush1.msra.mxu0 0.0
        %4760 = vmatprep.subr.mxu0 0.0
        %4761 = vmatpush1.msra.mxu0 0.0
        %4762 = vmatprep.subr.mxu0 0.0
        %4763 = vmatpush1.msra.mxu0 0.0
        %4764 = vmatprep.subr.mxu0 0.0
        %4765 = vmatpush1.msra.mxu0 0.0
        %4766 = vmatprep.subr.mxu0 0.0
        %4767 = vmatpush1.msra.mxu0 0.0
        %4768 = vmatprep.subr.mxu0 0.0
        %4769 = vmatpush1.msra.mxu0 0.0
        %4770 = vmatprep.subr.mxu0 0.0
        %4771 = vmatpush1.msra.mxu0 0.0
        %4772 = vmatprep.subr.mxu0 0.0
        %4773 = vmatpush1.msra.mxu0 %v4742
        %4774 = vmatprep.subr.mxu0 0.0
        %4775 = vmatpush1.msra.mxu0 %v4730
        %4776 = vmatprep.subr.mxu0 0.0
        %4777 = vmatpush2.msra.mxu0 0.0
        %4778 = vmatprep.subr.mxu0 0.0
        %4779 = vmatpush2.msra.mxu0 0.0
        %4780 = vmatprep.subr.mxu0 0.0
        %4781 = vmatpush2.msra.mxu0 0.0
        %4782 = vmatprep.subr.mxu0 0.0
        %4783 = vmatpush2.msra.mxu0 0.0
        %4784 = vmatprep.subr.mxu0 0.0
        %4785 = vmatpush2.msra.mxu0 0.0
        %4786 = vmatprep.subr.mxu0 0.0
        %4787 = vmatpush2.msra.mxu0 0.0
        %4788 = vmatprep.subr.mxu0 0.0
        %4789 = vmatpush2.msra.mxu0 0.0
        %4790 = vmatprep.subr.mxu0 0.0
        %4791 = vmatpush2.msra.mxu0 0.0
        %4792 = vmatprep.subr.mxu0 0.0
        %4793 = vmatpush2.msra.mxu0 0.0
        %4794 = vmatprep.subr.mxu0 0.0
        %4795 = vmatpush2.msra.mxu0 0.0
        %4796 = vmatprep.subr.mxu0 0.0
        %4797 = vmatpush2.msra.mxu0 0.0
        %4798 = vmatprep.subr.mxu0 0.0
        %4799 = vmatpush2.msra.mxu0 0.0
        %4800 = vmatprep.subr.mxu0 0.0
        %4801 = vmatpush2.msra.mxu0 0.0
        %4802 = vmatprep.subr.mxu0 0.0
        %4803 = vmatpush2.msra.mxu0 0.0
        %4804 = vmatprep.subr.mxu0 0.0
        %4805 = vmatpush2.msra.mxu0 0.0
        %4806 = vmatprep.subr.mxu0 0.0
        %4807 = vmatpush2.msra.mxu0 0.0
        %4808 = vmatprep.mubr.f32.mxu0 0.0
        %4809 = vmatmul.mubr.f32.gmra.mxu0 %v4736
        %v4810 = vpop.f32.mrf.mxu0
        %v4811 = vadd.f32 0.0, %v4810
        %v4812 = vpop.f32.mrf.mxu0
        %4813 = vmatprep.mubr.f32.mxu0 0.0
        %4814 = vmatmul.mubr.f32.gmra.mxu0 %v4739
        %v4815 = vpop.f32.mrf.mxu0
        %v4816 = vadd.f32 0.0, %v4815
        %v4817 = vpop.f32.mrf.mxu0
        %4818 = vdwg.mxu0
        %v4819 = vadd.f32 %v4722, %v4811
        %v4820 = vadd.f32 %v4723, %v4816
        %4821 = vst [vmem:[#allocation3] sm:$0xff] 0.0
        %4822 = vst [vmem:[#allocation3 + $0x8] sm:$0xff] 0.0
        %4823 = vst.msk [vmem:[#allocation3 + $0x10] sm:$0xff] %vm483, 0.0
        %4824 = vst [vmem:[#allocation3 + $0x18] sm:$0xf] 0.0
        %4825 = vst [vmem:[#allocation3 + $0x20] sm:$0xf] 0.0
        %4826 = vst.msk [vmem:[#allocation3 + $0x28] sm:$0xf] %vm487, 0.0
        %v4827 = vmax.f32 %v4819, 0.0
        %v4828 = vmax.f32 %v4820, 0.0
        %4831 = vrot.lane.b32.xlu0 %v4827, 5
        %v4832 = vpop.permute.xlu0 %4831
        %4833 = vrot.lane.b32.xlu0 %v4828, 5
        %v4834 = vpop.permute.xlu0 %4833
        %4837 = vst.msk [vmem:[#allocation3] sm:$0xff] %vm3833, %v4832
        %4838 = vst.msk [vmem:[#allocation3 + $0x18] sm:$0xf] %vm3835, %v4834
        %v4839 = vld [vmem:[#allocation3] sm:$0xff]
        %v4840 = vld [vmem:[#allocation3 + $0x18] sm:$0xf]
        %v4841 = vsel %vm3965, %v4839, 0.0
        %v4842 = vsel %vm3965, %v4840, 0.0
        %v4843 = vld [vmem:[#allocation10] sm:$0xff]
        %v4844 = vld [vmem:[#allocation10 + $0x8] sm:$0xf]
        %s4845 = scalar_lea.vmem [#allocation10], 16
        %v4846 = vld [vmem:[%s4845] sm:$0xff]
        %v4847 = vld [vmem:[%s4845 + $0x8] sm:$0xf]
        %4850 = vrot.lane.b32.xlu0 %v4839, 127
        %v4851 = vpop.permute.xlu0 %4850
        %4852 = vrot.lane.b32.xlu0 %v4840, 127
        %v4853 = vpop.permute.xlu0 %4852
        %v4856 = vsel %vm1970, %v4846, 0
        %v4859 = vsel %vm1970, %v4847, 0
        %v4861 = vsel %vm1977, %v4853, 0
        %4863 = vmatprep.subr.mxu0 0.0
        %4864 = vmatpush1.msra.mxu0 0.0
        %4865 = vmatprep.subr.mxu0 0.0
        %4866 = vmatpush1.msra.mxu0 0.0
        %4867 = vmatprep.subr.mxu0 0.0
        %4868 = vmatpush1.msra.mxu0 0.0
        %4869 = vmatprep.subr.mxu0 0.0
        %4870 = vmatpush1.msra.mxu0 0.0
        %4871 = vmatprep.subr.mxu0 0.0
        %4872 = vmatpush1.msra.mxu0 0.0
        %4873 = vmatprep.subr.mxu0 0.0
        %4874 = vmatpush1.msra.mxu0 0.0
        %4875 = vmatprep.subr.mxu0 0.0
        %4876 = vmatpush1.msra.mxu0 0.0
        %4877 = vmatprep.subr.mxu0 0.0
        %4878 = vmatpush1.msra.mxu0 0.0
        %4879 = vmatprep.subr.mxu0 0.0
        %4880 = vmatpush1.msra.mxu0 0.0
        %4881 = vmatprep.subr.mxu0 0.0
        %4882 = vmatpush1.msra.mxu0 0.0
        %4883 = vmatprep.subr.mxu0 0.0
        %4884 = vmatpush1.msra.mxu0 0.0
        %4885 = vmatprep.subr.mxu0 0.0
        %4886 = vmatpush1.msra.mxu0 0.0
        %4887 = vmatprep.subr.mxu0 0.0
        %4888 = vmatpush1.msra.mxu0 0.0
        %4889 = vmatprep.subr.mxu0 0.0
        %4890 = vmatpush1.msra.mxu0 0.0
        %4891 = vmatprep.subr.mxu0 0.0
        %4892 = vmatpush1.msra.mxu0 %v4861
        %4893 = vmatprep.subr.mxu0 0.0
        %4894 = vmatpush1.msra.mxu0 %v4851
        %4895 = vmatprep.subr.mxu0 0.0
        %4896 = vmatpush2.msra.mxu0 0.0
        %4897 = vmatprep.subr.mxu0 0.0
        %4898 = vmatpush2.msra.mxu0 0.0
        %4899 = vmatprep.subr.mxu0 0.0
        %4900 = vmatpush2.msra.mxu0 0.0
        %4901 = vmatprep.subr.mxu0 0.0
        %4902 = vmatpush2.msra.mxu0 0.0
        %4903 = vmatprep.subr.mxu0 0.0
        %4904 = vmatpush2.msra.mxu0 0.0
        %4905 = vmatprep.subr.mxu0 0.0
        %4906 = vmatpush2.msra.mxu0 0.0
        %4907 = vmatprep.subr.mxu0 0.0
        %4908 = vmatpush2.msra.mxu0 0.0
        %4909 = vmatprep.subr.mxu0 0.0
        %4910 = vmatpush2.msra.mxu0 0.0
        %4911 = vmatprep.subr.mxu0 0.0
        %4912 = vmatpush2.msra.mxu0 0.0
        %4913 = vmatprep.subr.mxu0 0.0
        %4914 = vmatpush2.msra.mxu0 0.0
        %4915 = vmatprep.subr.mxu0 0.0
        %4916 = vmatpush2.msra.mxu0 0.0
        %4917 = vmatprep.subr.mxu0 0.0
        %4918 = vmatpush2.msra.mxu0 0.0
        %4919 = vmatprep.subr.mxu0 0.0
        %4920 = vmatpush2.msra.mxu0 0.0
        %4921 = vmatprep.subr.mxu0 0.0
        %4922 = vmatpush2.msra.mxu0 0.0
        %4923 = vmatprep.subr.mxu0 0.0
        %4924 = vmatpush2.msra.mxu0 0.0
        %4925 = vmatprep.subr.mxu0 0.0
        %4926 = vmatpush2.msra.mxu0 0.0
        %4927 = vmatprep.mubr.f32.mxu0 0.0
        %4928 = vmatmul.mubr.f32.gmra.mxu0 %v4856
        %v4929 = vpop.f32.mrf.mxu0
        %v4930 = vadd.f32 0.0, %v4929
        %v4931 = vpop.f32.mrf.mxu0
        %4932 = vmatprep.mubr.f32.mxu0 0.0
        %4933 = vmatmul.mubr.f32.gmra.mxu0 %v4859
        %v4934 = vpop.f32.mrf.mxu0
        %v4935 = vadd.f32 0.0, %v4934
        %v4936 = vpop.f32.mrf.mxu0
        %4937 = vdwg.mxu0
        %v4939 = vsel %vm1970, %v4843, 0
        %v4942 = vsel %vm1970, %v4844, 0
        %v4945 = vsel %vm1977, %v4842, 0
        %4947 = vmatprep.subr.mxu0 0.0
        %4948 = vmatpush1.msra.mxu0 0.0
        %4949 = vmatprep.subr.mxu0 0.0
        %4950 = vmatpush1.msra.mxu0 0.0
        %4951 = vmatprep.subr.mxu0 0.0
        %4952 = vmatpush1.msra.mxu0 0.0
        %4953 = vmatprep.subr.mxu0 0.0
        %4954 = vmatpush1.msra.mxu0 0.0
        %4955 = vmatprep.subr.mxu0 0.0
        %4956 = vmatpush1.msra.mxu0 0.0
        %4957 = vmatprep.subr.mxu0 0.0
        %4958 = vmatpush1.msra.mxu0 0.0
        %4959 = vmatprep.subr.mxu0 0.0
        %4960 = vmatpush1.msra.mxu0 0.0
        %4961 = vmatprep.subr.mxu0 0.0
        %4962 = vmatpush1.msra.mxu0 0.0
        %4963 = vmatprep.subr.mxu0 0.0
        %4964 = vmatpush1.msra.mxu0 0.0
        %4965 = vmatprep.subr.mxu0 0.0
        %4966 = vmatpush1.msra.mxu0 0.0
        %4967 = vmatprep.subr.mxu0 0.0
        %4968 = vmatpush1.msra.mxu0 0.0
        %4969 = vmatprep.subr.mxu0 0.0
        %4970 = vmatpush1.msra.mxu0 0.0
        %4971 = vmatprep.subr.mxu0 0.0
        %4972 = vmatpush1.msra.mxu0 0.0
        %4973 = vmatprep.subr.mxu0 0.0
        %4974 = vmatpush1.msra.mxu0 0.0
        %4975 = vmatprep.subr.mxu0 0.0
        %4976 = vmatpush1.msra.mxu0 %v4945
        %4977 = vmatprep.subr.mxu0 0.0
        %4978 = vmatpush1.msra.mxu0 %v4841
        %4979 = vmatprep.subr.mxu0 0.0
        %4980 = vmatpush2.msra.mxu0 0.0
        %4981 = vmatprep.subr.mxu0 0.0
        %4982 = vmatpush2.msra.mxu0 0.0
        %4983 = vmatprep.subr.mxu0 0.0
        %4984 = vmatpush2.msra.mxu0 0.0
        %4985 = vmatprep.subr.mxu0 0.0
        %4986 = vmatpush2.msra.mxu0 0.0
        %4987 = vmatprep.subr.mxu0 0.0
        %4988 = vmatpush2.msra.mxu0 0.0
        %4989 = vmatprep.subr.mxu0 0.0
        %4990 = vmatpush2.msra.mxu0 0.0
        %4991 = vmatprep.subr.mxu0 0.0
        %4992 = vmatpush2.msra.mxu0 0.0
        %4993 = vmatprep.subr.mxu0 0.0
        %4994 = vmatpush2.msra.mxu0 0.0
        %4995 = vmatprep.subr.mxu0 0.0
        %4996 = vmatpush2.msra.mxu0 0.0
        %4997 = vmatprep.subr.mxu0 0.0
        %4998 = vmatpush2.msra.mxu0 0.0
        %4999 = vmatprep.subr.mxu0 0.0
        %5000 = vmatpush2.msra.mxu0 0.0
        %5001 = vmatprep.subr.mxu0 0.0
        %5002 = vmatpush2.msra.mxu0 0.0
        %5003 = vmatprep.subr.mxu0 0.0
        %5004 = vmatpush2.msra.mxu0 0.0
        %5005 = vmatprep.subr.mxu0 0.0
        %5006 = vmatpush2.msra.mxu0 0.0
        %5007 = vmatprep.subr.mxu0 0.0
        %5008 = vmatpush2.msra.mxu0 0.0
        %5009 = vmatprep.subr.mxu0 0.0
        %5010 = vmatpush2.msra.mxu0 0.0
        %5011 = vmatprep.mubr.f32.mxu0 0.0
        %5012 = vmatmul.mubr.f32.gmra.mxu0 %v4939
        %v5013 = vpop.f32.mrf.mxu0
        %v5014 = vadd.f32 %v4930, %v5013
        %v5015 = vpop.f32.mrf.mxu0
        %5016 = vmatprep.mubr.f32.mxu0 0.0
        %5017 = vmatmul.mubr.f32.gmra.mxu0 %v4942
        %v5018 = vpop.f32.mrf.mxu0
        %v5019 = vadd.f32 %v4935, %v5018
        %v5020 = vpop.f32.mrf.mxu0
        %5021 = vdwg.mxu0
        %5022 = vrot.lane.b32.xlu0 %v4839, 126
        %v5023 = vpop.permute.xlu0 %5022
        %5024 = vrot.lane.b32.xlu0 %v4840, 126
        %v5025 = vpop.permute.xlu0 %5024
        %v5028 = vsel %vm4149, %v5023, 0.0
        %v5029 = vsel %vm4149, %v5025, 0.0
        %s5030 = scalar_lea.vmem [#allocation10], 32
        %v5031 = vld [vmem:[%s5030] sm:$0xff]
        %v5032 = vld [vmem:[%s5030 + $0x8] sm:$0xf]
        %v5034 = vsel %vm1970, %v5031, 0
        %v5037 = vsel %vm1970, %v5032, 0
        %v5040 = vsel %vm1977, %v5029, 0
        %5042 = vmatprep.subr.mxu0 0.0
        %5043 = vmatpush1.msra.mxu0 0.0
        %5044 = vmatprep.subr.mxu0 0.0
        %5045 = vmatpush1.msra.mxu0 0.0
        %5046 = vmatprep.subr.mxu0 0.0
        %5047 = vmatpush1.msra.mxu0 0.0
        %5048 = vmatprep.subr.mxu0 0.0
        %5049 = vmatpush1.msra.mxu0 0.0
        %5050 = vmatprep.subr.mxu0 0.0
        %5051 = vmatpush1.msra.mxu0 0.0
        %5052 = vmatprep.subr.mxu0 0.0
        %5053 = vmatpush1.msra.mxu0 0.0
        %5054 = vmatprep.subr.mxu0 0.0
        %5055 = vmatpush1.msra.mxu0 0.0
        %5056 = vmatprep.subr.mxu0 0.0
        %5057 = vmatpush1.msra.mxu0 0.0
        %5058 = vmatprep.subr.mxu0 0.0
        %5059 = vmatpush1.msra.mxu0 0.0
        %5060 = vmatprep.subr.mxu0 0.0
        %5061 = vmatpush1.msra.mxu0 0.0
        %5062 = vmatprep.subr.mxu0 0.0
        %5063 = vmatpush1.msra.mxu0 0.0
        %5064 = vmatprep.subr.mxu0 0.0
        %5065 = vmatpush1.msra.mxu0 0.0
        %5066 = vmatprep.subr.mxu0 0.0
        %5067 = vmatpush1.msra.mxu0 0.0
        %5068 = vmatprep.subr.mxu0 0.0
        %5069 = vmatpush1.msra.mxu0 0.0
        %5070 = vmatprep.subr.mxu0 0.0
        %5071 = vmatpush1.msra.mxu0 %v5040
        %5072 = vmatprep.subr.mxu0 0.0
        %5073 = vmatpush1.msra.mxu0 %v5028
        %5074 = vmatprep.subr.mxu0 0.0
        %5075 = vmatpush2.msra.mxu0 0.0
        %5076 = vmatprep.subr.mxu0 0.0
        %5077 = vmatpush2.msra.mxu0 0.0
        %5078 = vmatprep.subr.mxu0 0.0
        %5079 = vmatpush2.msra.mxu0 0.0
        %5080 = vmatprep.subr.mxu0 0.0
        %5081 = vmatpush2.msra.mxu0 0.0
        %5082 = vmatprep.subr.mxu0 0.0
        %5083 = vmatpush2.msra.mxu0 0.0
        %5084 = vmatprep.subr.mxu0 0.0
        %5085 = vmatpush2.msra.mxu0 0.0
        %5086 = vmatprep.subr.mxu0 0.0
        %5087 = vmatpush2.msra.mxu0 0.0
        %5088 = vmatprep.subr.mxu0 0.0
        %5089 = vmatpush2.msra.mxu0 0.0
        %5090 = vmatprep.subr.mxu0 0.0
        %5091 = vmatpush2.msra.mxu0 0.0
        %5092 = vmatprep.subr.mxu0 0.0
        %5093 = vmatpush2.msra.mxu0 0.0
        %5094 = vmatprep.subr.mxu0 0.0
        %5095 = vmatpush2.msra.mxu0 0.0
        %5096 = vmatprep.subr.mxu0 0.0
        %5097 = vmatpush2.msra.mxu0 0.0
        %5098 = vmatprep.subr.mxu0 0.0
        %5099 = vmatpush2.msra.mxu0 0.0
        %5100 = vmatprep.subr.mxu0 0.0
        %5101 = vmatpush2.msra.mxu0 0.0
        %5102 = vmatprep.subr.mxu0 0.0
        %5103 = vmatpush2.msra.mxu0 0.0
        %5104 = vmatprep.subr.mxu0 0.0
        %5105 = vmatpush2.msra.mxu0 0.0
        %5106 = vmatprep.mubr.f32.mxu0 0.0
        %5107 = vmatmul.mubr.f32.gmra.mxu0 %v5034
        %v5108 = vpop.f32.mrf.mxu0
        %v5109 = vadd.f32 0.0, %v5108
        %v5110 = vpop.f32.mrf.mxu0
        %5111 = vmatprep.mubr.f32.mxu0 0.0
        %5112 = vmatmul.mubr.f32.gmra.mxu0 %v5037
        %v5113 = vpop.f32.mrf.mxu0
        %v5114 = vadd.f32 0.0, %v5113
        %v5115 = vpop.f32.mrf.mxu0
        %5116 = vdwg.mxu0
        %v5117 = vadd.f32 %v5014, %v5109
        %v5118 = vadd.f32 %v5019, %v5114
        %5119 = vrot.lane.b32.xlu0 %v4839, 124
        %v5120 = vpop.permute.xlu0 %5119
        %5121 = vrot.lane.b32.xlu0 %v4840, 124
        %v5122 = vpop.permute.xlu0 %5121
        %v5125 = vsel %vm3965, %v5120, 0.0
        %v5126 = vsel %vm3965, %v5122, 0.0
        %s5127 = scalar_lea.vmem [#allocation10], 48
        %v5128 = vld [vmem:[%s5127] sm:$0xff]
        %v5129 = vld [vmem:[%s5127 + $0x8] sm:$0xf]
        %v5131 = vsel %vm1970, %v5128, 0
        %v5134 = vsel %vm1970, %v5129, 0
        %v5137 = vsel %vm1977, %v5126, 0
        %5139 = vmatprep.subr.mxu0 0.0
        %5140 = vmatpush1.msra.mxu0 0.0
        %5141 = vmatprep.subr.mxu0 0.0
        %5142 = vmatpush1.msra.mxu0 0.0
        %5143 = vmatprep.subr.mxu0 0.0
        %5144 = vmatpush1.msra.mxu0 0.0
        %5145 = vmatprep.subr.mxu0 0.0
        %5146 = vmatpush1.msra.mxu0 0.0
        %5147 = vmatprep.subr.mxu0 0.0
        %5148 = vmatpush1.msra.mxu0 0.0
        %5149 = vmatprep.subr.mxu0 0.0
        %5150 = vmatpush1.msra.mxu0 0.0
        %5151 = vmatprep.subr.mxu0 0.0
        %5152 = vmatpush1.msra.mxu0 0.0
        %5153 = vmatprep.subr.mxu0 0.0
        %5154 = vmatpush1.msra.mxu0 0.0
        %5155 = vmatprep.subr.mxu0 0.0
        %5156 = vmatpush1.msra.mxu0 0.0
        %5157 = vmatprep.subr.mxu0 0.0
        %5158 = vmatpush1.msra.mxu0 0.0
        %5159 = vmatprep.subr.mxu0 0.0
        %5160 = vmatpush1.msra.mxu0 0.0
        %5161 = vmatprep.subr.mxu0 0.0
        %5162 = vmatpush1.msra.mxu0 0.0
        %5163 = vmatprep.subr.mxu0 0.0
        %5164 = vmatpush1.msra.mxu0 0.0
        %5165 = vmatprep.subr.mxu0 0.0
        %5166 = vmatpush1.msra.mxu0 0.0
        %5167 = vmatprep.subr.mxu0 0.0
        %5168 = vmatpush1.msra.mxu0 %v5137
        %5169 = vmatprep.subr.mxu0 0.0
        %5170 = vmatpush1.msra.mxu0 %v5125
        %5171 = vmatprep.subr.mxu0 0.0
        %5172 = vmatpush2.msra.mxu0 0.0
        %5173 = vmatprep.subr.mxu0 0.0
        %5174 = vmatpush2.msra.mxu0 0.0
        %5175 = vmatprep.subr.mxu0 0.0
        %5176 = vmatpush2.msra.mxu0 0.0
        %5177 = vmatprep.subr.mxu0 0.0
        %5178 = vmatpush2.msra.mxu0 0.0
        %5179 = vmatprep.subr.mxu0 0.0
        %5180 = vmatpush2.msra.mxu0 0.0
        %5181 = vmatprep.subr.mxu0 0.0
        %5182 = vmatpush2.msra.mxu0 0.0
        %5183 = vmatprep.subr.mxu0 0.0
        %5184 = vmatpush2.msra.mxu0 0.0
        %5185 = vmatprep.subr.mxu0 0.0
        %5186 = vmatpush2.msra.mxu0 0.0
        %5187 = vmatprep.subr.mxu0 0.0
        %5188 = vmatpush2.msra.mxu0 0.0
        %5189 = vmatprep.subr.mxu0 0.0
        %5190 = vmatpush2.msra.mxu0 0.0
        %5191 = vmatprep.subr.mxu0 0.0
        %5192 = vmatpush2.msra.mxu0 0.0
        %5193 = vmatprep.subr.mxu0 0.0
        %5194 = vmatpush2.msra.mxu0 0.0
        %5195 = vmatprep.subr.mxu0 0.0
        %5196 = vmatpush2.msra.mxu0 0.0
        %5197 = vmatprep.subr.mxu0 0.0
        %5198 = vmatpush2.msra.mxu0 0.0
        %5199 = vmatprep.subr.mxu0 0.0
        %5200 = vmatpush2.msra.mxu0 0.0
        %5201 = vmatprep.subr.mxu0 0.0
        %5202 = vmatpush2.msra.mxu0 0.0
        %5203 = vmatprep.mubr.f32.mxu0 0.0
        %5204 = vmatmul.mubr.f32.gmra.mxu0 %v5131
        %v5205 = vpop.f32.mrf.mxu0
        %v5206 = vadd.f32 0.0, %v5205
        %v5207 = vpop.f32.mrf.mxu0
        %5208 = vmatprep.mubr.f32.mxu0 0.0
        %5209 = vmatmul.mubr.f32.gmra.mxu0 %v5134
        %v5210 = vpop.f32.mrf.mxu0
        %v5211 = vadd.f32 0.0, %v5210
        %v5212 = vpop.f32.mrf.mxu0
        %5213 = vdwg.mxu0
        %v5214 = vadd.f32 %v5117, %v5206
        %v5215 = vadd.f32 %v5118, %v5211
        %s5216 = scalar_lea.vmem [#allocation10], 64
        %v5217 = vld [vmem:[%s5216] sm:$0xff]
        %v5218 = vld [vmem:[%s5216 + $0x8] sm:$0xf]
        %5219 = vrot.lane.b32.xlu0 %v4839, 123
        %v5220 = vpop.permute.xlu0 %5219
        %5221 = vrot.lane.b32.xlu0 %v4840, 123
        %v5222 = vpop.permute.xlu0 %5221
        %v5225 = vsel %vm1970, %v5217, 0
        %v5228 = vsel %vm1970, %v5218, 0
        %v5230 = vsel %vm1977, %v5222, 0
        %5232 = vmatprep.subr.mxu0 0.0
        %5233 = vmatpush1.msra.mxu0 0.0
        %5234 = vmatprep.subr.mxu0 0.0
        %5235 = vmatpush1.msra.mxu0 0.0
        %5236 = vmatprep.subr.mxu0 0.0
        %5237 = vmatpush1.msra.mxu0 0.0
        %5238 = vmatprep.subr.mxu0 0.0
        %5239 = vmatpush1.msra.mxu0 0.0
        %5240 = vmatprep.subr.mxu0 0.0
        %5241 = vmatpush1.msra.mxu0 0.0
        %5242 = vmatprep.subr.mxu0 0.0
        %5243 = vmatpush1.msra.mxu0 0.0
        %5244 = vmatprep.subr.mxu0 0.0
        %5245 = vmatpush1.msra.mxu0 0.0
        %5246 = vmatprep.subr.mxu0 0.0
        %5247 = vmatpush1.msra.mxu0 0.0
        %5248 = vmatprep.subr.mxu0 0.0
        %5249 = vmatpush1.msra.mxu0 0.0
        %5250 = vmatprep.subr.mxu0 0.0
        %5251 = vmatpush1.msra.mxu0 0.0
        %5252 = vmatprep.subr.mxu0 0.0
        %5253 = vmatpush1.msra.mxu0 0.0
        %5254 = vmatprep.subr.mxu0 0.0
        %5255 = vmatpush1.msra.mxu0 0.0
        %5256 = vmatprep.subr.mxu0 0.0
        %5257 = vmatpush1.msra.mxu0 0.0
        %5258 = vmatprep.subr.mxu0 0.0
        %5259 = vmatpush1.msra.mxu0 0.0
        %5260 = vmatprep.subr.mxu0 0.0
        %5261 = vmatpush1.msra.mxu0 %v5230
        %5262 = vmatprep.subr.mxu0 0.0
        %5263 = vmatpush1.msra.mxu0 %v5220
        %5264 = vmatprep.subr.mxu0 0.0
        %5265 = vmatpush2.msra.mxu0 0.0
        %5266 = vmatprep.subr.mxu0 0.0
        %5267 = vmatpush2.msra.mxu0 0.0
        %5268 = vmatprep.subr.mxu0 0.0
        %5269 = vmatpush2.msra.mxu0 0.0
        %5270 = vmatprep.subr.mxu0 0.0
        %5271 = vmatpush2.msra.mxu0 0.0
        %5272 = vmatprep.subr.mxu0 0.0
        %5273 = vmatpush2.msra.mxu0 0.0
        %5274 = vmatprep.subr.mxu0 0.0
        %5275 = vmatpush2.msra.mxu0 0.0
        %5276 = vmatprep.subr.mxu0 0.0
        %5277 = vmatpush2.msra.mxu0 0.0
        %5278 = vmatprep.subr.mxu0 0.0
        %5279 = vmatpush2.msra.mxu0 0.0
        %5280 = vmatprep.subr.mxu0 0.0
        %5281 = vmatpush2.msra.mxu0 0.0
        %5282 = vmatprep.subr.mxu0 0.0
        %5283 = vmatpush2.msra.mxu0 0.0
        %5284 = vmatprep.subr.mxu0 0.0
        %5285 = vmatpush2.msra.mxu0 0.0
        %5286 = vmatprep.subr.mxu0 0.0
        %5287 = vmatpush2.msra.mxu0 0.0
        %5288 = vmatprep.subr.mxu0 0.0
        %5289 = vmatpush2.msra.mxu0 0.0
        %5290 = vmatprep.subr.mxu0 0.0
        %5291 = vmatpush2.msra.mxu0 0.0
        %5292 = vmatprep.subr.mxu0 0.0
        %5293 = vmatpush2.msra.mxu0 0.0
        %5294 = vmatprep.subr.mxu0 0.0
        %5295 = vmatpush2.msra.mxu0 0.0
        %5296 = vmatprep.mubr.f32.mxu0 0.0
        %5297 = vmatmul.mubr.f32.gmra.mxu0 %v5225
        %v5298 = vpop.f32.mrf.mxu0
        %v5299 = vadd.f32 0.0, %v5298
        %v5300 = vpop.f32.mrf.mxu0
        %5301 = vmatprep.mubr.f32.mxu0 0.0
        %5302 = vmatmul.mubr.f32.gmra.mxu0 %v5228
        %v5303 = vpop.f32.mrf.mxu0
        %v5304 = vadd.f32 0.0, %v5303
        %v5305 = vpop.f32.mrf.mxu0
        %5306 = vdwg.mxu0
        %v5307 = vadd.f32 %v5214, %v5299
        %v5308 = vadd.f32 %v5215, %v5304
        %5309 = vrot.lane.b32.xlu0 %v4839, 122
        %v5310 = vpop.permute.xlu0 %5309
        %5311 = vrot.lane.b32.xlu0 %v4840, 122
        %v5312 = vpop.permute.xlu0 %5311
        %v5315 = vsel %vm4149, %v5310, 0.0
        %v5316 = vsel %vm4149, %v5312, 0.0
        %s5317 = scalar_lea.vmem [#allocation10], 80
        %v5318 = vld [vmem:[%s5317] sm:$0xff]
        %v5319 = vld [vmem:[%s5317 + $0x8] sm:$0xf]
        %v5321 = vsel %vm1970, %v5318, 0
        %v5324 = vsel %vm1970, %v5319, 0
        %v5327 = vsel %vm1977, %v5316, 0
        %5329 = vmatprep.subr.mxu0 0.0
        %5330 = vmatpush1.msra.mxu0 0.0
        %5331 = vmatprep.subr.mxu0 0.0
        %5332 = vmatpush1.msra.mxu0 0.0
        %5333 = vmatprep.subr.mxu0 0.0
        %5334 = vmatpush1.msra.mxu0 0.0
        %5335 = vmatprep.subr.mxu0 0.0
        %5336 = vmatpush1.msra.mxu0 0.0
        %5337 = vmatprep.subr.mxu0 0.0
        %5338 = vmatpush1.msra.mxu0 0.0
        %5339 = vmatprep.subr.mxu0 0.0
        %5340 = vmatpush1.msra.mxu0 0.0
        %5341 = vmatprep.subr.mxu0 0.0
        %5342 = vmatpush1.msra.mxu0 0.0
        %5343 = vmatprep.subr.mxu0 0.0
        %5344 = vmatpush1.msra.mxu0 0.0
        %5345 = vmatprep.subr.mxu0 0.0
        %5346 = vmatpush1.msra.mxu0 0.0
        %5347 = vmatprep.subr.mxu0 0.0
        %5348 = vmatpush1.msra.mxu0 0.0
        %5349 = vmatprep.subr.mxu0 0.0
        %5350 = vmatpush1.msra.mxu0 0.0
        %5351 = vmatprep.subr.mxu0 0.0
        %5352 = vmatpush1.msra.mxu0 0.0
        %5353 = vmatprep.subr.mxu0 0.0
        %5354 = vmatpush1.msra.mxu0 0.0
        %5355 = vmatprep.subr.mxu0 0.0
        %5356 = vmatpush1.msra.mxu0 0.0
        %5357 = vmatprep.subr.mxu0 0.0
        %5358 = vmatpush1.msra.mxu0 %v5327
        %5359 = vmatprep.subr.mxu0 0.0
        %5360 = vmatpush1.msra.mxu0 %v5315
        %5361 = vmatprep.subr.mxu0 0.0
        %5362 = vmatpush2.msra.mxu0 0.0
        %5363 = vmatprep.subr.mxu0 0.0
        %5364 = vmatpush2.msra.mxu0 0.0
        %5365 = vmatprep.subr.mxu0 0.0
        %5366 = vmatpush2.msra.mxu0 0.0
        %5367 = vmatprep.subr.mxu0 0.0
        %5368 = vmatpush2.msra.mxu0 0.0
        %5369 = vmatprep.subr.mxu0 0.0
        %5370 = vmatpush2.msra.mxu0 0.0
        %5371 = vmatprep.subr.mxu0 0.0
        %5372 = vmatpush2.msra.mxu0 0.0
        %5373 = vmatprep.subr.mxu0 0.0
        %5374 = vmatpush2.msra.mxu0 0.0
        %5375 = vmatprep.subr.mxu0 0.0
        %5376 = vmatpush2.msra.mxu0 0.0
        %5377 = vmatprep.subr.mxu0 0.0
        %5378 = vmatpush2.msra.mxu0 0.0
        %5379 = vmatprep.subr.mxu0 0.0
        %5380 = vmatpush2.msra.mxu0 0.0
        %5381 = vmatprep.subr.mxu0 0.0
        %5382 = vmatpush2.msra.mxu0 0.0
        %5383 = vmatprep.subr.mxu0 0.0
        %5384 = vmatpush2.msra.mxu0 0.0
        %5385 = vmatprep.subr.mxu0 0.0
        %5386 = vmatpush2.msra.mxu0 0.0
        %5387 = vmatprep.subr.mxu0 0.0
        %5388 = vmatpush2.msra.mxu0 0.0
        %5389 = vmatprep.subr.mxu0 0.0
        %5390 = vmatpush2.msra.mxu0 0.0
        %5391 = vmatprep.subr.mxu0 0.0
        %5392 = vmatpush2.msra.mxu0 0.0
        %5393 = vmatprep.mubr.f32.mxu0 0.0
        %5394 = vmatmul.mubr.f32.gmra.mxu0 %v5321
        %v5395 = vpop.f32.mrf.mxu0
        %v5396 = vadd.f32 0.0, %v5395
        %v5397 = vpop.f32.mrf.mxu0
        %5398 = vmatprep.mubr.f32.mxu0 0.0
        %5399 = vmatmul.mubr.f32.gmra.mxu0 %v5324
        %v5400 = vpop.f32.mrf.mxu0
        %v5401 = vadd.f32 0.0, %v5400
        %v5402 = vpop.f32.mrf.mxu0
        %5403 = vdwg.mxu0
        %v5404 = vadd.f32 %v5307, %v5396
        %v5405 = vadd.f32 %v5308, %v5401
        %5406 = vrot.lane.b32.xlu0 %v4839, 120
        %v5407 = vpop.permute.xlu0 %5406
        %5408 = vrot.lane.b32.xlu0 %v4840, 120
        %v5409 = vpop.permute.xlu0 %5408
        %v5412 = vsel %vm3965, %v5407, 0.0
        %v5413 = vsel %vm3965, %v5409, 0.0
        %s5414 = scalar_lea.vmem [#allocation10], 96
        %v5415 = vld [vmem:[%s5414] sm:$0xff]
        %v5416 = vld [vmem:[%s5414 + $0x8] sm:$0xf]
        %v5418 = vsel %vm1970, %v5415, 0
        %v5421 = vsel %vm1970, %v5416, 0
        %v5424 = vsel %vm1977, %v5413, 0
        %5426 = vmatprep.subr.mxu0 0.0
        %5427 = vmatpush1.msra.mxu0 0.0
        %5428 = vmatprep.subr.mxu0 0.0
        %5429 = vmatpush1.msra.mxu0 0.0
        %5430 = vmatprep.subr.mxu0 0.0
        %5431 = vmatpush1.msra.mxu0 0.0
        %5432 = vmatprep.subr.mxu0 0.0
        %5433 = vmatpush1.msra.mxu0 0.0
        %5434 = vmatprep.subr.mxu0 0.0
        %5435 = vmatpush1.msra.mxu0 0.0
        %5436 = vmatprep.subr.mxu0 0.0
        %5437 = vmatpush1.msra.mxu0 0.0
        %5438 = vmatprep.subr.mxu0 0.0
        %5439 = vmatpush1.msra.mxu0 0.0
        %5440 = vmatprep.subr.mxu0 0.0
        %5441 = vmatpush1.msra.mxu0 0.0
        %5442 = vmatprep.subr.mxu0 0.0
        %5443 = vmatpush1.msra.mxu0 0.0
        %5444 = vmatprep.subr.mxu0 0.0
        %5445 = vmatpush1.msra.mxu0 0.0
        %5446 = vmatprep.subr.mxu0 0.0
        %5447 = vmatpush1.msra.mxu0 0.0
        %5448 = vmatprep.subr.mxu0 0.0
        %5449 = vmatpush1.msra.mxu0 0.0
        %5450 = vmatprep.subr.mxu0 0.0
        %5451 = vmatpush1.msra.mxu0 0.0
        %5452 = vmatprep.subr.mxu0 0.0
        %5453 = vmatpush1.msra.mxu0 0.0
        %5454 = vmatprep.subr.mxu0 0.0
        %5455 = vmatpush1.msra.mxu0 %v5424
        %5456 = vmatprep.subr.mxu0 0.0
        %5457 = vmatpush1.msra.mxu0 %v5412
        %5458 = vmatprep.subr.mxu0 0.0
        %5459 = vmatpush2.msra.mxu0 0.0
        %5460 = vmatprep.subr.mxu0 0.0
        %5461 = vmatpush2.msra.mxu0 0.0
        %5462 = vmatprep.subr.mxu0 0.0
        %5463 = vmatpush2.msra.mxu0 0.0
        %5464 = vmatprep.subr.mxu0 0.0
        %5465 = vmatpush2.msra.mxu0 0.0
        %5466 = vmatprep.subr.mxu0 0.0
        %5467 = vmatpush2.msra.mxu0 0.0
        %5468 = vmatprep.subr.mxu0 0.0
        %5469 = vmatpush2.msra.mxu0 0.0
        %5470 = vmatprep.subr.mxu0 0.0
        %5471 = vmatpush2.msra.mxu0 0.0
        %5472 = vmatprep.subr.mxu0 0.0
        %5473 = vmatpush2.msra.mxu0 0.0
        %5474 = vmatprep.subr.mxu0 0.0
        %5475 = vmatpush2.msra.mxu0 0.0
        %5476 = vmatprep.subr.mxu0 0.0
        %5477 = vmatpush2.msra.mxu0 0.0
        %5478 = vmatprep.subr.mxu0 0.0
        %5479 = vmatpush2.msra.mxu0 0.0
        %5480 = vmatprep.subr.mxu0 0.0
        %5481 = vmatpush2.msra.mxu0 0.0
        %5482 = vmatprep.subr.mxu0 0.0
        %5483 = vmatpush2.msra.mxu0 0.0
        %5484 = vmatprep.subr.mxu0 0.0
        %5485 = vmatpush2.msra.mxu0 0.0
        %5486 = vmatprep.subr.mxu0 0.0
        %5487 = vmatpush2.msra.mxu0 0.0
        %5488 = vmatprep.subr.mxu0 0.0
        %5489 = vmatpush2.msra.mxu0 0.0
        %5490 = vmatprep.mubr.f32.mxu0 0.0
        %5491 = vmatmul.mubr.f32.gmra.mxu0 %v5418
        %v5492 = vpop.f32.mrf.mxu0
        %v5493 = vadd.f32 0.0, %v5492
        %v5494 = vpop.f32.mrf.mxu0
        %5495 = vmatprep.mubr.f32.mxu0 0.0
        %5496 = vmatmul.mubr.f32.gmra.mxu0 %v5421
        %v5497 = vpop.f32.mrf.mxu0
        %v5498 = vadd.f32 0.0, %v5497
        %v5499 = vpop.f32.mrf.mxu0
        %5500 = vdwg.mxu0
        %v5501 = vadd.f32 %v5404, %v5493
        %v5502 = vadd.f32 %v5405, %v5498
        %s5503 = scalar_lea.vmem [#allocation10], 112
        %v5504 = vld [vmem:[%s5503] sm:$0xff]
        %v5505 = vld [vmem:[%s5503 + $0x8] sm:$0xf]
        %5506 = vrot.lane.b32.xlu0 %v4839, 119
        %v5507 = vpop.permute.xlu0 %5506
        %5508 = vrot.lane.b32.xlu0 %v4840, 119
        %v5509 = vpop.permute.xlu0 %5508
        %v5512 = vsel %vm1970, %v5504, 0
        %v5515 = vsel %vm1970, %v5505, 0
        %v5517 = vsel %vm1977, %v5509, 0
        %5519 = vmatprep.subr.mxu0 0.0
        %5520 = vmatpush1.msra.mxu0 0.0
        %5521 = vmatprep.subr.mxu0 0.0
        %5522 = vmatpush1.msra.mxu0 0.0
        %5523 = vmatprep.subr.mxu0 0.0
        %5524 = vmatpush1.msra.mxu0 0.0
        %5525 = vmatprep.subr.mxu0 0.0
        %5526 = vmatpush1.msra.mxu0 0.0
        %5527 = vmatprep.subr.mxu0 0.0
        %5528 = vmatpush1.msra.mxu0 0.0
        %5529 = vmatprep.subr.mxu0 0.0
        %5530 = vmatpush1.msra.mxu0 0.0
        %5531 = vmatprep.subr.mxu0 0.0
        %5532 = vmatpush1.msra.mxu0 0.0
        %5533 = vmatprep.subr.mxu0 0.0
        %5534 = vmatpush1.msra.mxu0 0.0
        %5535 = vmatprep.subr.mxu0 0.0
        %5536 = vmatpush1.msra.mxu0 0.0
        %5537 = vmatprep.subr.mxu0 0.0
        %5538 = vmatpush1.msra.mxu0 0.0
        %5539 = vmatprep.subr.mxu0 0.0
        %5540 = vmatpush1.msra.mxu0 0.0
        %5541 = vmatprep.subr.mxu0 0.0
        %5542 = vmatpush1.msra.mxu0 0.0
        %5543 = vmatprep.subr.mxu0 0.0
        %5544 = vmatpush1.msra.mxu0 0.0
        %5545 = vmatprep.subr.mxu0 0.0
        %5546 = vmatpush1.msra.mxu0 0.0
        %5547 = vmatprep.subr.mxu0 0.0
        %5548 = vmatpush1.msra.mxu0 %v5517
        %5549 = vmatprep.subr.mxu0 0.0
        %5550 = vmatpush1.msra.mxu0 %v5507
        %5551 = vmatprep.subr.mxu0 0.0
        %5552 = vmatpush2.msra.mxu0 0.0
        %5553 = vmatprep.subr.mxu0 0.0
        %5554 = vmatpush2.msra.mxu0 0.0
        %5555 = vmatprep.subr.mxu0 0.0
        %5556 = vmatpush2.msra.mxu0 0.0
        %5557 = vmatprep.subr.mxu0 0.0
        %5558 = vmatpush2.msra.mxu0 0.0
        %5559 = vmatprep.subr.mxu0 0.0
        %5560 = vmatpush2.msra.mxu0 0.0
        %5561 = vmatprep.subr.mxu0 0.0
        %5562 = vmatpush2.msra.mxu0 0.0
        %5563 = vmatprep.subr.mxu0 0.0
        %5564 = vmatpush2.msra.mxu0 0.0
        %5565 = vmatprep.subr.mxu0 0.0
        %5566 = vmatpush2.msra.mxu0 0.0
        %5567 = vmatprep.subr.mxu0 0.0
        %5568 = vmatpush2.msra.mxu0 0.0
        %5569 = vmatprep.subr.mxu0 0.0
        %5570 = vmatpush2.msra.mxu0 0.0
        %5571 = vmatprep.subr.mxu0 0.0
        %5572 = vmatpush2.msra.mxu0 0.0
        %5573 = vmatprep.subr.mxu0 0.0
        %5574 = vmatpush2.msra.mxu0 0.0
        %5575 = vmatprep.subr.mxu0 0.0
        %5576 = vmatpush2.msra.mxu0 0.0
        %5577 = vmatprep.subr.mxu0 0.0
        %5578 = vmatpush2.msra.mxu0 0.0
        %5579 = vmatprep.subr.mxu0 0.0
        %5580 = vmatpush2.msra.mxu0 0.0
        %5581 = vmatprep.subr.mxu0 0.0
        %5582 = vmatpush2.msra.mxu0 0.0
        %5583 = vmatprep.mubr.f32.mxu0 0.0
        %5584 = vmatmul.mubr.f32.gmra.mxu0 %v5512
        %v5585 = vpop.f32.mrf.mxu0
        %v5586 = vadd.f32 0.0, %v5585
        %v5587 = vpop.f32.mrf.mxu0
        %5588 = vmatprep.mubr.f32.mxu0 0.0
        %5589 = vmatmul.mubr.f32.gmra.mxu0 %v5515
        %v5590 = vpop.f32.mrf.mxu0
        %v5591 = vadd.f32 0.0, %v5590
        %v5592 = vpop.f32.mrf.mxu0
        %5593 = vdwg.mxu0
        %v5594 = vadd.f32 %v5501, %v5586
        %v5595 = vadd.f32 %v5502, %v5591
        %5596 = vrot.lane.b32.xlu0 %v4839, 118
        %v5597 = vpop.permute.xlu0 %5596
        %5598 = vrot.lane.b32.xlu0 %v4840, 118
        %v5599 = vpop.permute.xlu0 %5598
        %v5602 = vsel %vm4149, %v5597, 0.0
        %v5603 = vsel %vm4149, %v5599, 0.0
        %s5604 = scalar_lea.vmem [#allocation10], 128
        %v5605 = vld [vmem:[%s5604] sm:$0xff]
        %v5606 = vld [vmem:[%s5604 + $0x8] sm:$0xf]
        %v5608 = vsel %vm1970, %v5605, 0
        %v5611 = vsel %vm1970, %v5606, 0
        %v5614 = vsel %vm1977, %v5603, 0
        %5616 = vmatprep.subr.mxu0 0.0
        %5617 = vmatpush1.msra.mxu0 0.0
        %5618 = vmatprep.subr.mxu0 0.0
        %5619 = vmatpush1.msra.mxu0 0.0
        %5620 = vmatprep.subr.mxu0 0.0
        %5621 = vmatpush1.msra.mxu0 0.0
        %5622 = vmatprep.subr.mxu0 0.0
        %5623 = vmatpush1.msra.mxu0 0.0
        %5624 = vmatprep.subr.mxu0 0.0
        %5625 = vmatpush1.msra.mxu0 0.0
        %5626 = vmatprep.subr.mxu0 0.0
        %5627 = vmatpush1.msra.mxu0 0.0
        %5628 = vmatprep.subr.mxu0 0.0
        %5629 = vmatpush1.msra.mxu0 0.0
        %5630 = vmatprep.subr.mxu0 0.0
        %5631 = vmatpush1.msra.mxu0 0.0
        %5632 = vmatprep.subr.mxu0 0.0
        %5633 = vmatpush1.msra.mxu0 0.0
        %5634 = vmatprep.subr.mxu0 0.0
        %5635 = vmatpush1.msra.mxu0 0.0
        %5636 = vmatprep.subr.mxu0 0.0
        %5637 = vmatpush1.msra.mxu0 0.0
        %5638 = vmatprep.subr.mxu0 0.0
        %5639 = vmatpush1.msra.mxu0 0.0
        %5640 = vmatprep.subr.mxu0 0.0
        %5641 = vmatpush1.msra.mxu0 0.0
        %5642 = vmatprep.subr.mxu0 0.0
        %5643 = vmatpush1.msra.mxu0 0.0
        %5644 = vmatprep.subr.mxu0 0.0
        %5645 = vmatpush1.msra.mxu0 %v5614
        %5646 = vmatprep.subr.mxu0 0.0
        %5647 = vmatpush1.msra.mxu0 %v5602
        %5648 = vmatprep.subr.mxu0 0.0
        %5649 = vmatpush2.msra.mxu0 0.0
        %5650 = vmatprep.subr.mxu0 0.0
        %5651 = vmatpush2.msra.mxu0 0.0
        %5652 = vmatprep.subr.mxu0 0.0
        %5653 = vmatpush2.msra.mxu0 0.0
        %5654 = vmatprep.subr.mxu0 0.0
        %5655 = vmatpush2.msra.mxu0 0.0
        %5656 = vmatprep.subr.mxu0 0.0
        %5657 = vmatpush2.msra.mxu0 0.0
        %5658 = vmatprep.subr.mxu0 0.0
        %5659 = vmatpush2.msra.mxu0 0.0
        %5660 = vmatprep.subr.mxu0 0.0
        %5661 = vmatpush2.msra.mxu0 0.0
        %5662 = vmatprep.subr.mxu0 0.0
        %5663 = vmatpush2.msra.mxu0 0.0
        %5664 = vmatprep.subr.mxu0 0.0
        %5665 = vmatpush2.msra.mxu0 0.0
        %5666 = vmatprep.subr.mxu0 0.0
        %5667 = vmatpush2.msra.mxu0 0.0
        %5668 = vmatprep.subr.mxu0 0.0
        %5669 = vmatpush2.msra.mxu0 0.0
        %5670 = vmatprep.subr.mxu0 0.0
        %5671 = vmatpush2.msra.mxu0 0.0
        %5672 = vmatprep.subr.mxu0 0.0
        %5673 = vmatpush2.msra.mxu0 0.0
        %5674 = vmatprep.subr.mxu0 0.0
        %5675 = vmatpush2.msra.mxu0 0.0
        %5676 = vmatprep.subr.mxu0 0.0
        %5677 = vmatpush2.msra.mxu0 0.0
        %5678 = vmatprep.subr.mxu0 0.0
        %5679 = vmatpush2.msra.mxu0 0.0
        %5680 = vmatprep.mubr.f32.mxu0 0.0
        %5681 = vmatmul.mubr.f32.gmra.mxu0 %v5608
        %v5682 = vpop.f32.mrf.mxu0
        %v5683 = vadd.f32 0.0, %v5682
        %v5684 = vpop.f32.mrf.mxu0
        %5685 = vmatprep.mubr.f32.mxu0 0.0
        %5686 = vmatmul.mubr.f32.gmra.mxu0 %v5611
        %v5687 = vpop.f32.mrf.mxu0
        %v5688 = vadd.f32 0.0, %v5687
        %v5689 = vpop.f32.mrf.mxu0
        %5690 = vdwg.mxu0
        %v5691 = vadd.f32 %v5594, %v5683
        %v5692 = vadd.f32 %v5595, %v5688
        %5693 = vst [vmem:[#allocation2] sm:$0xff] 0.0
        %5694 = vst [vmem:[#allocation2 + $0x8] sm:$0xff] 0.0
        %5695 = vst.msk [vmem:[#allocation2 + $0x10] sm:$0xff] %vm483, 0.0
        %5696 = vst [vmem:[#allocation2 + $0x18] sm:$0xf] 0.0
        %5697 = vst [vmem:[#allocation2 + $0x20] sm:$0xf] 0.0
        %5698 = vst.msk [vmem:[#allocation2 + $0x28] sm:$0xf] %vm487, 0.0
        %v5699 = vmax.f32 %v5691, 0.0
        %v5700 = vmax.f32 %v5692, 0.0
        %5703 = vrot.lane.b32.xlu0 %v5699, 5
        %v5704 = vpop.permute.xlu0 %5703
        %5705 = vrot.lane.b32.xlu0 %v5700, 5
        %v5706 = vpop.permute.xlu0 %5705
        %5709 = vst.msk [vmem:[#allocation2] sm:$0xff] %vm3833, %v5704
        %5710 = vst.msk [vmem:[#allocation2 + $0x18] sm:$0xf] %vm3835, %v5706
        %v5711 = vld [vmem:[#allocation2] sm:$0xff]
        %v5712 = vld [vmem:[#allocation2 + $0x18] sm:$0xf]
        %v5713 = vsel %vm3965, %v5711, 0.0
        %v5714 = vsel %vm3965, %v5712, 0.0
        %v5715 = vld [vmem:[#allocation12] sm:$0xff]
        %v5716 = vld [vmem:[#allocation12 + $0x8] sm:$0x3]
        %s5717 = scalar_lea.vmem [#allocation12], 16
        %v5718 = vld [vmem:[%s5717] sm:$0xff]
        %v5719 = vld [vmem:[%s5717 + $0x8] sm:$0x3]
        %5722 = vrot.lane.b32.xlu0 %v5711, 127
        %v5723 = vpop.permute.xlu0 %5722
        %5724 = vrot.lane.b32.xlu0 %v5712, 127
        %v5725 = vpop.permute.xlu0 %5724
        %v5728 = vsel %vm1970, %v5718, 0
        %v5731 = vsel %vm1970, %v5719, 0
        %v5733 = vsel %vm1977, %v5725, 0
        %5735 = vmatprep.subr.mxu0 0.0
        %5736 = vmatpush1.msra.mxu0 0.0
        %5737 = vmatprep.subr.mxu0 0.0
        %5738 = vmatpush1.msra.mxu0 0.0
        %5739 = vmatprep.subr.mxu0 0.0
        %5740 = vmatpush1.msra.mxu0 0.0
        %5741 = vmatprep.subr.mxu0 0.0
        %5742 = vmatpush1.msra.mxu0 0.0
        %5743 = vmatprep.subr.mxu0 0.0
        %5744 = vmatpush1.msra.mxu0 0.0
        %5745 = vmatprep.subr.mxu0 0.0
        %5746 = vmatpush1.msra.mxu0 0.0
        %5747 = vmatprep.subr.mxu0 0.0
        %5748 = vmatpush1.msra.mxu0 0.0
        %5749 = vmatprep.subr.mxu0 0.0
        %5750 = vmatpush1.msra.mxu0 0.0
        %5751 = vmatprep.subr.mxu0 0.0
        %5752 = vmatpush1.msra.mxu0 0.0
        %5753 = vmatprep.subr.mxu0 0.0
        %5754 = vmatpush1.msra.mxu0 0.0
        %5755 = vmatprep.subr.mxu0 0.0
        %5756 = vmatpush1.msra.mxu0 0.0
        %5757 = vmatprep.subr.mxu0 0.0
        %5758 = vmatpush1.msra.mxu0 0.0
        %5759 = vmatprep.subr.mxu0 0.0
        %5760 = vmatpush1.msra.mxu0 0.0
        %5761 = vmatprep.subr.mxu0 0.0
        %5762 = vmatpush1.msra.mxu0 0.0
        %5763 = vmatprep.subr.mxu0 0.0
        %5764 = vmatpush1.msra.mxu0 %v5733
        %5765 = vmatprep.subr.mxu0 0.0
        %5766 = vmatpush1.msra.mxu0 %v5723
        %5767 = vmatprep.subr.mxu0 0.0
        %5768 = vmatpush2.msra.mxu0 0.0
        %5769 = vmatprep.subr.mxu0 0.0
        %5770 = vmatpush2.msra.mxu0 0.0
        %5771 = vmatprep.subr.mxu0 0.0
        %5772 = vmatpush2.msra.mxu0 0.0
        %5773 = vmatprep.subr.mxu0 0.0
        %5774 = vmatpush2.msra.mxu0 0.0
        %5775 = vmatprep.subr.mxu0 0.0
        %5776 = vmatpush2.msra.mxu0 0.0
        %5777 = vmatprep.subr.mxu0 0.0
        %5778 = vmatpush2.msra.mxu0 0.0
        %5779 = vmatprep.subr.mxu0 0.0
        %5780 = vmatpush2.msra.mxu0 0.0
        %5781 = vmatprep.subr.mxu0 0.0
        %5782 = vmatpush2.msra.mxu0 0.0
        %5783 = vmatprep.subr.mxu0 0.0
        %5784 = vmatpush2.msra.mxu0 0.0
        %5785 = vmatprep.subr.mxu0 0.0
        %5786 = vmatpush2.msra.mxu0 0.0
        %5787 = vmatprep.subr.mxu0 0.0
        %5788 = vmatpush2.msra.mxu0 0.0
        %5789 = vmatprep.subr.mxu0 0.0
        %5790 = vmatpush2.msra.mxu0 0.0
        %5791 = vmatprep.subr.mxu0 0.0
        %5792 = vmatpush2.msra.mxu0 0.0
        %5793 = vmatprep.subr.mxu0 0.0
        %5794 = vmatpush2.msra.mxu0 0.0
        %5795 = vmatprep.subr.mxu0 0.0
        %5796 = vmatpush2.msra.mxu0 0.0
        %5797 = vmatprep.subr.mxu0 0.0
        %5798 = vmatpush2.msra.mxu0 0.0
        %5799 = vmatprep.mubr.f32.mxu0 0.0
        %5800 = vmatmul.mubr.f32.gmra.mxu0 %v5728
        %v5801 = vpop.f32.mrf.mxu0
        %v5802 = vadd.f32 0.0, %v5801
        %v5803 = vpop.f32.mrf.mxu0
        %5804 = vmatprep.mubr.f32.mxu0 0.0
        %5805 = vmatmul.mubr.f32.gmra.mxu0 %v5731
        %v5806 = vpop.f32.mrf.mxu0
        %v5807 = vadd.f32 0.0, %v5806
        %v5808 = vpop.f32.mrf.mxu0
        %5809 = vdwg.mxu0
        %v5811 = vsel %vm1970, %v5715, 0
        %v5814 = vsel %vm1970, %v5716, 0
        %v5817 = vsel %vm1977, %v5714, 0
        %5819 = vmatprep.subr.mxu0 0.0
        %5820 = vmatpush1.msra.mxu0 0.0
        %5821 = vmatprep.subr.mxu0 0.0
        %5822 = vmatpush1.msra.mxu0 0.0
        %5823 = vmatprep.subr.mxu0 0.0
        %5824 = vmatpush1.msra.mxu0 0.0
        %5825 = vmatprep.subr.mxu0 0.0
        %5826 = vmatpush1.msra.mxu0 0.0
        %5827 = vmatprep.subr.mxu0 0.0
        %5828 = vmatpush1.msra.mxu0 0.0
        %5829 = vmatprep.subr.mxu0 0.0
        %5830 = vmatpush1.msra.mxu0 0.0
        %5831 = vmatprep.subr.mxu0 0.0
        %5832 = vmatpush1.msra.mxu0 0.0
        %5833 = vmatprep.subr.mxu0 0.0
        %5834 = vmatpush1.msra.mxu0 0.0
        %5835 = vmatprep.subr.mxu0 0.0
        %5836 = vmatpush1.msra.mxu0 0.0
        %5837 = vmatprep.subr.mxu0 0.0
        %5838 = vmatpush1.msra.mxu0 0.0
        %5839 = vmatprep.subr.mxu0 0.0
        %5840 = vmatpush1.msra.mxu0 0.0
        %5841 = vmatprep.subr.mxu0 0.0
        %5842 = vmatpush1.msra.mxu0 0.0
        %5843 = vmatprep.subr.mxu0 0.0
        %5844 = vmatpush1.msra.mxu0 0.0
        %5845 = vmatprep.subr.mxu0 0.0
        %5846 = vmatpush1.msra.mxu0 0.0
        %5847 = vmatprep.subr.mxu0 0.0
        %5848 = vmatpush1.msra.mxu0 %v5817
        %5849 = vmatprep.subr.mxu0 0.0
        %5850 = vmatpush1.msra.mxu0 %v5713
        %5851 = vmatprep.subr.mxu0 0.0
        %5852 = vmatpush2.msra.mxu0 0.0
        %5853 = vmatprep.subr.mxu0 0.0
        %5854 = vmatpush2.msra.mxu0 0.0
        %5855 = vmatprep.subr.mxu0 0.0
        %5856 = vmatpush2.msra.mxu0 0.0
        %5857 = vmatprep.subr.mxu0 0.0
        %5858 = vmatpush2.msra.mxu0 0.0
        %5859 = vmatprep.subr.mxu0 0.0
        %5860 = vmatpush2.msra.mxu0 0.0
        %5861 = vmatprep.subr.mxu0 0.0
        %5862 = vmatpush2.msra.mxu0 0.0
        %5863 = vmatprep.subr.mxu0 0.0
        %5864 = vmatpush2.msra.mxu0 0.0
        %5865 = vmatprep.subr.mxu0 0.0
        %5866 = vmatpush2.msra.mxu0 0.0
        %5867 = vmatprep.subr.mxu0 0.0
        %5868 = vmatpush2.msra.mxu0 0.0
        %5869 = vmatprep.subr.mxu0 0.0
        %5870 = vmatpush2.msra.mxu0 0.0
        %5871 = vmatprep.subr.mxu0 0.0
        %5872 = vmatpush2.msra.mxu0 0.0
        %5873 = vmatprep.subr.mxu0 0.0
        %5874 = vmatpush2.msra.mxu0 0.0
        %5875 = vmatprep.subr.mxu0 0.0
        %5876 = vmatpush2.msra.mxu0 0.0
        %5877 = vmatprep.subr.mxu0 0.0
        %5878 = vmatpush2.msra.mxu0 0.0
        %5879 = vmatprep.subr.mxu0 0.0
        %5880 = vmatpush2.msra.mxu0 0.0
        %5881 = vmatprep.subr.mxu0 0.0
        %5882 = vmatpush2.msra.mxu0 0.0
        %5883 = vmatprep.mubr.f32.mxu0 0.0
        %5884 = vmatmul.mubr.f32.gmra.mxu0 %v5811
        %v5885 = vpop.f32.mrf.mxu0
        %v5886 = vadd.f32 %v5802, %v5885
        %v5887 = vpop.f32.mrf.mxu0
        %5888 = vmatprep.mubr.f32.mxu0 0.0
        %5889 = vmatmul.mubr.f32.gmra.mxu0 %v5814
        %v5890 = vpop.f32.mrf.mxu0
        %v5891 = vadd.f32 %v5807, %v5890
        %v5892 = vpop.f32.mrf.mxu0
        %5893 = vdwg.mxu0
        %5894 = vrot.lane.b32.xlu0 %v5711, 126
        %v5895 = vpop.permute.xlu0 %5894
        %5896 = vrot.lane.b32.xlu0 %v5712, 126
        %v5897 = vpop.permute.xlu0 %5896
        %v5900 = vsel %vm4149, %v5895, 0.0
        %v5901 = vsel %vm4149, %v5897, 0.0
        %s5902 = scalar_lea.vmem [#allocation12], 32
        %v5903 = vld [vmem:[%s5902] sm:$0xff]
        %v5904 = vld [vmem:[%s5902 + $0x8] sm:$0x3]
        %v5906 = vsel %vm1970, %v5903, 0
        %v5909 = vsel %vm1970, %v5904, 0
        %v5912 = vsel %vm1977, %v5901, 0
        %5914 = vmatprep.subr.mxu0 0.0
        %5915 = vmatpush1.msra.mxu0 0.0
        %5916 = vmatprep.subr.mxu0 0.0
        %5917 = vmatpush1.msra.mxu0 0.0
        %5918 = vmatprep.subr.mxu0 0.0
        %5919 = vmatpush1.msra.mxu0 0.0
        %5920 = vmatprep.subr.mxu0 0.0
        %5921 = vmatpush1.msra.mxu0 0.0
        %5922 = vmatprep.subr.mxu0 0.0
        %5923 = vmatpush1.msra.mxu0 0.0
        %5924 = vmatprep.subr.mxu0 0.0
        %5925 = vmatpush1.msra.mxu0 0.0
        %5926 = vmatprep.subr.mxu0 0.0
        %5927 = vmatpush1.msra.mxu0 0.0
        %5928 = vmatprep.subr.mxu0 0.0
        %5929 = vmatpush1.msra.mxu0 0.0
        %5930 = vmatprep.subr.mxu0 0.0
        %5931 = vmatpush1.msra.mxu0 0.0
        %5932 = vmatprep.subr.mxu0 0.0
        %5933 = vmatpush1.msra.mxu0 0.0
        %5934 = vmatprep.subr.mxu0 0.0
        %5935 = vmatpush1.msra.mxu0 0.0
        %5936 = vmatprep.subr.mxu0 0.0
        %5937 = vmatpush1.msra.mxu0 0.0
        %5938 = vmatprep.subr.mxu0 0.0
        %5939 = vmatpush1.msra.mxu0 0.0
        %5940 = vmatprep.subr.mxu0 0.0
        %5941 = vmatpush1.msra.mxu0 0.0
        %5942 = vmatprep.subr.mxu0 0.0
        %5943 = vmatpush1.msra.mxu0 %v5912
        %5944 = vmatprep.subr.mxu0 0.0
        %5945 = vmatpush1.msra.mxu0 %v5900
        %5946 = vmatprep.subr.mxu0 0.0
        %5947 = vmatpush2.msra.mxu0 0.0
        %5948 = vmatprep.subr.mxu0 0.0
        %5949 = vmatpush2.msra.mxu0 0.0
        %5950 = vmatprep.subr.mxu0 0.0
        %5951 = vmatpush2.msra.mxu0 0.0
        %5952 = vmatprep.subr.mxu0 0.0
        %5953 = vmatpush2.msra.mxu0 0.0
        %5954 = vmatprep.subr.mxu0 0.0
        %5955 = vmatpush2.msra.mxu0 0.0
        %5956 = vmatprep.subr.mxu0 0.0
        %5957 = vmatpush2.msra.mxu0 0.0
        %5958 = vmatprep.subr.mxu0 0.0
        %5959 = vmatpush2.msra.mxu0 0.0
        %5960 = vmatprep.subr.mxu0 0.0
        %5961 = vmatpush2.msra.mxu0 0.0
        %5962 = vmatprep.subr.mxu0 0.0
        %5963 = vmatpush2.msra.mxu0 0.0
        %5964 = vmatprep.subr.mxu0 0.0
        %5965 = vmatpush2.msra.mxu0 0.0
        %5966 = vmatprep.subr.mxu0 0.0
        %5967 = vmatpush2.msra.mxu0 0.0
        %5968 = vmatprep.subr.mxu0 0.0
        %5969 = vmatpush2.msra.mxu0 0.0
        %5970 = vmatprep.subr.mxu0 0.0
        %5971 = vmatpush2.msra.mxu0 0.0
        %5972 = vmatprep.subr.mxu0 0.0
        %5973 = vmatpush2.msra.mxu0 0.0
        %5974 = vmatprep.subr.mxu0 0.0
        %5975 = vmatpush2.msra.mxu0 0.0
        %5976 = vmatprep.subr.mxu0 0.0
        %5977 = vmatpush2.msra.mxu0 0.0
        %5978 = vmatprep.mubr.f32.mxu0 0.0
        %5979 = vmatmul.mubr.f32.gmra.mxu0 %v5906
        %v5980 = vpop.f32.mrf.mxu0
        %v5981 = vadd.f32 0.0, %v5980
        %v5982 = vpop.f32.mrf.mxu0
        %5983 = vmatprep.mubr.f32.mxu0 0.0
        %5984 = vmatmul.mubr.f32.gmra.mxu0 %v5909
        %v5985 = vpop.f32.mrf.mxu0
        %v5986 = vadd.f32 0.0, %v5985
        %v5987 = vpop.f32.mrf.mxu0
        %5988 = vdwg.mxu0
        %v5989 = vadd.f32 %v5886, %v5981
        %v5990 = vadd.f32 %v5891, %v5986
        %5991 = vrot.lane.b32.xlu0 %v5711, 124
        %v5992 = vpop.permute.xlu0 %5991
        %5993 = vrot.lane.b32.xlu0 %v5712, 124
        %v5994 = vpop.permute.xlu0 %5993
        %v5997 = vsel %vm3965, %v5992, 0.0
        %v5998 = vsel %vm3965, %v5994, 0.0
        %s5999 = scalar_lea.vmem [#allocation12], 48
        %v6000 = vld [vmem:[%s5999] sm:$0xff]
        %v6001 = vld [vmem:[%s5999 + $0x8] sm:$0x3]
        %v6003 = vsel %vm1970, %v6000, 0
        %v6006 = vsel %vm1970, %v6001, 0
        %v6009 = vsel %vm1977, %v5998, 0
        %6011 = vmatprep.subr.mxu0 0.0
        %6012 = vmatpush1.msra.mxu0 0.0
        %6013 = vmatprep.subr.mxu0 0.0
        %6014 = vmatpush1.msra.mxu0 0.0
        %6015 = vmatprep.subr.mxu0 0.0
        %6016 = vmatpush1.msra.mxu0 0.0
        %6017 = vmatprep.subr.mxu0 0.0
        %6018 = vmatpush1.msra.mxu0 0.0
        %6019 = vmatprep.subr.mxu0 0.0
        %6020 = vmatpush1.msra.mxu0 0.0
        %6021 = vmatprep.subr.mxu0 0.0
        %6022 = vmatpush1.msra.mxu0 0.0
        %6023 = vmatprep.subr.mxu0 0.0
        %6024 = vmatpush1.msra.mxu0 0.0
        %6025 = vmatprep.subr.mxu0 0.0
        %6026 = vmatpush1.msra.mxu0 0.0
        %6027 = vmatprep.subr.mxu0 0.0
        %6028 = vmatpush1.msra.mxu0 0.0
        %6029 = vmatprep.subr.mxu0 0.0
        %6030 = vmatpush1.msra.mxu0 0.0
        %6031 = vmatprep.subr.mxu0 0.0
        %6032 = vmatpush1.msra.mxu0 0.0
        %6033 = vmatprep.subr.mxu0 0.0
        %6034 = vmatpush1.msra.mxu0 0.0
        %6035 = vmatprep.subr.mxu0 0.0
        %6036 = vmatpush1.msra.mxu0 0.0
        %6037 = vmatprep.subr.mxu0 0.0
        %6038 = vmatpush1.msra.mxu0 0.0
        %6039 = vmatprep.subr.mxu0 0.0
        %6040 = vmatpush1.msra.mxu0 %v6009
        %6041 = vmatprep.subr.mxu0 0.0
        %6042 = vmatpush1.msra.mxu0 %v5997
        %6043 = vmatprep.subr.mxu0 0.0
        %6044 = vmatpush2.msra.mxu0 0.0
        %6045 = vmatprep.subr.mxu0 0.0
        %6046 = vmatpush2.msra.mxu0 0.0
        %6047 = vmatprep.subr.mxu0 0.0
        %6048 = vmatpush2.msra.mxu0 0.0
        %6049 = vmatprep.subr.mxu0 0.0
        %6050 = vmatpush2.msra.mxu0 0.0
        %6051 = vmatprep.subr.mxu0 0.0
        %6052 = vmatpush2.msra.mxu0 0.0
        %6053 = vmatprep.subr.mxu0 0.0
        %6054 = vmatpush2.msra.mxu0 0.0
        %6055 = vmatprep.subr.mxu0 0.0
        %6056 = vmatpush2.msra.mxu0 0.0
        %6057 = vmatprep.subr.mxu0 0.0
        %6058 = vmatpush2.msra.mxu0 0.0
        %6059 = vmatprep.subr.mxu0 0.0
        %6060 = vmatpush2.msra.mxu0 0.0
        %6061 = vmatprep.subr.mxu0 0.0
        %6062 = vmatpush2.msra.mxu0 0.0
        %6063 = vmatprep.subr.mxu0 0.0
        %6064 = vmatpush2.msra.mxu0 0.0
        %6065 = vmatprep.subr.mxu0 0.0
        %6066 = vmatpush2.msra.mxu0 0.0
        %6067 = vmatprep.subr.mxu0 0.0
        %6068 = vmatpush2.msra.mxu0 0.0
        %6069 = vmatprep.subr.mxu0 0.0
        %6070 = vmatpush2.msra.mxu0 0.0
        %6071 = vmatprep.subr.mxu0 0.0
        %6072 = vmatpush2.msra.mxu0 0.0
        %6073 = vmatprep.subr.mxu0 0.0
        %6074 = vmatpush2.msra.mxu0 0.0
        %6075 = vmatprep.mubr.f32.mxu0 0.0
        %6076 = vmatmul.mubr.f32.gmra.mxu0 %v6003
        %v6077 = vpop.f32.mrf.mxu0
        %v6078 = vadd.f32 0.0, %v6077
        %v6079 = vpop.f32.mrf.mxu0
        %6080 = vmatprep.mubr.f32.mxu0 0.0
        %6081 = vmatmul.mubr.f32.gmra.mxu0 %v6006
        %v6082 = vpop.f32.mrf.mxu0
        %v6083 = vadd.f32 0.0, %v6082
        %v6084 = vpop.f32.mrf.mxu0
        %6085 = vdwg.mxu0
        %v6086 = vadd.f32 %v5989, %v6078
        %v6087 = vadd.f32 %v5990, %v6083
        %s6088 = scalar_lea.vmem [#allocation12], 64
        %v6089 = vld [vmem:[%s6088] sm:$0xff]
        %v6090 = vld [vmem:[%s6088 + $0x8] sm:$0x3]
        %6091 = vrot.lane.b32.xlu0 %v5711, 123
        %v6092 = vpop.permute.xlu0 %6091
        %6093 = vrot.lane.b32.xlu0 %v5712, 123
        %v6094 = vpop.permute.xlu0 %6093
        %v6097 = vsel %vm1970, %v6089, 0
        %v6100 = vsel %vm1970, %v6090, 0
        %v6102 = vsel %vm1977, %v6094, 0
        %6104 = vmatprep.subr.mxu0 0.0
        %6105 = vmatpush1.msra.mxu0 0.0
        %6106 = vmatprep.subr.mxu0 0.0
        %6107 = vmatpush1.msra.mxu0 0.0
        %6108 = vmatprep.subr.mxu0 0.0
        %6109 = vmatpush1.msra.mxu0 0.0
        %6110 = vmatprep.subr.mxu0 0.0
        %6111 = vmatpush1.msra.mxu0 0.0
        %6112 = vmatprep.subr.mxu0 0.0
        %6113 = vmatpush1.msra.mxu0 0.0
        %6114 = vmatprep.subr.mxu0 0.0
        %6115 = vmatpush1.msra.mxu0 0.0
        %6116 = vmatprep.subr.mxu0 0.0
        %6117 = vmatpush1.msra.mxu0 0.0
        %6118 = vmatprep.subr.mxu0 0.0
        %6119 = vmatpush1.msra.mxu0 0.0
        %6120 = vmatprep.subr.mxu0 0.0
        %6121 = vmatpush1.msra.mxu0 0.0
        %6122 = vmatprep.subr.mxu0 0.0
        %6123 = vmatpush1.msra.mxu0 0.0
        %6124 = vmatprep.subr.mxu0 0.0
        %6125 = vmatpush1.msra.mxu0 0.0
        %6126 = vmatprep.subr.mxu0 0.0
        %6127 = vmatpush1.msra.mxu0 0.0
        %6128 = vmatprep.subr.mxu0 0.0
        %6129 = vmatpush1.msra.mxu0 0.0
        %6130 = vmatprep.subr.mxu0 0.0
        %6131 = vmatpush1.msra.mxu0 0.0
        %6132 = vmatprep.subr.mxu0 0.0
        %6133 = vmatpush1.msra.mxu0 %v6102
        %6134 = vmatprep.subr.mxu0 0.0
        %6135 = vmatpush1.msra.mxu0 %v6092
        %6136 = vmatprep.subr.mxu0 0.0
        %6137 = vmatpush2.msra.mxu0 0.0
        %6138 = vmatprep.subr.mxu0 0.0
        %6139 = vmatpush2.msra.mxu0 0.0
        %6140 = vmatprep.subr.mxu0 0.0
        %6141 = vmatpush2.msra.mxu0 0.0
        %6142 = vmatprep.subr.mxu0 0.0
        %6143 = vmatpush2.msra.mxu0 0.0
        %6144 = vmatprep.subr.mxu0 0.0
        %6145 = vmatpush2.msra.mxu0 0.0
        %6146 = vmatprep.subr.mxu0 0.0
        %6147 = vmatpush2.msra.mxu0 0.0
        %6148 = vmatprep.subr.mxu0 0.0
        %6149 = vmatpush2.msra.mxu0 0.0
        %6150 = vmatprep.subr.mxu0 0.0
        %6151 = vmatpush2.msra.mxu0 0.0
        %6152 = vmatprep.subr.mxu0 0.0
        %6153 = vmatpush2.msra.mxu0 0.0
        %6154 = vmatprep.subr.mxu0 0.0
        %6155 = vmatpush2.msra.mxu0 0.0
        %6156 = vmatprep.subr.mxu0 0.0
        %6157 = vmatpush2.msra.mxu0 0.0
        %6158 = vmatprep.subr.mxu0 0.0
        %6159 = vmatpush2.msra.mxu0 0.0
        %6160 = vmatprep.subr.mxu0 0.0
        %6161 = vmatpush2.msra.mxu0 0.0
        %6162 = vmatprep.subr.mxu0 0.0
        %6163 = vmatpush2.msra.mxu0 0.0
        %6164 = vmatprep.subr.mxu0 0.0
        %6165 = vmatpush2.msra.mxu0 0.0
        %6166 = vmatprep.subr.mxu0 0.0
        %6167 = vmatpush2.msra.mxu0 0.0
        %6168 = vmatprep.mubr.f32.mxu0 0.0
        %6169 = vmatmul.mubr.f32.gmra.mxu0 %v6097
        %v6170 = vpop.f32.mrf.mxu0
        %v6171 = vadd.f32 0.0, %v6170
        %v6172 = vpop.f32.mrf.mxu0
        %6173 = vmatprep.mubr.f32.mxu0 0.0
        %6174 = vmatmul.mubr.f32.gmra.mxu0 %v6100
        %v6175 = vpop.f32.mrf.mxu0
        %v6176 = vadd.f32 0.0, %v6175
        %v6177 = vpop.f32.mrf.mxu0
        %6178 = vdwg.mxu0
        %v6179 = vadd.f32 %v6086, %v6171
        %v6180 = vadd.f32 %v6087, %v6176
        %6181 = vrot.lane.b32.xlu0 %v5711, 122
        %v6182 = vpop.permute.xlu0 %6181
        %6183 = vrot.lane.b32.xlu0 %v5712, 122
        %v6184 = vpop.permute.xlu0 %6183
        %v6187 = vsel %vm4149, %v6182, 0.0
        %v6188 = vsel %vm4149, %v6184, 0.0
        %s6189 = scalar_lea.vmem [#allocation12], 80
        %v6190 = vld [vmem:[%s6189] sm:$0xff]
        %v6191 = vld [vmem:[%s6189 + $0x8] sm:$0x3]
        %v6193 = vsel %vm1970, %v6190, 0
        %v6196 = vsel %vm1970, %v6191, 0
        %v6199 = vsel %vm1977, %v6188, 0
        %6201 = vmatprep.subr.mxu0 0.0
        %6202 = vmatpush1.msra.mxu0 0.0
        %6203 = vmatprep.subr.mxu0 0.0
        %6204 = vmatpush1.msra.mxu0 0.0
        %6205 = vmatprep.subr.mxu0 0.0
        %6206 = vmatpush1.msra.mxu0 0.0
        %6207 = vmatprep.subr.mxu0 0.0
        %6208 = vmatpush1.msra.mxu0 0.0
        %6209 = vmatprep.subr.mxu0 0.0
        %6210 = vmatpush1.msra.mxu0 0.0
        %6211 = vmatprep.subr.mxu0 0.0
        %6212 = vmatpush1.msra.mxu0 0.0
        %6213 = vmatprep.subr.mxu0 0.0
        %6214 = vmatpush1.msra.mxu0 0.0
        %6215 = vmatprep.subr.mxu0 0.0
        %6216 = vmatpush1.msra.mxu0 0.0
        %6217 = vmatprep.subr.mxu0 0.0
        %6218 = vmatpush1.msra.mxu0 0.0
        %6219 = vmatprep.subr.mxu0 0.0
        %6220 = vmatpush1.msra.mxu0 0.0
        %6221 = vmatprep.subr.mxu0 0.0
        %6222 = vmatpush1.msra.mxu0 0.0
        %6223 = vmatprep.subr.mxu0 0.0
        %6224 = vmatpush1.msra.mxu0 0.0
        %6225 = vmatprep.subr.mxu0 0.0
        %6226 = vmatpush1.msra.mxu0 0.0
        %6227 = vmatprep.subr.mxu0 0.0
        %6228 = vmatpush1.msra.mxu0 0.0
        %6229 = vmatprep.subr.mxu0 0.0
        %6230 = vmatpush1.msra.mxu0 %v6199
        %6231 = vmatprep.subr.mxu0 0.0
        %6232 = vmatpush1.msra.mxu0 %v6187
        %6233 = vmatprep.subr.mxu0 0.0
        %6234 = vmatpush2.msra.mxu0 0.0
        %6235 = vmatprep.subr.mxu0 0.0
        %6236 = vmatpush2.msra.mxu0 0.0
        %6237 = vmatprep.subr.mxu0 0.0
        %6238 = vmatpush2.msra.mxu0 0.0
        %6239 = vmatprep.subr.mxu0 0.0
        %6240 = vmatpush2.msra.mxu0 0.0
        %6241 = vmatprep.subr.mxu0 0.0
        %6242 = vmatpush2.msra.mxu0 0.0
        %6243 = vmatprep.subr.mxu0 0.0
        %6244 = vmatpush2.msra.mxu0 0.0
        %6245 = vmatprep.subr.mxu0 0.0
        %6246 = vmatpush2.msra.mxu0 0.0
        %6247 = vmatprep.subr.mxu0 0.0
        %6248 = vmatpush2.msra.mxu0 0.0
        %6249 = vmatprep.subr.mxu0 0.0
        %6250 = vmatpush2.msra.mxu0 0.0
        %6251 = vmatprep.subr.mxu0 0.0
        %6252 = vmatpush2.msra.mxu0 0.0
        %6253 = vmatprep.subr.mxu0 0.0
        %6254 = vmatpush2.msra.mxu0 0.0
        %6255 = vmatprep.subr.mxu0 0.0
        %6256 = vmatpush2.msra.mxu0 0.0
        %6257 = vmatprep.subr.mxu0 0.0
        %6258 = vmatpush2.msra.mxu0 0.0
        %6259 = vmatprep.subr.mxu0 0.0
        %6260 = vmatpush2.msra.mxu0 0.0
        %6261 = vmatprep.subr.mxu0 0.0
        %6262 = vmatpush2.msra.mxu0 0.0
        %6263 = vmatprep.subr.mxu0 0.0
        %6264 = vmatpush2.msra.mxu0 0.0
        %6265 = vmatprep.mubr.f32.mxu0 0.0
        %6266 = vmatmul.mubr.f32.gmra.mxu0 %v6193
        %v6267 = vpop.f32.mrf.mxu0
        %v6268 = vadd.f32 0.0, %v6267
        %v6269 = vpop.f32.mrf.mxu0
        %6270 = vmatprep.mubr.f32.mxu0 0.0
        %6271 = vmatmul.mubr.f32.gmra.mxu0 %v6196
        %v6272 = vpop.f32.mrf.mxu0
        %v6273 = vadd.f32 0.0, %v6272
        %v6274 = vpop.f32.mrf.mxu0
        %6275 = vdwg.mxu0
        %v6276 = vadd.f32 %v6179, %v6268
        %v6277 = vadd.f32 %v6180, %v6273
        %6278 = vrot.lane.b32.xlu0 %v5711, 120
        %v6279 = vpop.permute.xlu0 %6278
        %6280 = vrot.lane.b32.xlu0 %v5712, 120
        %v6281 = vpop.permute.xlu0 %6280
        %v6284 = vsel %vm3965, %v6279, 0.0
        %v6285 = vsel %vm3965, %v6281, 0.0
        %s6286 = scalar_lea.vmem [#allocation12], 96
        %v6287 = vld [vmem:[%s6286] sm:$0xff]
        %v6288 = vld [vmem:[%s6286 + $0x8] sm:$0x3]
        %v6290 = vsel %vm1970, %v6287, 0
        %v6293 = vsel %vm1970, %v6288, 0
        %v6296 = vsel %vm1977, %v6285, 0
        %6298 = vmatprep.subr.mxu0 0.0
        %6299 = vmatpush1.msra.mxu0 0.0
        %6300 = vmatprep.subr.mxu0 0.0
        %6301 = vmatpush1.msra.mxu0 0.0
        %6302 = vmatprep.subr.mxu0 0.0
        %6303 = vmatpush1.msra.mxu0 0.0
        %6304 = vmatprep.subr.mxu0 0.0
        %6305 = vmatpush1.msra.mxu0 0.0
        %6306 = vmatprep.subr.mxu0 0.0
        %6307 = vmatpush1.msra.mxu0 0.0
        %6308 = vmatprep.subr.mxu0 0.0
        %6309 = vmatpush1.msra.mxu0 0.0
        %6310 = vmatprep.subr.mxu0 0.0
        %6311 = vmatpush1.msra.mxu0 0.0
        %6312 = vmatprep.subr.mxu0 0.0
        %6313 = vmatpush1.msra.mxu0 0.0
        %6314 = vmatprep.subr.mxu0 0.0
        %6315 = vmatpush1.msra.mxu0 0.0
        %6316 = vmatprep.subr.mxu0 0.0
        %6317 = vmatpush1.msra.mxu0 0.0
        %6318 = vmatprep.subr.mxu0 0.0
        %6319 = vmatpush1.msra.mxu0 0.0
        %6320 = vmatprep.subr.mxu0 0.0
        %6321 = vmatpush1.msra.mxu0 0.0
        %6322 = vmatprep.subr.mxu0 0.0
        %6323 = vmatpush1.msra.mxu0 0.0
        %6324 = vmatprep.subr.mxu0 0.0
        %6325 = vmatpush1.msra.mxu0 0.0
        %6326 = vmatprep.subr.mxu0 0.0
        %6327 = vmatpush1.msra.mxu0 %v6296
        %6328 = vmatprep.subr.mxu0 0.0
        %6329 = vmatpush1.msra.mxu0 %v6284
        %6330 = vmatprep.subr.mxu0 0.0
        %6331 = vmatpush2.msra.mxu0 0.0
        %6332 = vmatprep.subr.mxu0 0.0
        %6333 = vmatpush2.msra.mxu0 0.0
        %6334 = vmatprep.subr.mxu0 0.0
        %6335 = vmatpush2.msra.mxu0 0.0
        %6336 = vmatprep.subr.mxu0 0.0
        %6337 = vmatpush2.msra.mxu0 0.0
        %6338 = vmatprep.subr.mxu0 0.0
        %6339 = vmatpush2.msra.mxu0 0.0
        %6340 = vmatprep.subr.mxu0 0.0
        %6341 = vmatpush2.msra.mxu0 0.0
        %6342 = vmatprep.subr.mxu0 0.0
        %6343 = vmatpush2.msra.mxu0 0.0
        %6344 = vmatprep.subr.mxu0 0.0
        %6345 = vmatpush2.msra.mxu0 0.0
        %6346 = vmatprep.subr.mxu0 0.0
        %6347 = vmatpush2.msra.mxu0 0.0
        %6348 = vmatprep.subr.mxu0 0.0
        %6349 = vmatpush2.msra.mxu0 0.0
        %6350 = vmatprep.subr.mxu0 0.0
        %6351 = vmatpush2.msra.mxu0 0.0
        %6352 = vmatprep.subr.mxu0 0.0
        %6353 = vmatpush2.msra.mxu0 0.0
        %6354 = vmatprep.subr.mxu0 0.0
        %6355 = vmatpush2.msra.mxu0 0.0
        %6356 = vmatprep.subr.mxu0 0.0
        %6357 = vmatpush2.msra.mxu0 0.0
        %6358 = vmatprep.subr.mxu0 0.0
        %6359 = vmatpush2.msra.mxu0 0.0
        %6360 = vmatprep.subr.mxu0 0.0
        %6361 = vmatpush2.msra.mxu0 0.0
        %6362 = vmatprep.mubr.f32.mxu0 0.0
        %6363 = vmatmul.mubr.f32.gmra.mxu0 %v6290
        %v6364 = vpop.f32.mrf.mxu0
        %v6365 = vadd.f32 0.0, %v6364
        %v6366 = vpop.f32.mrf.mxu0
        %6367 = vmatprep.mubr.f32.mxu0 0.0
        %6368 = vmatmul.mubr.f32.gmra.mxu0 %v6293
        %v6369 = vpop.f32.mrf.mxu0
        %v6370 = vadd.f32 0.0, %v6369
        %v6371 = vpop.f32.mrf.mxu0
        %6372 = vdwg.mxu0
        %v6373 = vadd.f32 %v6276, %v6365
        %v6374 = vadd.f32 %v6277, %v6370
        %s6375 = scalar_lea.vmem [#allocation12], 112
        %v6376 = vld [vmem:[%s6375] sm:$0xff]
        %v6377 = vld [vmem:[%s6375 + $0x8] sm:$0x3]
        %6378 = vrot.lane.b32.xlu0 %v5711, 119
        %v6379 = vpop.permute.xlu0 %6378
        %6380 = vrot.lane.b32.xlu0 %v5712, 119
        %v6381 = vpop.permute.xlu0 %6380
        %v6384 = vsel %vm1970, %v6376, 0
        %v6387 = vsel %vm1970, %v6377, 0
        %v6389 = vsel %vm1977, %v6381, 0
        %6391 = vmatprep.subr.mxu0 0.0
        %6392 = vmatpush1.msra.mxu0 0.0
        %6393 = vmatprep.subr.mxu0 0.0
        %6394 = vmatpush1.msra.mxu0 0.0
        %6395 = vmatprep.subr.mxu0 0.0
        %6396 = vmatpush1.msra.mxu0 0.0
        %6397 = vmatprep.subr.mxu0 0.0
        %6398 = vmatpush1.msra.mxu0 0.0
        %6399 = vmatprep.subr.mxu0 0.0
        %6400 = vmatpush1.msra.mxu0 0.0
        %6401 = vmatprep.subr.mxu0 0.0
        %6402 = vmatpush1.msra.mxu0 0.0
        %6403 = vmatprep.subr.mxu0 0.0
        %6404 = vmatpush1.msra.mxu0 0.0
        %6405 = vmatprep.subr.mxu0 0.0
        %6406 = vmatpush1.msra.mxu0 0.0
        %6407 = vmatprep.subr.mxu0 0.0
        %6408 = vmatpush1.msra.mxu0 0.0
        %6409 = vmatprep.subr.mxu0 0.0
        %6410 = vmatpush1.msra.mxu0 0.0
        %6411 = vmatprep.subr.mxu0 0.0
        %6412 = vmatpush1.msra.mxu0 0.0
        %6413 = vmatprep.subr.mxu0 0.0
        %6414 = vmatpush1.msra.mxu0 0.0
        %6415 = vmatprep.subr.mxu0 0.0
        %6416 = vmatpush1.msra.mxu0 0.0
        %6417 = vmatprep.subr.mxu0 0.0
        %6418 = vmatpush1.msra.mxu0 0.0
        %6419 = vmatprep.subr.mxu0 0.0
        %6420 = vmatpush1.msra.mxu0 %v6389
        %6421 = vmatprep.subr.mxu0 0.0
        %6422 = vmatpush1.msra.mxu0 %v6379
        %6423 = vmatprep.subr.mxu0 0.0
        %6424 = vmatpush2.msra.mxu0 0.0
        %6425 = vmatprep.subr.mxu0 0.0
        %6426 = vmatpush2.msra.mxu0 0.0
        %6427 = vmatprep.subr.mxu0 0.0
        %6428 = vmatpush2.msra.mxu0 0.0
        %6429 = vmatprep.subr.mxu0 0.0
        %6430 = vmatpush2.msra.mxu0 0.0
        %6431 = vmatprep.subr.mxu0 0.0
        %6432 = vmatpush2.msra.mxu0 0.0
        %6433 = vmatprep.subr.mxu0 0.0
        %6434 = vmatpush2.msra.mxu0 0.0
        %6435 = vmatprep.subr.mxu0 0.0
        %6436 = vmatpush2.msra.mxu0 0.0
        %6437 = vmatprep.subr.mxu0 0.0
        %6438 = vmatpush2.msra.mxu0 0.0
        %6439 = vmatprep.subr.mxu0 0.0
        %6440 = vmatpush2.msra.mxu0 0.0
        %6441 = vmatprep.subr.mxu0 0.0
        %6442 = vmatpush2.msra.mxu0 0.0
        %6443 = vmatprep.subr.mxu0 0.0
        %6444 = vmatpush2.msra.mxu0 0.0
        %6445 = vmatprep.subr.mxu0 0.0
        %6446 = vmatpush2.msra.mxu0 0.0
        %6447 = vmatprep.subr.mxu0 0.0
        %6448 = vmatpush2.msra.mxu0 0.0
        %6449 = vmatprep.subr.mxu0 0.0
        %6450 = vmatpush2.msra.mxu0 0.0
        %6451 = vmatprep.subr.mxu0 0.0
        %6452 = vmatpush2.msra.mxu0 0.0
        %6453 = vmatprep.subr.mxu0 0.0
        %6454 = vmatpush2.msra.mxu0 0.0
        %6455 = vmatprep.mubr.f32.mxu0 0.0
        %6456 = vmatmul.mubr.f32.gmra.mxu0 %v6384
        %v6457 = vpop.f32.mrf.mxu0
        %v6458 = vadd.f32 0.0, %v6457
        %v6459 = vpop.f32.mrf.mxu0
        %6460 = vmatprep.mubr.f32.mxu0 0.0
        %6461 = vmatmul.mubr.f32.gmra.mxu0 %v6387
        %v6462 = vpop.f32.mrf.mxu0
        %v6463 = vadd.f32 0.0, %v6462
        %v6464 = vpop.f32.mrf.mxu0
        %6465 = vdwg.mxu0
        %v6466 = vadd.f32 %v6373, %v6458
        %v6467 = vadd.f32 %v6374, %v6463
        %6468 = vrot.lane.b32.xlu0 %v5711, 118
        %v6469 = vpop.permute.xlu0 %6468
        %6470 = vrot.lane.b32.xlu0 %v5712, 118
        %v6471 = vpop.permute.xlu0 %6470
        %v6474 = vsel %vm4149, %v6469, 0.0
        %v6475 = vsel %vm4149, %v6471, 0.0
        %s6476 = scalar_lea.vmem [#allocation12], 128
        %v6477 = vld [vmem:[%s6476] sm:$0xff]
        %v6478 = vld [vmem:[%s6476 + $0x8] sm:$0x3]
        %v6480 = vsel %vm1970, %v6477, 0
        %v6483 = vsel %vm1970, %v6478, 0
        %v6486 = vsel %vm1977, %v6475, 0
        %6488 = vmatprep.subr.mxu0 0.0
        %6489 = vmatpush1.msra.mxu0 0.0
        %6490 = vmatprep.subr.mxu0 0.0
        %6491 = vmatpush1.msra.mxu0 0.0
        %6492 = vmatprep.subr.mxu0 0.0
        %6493 = vmatpush1.msra.mxu0 0.0
        %6494 = vmatprep.subr.mxu0 0.0
        %6495 = vmatpush1.msra.mxu0 0.0
        %6496 = vmatprep.subr.mxu0 0.0
        %6497 = vmatpush1.msra.mxu0 0.0
        %6498 = vmatprep.subr.mxu0 0.0
        %6499 = vmatpush1.msra.mxu0 0.0
        %6500 = vmatprep.subr.mxu0 0.0
        %6501 = vmatpush1.msra.mxu0 0.0
        %6502 = vmatprep.subr.mxu0 0.0
        %6503 = vmatpush1.msra.mxu0 0.0
        %6504 = vmatprep.subr.mxu0 0.0
        %6505 = vmatpush1.msra.mxu0 0.0
        %6506 = vmatprep.subr.mxu0 0.0
        %6507 = vmatpush1.msra.mxu0 0.0
        %6508 = vmatprep.subr.mxu0 0.0
        %6509 = vmatpush1.msra.mxu0 0.0
        %6510 = vmatprep.subr.mxu0 0.0
        %6511 = vmatpush1.msra.mxu0 0.0
        %6512 = vmatprep.subr.mxu0 0.0
        %6513 = vmatpush1.msra.mxu0 0.0
        %6514 = vmatprep.subr.mxu0 0.0
        %6515 = vmatpush1.msra.mxu0 0.0
        %6516 = vmatprep.subr.mxu0 0.0
        %6517 = vmatpush1.msra.mxu0 %v6486
        %6518 = vmatprep.subr.mxu0 0.0
        %6519 = vmatpush1.msra.mxu0 %v6474
        %6520 = vmatprep.subr.mxu0 0.0
        %6521 = vmatpush2.msra.mxu0 0.0
        %6522 = vmatprep.subr.mxu0 0.0
        %6523 = vmatpush2.msra.mxu0 0.0
        %6524 = vmatprep.subr.mxu0 0.0
        %6525 = vmatpush2.msra.mxu0 0.0
        %6526 = vmatprep.subr.mxu0 0.0
        %6527 = vmatpush2.msra.mxu0 0.0
        %6528 = vmatprep.subr.mxu0 0.0
        %6529 = vmatpush2.msra.mxu0 0.0
        %6530 = vmatprep.subr.mxu0 0.0
        %6531 = vmatpush2.msra.mxu0 0.0
        %6532 = vmatprep.subr.mxu0 0.0
        %6533 = vmatpush2.msra.mxu0 0.0
        %6534 = vmatprep.subr.mxu0 0.0
        %6535 = vmatpush2.msra.mxu0 0.0
        %6536 = vmatprep.subr.mxu0 0.0
        %6537 = vmatpush2.msra.mxu0 0.0
        %6538 = vmatprep.subr.mxu0 0.0
        %6539 = vmatpush2.msra.mxu0 0.0
        %6540 = vmatprep.subr.mxu0 0.0
        %6541 = vmatpush2.msra.mxu0 0.0
        %6542 = vmatprep.subr.mxu0 0.0
        %6543 = vmatpush2.msra.mxu0 0.0
        %6544 = vmatprep.subr.mxu0 0.0
        %6545 = vmatpush2.msra.mxu0 0.0
        %6546 = vmatprep.subr.mxu0 0.0
        %6547 = vmatpush2.msra.mxu0 0.0
        %6548 = vmatprep.subr.mxu0 0.0
        %6549 = vmatpush2.msra.mxu0 0.0
        %6550 = vmatprep.subr.mxu0 0.0
        %6551 = vmatpush2.msra.mxu0 0.0
        %6552 = vmatprep.mubr.f32.mxu0 0.0
        %6553 = vmatmul.mubr.f32.gmra.mxu0 %v6480
        %v6554 = vpop.f32.mrf.mxu0
        %v6555 = vadd.f32 0.0, %v6554
        %v6556 = vpop.f32.mrf.mxu0
        %6557 = vmatprep.mubr.f32.mxu0 0.0
        %6558 = vmatmul.mubr.f32.gmra.mxu0 %v6483
        %v6559 = vpop.f32.mrf.mxu0
        %v6560 = vadd.f32 0.0, %v6559
        %v6561 = vpop.f32.mrf.mxu0
        %6562 = vdwg.mxu0
        %v6563 = vadd.f32 %v6466, %v6555
        %v6564 = vadd.f32 %v6467, %v6560
        %6565 = vst [vmem:[#allocation3] sm:$0xff] 0.0
        %6566 = vst [vmem:[#allocation3 + $0x8] sm:$0xff] 0.0
        %6567 = vst.msk [vmem:[#allocation3 + $0x10] sm:$0xff] %vm483, 0.0
        %6568 = vst [vmem:[#allocation3 + $0x18] sm:$0xf] 0.0
        %6569 = vst [vmem:[#allocation3 + $0x20] sm:$0xf] 0.0
        %6570 = vst.msk [vmem:[#allocation3 + $0x28] sm:$0xf] %vm487, 0.0
        %v6571 = vmax.f32 %v6563, 0.0
        %v6572 = vmax.f32 %v6564, 0.0
        %6575 = vrot.lane.b32.xlu0 %v6571, 5
        %v6576 = vpop.permute.xlu0 %6575
        %6577 = vrot.lane.b32.xlu0 %v6572, 5
        %v6578 = vpop.permute.xlu0 %6577
        %6581 = vst.msk [vmem:[#allocation3] sm:$0xff] %vm3833, %v6576
        %vm6582 = vcmask 164904
        %6583 = vst.msk [vmem:[#allocation3 + $0x18] sm:$0x3] %vm6582, %v6578
        %v6584 = vld [vmem:[#allocation3] sm:$0xff]
        %v6585 = vld [vmem:[#allocation3 + $0x18] sm:$0x3]
        %6588 = vrot.lane.b32.xlu0 %v6584, 123
        %v6589 = vpop.permute.xlu0 %6588
        %6590 = vrot.lane.b32.xlu0 %v6585, 123
        %v6591 = vpop.permute.xlu0 %6590
        %vm6592 = vcmask 130048
        %v6594 = vsel %vm6592, 0.0625, 0
        %v6596 = vsel %vm6592, %v6589, 0
        %v6598 = vsel %vm6592, %v6591, 0
        %6600 = vmatprep.subr.mxu0 0.0
        %6601 = vmatpush1.xpose.msra.mxu0 0.0
        %6602 = vmatprep.subr.mxu0 0.0
        %6603 = vmatpush1.xpose.msra.mxu0 0.0
        %6604 = vmatprep.subr.mxu0 0.0
        %6605 = vmatpush1.xpose.msra.mxu0 0.0
        %6606 = vmatprep.subr.mxu0 0.0
        %6607 = vmatpush1.xpose.msra.mxu0 0.0
        %6608 = vmatprep.subr.mxu0 0.0
        %6609 = vmatpush1.xpose.msra.mxu0 0.0
        %6610 = vmatprep.subr.mxu0 0.0
        %6611 = vmatpush1.xpose.msra.mxu0 0.0
        %6612 = vmatprep.subr.mxu0 0.0
        %6613 = vmatpush1.xpose.msra.mxu0 0.0
        %6614 = vmatprep.subr.mxu0 0.0
        %6615 = vmatpush1.xpose.msra.mxu0 0.0
        %6616 = vmatprep.subr.mxu0 0.0
        %6617 = vmatpush1.xpose.msra.mxu0 0.0
        %6618 = vmatprep.subr.mxu0 0.0
        %6619 = vmatpush1.xpose.msra.mxu0 0.0
        %6620 = vmatprep.subr.mxu0 0.0
        %6621 = vmatpush1.xpose.msra.mxu0 0.0
        %6622 = vmatprep.subr.mxu0 0.0
        %6623 = vmatpush1.xpose.msra.mxu0 0.0
        %6624 = vmatprep.subr.mxu0 0.0
        %6625 = vmatpush1.xpose.msra.mxu0 0.0
        %6626 = vmatprep.subr.mxu0 0.0
        %6627 = vmatpush1.xpose.msra.mxu0 0.0
        %6628 = vmatprep.subr.mxu0 0.0
        %6629 = vmatpush1.xpose.msra.mxu0 %v6598
        %6630 = vmatprep.subr.mxu0 0.0
        %6631 = vmatpush1.xpose.msra.mxu0 %v6596
        %6632 = vmatprep.subr.mxu0 0.0
        %6633 = vmatpush2.xpose.msra.mxu0 0.0
        %6634 = vmatprep.subr.mxu0 0.0
        %6635 = vmatpush2.xpose.msra.mxu0 0.0
        %6636 = vmatprep.subr.mxu0 0.0
        %6637 = vmatpush2.xpose.msra.mxu0 0.0
        %6638 = vmatprep.subr.mxu0 0.0
        %6639 = vmatpush2.xpose.msra.mxu0 0.0
        %6640 = vmatprep.subr.mxu0 0.0
        %6641 = vmatpush2.xpose.msra.mxu0 0.0
        %6642 = vmatprep.subr.mxu0 0.0
        %6643 = vmatpush2.xpose.msra.mxu0 0.0
        %6644 = vmatprep.subr.mxu0 0.0
        %6645 = vmatpush2.xpose.msra.mxu0 0.0
        %6646 = vmatprep.subr.mxu0 0.0
        %6647 = vmatpush2.xpose.msra.mxu0 0.0
        %6648 = vmatprep.subr.mxu0 0.0
        %6649 = vmatpush2.xpose.msra.mxu0 0.0
        %6650 = vmatprep.subr.mxu0 0.0
        %6651 = vmatpush2.xpose.msra.mxu0 0.0
        %6652 = vmatprep.subr.mxu0 0.0
        %6653 = vmatpush2.xpose.msra.mxu0 0.0
        %6654 = vmatprep.subr.mxu0 0.0
        %6655 = vmatpush2.xpose.msra.mxu0 0.0
        %6656 = vmatprep.subr.mxu0 0.0
        %6657 = vmatpush2.xpose.msra.mxu0 0.0
        %6658 = vmatprep.subr.mxu0 0.0
        %6659 = vmatpush2.xpose.msra.mxu0 0.0
        %6660 = vmatprep.subr.mxu0 0.0
        %6661 = vmatpush2.xpose.msra.mxu0 0.0
        %6662 = vmatprep.subr.mxu0 0.0
        %6663 = vmatpush2.xpose.msra.mxu0 0.0
        %6664 = vmatprep.mubr.f32.mxu0 0.0
        %6665 = vmatmul.mubr.f32.gmra.mxu0 %v6594
        %v6666 = vpop.f32.mrf.mxu0
        %v6667 = vadd.f32 0.0, %v6666
        %v6668 = vpop.f32.mrf.mxu0
        %6669 = vdwg.mxu0
        %vm6670 = vcmask 73728
        %v6671 = vsel %vm6670, %v6667, -inf
        %6672 = vmax.xlane.f32.xlu0 %v6671
        %v6673 = vpop.xlane.xlu0 %6672
        %v6674 = vsub.f32 %v6667, %v6673
        %v6675 = vmul.f32 %v6674, 1.442695
        %v6676 = vpow.pop %v6675
        %v6677 = vsel %vm6670, %v6676, 0.0
        %6678 = vadd.xlane.f32.xlu0 %v6677
        %v6679 = vpop.xlane.xlu0 %6678
        %v6680 = vlog2.pop %v6679
        %v6681 = vmul.f32 %v6680, 0.6931472
        %v6682 = vsub.f32 %v6674, %v6681
        %6683 = vst.msk [vmem:[%s476] sm:$0x1] %vm6670, %v6682
        %s6684 = sand.u32 %s294, 1
        %s6685 = scalar_lea.sflag [#allocation6], %s6684
        %s6686 = sand.u32 %s294, 1
        %s6687 = scalar_lea.vmem [#allocation13], %s6686
        // Predicated region
        $region89: #{forward.1} parent=67 // pred_check
          %p6688 = pneg %p304
        $region90: #{forward.1} parent=67 // pred_check_branch
          %6690 = sbr.rel (%p6688) target = $region92
        $region91: #{forward.1} parent=67 // pred_region
          %s6692 = ssub.s32 16, 16
          %6693 = vsyncadd %s6685, %s6692
          %s6694 = smul.addr %s29, 16
          %s6695 = scalar_lea.hbm %s12, %s6694
          %s6697 = sshll.u32 %s6687, 4
          %s6698 = int_to_ptr.vmem [resolvable:$true] %s6697
          %6700 = dma.vmem_to_hbm [thread:$0]  %s6698, 16, %s6695, %s6685
        $region92: #{forward.1} parent=67 // pred_fallthru
          _
      $region68: #{forward.1} parent=5 // pred_fallthru
        _
      %p6701 = scmp.le.s32.totalorder 2, %s24
      // Predicated region
      $region93: #{forward.1} parent=5 // pred_check
        %p6702 = pneg %p6701
      $region94: #{forward.1} parent=5 // pred_check_branch
        %6704 = sbr.rel (%p6702) target = $region96
      $region95: #{forward.1} parent=5 // pred_region
        %s6705 = ssub.s32 %s24, 2
        // Predicated region
        $region97: #{forward.1} parent=95 // pred_check
          %p6706 = pneg %p310
        $region98: #{forward.1} parent=95 // pred_check_branch
          %6708 = sbr.rel (%p6706) target = $region100
        $region99: #{forward.1} parent=95 // pred_region
          %s6709 = sand.u32 %s295, 1
          %s6710 = scalar_lea.sflag [#allocation6], %s6709
          %s6711 = sand.u32 %s295, 1
          %s6712 = scalar_lea.vmem [#allocation13], %s6711
          %6713 = dma.done %s6710, 16
        $region100: #{forward.1} parent=95 // pred_fallthru
          _
      $region96: #{forward.1} parent=5 // pred_fallthru
        _
    $region6: #{forward.1} parent=1 // loop_footer
      %s28 = sadd.s32 1, %s24
    $region7: #{forward.1} parent=1 // loop_footer_branch
      %23 = sbr.rel target = $region3
    $region8: #{forward.1} parent=1 // loop_exit
      _
    %6714 = vsyncpa [#allocation5], 1
    %s6715 = scalar_lea.sflag [#allocation5], 1
    %6716 = vsyncpa %s6715, 1
    %6717 = vsyncpa [#allocation8], 1
    %6718 = vsyncpa [#allocation11], 1
    %6719 = vsyncpa [#allocation6], 1
    %s6720 = scalar_lea.sflag [#allocation6], 1
    %6721 = vsyncpa %s6720, 1

</llo_original>
